<compile_context>
chip_gen: v6e
topology: v6e:2x2x1
jax: 0.10.0
libtpu: 0.0.40
codegen_flags: <defaults>
</compile_context>

<pallas_src>
import functools

import jax
import jax.numpy as jnp
from jax.experimental import pallas as pl
from jax.experimental.pallas import tpu as pltpu


def _pick_strip_rows(H, N):
    """Output rows computed per grid step.

    Larger strips amortize the 2-row conv1 halo recompute and the per-step
    overhead while keeping the f32 strip accumulator inside VMEM.  Prefer the
    largest divisor of H <= 32; when the batch alone cannot feed both v7x
    TensorCores, keep at least 2 strips.
    """
    divisors = [d for d in range(1, H + 1) if H % d == 0]
    cands = [d for d in divisors if d <= 32]
    hr = max(cands)
    if N < 2 and hr == H and len(cands) > 1:
        hr = max(d for d in cands if d < H)
    # TODO(synk): for prime H > 32 this degrades to 1-row strips; a masked
    # remainder strip would be better.
    return hr


def _pack_weights(w_oihw, scale, cin_p, cout_p):
    """OIHW conv weight -> (kw, kh*Cin_p + ci, co_p) bf16 with BN scale folded.

    The kh axis is folded into the contraction axis so the kernel can use
    K = 3*Cin matmuls; the leading axis selects the column tap kw.
    """
    w = jnp.transpose(w_oihw, (2, 3, 1, 0))            # (kh, kw, ci, co)
    w = w * scale[None, None, None, :]                 # fold BN scale into co
    w = jnp.pad(w, ((0, 0), (0, 0),
                    (0, cin_p - w.shape[2]), (0, cout_p - w.shape[3])))
    w = jnp.transpose(w, (1, 0, 2, 3))                 # (kw, kh, ci_p, co_p)
    return w.reshape(3, 3 * cin_p, cout_p).astype(jnp.bfloat16)


def _basic_block_kernel(Wp, HR,
                        x_ref, w1_ref, w2_ref, b1_ref, b2_ref, m_ref,
                        o_ref, acc_ref, mid_ref):
    # x_ref  : (1, (H+4)*Wp, Cp) bf16 -- zero-padded image, rows flattened
    # w*_ref : (3, 3*Cp, Pp)     bf16 -- [kw] x [kh*Cp + ci] x [co], BN folded
    # b*_ref : (1, Pp)           f32  -- folded BN bias
    # m_ref  : (MM, 1)           f32  -- 1.0 on real columns, 0.0 on padding
    # o_ref  : (1, HR*Wp, Pp)    bf16 -- one lane-dense output row strip
    # acc_ref: (MM, Pp)          f32  -- conv accumulator scratch
    # mid_ref: (MM, Pp)          bf16 -- relu(bn1(conv1)) strip (+1 halo row
    #                                    each side) consumed by conv2
    s = pl.program_id(1)
    n_s = pl.num_programs(1)
    Pp = o_ref.shape[2]
    M2 = HR * Wp                 # rows of one output strip
    MM = (HR + 2) * Wp           # rows incl. the 1-row halo needed by conv2
    row0 = s * HR

    def conv3x3(op, w_ref, n_rows):
        # op: (n_rows, 3*Cin) bf16, kh folded into the contraction axis.
        # w_ref[kw] multiplies the input at column c-1+kw; the matmul result
        # computed at flattened position i therefore belongs to output
        # position i+1-kw, realized with one f32 roll (XLU slot) for kw=0 and
        # kw=2.  Roll wrap / row-crossing contributions only ever touch
        # zero-padded or masked columns (Wp >= W+1).
        acc_ref[0:n_rows, :] = jnp.dot(
            op, w_ref[1], preferred_element_type=jnp.float32)
        left = jnp.dot(op, w_ref[0], preferred_element_type=jnp.float32)
        acc_ref[0:n_rows, :] += pltpu.roll(left, 1, axis=0)
        right = jnp.dot(op, w_ref[2], preferred_element_type=jnp.float32)
        acc_ref[0:n_rows, :] += pltpu.roll(right, n_rows - 1, axis=0)

    # ---------------- conv1 + bn1 over HR+2 rows (1-row halo each side) -----
    starts = [pl.multiple_of((row0 + kh) * Wp, Wp) for kh in range(3)]
    op1 = jnp.concatenate(
        [x_ref[0, pl.ds(st, MM), :] for st in starts], axis=1)   # (MM, 3*Cp)
    conv3x3(op1, w1_ref, MM)

    # Bias + relu + width mask, single cast to the bf16 conv2 operand.
    y = jnp.maximum(acc_ref[...] + b1_ref[...], 0.0) * m_ref[...]
    mid_ref[...] = y.astype(mid_ref.dtype)

    @pl.when(s == 0)             # halo row above the image must read as zero
    def _():
        mid_ref[0:Wp, :] = jnp.zeros((Wp, Pp), mid_ref.dtype)

    @pl.when(s == n_s - 1)       # halo row below the image
    def _():
        mid_ref[MM - Wp:MM, :] = jnp.zeros((Wp, Pp), mid_ref.dtype)

    # ---------------- conv2 + bn2 over HR rows ------------------------------
    op2 = jnp.concatenate(
        [mid_ref[kh * Wp:kh * Wp + M2, :] for kh in range(3)], axis=1)
    conv3x3(op2, w2_ref, M2)

    # ---------------- bias + residual add + relu, bf16 lane-dense store -----
    # NOTE: identity is taken from the bf16-cast input (small systematic
    # precision loss in the residual path vs a fp32 identity add).
    si = pl.multiple_of((row0 + 2) * Wp, Wp)
    ident = x_ref[0, pl.ds(si, M2), :].astype(jnp.float32)
    o_ref[0] = jnp.maximum(acc_ref[0:M2, :] + b2_ref[...] + ident,
                           0.0).astype(o_ref.dtype)


def basic_block_forward(x_nchw, w1_oihw, w2_oihw,
                        gamma1, beta1, mean1, var1,
                        gamma2, beta2, mean2, var2, eps=1e-5):
    """BasicBlock forward (stride=1, downsample=None). NCHW in / NCHW out."""
    N, C, H, W = x_nchw.shape
    P = w1_oihw.shape[0]
    assert C == P, "stride=1, downsample=None requires inplanes == planes"

    Cp = Pp = 128 * pl.cdiv(max(C, P), 128)   # lane-dense channels
    # Width padded to a multiple of 16 (>= W+1): keeps every bf16 (16,128)
    # tile / row offset aligned while wasting fewer columns than a pow2 pad.
    Wp = 16 * pl.cdiv(W + 1, 16)
    HR = _pick_strip_rows(H, N)
    S = H // HR
    MM = (HR + 2) * Wp
    M2 = HR * Wp

    # Fold eval-mode BatchNorm: scale -> conv weights, shift -> bias.
    inv1 = gamma1 / jnp.sqrt(var1 + eps)
    inv2 = gamma2 / jnp.sqrt(var2 + eps)
    b1 = jnp.pad(beta1 - mean1 * inv1, (0, Pp - P)).reshape(1, Pp)
    b1 = b1.astype(jnp.float32)
    b2 = jnp.pad(beta2 - mean2 * inv2, (0, Pp - P)).reshape(1, Pp)
    b2 = b2.astype(jnp.float32)
    w1 = _pack_weights(w1_oihw, inv1, Cp, Pp)
    w2 = _pack_weights(w2_oihw, inv2, Pp, Pp)

    # NCHW -> NHWC; pad 2 halo rows top/bottom, width -> Wp (right, zeros),
    # channels -> Cp; bf16; flatten (row, col) into one sublane-major axis.
    x_nhwc = jnp.transpose(x_nchw, (0, 2, 3, 1))
    x_pad = jnp.pad(x_nhwc, ((0, 0), (2, 2), (0, Wp - W), (0, Cp - C)))
    x_flat = x_pad.astype(jnp.bfloat16).reshape(N, (H + 4) * Wp, Cp)

    # Column mask (grid-invariant tiny input): zeroes the conv1 output's
    # padding columns so they cannot contaminate conv2 via the +-1 col taps.
    mask = (jnp.arange(MM) % Wp < W).astype(jnp.float32).reshape(MM, 1)

    # Per-step VMEM estimate (double-buffered I/O blocks + scratch + the
    # lane-concatenated operand).  Only raise the scoped limit when the
    # default would be tight (256-512 channel stages); capped under v7x's
    # 64 MiB.  TODO(synk): at 512 channels, tile Pp as a third grid axis.
    blk_bytes = (2 * (H + 4) * Wp * Cp * 2          # x block  (x2 buffers)
                 + 2 * 2 * 3 * 3 * Cp * Pp * 2      # w1 + w2  (x2 buffers)
                 + 2 * M2 * Pp * 2                  # output   (x2 buffers)
                 + MM * Pp * 4 + MM * Pp * 2        # acc + mid scratch
                 + MM * 3 * Cp * 2)                 # concat operand temp
    vmem_limit = (int(min(2 * blk_bytes, 64 << 20))
                  if blk_bytes > (12 << 20) else None)

    kernel = functools.partial(_basic_block_kernel, Wp, HR)
    out_flat = pl.pallas_call(
        kernel,
        out_shape=jax.ShapeDtypeStruct((N, H * Wp, Pp), jnp.bfloat16),
        grid_spec=pltpu.PrefetchScalarGridSpec(
            num_scalar_prefetch=0,
            grid=(N, S),
            in_specs=[
                # Whole padded image per batch element (constant in s -> the
                # DMA only refires when n changes); strips read aligned slabs.
                pl.BlockSpec((1, (H + 4) * Wp, Cp), lambda n, s: (n, 0, 0)),
                # Grid-invariant packed weights / biases / mask.
                pl.BlockSpec((3, 3 * Cp, Pp), lambda n, s: (0, 0, 0)),
                pl.BlockSpec((3, 3 * Pp, Pp), lambda n, s: (0, 0, 0)),
                pl.BlockSpec((1, Pp), lambda n, s: (0, 0)),
                pl.BlockSpec((1, Pp), lambda n, s: (0, 0)),
                pl.BlockSpec((MM, 1), lambda n, s: (0, 0)),
            ],
            out_specs=pl.BlockSpec((1, M2, Pp), lambda n, s: (n, s, 0)),
            scratch_shapes=[
                pltpu.VMEM((MM, Pp), jnp.float32),    # conv accumulator
                pltpu.VMEM((MM, Pp), jnp.bfloat16),   # conv1->conv2 strip
            ],
        ),
        compiler_params=pltpu.CompilerParams(
            dimension_semantics=("parallel", "parallel"),
            vmem_limit_bytes=vmem_limit),
    )(x_flat, w1, w2, b1, b2, mask)

    # Lane-dense bf16 slab -> NCHW f32: drop padding, transpose back.
    out = out_flat.reshape(N, H, Wp, Pp)[:, :, :W, :P]
    return jnp.transpose(out, (0, 3, 1, 2)).astype(jnp.float32)


def _reference_forward(x, w1_oihw, w2_oihw, g1, be1, m1, v1, g2, be2, m2, v2,
                       eps=1e-5):
    """Pure-JAX reference at matched precision (bf16 conv operands, f32
    accumulation, bf16 intermediate, bf16-cast residual) mirroring the kernel's
    MXU numerics; final result kept in f32."""
    dn = jax.lax.conv_dimension_numbers(x.shape, w1_oihw.shape,
                                        ("NCHW", "OIHW", "NCHW"))
    inv1 = g1 / jnp.sqrt(v1 + eps)
    inv2 = g2 / jnp.sqrt(v2 + eps)
    w1s = (w1_oihw * inv1[:, None, None, None]).astype(jnp.bfloat16)
    w2s = (w2_oihw * inv2[:, None, None, None]).astype(jnp.bfloat16)
    b1 = (be1 - m1 * inv1).reshape(1, -1, 1, 1)
    b2 = (be2 - m2 * inv2).reshape(1, -1, 1, 1)
    xb = x.astype(jnp.bfloat16)
    y = jax.lax.conv_general_dilated(
        xb, w1s, (1, 1), ((1, 1), (1, 1)), dimension_numbers=dn,
        preferred_element_type=jnp.float32) + b1
    y = jnp.maximum(y, 0.0).astype(jnp.bfloat16)
    y = jax.lax.conv_general_dilated(
        y, w2s, (1, 1), ((1, 1), (1, 1)), dimension_numbers=dn,
        preferred_element_type=jnp.float32) + b2
    return jnp.maximum(y + xb.astype(jnp.float32), 0.0)


if __name__ == "__main__":
    # Small deterministic correctness config: inplanes = planes = 4, 16x16
    # spatial, batch 2 (performance should be evaluated at >= 64 channels).
    N, C, H, W = 2, 4, 16, 16
    P = C  # planes (expansion = 1, stride = 1, no downsample)

    key = jax.random.PRNGKey(0)
    ks = jax.random.split(key, 11)
    x = jax.random.normal(ks[0], (N, C, H, W), dtype=jnp.float32)
    w1 = jax.random.normal(ks[1], (P, C, 3, 3), dtype=jnp.float32) * 0.2
    w2 = jax.random.normal(ks[2], (P, P, 3, 3), dtype=jnp.float32) * 0.2
    gamma1 = 1.0 + 0.1 * jax.random.normal(ks[3], (P,), dtype=jnp.float32)
    beta1 = 0.1 * jax.random.normal(ks[4], (P,), dtype=jnp.float32)
    mean1 = 0.1 * jax.random.normal(ks[5], (P,), dtype=jnp.float32)
    var1 = 1.0 + 0.1 * jax.random.uniform(ks[6], (P,), dtype=jnp.float32)
    gamma2 = 1.0 + 0.1 * jax.random.normal(ks[7], (P,), dtype=jnp.float32)
    beta2 = 0.1 * jax.random.normal(ks[8], (P,), dtype=jnp.float32)
    mean2 = 0.1 * jax.random.normal(ks[9], (P,), dtype=jnp.float32)
    var2 = 1.0 + 0.1 * jax.random.uniform(ks[10], (P,), dtype=jnp.float32)

    fwd = jax.jit(basic_block_forward)
    out = jax.block_until_ready(fwd(x, w1, w2, gamma1, beta1, mean1, var1,
                                    gamma2, beta2, mean2, var2))

    ref = _reference_forward(x, w1, w2, gamma1, beta1, mean1, var1,
                             gamma2, beta2, mean2, var2)
    assert out.shape == (N, P, H, W)
    # Kernel output is rounded to bf16 (store dtype); the remaining gap vs the
    # matched-precision f32 reference is <= ~half a bf16 ulp at |out| ~ 5 plus
    # tiny accumulation-order differences.
    err = float(jnp.max(jnp.abs(out - ref)))
    assert err < 6e-2, f"mismatch vs reference: {err}"

    print("KERNEL_OK")
</pallas_src>

<mosaic_0001>
module attributes {stable_mosaic.version = 11 : i64} {
  func.func @_basic_block_kernel(%arg0: i32, %arg1: i32, %arg2: memref<1x640x128xbf16, #tpu.memory_space<vmem>>, %arg3: memref<3x384x128xbf16, #tpu.memory_space<vmem>>, %arg4: memref<3x384x128xbf16, #tpu.memory_space<vmem>>, %arg5: memref<1x128xf32, #tpu.memory_space<vmem>>, %arg6: memref<1x128xf32, #tpu.memory_space<vmem>>, %arg7: memref<576x1xf32, #tpu.memory_space<vmem>>, %arg8: memref<1x512x128xbf16, #tpu.memory_space<vmem>>, %arg9: memref<576x128xf32, #tpu.memory_space<vmem>>, %arg10: memref<576x128xbf16, #tpu.memory_space<vmem>>) attributes {dimension_semantics = [#tpu.dimension_semantics<parallel>, #tpu.dimension_semantics<parallel>], iteration_bounds = array<i64: 2, 1>, scalar_prefetch = 0 : i64, scratch_operands = 2 : i64, tpu.core_type = #tpu.core_type<tc>, window_params = [{transform_indices = @transform_0, window_bounds = array<i64: 1, 640, 128>}, {pipeline_mode = #tpu.pipeline_mode<synchronous>, transform_indices = @transform_1, window_bounds = array<i64: 3, 384, 128>}, {pipeline_mode = #tpu.pipeline_mode<synchronous>, transform_indices = @transform_2, window_bounds = array<i64: 3, 384, 128>}, {pipeline_mode = #tpu.pipeline_mode<synchronous>, transform_indices = @transform_3, window_bounds = array<i64: 1, 128>}, {pipeline_mode = #tpu.pipeline_mode<synchronous>, transform_indices = @transform_4, window_bounds = array<i64: 1, 128>}, {pipeline_mode = #tpu.pipeline_mode<synchronous>, transform_indices = @transform_5, window_bounds = array<i64: 576, 1>}, {transform_indices = @transform_6, window_bounds = array<i64: 1, 512, 128>}]} {
    %c16_i32 = arith.constant 16 : i32
    %0 = arith.muli %arg1, %c16_i32 : i32
    %c0_i32 = arith.constant 0 : i32
    %1 = arith.addi %0, %c0_i32 : i32
    %c32_i32 = arith.constant 32 : i32
    %2 = arith.muli %1, %c32_i32 : i32
    %3 = tpu.assume_multiple %2, 32 : i32
    %c1_i32 = arith.constant 1 : i32
    %4 = arith.addi %0, %c1_i32 : i32
    %c32_i32_0 = arith.constant 32 : i32
    %5 = arith.muli %4, %c32_i32_0 : i32
    %6 = tpu.assume_multiple %5, 32 : i32
    %c2_i32 = arith.constant 2 : i32
    %7 = arith.addi %0, %c2_i32 : i32
    %c32_i32_1 = arith.constant 32 : i32
    %8 = arith.muli %7, %c32_i32_1 : i32
    %9 = tpu.assume_multiple %8, 32 : i32
    %c0 = arith.constant 0 : index
    %10 = arith.index_cast %3 : i32 to index
    %c0_2 = arith.constant 0 : index
    %11 = vector.load %arg2[%c0, %10, %c0_2] : memref<1x640x128xbf16, #tpu.memory_space<vmem>>, vector<1x576x128xbf16>
    %12 = vector.shape_cast %11 : vector<1x576x128xbf16> to vector<576x128xbf16>
    %c0_3 = arith.constant 0 : index
    %13 = arith.index_cast %6 : i32 to index
    %c0_4 = arith.constant 0 : index
    %14 = vector.load %arg2[%c0_3, %13, %c0_4] : memref<1x640x128xbf16, #tpu.memory_space<vmem>>, vector<1x576x128xbf16>
    %15 = vector.shape_cast %14 : vector<1x576x128xbf16> to vector<576x128xbf16>
    %c0_5 = arith.constant 0 : index
    %16 = arith.index_cast %9 : i32 to index
    %c0_6 = arith.constant 0 : index
    %17 = vector.load %arg2[%c0_5, %16, %c0_6] : memref<1x640x128xbf16, #tpu.memory_space<vmem>>, vector<1x576x128xbf16>
    %18 = vector.shape_cast %17 : vector<1x576x128xbf16> to vector<576x128xbf16>
    %19 = tpu.concatenate %12, %15, %18 in 1 : vector<576x128xbf16>, vector<576x128xbf16>, vector<576x128xbf16> -> vector<576x384xbf16>
    %c1 = arith.constant 1 : index
    %c0_7 = arith.constant 0 : index
    %c0_8 = arith.constant 0 : index
    %20 = vector.load %arg3[%c1, %c0_7, %c0_8] : memref<3x384x128xbf16, #tpu.memory_space<vmem>>, vector<1x384x128xbf16>
    %21 = vector.shape_cast %20 : vector<1x384x128xbf16> to vector<384x128xbf16>
    %cst = arith.constant dense<0.000000e+00> : vector<576x128xf32>
    %22 = tpu.matmul %19, %21, %cst {dimension_numbers = #tpu.dot_dimension_numbers<[1], [0], [0], [1], [0, 0, 1, 1], [], []>} : vector<576x384xbf16>, vector<384x128xbf16>, vector<576x128xf32> -> vector<576x128xf32>
    %c0_9 = arith.constant 0 : index
    %c0_10 = arith.constant 0 : index
    %23 = vector.load %arg9[%c0_9, %c0_10] : memref<576x128xf32, #tpu.memory_space<vmem>>, vector<576x128xf32>
    tpu.vector_store %arg9[%c0_9, %c0_10], %22 {strides = array<i32>} : memref<576x128xf32, #tpu.memory_space<vmem>>, vector<576x128xf32>,
    %c0_11 = arith.constant 0 : index
    %c0_12 = arith.constant 0 : index
    %c0_13 = arith.constant 0 : index
    %24 = vector.load %arg3[%c0_11, %c0_12, %c0_13] : memref<3x384x128xbf16, #tpu.memory_space<vmem>>, vector<1x384x128xbf16>
    %25 = vector.shape_cast %24 : vector<1x384x128xbf16> to vector<384x128xbf16>
    %cst_14 = arith.constant dense<0.000000e+00> : vector<576x128xf32>
    %26 = tpu.matmul %19, %25, %cst_14 {dimension_numbers = #tpu.dot_dimension_numbers<[1], [0], [0], [1], [0, 0, 1, 1], [], []>} : vector<576x384xbf16>, vector<384x128xbf16>, vector<576x128xf32> -> vector<576x128xf32>
    %c0_15 = arith.constant 0 : index
    %c0_16 = arith.constant 0 : index
    %27 = vector.load %arg9[%c0_15, %c0_16] : memref<576x128xf32, #tpu.memory_space<vmem>>, vector<576x128xf32>
    %c1_i32_17 = arith.constant 1 : i32
    %28 = tpu.dynamic_rotate %26 by %c1_i32_17 dim 0 : vector<576x128xf32>, i32 -> vector<576x128xf32>
    %29 = arith.addf %27, %28 : vector<576x128xf32>
    %c0_18 = arith.constant 0 : index
    %c0_19 = arith.constant 0 : index
    %30 = vector.load %arg9[%c0_18, %c0_19] : memref<576x128xf32, #tpu.memory_space<vmem>>, vector<576x128xf32>
    tpu.vector_store %arg9[%c0_18, %c0_19], %29 {strides = array<i32>} : memref<576x128xf32, #tpu.memory_space<vmem>>, vector<576x128xf32>,
    %c2 = arith.constant 2 : index
    %c0_20 = arith.constant 0 : index
    %c0_21 = arith.constant 0 : index
    %31 = vector.load %arg3[%c2, %c0_20, %c0_21] : memref<3x384x128xbf16, #tpu.memory_space<vmem>>, vector<1x384x128xbf16>
    %32 = vector.shape_cast %31 : vector<1x384x128xbf16> to vector<384x128xbf16>
    %cst_22 = arith.constant dense<0.000000e+00> : vector<576x128xf32>
    %33 = tpu.matmul %19, %32, %cst_22 {dimension_numbers = #tpu.dot_dimension_numbers<[1], [0], [0], [1], [0, 0, 1, 1], [], []>} : vector<576x384xbf16>, vector<384x128xbf16>, vector<576x128xf32> -> vector<576x128xf32>
    %c0_23 = arith.constant 0 : index
    %c0_24 = arith.constant 0 : index
    %34 = vector.load %arg9[%c0_23, %c0_24] : memref<576x128xf32, #tpu.memory_space<vmem>>, vector<576x128xf32>
    %c575_i32 = arith.constant 575 : i32
    %35 = tpu.dynamic_rotate %33 by %c575_i32 dim 0 : vector<576x128xf32>, i32 -> vector<576x128xf32>
    %36 = arith.addf %34, %35 : vector<576x128xf32>
    %c0_25 = arith.constant 0 : index
    %c0_26 = arith.constant 0 : index
    %37 = vector.load %arg9[%c0_25, %c0_26] : memref<576x128xf32, #tpu.memory_space<vmem>>, vector<576x128xf32>
    tpu.vector_store %arg9[%c0_25, %c0_26], %36 {strides = array<i32>} : memref<576x128xf32, #tpu.memory_space<vmem>>, vector<576x128xf32>,
    %c0_27 = arith.constant 0 : index
    %c0_28 = arith.constant 0 : index
    %38 = vector.load %arg9[%c0_27, %c0_28] : memref<576x128xf32, #tpu.memory_space<vmem>>, vector<576x128xf32>
    %c0_29 = arith.constant 0 : index
    %c0_30 = arith.constant 0 : index
    %39 = vector.load %arg5[%c0_29, %c0_30] : memref<1x128xf32, #tpu.memory_space<vmem>>, vector<1x128xf32>
    %40 = vector.broadcast %39 : vector<1x128xf32> to vector<576x128xf32>
    %41 = arith.addf %38, %40 : vector<576x128xf32>
    %cst_31 = arith.constant 0.000000e+00 : f32
    %42 = vector.broadcast %cst_31 : f32 to vector<576x128xf32>
    %43 = arith.maximumf %41, %42 : vector<576x128xf32>
    %c0_32 = arith.constant 0 : index
    %c0_33 = arith.constant 0 : index
    %44 = vector.load %arg7[%c0_32, %c0_33] : memref<576x1xf32, #tpu.memory_space<vmem>>, vector<576x1xf32>
    %45 = vector.broadcast %44 : vector<576x1xf32> to vector<576x128xf32>
    %46 = arith.mulf %43, %45 : vector<576x128xf32>
    %47 = arith.truncf %46 : vector<576x128xf32> to vector<576x128xbf16>
    %c0_34 = arith.constant 0 : index
    %c0_35 = arith.constant 0 : index
    %48 = vector.load %arg10[%c0_34, %c0_35] : memref<576x128xbf16, #tpu.memory_space<vmem>>, vector<576x128xbf16>
    tpu.vector_store %arg10[%c0_34, %c0_35], %47 {strides = array<i32>} : memref<576x128xbf16, #tpu.memory_space<vmem>>, vector<576x128xbf16>,
    %c0_i32_36 = arith.constant 0 : i32
    %49 = arith.cmpi eq, %arg1, %c0_i32_36 : i32
    %50 = arith.extui %49 : i1 to i32
    %c0_i32_37 = arith.constant 0 : i32
    %51 = arith.cmpi ne, %50, %c0_i32_37 : i32
    scf.if %51 {
      %cst_79 = arith.constant 0.000000e+00 : bf16
      %95 = vector.broadcast %cst_79 : bf16 to vector<32x128xbf16>
      %c0_80 = arith.constant 0 : index
      %c0_81 = arith.constant 0 : index
      %96 = vector.load %arg10[%c0_80, %c0_81] : memref<576x128xbf16, #tpu.memory_space<vmem>>, vector<32x128xbf16>
      tpu.vector_store %arg10[%c0_80, %c0_81], %95 {strides = array<i32>} : memref<576x128xbf16, #tpu.memory_space<vmem>>, vector<32x128xbf16>,
    } else {
    }
    %c0_i32_38 = arith.constant 0 : i32
    %52 = arith.cmpi eq, %arg1, %c0_i32_38 : i32
    %53 = arith.extui %52 : i1 to i32
    %c0_i32_39 = arith.constant 0 : i32
    %54 = arith.cmpi ne, %53, %c0_i32_39 : i32
    scf.if %54 {
      %cst_79 = arith.constant 0.000000e+00 : bf16
      %95 = vector.broadcast %cst_79 : bf16 to vector<32x128xbf16>
      %c544 = arith.constant 544 : index
      %c0_80 = arith.constant 0 : index
      %96 = vector.load %arg10[%c544, %c0_80] : memref<576x128xbf16, #tpu.memory_space<vmem>>, vector<32x128xbf16>
      tpu.vector_store %arg10[%c544, %c0_80], %95 {strides = array<i32>} : memref<576x128xbf16, #tpu.memory_space<vmem>>, vector<32x128xbf16>,
    } else {
    }
    %c0_40 = arith.constant 0 : index
    %c0_41 = arith.constant 0 : index
    %55 = vector.load %arg10[%c0_40, %c0_41] : memref<576x128xbf16, #tpu.memory_space<vmem>>, vector<512x128xbf16>
    %c32 = arith.constant 32 : index
    %c0_42 = arith.constant 0 : index
    %56 = vector.load %arg10[%c32, %c0_42] : memref<576x128xbf16, #tpu.memory_space<vmem>>, vector<512x128xbf16>
    %c64 = arith.constant 64 : index
    %c0_43 = arith.constant 0 : index
    %57 = vector.load %arg10[%c64, %c0_43] : memref<576x128xbf16, #tpu.memory_space<vmem>>, vector<512x128xbf16>
    %58 = tpu.concatenate %55, %56, %57 in 1 : vector<512x128xbf16>, vector<512x128xbf16>, vector<512x128xbf16> -> vector<512x384xbf16>
    %c1_44 = arith.constant 1 : index
    %c0_45 = arith.constant 0 : index
    %c0_46 = arith.constant 0 : index
    %59 = vector.load %arg4[%c1_44, %c0_45, %c0_46] : memref<3x384x128xbf16, #tpu.memory_space<vmem>>, vector<1x384x128xbf16>
    %60 = vector.shape_cast %59 : vector<1x384x128xbf16> to vector<384x128xbf16>
    %cst_47 = arith.constant dense<0.000000e+00> : vector<512x128xf32>
    %61 = tpu.matmul %58, %60, %cst_47 {dimension_numbers = #tpu.dot_dimension_numbers<[1], [0], [0], [1], [0, 0, 1, 1], [], []>} : vector<512x384xbf16>, vector<384x128xbf16>, vector<512x128xf32> -> vector<512x128xf32>
    %c0_48 = arith.constant 0 : index
    %c0_49 = arith.constant 0 : index
    %62 = vector.load %arg9[%c0_48, %c0_49] : memref<576x128xf32, #tpu.memory_space<vmem>>, vector<512x128xf32>
    tpu.vector_store %arg9[%c0_48, %c0_49], %61 {strides = array<i32>} : memref<576x128xf32, #tpu.memory_space<vmem>>, vector<512x128xf32>,
    %c0_50 = arith.constant 0 : index
    %c0_51 = arith.constant 0 : index
    %c0_52 = arith.constant 0 : index
    %63 = vector.load %arg4[%c0_50, %c0_51, %c0_52] : memref<3x384x128xbf16, #tpu.memory_space<vmem>>, vector<1x384x128xbf16>
    %64 = vector.shape_cast %63 : vector<1x384x128xbf16> to vector<384x128xbf16>
    %cst_53 = arith.constant dense<0.000000e+00> : vector<512x128xf32>
    %65 = tpu.matmul %58, %64, %cst_53 {dimension_numbers = #tpu.dot_dimension_numbers<[1], [0], [0], [1], [0, 0, 1, 1], [], []>} : vector<512x384xbf16>, vector<384x128xbf16>, vector<512x128xf32> -> vector<512x128xf32>
    %c0_54 = arith.constant 0 : index
    %c0_55 = arith.constant 0 : index
    %66 = vector.load %arg9[%c0_54, %c0_55] : memref<576x128xf32, #tpu.memory_space<vmem>>, vector<512x128xf32>
    %c1_i32_56 = arith.constant 1 : i32
    %67 = tpu.dynamic_rotate %65 by %c1_i32_56 dim 0 : vector<512x128xf32>, i32 -> vector<512x128xf32>
    %68 = arith.addf %66, %67 : vector<512x128xf32>
    %c0_57 = arith.constant 0 : index
    %c0_58 = arith.constant 0 : index
    %69 = vector.load %arg9[%c0_57, %c0_58] : memref<576x128xf32, #tpu.memory_space<vmem>>, vector<512x128xf32>
    tpu.vector_store %arg9[%c0_57, %c0_58], %68 {strides = array<i32>} : memref<576x128xf32, #tpu.memory_space<vmem>>, vector<512x128xf32>,
    %c2_59 = arith.constant 2 : index
    %c0_60 = arith.constant 0 : index
    %c0_61 = arith.constant 0 : index
    %70 = vector.load %arg4[%c2_59, %c0_60, %c0_61] : memref<3x384x128xbf16, #tpu.memory_space<vmem>>, vector<1x384x128xbf16>
    %71 = vector.shape_cast %70 : vector<1x384x128xbf16> to vector<384x128xbf16>
    %cst_62 = arith.constant dense<0.000000e+00> : vector<512x128xf32>
    %72 = tpu.matmul %58, %71, %cst_62 {dimension_numbers = #tpu.dot_dimension_numbers<[1], [0], [0], [1], [0, 0, 1, 1], [], []>} : vector<512x384xbf16>, vector<384x128xbf16>, vector<512x128xf32> -> vector<512x128xf32>
    %c0_63 = arith.constant 0 : index
    %c0_64 = arith.constant 0 : index
    %73 = vector.load %arg9[%c0_63, %c0_64] : memref<576x128xf32, #tpu.memory_space<vmem>>, vector<512x128xf32>
    %c511_i32 = arith.constant 511 : i32
    %74 = tpu.dynamic_rotate %72 by %c511_i32 dim 0 : vector<512x128xf32>, i32 -> vector<512x128xf32>
    %75 = arith.addf %73, %74 : vector<512x128xf32>
    %c0_65 = arith.constant 0 : index
    %c0_66 = arith.constant 0 : index
    %76 = vector.load %arg9[%c0_65, %c0_66] : memref<576x128xf32, #tpu.memory_space<vmem>>, vector<512x128xf32>
    tpu.vector_store %arg9[%c0_65, %c0_66], %75 {strides = array<i32>} : memref<576x128xf32, #tpu.memory_space<vmem>>, vector<512x128xf32>,
    %c2_i32_67 = arith.constant 2 : i32
    %77 = arith.addi %0, %c2_i32_67 : i32
    %c32_i32_68 = arith.constant 32 : i32
    %78 = arith.muli %77, %c32_i32_68 : i32
    %79 = tpu.assume_multiple %78, 32 : i32
    %c0_69 = arith.constant 0 : index
    %80 = arith.index_cast %79 : i32 to index
    %c0_70 = arith.constant 0 : index
    %81 = vector.load %arg2[%c0_69, %80, %c0_70] : memref<1x640x128xbf16, #tpu.memory_space<vmem>>, vector<1x512x128xbf16>
    %82 = vector.shape_cast %81 : vector<1x512x128xbf16> to vector<512x128xbf16>
    %83 = arith.extf %82 : vector<512x128xbf16> to vector<512x128xf32>
    %c0_71 = arith.constant 0 : index
    %c0_72 = arith.constant 0 : index
    %84 = vector.load %arg9[%c0_71, %c0_72] : memref<576x128xf32, #tpu.memory_space<vmem>>, vector<512x128xf32>
    %c0_73 = arith.constant 0 : index
    %c0_74 = arith.constant 0 : index
    %85 = vector.load %arg6[%c0_73, %c0_74] : memref<1x128xf32, #tpu.memory_space<vmem>>, vector<1x128xf32>
    %86 = vector.broadcast %85 : vector<1x128xf32> to vector<512x128xf32>
    %87 = arith.addf %84, %86 : vector<512x128xf32>
    %88 = arith.addf %87, %83 : vector<512x128xf32>
    %cst_75 = arith.constant 0.000000e+00 : f32
    %89 = vector.broadcast %cst_75 : f32 to vector<512x128xf32>
    %90 = arith.maximumf %88, %89 : vector<512x128xf32>
    %91 = arith.truncf %90 : vector<512x128xf32> to vector<512x128xbf16>
    %c0_76 = arith.constant 0 : index
    %c0_77 = arith.constant 0 : index
    %c0_78 = arith.constant 0 : index
    %92 = vector.load %arg8[%c0_76, %c0_77, %c0_78] : memref<1x512x128xbf16, #tpu.memory_space<vmem>>, vector<1x512x128xbf16>
    %93 = vector.shape_cast %92 : vector<1x512x128xbf16> to vector<512x128xbf16>
    %94 = vector.shape_cast %91 : vector<512x128xbf16> to vector<1x512x128xbf16>
    tpu.vector_store %arg8[%c0_76, %c0_77, %c0_78], %94 {strides = array<i32>} : memref<1x512x128xbf16, #tpu.memory_space<vmem>>, vector<1x512x128xbf16>,
    return
  }
  func.func @transform_0(%arg0: i32, %arg1: i32) -> (i32, i32, i32) {
    %c0_i32 = arith.constant 0 : i32
    %c0_i32_0 = arith.constant 0 : i32
    %c0_i32_1 = arith.constant 0 : i32
    return %arg0, %c0_i32, %c0_i32_0 : i32, i32, i32
  }
  func.func @transform_1(%arg0: i32, %arg1: i32) -> (i32, i32, i32) {
    %c0_i32 = arith.constant 0 : i32
    %c0_i32_0 = arith.constant 0 : i32
    %c0_i32_1 = arith.constant 0 : i32
    %c0_i32_2 = arith.constant 0 : i32
    return %c0_i32, %c0_i32_0, %c0_i32_1 : i32, i32, i32
  }
  func.func @transform_2(%arg0: i32, %arg1: i32) -> (i32, i32, i32) {
    %c0_i32 = arith.constant 0 : i32
    %c0_i32_0 = arith.constant 0 : i32
    %c0_i32_1 = arith.constant 0 : i32
    %c0_i32_2 = arith.constant 0 : i32
    return %c0_i32, %c0_i32_0, %c0_i32_1 : i32, i32, i32
  }
  func.func @transform_3(%arg0: i32, %arg1: i32) -> (i32, i32) {
    %c0_i32 = arith.constant 0 : i32
    %c0_i32_0 = arith.constant 0 : i32
    %c0_i32_1 = arith.constant 0 : i32
    return %c0_i32, %c0_i32_0 : i32, i32
  }
  func.func @transform_4(%arg0: i32, %arg1: i32) -> (i32, i32) {
    %c0_i32 = arith.constant 0 : i32
    %c0_i32_0 = arith.constant 0 : i32
    %c0_i32_1 = arith.constant 0 : i32
    return %c0_i32, %c0_i32_0 : i32, i32
  }
  func.func @transform_5(%arg0: i32, %arg1: i32) -> (i32, i32) {
    %c0_i32 = arith.constant 0 : i32
    %c0_i32_0 = arith.constant 0 : i32
    %c0_i32_1 = arith.constant 0 : i32
    return %c0_i32, %c0_i32_0 : i32, i32
  }
  func.func @transform_6(%arg0: i32, %arg1: i32) -> (i32, i32, i32) {
    %c0_i32 = arith.constant 0 : i32
    %c0_i32_0 = arith.constant 0 : i32
    return %arg0, %arg1, %c0_i32 : i32, i32, i32
  }
}

</mosaic_0001>

<llo_original>
// kernel: basic_block_forward.1
$region0: #{basic_block_forward.1}
  #allocation0 [shape = 'u32[]', space=smem, size = 0x4, offset = 0x4, fixed_abs, tag = 'smem constant byte address 0x4 - core index']
  #allocation1 [shape = 'u32[144,128]{1,0:T(1,128)}', space=vmem, size = 0x12000, scoped, tag = 'internal scratch']
  #allocation2 [shape = 'f32[576,128]{1,0:T(8,128)}', space=vmem, size = 0x48000, scoped, tag = 'scratch operand']
  #allocation3 [shape = 'bf16[576,128]{1,0:T(8,128)(2,1)}', space=vmem, size = 0x24000, scoped, tag = 'scratch operand']
  %s0 = inlined_call_operand.vmem [shape: bf16[2,640,128], index: 0, kind: input, shape index: {}]
  %s1 = inlined_call_operand.vmem [shape: bf16[3,384,128], index: 1, kind: input, shape index: {}]
  %s2 = inlined_call_operand.vmem [shape: bf16[3,384,128], index: 2, kind: input, shape index: {}]
  %s3 = inlined_call_operand.vmem [shape: f32[1,128], index: 3, kind: input, shape index: {}]
  %s4 = inlined_call_operand.vmem [shape: f32[1,128], index: 4, kind: input, shape index: {}]
  %s5 = inlined_call_operand.vmem [shape: f32[576,1], index: 5, kind: input, shape index: {}]
  %s6 = inlined_call_operand.vmem [shape: bf16[2,512,128], index: 6, kind: output, shape index: {}]
  %s7 = sld [smem:[#allocation0]]
  $region61: #{basic_block_forward.1} parent=0
    _
  %s9 = ssub.s32 1, %s7
  %s10 = scalar_select 0, %s9, %s7
  loop: start=0, step=1, limit=4
  $region2: #{basic_block_forward.1} parent=0 // loop_pre_header
    _
  $region3: #{basic_block_forward.1} parent=0 // loop_header
    %s12 = sphi 0, %s16
    %p13 = scmp.ge.s32.totalorder %s12, 4
    %s19 = sphi 0, %s31
    %s20 = sphi 0, %s27
    %s21 = sphi 0, %s19
    %s22 = sphi 0, %s20
    %s23 = sphi 0, %s21
    %s24 = sphi 0, %s22
    %s34 = sphi 0, %s36
    %s37 = sphi 0, %s34
    %s38 = sphi 0, %s37
    %s54 = sphi 0, %s38
    %s58 = sphi 0, %s58
    %s60 = sphi 0, %s58
    %s61 = sphi 0, %s60
    %s75 = sphi 0, %s61
    %s79 = sphi 0, %s79
    %s81 = sphi 0, %s79
    %s82 = sphi 0, %s81
    %s96 = sphi 0, %s82
    %s100 = sphi 0, %s100
    %s102 = sphi 0, %s100
    %s103 = sphi 0, %s102
    %s117 = sphi 0, %s103
    %s121 = sphi 0, %s121
    %s123 = sphi 0, %s121
    %s124 = sphi 0, %s123
    %s138 = sphi 0, %s124
    %s142 = sphi 0, %s142
    %s144 = sphi 0, %s142
    %s145 = sphi 0, %s144
    %s159 = sphi 0, %s145
    %s167 = sphi 0, %s169
    %s170 = sphi 0, %s167
    %s171 = sphi 0, %s170
    %s187 = sphi 0, %s171
  $region4: #{basic_block_forward.1} parent=0 // loop_header_branch
    %15 = sbr.rel (%p13) target = $region8
  $region5: #{basic_block_forward.1} parent=0 // loop_body
    %s17 = ssub.s32 %s12, 1
    %s18 = ssub.s32 %s12, 2
    %s25 = sadd.s32 1, %s20
    %p26 = scmp.ge.s32.totalorder %s25, 1
    %s27 = scalar_select %p26, 0, %s25
    %s28 = sadd.s32 1, %s19
    %s29 = scalar_select %p26, %s28, %s19
    %p30 = scmp.ge.s32.totalorder %s29, 2
    %s31 = scalar_select %p30, 0, %s29
    %s32 = ssub.s32 %s19, %s31
    %p33 = scmp.eq.s32.totalorder %s32, 0
    %s35 = sadd.s32 %s34, 1
    %s36 = scalar_select %p33, %s34, %s35
    %p39 = pneg %p33
    %p40 = scmp.eq.s32.totalorder %s12, 1
    %p41 = por %p39, %p40
    %p42 = scmp.ne.s32.totalorder %s34, %s37
    %p43 = scmp.eq.s32.totalorder %s12, 0
    %p44 = por %p42, %p43
    %p45 = scmp.ne.s32.totalorder %s34, %s37
    %p46 = scmp.eq.s32.totalorder %s17, 1
    %p47 = por %p45, %p46
    %p48 = scmp.ne.s32.totalorder %s37, %s38
    %p49 = scmp.eq.s32.totalorder %s17, 0
    %p50 = por %p48, %p49
    %p51 = scmp.ne.s32.totalorder %s37, %s38
    %p52 = scmp.eq.s32.totalorder %s18, 1
    %p53 = por %p51, %p52
    %p55 = scmp.ne.s32.totalorder %s38, %s54
    %p56 = scmp.eq.s32.totalorder %s18, 0
    %p57 = por %p55, %p56
    %s59 = sadd.s32 %s58, 1
    %p62 = scmp.eq.s32.totalorder %s12, 1
    %p63 = scmp.ne.s32.totalorder %s58, %s60
    %p64 = scmp.eq.s32.totalorder %s12, 0
    %p65 = por %p63, %p64
    %p66 = scmp.ne.s32.totalorder %s58, %s60
    %p67 = scmp.eq.s32.totalorder %s17, 1
    %p68 = por %p66, %p67
    %p69 = scmp.ne.s32.totalorder %s60, %s61
    %p70 = scmp.eq.s32.totalorder %s17, 0
    %p71 = por %p69, %p70
    %p72 = scmp.ne.s32.totalorder %s60, %s61
    %p73 = scmp.eq.s32.totalorder %s18, 1
    %p74 = por %p72, %p73
    %p76 = scmp.ne.s32.totalorder %s61, %s75
    %p77 = scmp.eq.s32.totalorder %s18, 0
    %p78 = por %p76, %p77
    %s80 = sadd.s32 %s79, 1
    %p83 = scmp.eq.s32.totalorder %s12, 1
    %p84 = scmp.ne.s32.totalorder %s79, %s81
    %p85 = scmp.eq.s32.totalorder %s12, 0
    %p86 = por %p84, %p85
    %p87 = scmp.ne.s32.totalorder %s79, %s81
    %p88 = scmp.eq.s32.totalorder %s17, 1
    %p89 = por %p87, %p88
    %p90 = scmp.ne.s32.totalorder %s81, %s82
    %p91 = scmp.eq.s32.totalorder %s17, 0
    %p92 = por %p90, %p91
    %p93 = scmp.ne.s32.totalorder %s81, %s82
    %p94 = scmp.eq.s32.totalorder %s18, 1
    %p95 = por %p93, %p94
    %p97 = scmp.ne.s32.totalorder %s82, %s96
    %p98 = scmp.eq.s32.totalorder %s18, 0
    %p99 = por %p97, %p98
    %s101 = sadd.s32 %s100, 1
    %p104 = scmp.eq.s32.totalorder %s12, 1
    %p105 = scmp.ne.s32.totalorder %s100, %s102
    %p106 = scmp.eq.s32.totalorder %s12, 0
    %p107 = por %p105, %p106
    %p108 = scmp.ne.s32.totalorder %s100, %s102
    %p109 = scmp.eq.s32.totalorder %s17, 1
    %p110 = por %p108, %p109
    %p111 = scmp.ne.s32.totalorder %s102, %s103
    %p112 = scmp.eq.s32.totalorder %s17, 0
    %p113 = por %p111, %p112
    %p114 = scmp.ne.s32.totalorder %s102, %s103
    %p115 = scmp.eq.s32.totalorder %s18, 1
    %p116 = por %p114, %p115
    %p118 = scmp.ne.s32.totalorder %s103, %s117
    %p119 = scmp.eq.s32.totalorder %s18, 0
    %p120 = por %p118, %p119
    %s122 = sadd.s32 %s121, 1
    %p125 = scmp.eq.s32.totalorder %s12, 1
    %p126 = scmp.ne.s32.totalorder %s121, %s123
    %p127 = scmp.eq.s32.totalorder %s12, 0
    %p128 = por %p126, %p127
    %p129 = scmp.ne.s32.totalorder %s121, %s123
    %p130 = scmp.eq.s32.totalorder %s17, 1
    %p131 = por %p129, %p130
    %p132 = scmp.ne.s32.totalorder %s123, %s124
    %p133 = scmp.eq.s32.totalorder %s17, 0
    %p134 = por %p132, %p133
    %p135 = scmp.ne.s32.totalorder %s123, %s124
    %p136 = scmp.eq.s32.totalorder %s18, 1
    %p137 = por %p135, %p136
    %p139 = scmp.ne.s32.totalorder %s124, %s138
    %p140 = scmp.eq.s32.totalorder %s18, 0
    %p141 = por %p139, %p140
    %s143 = sadd.s32 %s142, 1
    %p146 = scmp.eq.s32.totalorder %s12, 1
    %p147 = scmp.ne.s32.totalorder %s142, %s144
    %p148 = scmp.eq.s32.totalorder %s12, 0
    %p149 = por %p147, %p148
    %p150 = scmp.ne.s32.totalorder %s142, %s144
    %p151 = scmp.eq.s32.totalorder %s17, 1
    %p152 = por %p150, %p151
    %p153 = scmp.ne.s32.totalorder %s144, %s145
    %p154 = scmp.eq.s32.totalorder %s17, 0
    %p155 = por %p153, %p154
    %p156 = scmp.ne.s32.totalorder %s144, %s145
    %p157 = scmp.eq.s32.totalorder %s18, 1
    %p158 = por %p156, %p157
    %p160 = scmp.ne.s32.totalorder %s145, %s159
    %p161 = scmp.eq.s32.totalorder %s18, 0
    %p162 = por %p160, %p161
    %s163 = ssub.s32 %s19, %s31
    %s164 = ssub.s32 %s20, %s27
    %s165 = sor.u32 %s163, %s164
    %p166 = scmp.eq.s32.totalorder %s165, 0
    %s168 = sadd.s32 %s167, 1
    %s169 = scalar_select %p166, %s167, %s168
    %p172 = pneg %p166
    %p173 = scmp.eq.s32.totalorder %s12, 1
    %p174 = por %p172, %p173
    %p175 = scmp.ne.s32.totalorder %s167, %s170
    %p176 = scmp.eq.s32.totalorder %s12, 0
    %p177 = por %p175, %p176
    %p178 = scmp.ne.s32.totalorder %s167, %s170
    %p179 = scmp.eq.s32.totalorder %s17, 1
    %p180 = por %p178, %p179
    %p181 = scmp.ne.s32.totalorder %s170, %s171
    %p182 = scmp.eq.s32.totalorder %s17, 0
    %p183 = por %p181, %p182
    %p184 = scmp.ne.s32.totalorder %s170, %s171
    %p185 = scmp.eq.s32.totalorder %s18, 1
    %p186 = por %p184, %p185
    %p188 = scmp.ne.s32.totalorder %s171, %s187
    %p189 = scmp.eq.s32.totalorder %s18, 0
    %p190 = por %p188, %p189
    %p191 = scmp.le.s32.totalorder 1, %s12
    %p192 = scmp.lt.s32.totalorder %s12, 3
    %p193 = pnand %p191, %p192
    %p194 = pneg %p193
    // Predicated region
    $region9: #{basic_block_forward.1} parent=5 // pred_check
      _
    $region10: #{basic_block_forward.1} parent=5 // pred_check_branch
      %196 = sbr.rel (%p193) target = $region12
    $region11: #{basic_block_forward.1} parent=5 // pred_region
      %s197 = ssub.s32 %s12, 1
      // Predicated region
      $region13: #{basic_block_forward.1} parent=11 // pred_check
        %p198 = pneg %p71
      $region14: #{basic_block_forward.1} parent=11 // pred_check_branch
        %200 = sbr.rel (%p198) target = $region16
      $region15: #{basic_block_forward.1} parent=11 // pred_region
        _
      $region16: #{basic_block_forward.1} parent=11 // pred_fallthru
        _
      // Predicated region
      $region17: #{basic_block_forward.1} parent=11 // pred_check
        %p201 = pneg %p92
      $region18: #{basic_block_forward.1} parent=11 // pred_check_branch
        %203 = sbr.rel (%p201) target = $region20
      $region19: #{basic_block_forward.1} parent=11 // pred_region
        _
      $region20: #{basic_block_forward.1} parent=11 // pred_fallthru
        _
      // Predicated region
      $region21: #{basic_block_forward.1} parent=11 // pred_check
        %p204 = pneg %p113
      $region22: #{basic_block_forward.1} parent=11 // pred_check_branch
        %206 = sbr.rel (%p204) target = $region24
      $region23: #{basic_block_forward.1} parent=11 // pred_region
        _
      $region24: #{basic_block_forward.1} parent=11 // pred_fallthru
        _
      // Predicated region
      $region25: #{basic_block_forward.1} parent=11 // pred_check
        %p207 = pneg %p134
      $region26: #{basic_block_forward.1} parent=11 // pred_check_branch
        %209 = sbr.rel (%p207) target = $region28
      $region27: #{basic_block_forward.1} parent=11 // pred_region
        _
      $region28: #{basic_block_forward.1} parent=11 // pred_fallthru
        _
      // Predicated region
      $region29: #{basic_block_forward.1} parent=11 // pred_check
        %p210 = pneg %p155
      $region30: #{basic_block_forward.1} parent=11 // pred_check_branch
        %212 = sbr.rel (%p210) target = $region32
      $region31: #{basic_block_forward.1} parent=11 // pred_region
        _
      $region32: #{basic_block_forward.1} parent=11 // pred_fallthru
        _
    $region12: #{basic_block_forward.1} parent=5 // pred_fallthru
      _
    %p213 = scmp.lt.s32.totalorder %s12, 2
    // Predicated region
    $region33: #{basic_block_forward.1} parent=5 // pred_check
      %p214 = pneg %p213
    $region34: #{basic_block_forward.1} parent=5 // pred_check_branch
      %216 = sbr.rel (%p214) target = $region36
    $region35: #{basic_block_forward.1} parent=5 // pred_region
      // Predicated region
      $region37: #{basic_block_forward.1} parent=35 // pred_check
        %p217 = pneg %p44
      $region38: #{basic_block_forward.1} parent=35 // pred_check_branch
        %219 = sbr.rel (%p217) target = $region40
      $region39: #{basic_block_forward.1} parent=35 // pred_region
        %p220 = scmp.lt.s32.totalorder %s19, 1
        %s221 = scalar_select %p220, %s19, 1
        %s222 = smul.addr %s221, 80
        %s223 = smul.addr %s222, 4
        %s224 = scalar_lea.vmem %s0, %s223
      $region40: #{basic_block_forward.1} parent=35 // pred_fallthru
        _
    $region36: #{basic_block_forward.1} parent=5 // pred_fallthru
      _
    %p225 = scmp.le.s32.totalorder 1, %s12
    %p226 = scmp.lt.s32.totalorder %s12, 3
    %p227 = pnand %p225, %p226
    %p228 = pneg %p227
    // Predicated region
    $region41: #{basic_block_forward.1} parent=5 // pred_check
      _
    $region42: #{basic_block_forward.1} parent=5 // pred_check_branch
      %230 = sbr.rel (%p227) target = $region44
    $region43: #{basic_block_forward.1} parent=5 // pred_region
      %s231 = ssub.s32 %s12, 1
      %p232 = scmp.lt.s32.totalorder %s21, 1
      %s233 = scalar_select %p232, %s21, 1
      %s234 = smul.addr %s233, 80
      %s235 = smul.addr %s234, 4
      %s236 = scalar_lea.vmem %s0, %s235
      %p237 = pneg %p50
      %p238 = pneg %p47
      %p239 = pneg %p71
      %p240 = pneg %p68
      %p241 = pneg %p92
      %p242 = pneg %p89
      %p243 = pneg %p113
      %p244 = pneg %p110
      %p245 = pneg %p134
      %p246 = pneg %p131
      %p247 = pneg %p155
      %p248 = pneg %p152
      %p249 = pneg %p183
      %p250 = pneg %p180
      %s251 = smul.u32 64, %s22
      %p252 = scmp.lt.s32.totalorder %s21, 1
      %s253 = scalar_select %p252, %s21, 1
      %p254 = scmp.lt.s32.totalorder %s251, 63
      %s255 = scalar_select %p254, %s251, 63
      %s256 = smul.addr %s253, 64
      %s257 = sadd.s32 %s255, %s256
      %s258 = smul.addr %s257, 4
      %s259 = scalar_lea.vmem %s6, %s258
      %p260 = scmp.lt.s32.totalorder %s21, 1
      %s261 = scalar_select %p260, %s21, 1
      %s262 = smul.addr %s261, 80
      %s263 = smul.addr %s262, 4
      %s264 = scalar_lea.vmem %s0, %s263
      %s265 = smul.u32 64, %s22
      %p266 = scmp.lt.s32.totalorder %s21, 1
      %s267 = scalar_select %p266, %s21, 1
      %p268 = scmp.lt.s32.totalorder %s265, 63
      %s269 = scalar_select %p268, %s265, 63
      %s270 = smul.addr %s267, 64
      %s271 = sadd.s32 %s269, %s270
      %s272 = smul.addr %s271, 4
      %s273 = scalar_lea.vmem %s6, %s272
      %s274 = smul.u32 64, %s22
      %s276 = smul.u32 %s22, 16
      %s277 = smul.u32 %s22, 512
      %s278 = sadd.s32 %s276, 1
      %s279 = smul.u32 %s278, 32
      %s280 = sadd.s32 %s276, 2
      %s281 = smul.u32 %s280, 32
      %s282 = sshra.s32 %s277, 3
      %s283 = sand.u32 %s277, 7
      %s284 = smul.addr %s282, 4
      %s285 = scalar_lea.vmem %s264, %s284
      %v286 = vld [vmem:[%s285] sm:$0xf]
      %v287 = vld [vmem:[%s285 + $0x4] sm:$0xf]
      %v288 = vld [vmem:[%s285 + $0x8] sm:$0xf]
      %v289 = vld [vmem:[%s285 + $0xc] sm:$0xf]
      %v290 = vld [vmem:[%s285 + $0x10] sm:$0xf]
      %v291 = vld [vmem:[%s285 + $0x14] sm:$0xf]
      %v292 = vld [vmem:[%s285 + $0x18] sm:$0xf]
      %v293 = vld [vmem:[%s285 + $0x1c] sm:$0xf]
      %v294 = vld [vmem:[%s285 + $0x20] sm:$0xf]
      %v295 = vld [vmem:[%s285 + $0x24] sm:$0xf]
      %v296 = vld [vmem:[%s285 + $0x28] sm:$0xf]
      %v297 = vld [vmem:[%s285 + $0x2c] sm:$0xf]
      %v298 = vld [vmem:[%s285 + $0x30] sm:$0xf]
      %v299 = vld [vmem:[%s285 + $0x34] sm:$0xf]
      %v300 = vld [vmem:[%s285 + $0x38] sm:$0xf]
      %v301 = vld [vmem:[%s285 + $0x3c] sm:$0xf]
      %v302 = vld [vmem:[%s285 + $0x40] sm:$0xf]
      %v303 = vld [vmem:[%s285 + $0x44] sm:$0xf]
      %v304 = vld [vmem:[%s285 + $0x48] sm:$0xf]
      %v305 = vld [vmem:[%s285 + $0x4c] sm:$0xf]
      %v306 = vld [vmem:[%s285 + $0x50] sm:$0xf]
      %v307 = vld [vmem:[%s285 + $0x54] sm:$0xf]
      %v308 = vld [vmem:[%s285 + $0x58] sm:$0xf]
      %v309 = vld [vmem:[%s285 + $0x5c] sm:$0xf]
      %v310 = vld [vmem:[%s285 + $0x60] sm:$0xf]
      %v311 = vld [vmem:[%s285 + $0x64] sm:$0xf]
      %v312 = vld [vmem:[%s285 + $0x68] sm:$0xf]
      %v313 = vld [vmem:[%s285 + $0x6c] sm:$0xf]
      %v314 = vld [vmem:[%s285 + $0x70] sm:$0xf]
      %v315 = vld [vmem:[%s285 + $0x74] sm:$0xf]
      %v316 = vld [vmem:[%s285 + $0x78] sm:$0xf]
      %v317 = vld [vmem:[%s285 + $0x7c] sm:$0xf]
      %v318 = vld [vmem:[%s285 + $0x80] sm:$0xf]
      %v319 = vld [vmem:[%s285 + $0x84] sm:$0xf]
      %v320 = vld [vmem:[%s285 + $0x88] sm:$0xf]
      %v321 = vld [vmem:[%s285 + $0x8c] sm:$0xf]
      %v322 = vld [vmem:[%s285 + $0x90] sm:$0xf]
      %v323 = vld [vmem:[%s285 + $0x94] sm:$0xf]
      %v324 = vld [vmem:[%s285 + $0x98] sm:$0xf]
      %v325 = vld [vmem:[%s285 + $0x9c] sm:$0xf]
      %v326 = vld [vmem:[%s285 + $0xa0] sm:$0xf]
      %v327 = vld [vmem:[%s285 + $0xa4] sm:$0xf]
      %v328 = vld [vmem:[%s285 + $0xa8] sm:$0xf]
      %v329 = vld [vmem:[%s285 + $0xac] sm:$0xf]
      %v330 = vld [vmem:[%s285 + $0xb0] sm:$0xf]
      %v331 = vld [vmem:[%s285 + $0xb4] sm:$0xf]
      %v332 = vld [vmem:[%s285 + $0xb8] sm:$0xf]
      %v333 = vld [vmem:[%s285 + $0xbc] sm:$0xf]
      %v334 = vld [vmem:[%s285 + $0xc0] sm:$0xf]
      %v335 = vld [vmem:[%s285 + $0xc4] sm:$0xf]
      %v336 = vld [vmem:[%s285 + $0xc8] sm:$0xf]
      %v337 = vld [vmem:[%s285 + $0xcc] sm:$0xf]
      %v338 = vld [vmem:[%s285 + $0xd0] sm:$0xf]
      %v339 = vld [vmem:[%s285 + $0xd4] sm:$0xf]
      %v340 = vld [vmem:[%s285 + $0xd8] sm:$0xf]
      %v341 = vld [vmem:[%s285 + $0xdc] sm:$0xf]
      %v342 = vld [vmem:[%s285 + $0xe0] sm:$0xf]
      %v343 = vld [vmem:[%s285 + $0xe4] sm:$0xf]
      %v344 = vld [vmem:[%s285 + $0xe8] sm:$0xf]
      %v345 = vld [vmem:[%s285 + $0xec] sm:$0xf]
      %v346 = vld [vmem:[%s285 + $0xf0] sm:$0xf]
      %v347 = vld [vmem:[%s285 + $0xf4] sm:$0xf]
      %v348 = vld [vmem:[%s285 + $0xf8] sm:$0xf]
      %v349 = vld [vmem:[%s285 + $0xfc] sm:$0xf]
      %v350 = vld [vmem:[%s285 + $0x100] sm:$0xf]
      %v351 = vld [vmem:[%s285 + $0x104] sm:$0xf]
      %v352 = vld [vmem:[%s285 + $0x108] sm:$0xf]
      %v353 = vld [vmem:[%s285 + $0x10c] sm:$0xf]
      %v354 = vld [vmem:[%s285 + $0x110] sm:$0xf]
      %v355 = vld [vmem:[%s285 + $0x114] sm:$0xf]
      %v356 = vld [vmem:[%s285 + $0x118] sm:$0xf]
      %v357 = vld [vmem:[%s285 + $0x11c] sm:$0xf]
      %s358 = sshra.s32 %s279, 3
      %s359 = sand.u32 %s279, 7
      %s360 = smul.addr %s358, 4
      %s361 = scalar_lea.vmem %s264, %s360
      %v362 = vld [vmem:[%s361] sm:$0xf]
      %v363 = vld [vmem:[%s361 + $0x4] sm:$0xf]
      %v364 = vld [vmem:[%s361 + $0x8] sm:$0xf]
      %v365 = vld [vmem:[%s361 + $0xc] sm:$0xf]
      %v366 = vld [vmem:[%s361 + $0x10] sm:$0xf]
      %v367 = vld [vmem:[%s361 + $0x14] sm:$0xf]
      %v368 = vld [vmem:[%s361 + $0x18] sm:$0xf]
      %v369 = vld [vmem:[%s361 + $0x1c] sm:$0xf]
      %v370 = vld [vmem:[%s361 + $0x20] sm:$0xf]
      %v371 = vld [vmem:[%s361 + $0x24] sm:$0xf]
      %v372 = vld [vmem:[%s361 + $0x28] sm:$0xf]
      %v373 = vld [vmem:[%s361 + $0x2c] sm:$0xf]
      %v374 = vld [vmem:[%s361 + $0x30] sm:$0xf]
      %v375 = vld [vmem:[%s361 + $0x34] sm:$0xf]
      %v376 = vld [vmem:[%s361 + $0x38] sm:$0xf]
      %v377 = vld [vmem:[%s361 + $0x3c] sm:$0xf]
      %v378 = vld [vmem:[%s361 + $0x40] sm:$0xf]
      %v379 = vld [vmem:[%s361 + $0x44] sm:$0xf]
      %v380 = vld [vmem:[%s361 + $0x48] sm:$0xf]
      %v381 = vld [vmem:[%s361 + $0x4c] sm:$0xf]
      %v382 = vld [vmem:[%s361 + $0x50] sm:$0xf]
      %v383 = vld [vmem:[%s361 + $0x54] sm:$0xf]
      %v384 = vld [vmem:[%s361 + $0x58] sm:$0xf]
      %v385 = vld [vmem:[%s361 + $0x5c] sm:$0xf]
      %v386 = vld [vmem:[%s361 + $0x60] sm:$0xf]
      %v387 = vld [vmem:[%s361 + $0x64] sm:$0xf]
      %v388 = vld [vmem:[%s361 + $0x68] sm:$0xf]
      %v389 = vld [vmem:[%s361 + $0x6c] sm:$0xf]
      %v390 = vld [vmem:[%s361 + $0x70] sm:$0xf]
      %v391 = vld [vmem:[%s361 + $0x74] sm:$0xf]
      %v392 = vld [vmem:[%s361 + $0x78] sm:$0xf]
      %v393 = vld [vmem:[%s361 + $0x7c] sm:$0xf]
      %v394 = vld [vmem:[%s361 + $0x80] sm:$0xf]
      %v395 = vld [vmem:[%s361 + $0x84] sm:$0xf]
      %v396 = vld [vmem:[%s361 + $0x88] sm:$0xf]
      %v397 = vld [vmem:[%s361 + $0x8c] sm:$0xf]
      %v398 = vld [vmem:[%s361 + $0x90] sm:$0xf]
      %v399 = vld [vmem:[%s361 + $0x94] sm:$0xf]
      %v400 = vld [vmem:[%s361 + $0x98] sm:$0xf]
      %v401 = vld [vmem:[%s361 + $0x9c] sm:$0xf]
      %v402 = vld [vmem:[%s361 + $0xa0] sm:$0xf]
      %v403 = vld [vmem:[%s361 + $0xa4] sm:$0xf]
      %v404 = vld [vmem:[%s361 + $0xa8] sm:$0xf]
      %v405 = vld [vmem:[%s361 + $0xac] sm:$0xf]
      %v406 = vld [vmem:[%s361 + $0xb0] sm:$0xf]
      %v407 = vld [vmem:[%s361 + $0xb4] sm:$0xf]
      %v408 = vld [vmem:[%s361 + $0xb8] sm:$0xf]
      %v409 = vld [vmem:[%s361 + $0xbc] sm:$0xf]
      %v410 = vld [vmem:[%s361 + $0xc0] sm:$0xf]
      %v411 = vld [vmem:[%s361 + $0xc4] sm:$0xf]
      %v412 = vld [vmem:[%s361 + $0xc8] sm:$0xf]
      %v413 = vld [vmem:[%s361 + $0xcc] sm:$0xf]
      %v414 = vld [vmem:[%s361 + $0xd0] sm:$0xf]
      %v415 = vld [vmem:[%s361 + $0xd4] sm:$0xf]
      %v416 = vld [vmem:[%s361 + $0xd8] sm:$0xf]
      %v417 = vld [vmem:[%s361 + $0xdc] sm:$0xf]
      %v418 = vld [vmem:[%s361 + $0xe0] sm:$0xf]
      %v419 = vld [vmem:[%s361 + $0xe4] sm:$0xf]
      %v420 = vld [vmem:[%s361 + $0xe8] sm:$0xf]
      %v421 = vld [vmem:[%s361 + $0xec] sm:$0xf]
      %v422 = vld [vmem:[%s361 + $0xf0] sm:$0xf]
      %v423 = vld [vmem:[%s361 + $0xf4] sm:$0xf]
      %v424 = vld [vmem:[%s361 + $0xf8] sm:$0xf]
      %v425 = vld [vmem:[%s361 + $0xfc] sm:$0xf]
      %v426 = vld [vmem:[%s361 + $0x100] sm:$0xf]
      %v427 = vld [vmem:[%s361 + $0x104] sm:$0xf]
      %v428 = vld [vmem:[%s361 + $0x108] sm:$0xf]
      %v429 = vld [vmem:[%s361 + $0x10c] sm:$0xf]
      %v430 = vld [vmem:[%s361 + $0x110] sm:$0xf]
      %v431 = vld [vmem:[%s361 + $0x114] sm:$0xf]
      %v432 = vld [vmem:[%s361 + $0x118] sm:$0xf]
      %v433 = vld [vmem:[%s361 + $0x11c] sm:$0xf]
      %s434 = sshra.s32 %s281, 3
      %s435 = sand.u32 %s281, 7
      %s436 = smul.addr %s434, 4
      %s437 = scalar_lea.vmem %s264, %s436
      %v438 = vld [vmem:[%s437] sm:$0xf]
      %v439 = vld [vmem:[%s437 + $0x4] sm:$0xf]
      %v440 = vld [vmem:[%s437 + $0x8] sm:$0xf]
      %v441 = vld [vmem:[%s437 + $0xc] sm:$0xf]
      %v442 = vld [vmem:[%s437 + $0x10] sm:$0xf]
      %v443 = vld [vmem:[%s437 + $0x14] sm:$0xf]
      %v444 = vld [vmem:[%s437 + $0x18] sm:$0xf]
      %v445 = vld [vmem:[%s437 + $0x1c] sm:$0xf]
      %v446 = vld [vmem:[%s437 + $0x20] sm:$0xf]
      %v447 = vld [vmem:[%s437 + $0x24] sm:$0xf]
      %v448 = vld [vmem:[%s437 + $0x28] sm:$0xf]
      %v449 = vld [vmem:[%s437 + $0x2c] sm:$0xf]
      %v450 = vld [vmem:[%s437 + $0x30] sm:$0xf]
      %v451 = vld [vmem:[%s437 + $0x34] sm:$0xf]
      %v452 = vld [vmem:[%s437 + $0x38] sm:$0xf]
      %v453 = vld [vmem:[%s437 + $0x3c] sm:$0xf]
      %v454 = vld [vmem:[%s437 + $0x40] sm:$0xf]
      %v455 = vld [vmem:[%s437 + $0x44] sm:$0xf]
      %v456 = vld [vmem:[%s437 + $0x48] sm:$0xf]
      %v457 = vld [vmem:[%s437 + $0x4c] sm:$0xf]
      %v458 = vld [vmem:[%s437 + $0x50] sm:$0xf]
      %v459 = vld [vmem:[%s437 + $0x54] sm:$0xf]
      %v460 = vld [vmem:[%s437 + $0x58] sm:$0xf]
      %v461 = vld [vmem:[%s437 + $0x5c] sm:$0xf]
      %v462 = vld [vmem:[%s437 + $0x60] sm:$0xf]
      %v463 = vld [vmem:[%s437 + $0x64] sm:$0xf]
      %v464 = vld [vmem:[%s437 + $0x68] sm:$0xf]
      %v465 = vld [vmem:[%s437 + $0x6c] sm:$0xf]
      %v466 = vld [vmem:[%s437 + $0x70] sm:$0xf]
      %v467 = vld [vmem:[%s437 + $0x74] sm:$0xf]
      %v468 = vld [vmem:[%s437 + $0x78] sm:$0xf]
      %v469 = vld [vmem:[%s437 + $0x7c] sm:$0xf]
      %v470 = vld [vmem:[%s437 + $0x80] sm:$0xf]
      %v471 = vld [vmem:[%s437 + $0x84] sm:$0xf]
      %v472 = vld [vmem:[%s437 + $0x88] sm:$0xf]
      %v473 = vld [vmem:[%s437 + $0x8c] sm:$0xf]
      %v474 = vld [vmem:[%s437 + $0x90] sm:$0xf]
      %v475 = vld [vmem:[%s437 + $0x94] sm:$0xf]
      %v476 = vld [vmem:[%s437 + $0x98] sm:$0xf]
      %v477 = vld [vmem:[%s437 + $0x9c] sm:$0xf]
      %v478 = vld [vmem:[%s437 + $0xa0] sm:$0xf]
      %v479 = vld [vmem:[%s437 + $0xa4] sm:$0xf]
      %v480 = vld [vmem:[%s437 + $0xa8] sm:$0xf]
      %v481 = vld [vmem:[%s437 + $0xac] sm:$0xf]
      %v482 = vld [vmem:[%s437 + $0xb0] sm:$0xf]
      %v483 = vld [vmem:[%s437 + $0xb4] sm:$0xf]
      %v484 = vld [vmem:[%s437 + $0xb8] sm:$0xf]
      %v485 = vld [vmem:[%s437 + $0xbc] sm:$0xf]
      %v486 = vld [vmem:[%s437 + $0xc0] sm:$0xf]
      %v487 = vld [vmem:[%s437 + $0xc4] sm:$0xf]
      %v488 = vld [vmem:[%s437 + $0xc8] sm:$0xf]
      %v489 = vld [vmem:[%s437 + $0xcc] sm:$0xf]
      %v490 = vld [vmem:[%s437 + $0xd0] sm:$0xf]
      %v491 = vld [vmem:[%s437 + $0xd4] sm:$0xf]
      %v492 = vld [vmem:[%s437 + $0xd8] sm:$0xf]
      %v493 = vld [vmem:[%s437 + $0xdc] sm:$0xf]
      %v494 = vld [vmem:[%s437 + $0xe0] sm:$0xf]
      %v495 = vld [vmem:[%s437 + $0xe4] sm:$0xf]
      %v496 = vld [vmem:[%s437 + $0xe8] sm:$0xf]
      %v497 = vld [vmem:[%s437 + $0xec] sm:$0xf]
      %v498 = vld [vmem:[%s437 + $0xf0] sm:$0xf]
      %v499 = vld [vmem:[%s437 + $0xf4] sm:$0xf]
      %v500 = vld [vmem:[%s437 + $0xf8] sm:$0xf]
      %v501 = vld [vmem:[%s437 + $0xfc] sm:$0xf]
      %v502 = vld [vmem:[%s437 + $0x100] sm:$0xf]
      %v503 = vld [vmem:[%s437 + $0x104] sm:$0xf]
      %v504 = vld [vmem:[%s437 + $0x108] sm:$0xf]
      %v505 = vld [vmem:[%s437 + $0x10c] sm:$0xf]
      %v506 = vld [vmem:[%s437 + $0x110] sm:$0xf]
      %v507 = vld [vmem:[%s437 + $0x114] sm:$0xf]
      %v508 = vld [vmem:[%s437 + $0x118] sm:$0xf]
      %v509 = vld [vmem:[%s437 + $0x11c] sm:$0xf]
      %v582 = vunpack.c.l.b16 %v286
      %v583 = vunpack.c.l.b16 %v287
      %v584 = vunpack.c.l.b16 %v288
      %v585 = vunpack.c.l.b16 %v289
      %v586 = vunpack.c.l.b16 %v290
      %v587 = vunpack.c.l.b16 %v291
      %v588 = vunpack.c.l.b16 %v292
      %v589 = vunpack.c.l.b16 %v293
      %v590 = vunpack.c.l.b16 %v294
      %v591 = vunpack.c.l.b16 %v295
      %v592 = vunpack.c.l.b16 %v296
      %v593 = vunpack.c.l.b16 %v297
      %v594 = vunpack.c.l.b16 %v298
      %v595 = vunpack.c.l.b16 %v299
      %v596 = vunpack.c.l.b16 %v300
      %v597 = vunpack.c.l.b16 %v301
      %v598 = vunpack.c.l.b16 %v302
      %v599 = vunpack.c.l.b16 %v303
      %v600 = vunpack.c.l.b16 %v304
      %v601 = vunpack.c.l.b16 %v305
      %v602 = vunpack.c.l.b16 %v306
      %v603 = vunpack.c.l.b16 %v307
      %v604 = vunpack.c.l.b16 %v308
      %v605 = vunpack.c.l.b16 %v309
      %v606 = vunpack.c.l.b16 %v310
      %v607 = vunpack.c.l.b16 %v311
      %v608 = vunpack.c.l.b16 %v312
      %v609 = vunpack.c.l.b16 %v313
      %v610 = vunpack.c.l.b16 %v314
      %v611 = vunpack.c.l.b16 %v315
      %v612 = vunpack.c.l.b16 %v316
      %v613 = vunpack.c.l.b16 %v317
      %v614 = vunpack.c.l.b16 %v318
      %v615 = vunpack.c.l.b16 %v319
      %v616 = vunpack.c.l.b16 %v320
      %v617 = vunpack.c.l.b16 %v321
      %v618 = vunpack.c.l.b16 %v322
      %v619 = vunpack.c.l.b16 %v323
      %v620 = vunpack.c.l.b16 %v324
      %v621 = vunpack.c.l.b16 %v325
      %v622 = vunpack.c.l.b16 %v326
      %v623 = vunpack.c.l.b16 %v327
      %v624 = vunpack.c.l.b16 %v328
      %v625 = vunpack.c.l.b16 %v329
      %v626 = vunpack.c.l.b16 %v330
      %v627 = vunpack.c.l.b16 %v331
      %v628 = vunpack.c.l.b16 %v332
      %v629 = vunpack.c.l.b16 %v333
      %v630 = vunpack.c.l.b16 %v334
      %v631 = vunpack.c.l.b16 %v335
      %v632 = vunpack.c.l.b16 %v336
      %v633 = vunpack.c.l.b16 %v337
      %v634 = vunpack.c.l.b16 %v338
      %v635 = vunpack.c.l.b16 %v339
      %v636 = vunpack.c.l.b16 %v340
      %v637 = vunpack.c.l.b16 %v341
      %v638 = vunpack.c.l.b16 %v342
      %v639 = vunpack.c.l.b16 %v343
      %v640 = vunpack.c.l.b16 %v344
      %v641 = vunpack.c.l.b16 %v345
      %v642 = vunpack.c.l.b16 %v346
      %v643 = vunpack.c.l.b16 %v347
      %v644 = vunpack.c.l.b16 %v348
      %v645 = vunpack.c.l.b16 %v349
      %v646 = vunpack.c.l.b16 %v350
      %v647 = vunpack.c.l.b16 %v351
      %v648 = vunpack.c.l.b16 %v352
      %v649 = vunpack.c.l.b16 %v353
      %v650 = vunpack.c.l.b16 %v354
      %v651 = vunpack.c.l.b16 %v355
      %v652 = vunpack.c.l.b16 %v356
      %v653 = vunpack.c.l.b16 %v357
      %v654 = vpack.c.b16 %v583, %v582
      %v655 = vpack.c.b16 %v585, %v584
      %v656 = vpack.c.b16 %v587, %v586
      %v657 = vpack.c.b16 %v589, %v588
      %v658 = vpack.c.b16 %v591, %v590
      %v659 = vpack.c.b16 %v593, %v592
      %v660 = vpack.c.b16 %v595, %v594
      %v661 = vpack.c.b16 %v597, %v596
      %v662 = vpack.c.b16 %v599, %v598
      %v663 = vpack.c.b16 %v601, %v600
      %v664 = vpack.c.b16 %v603, %v602
      %v665 = vpack.c.b16 %v605, %v604
      %v666 = vpack.c.b16 %v607, %v606
      %v667 = vpack.c.b16 %v609, %v608
      %v668 = vpack.c.b16 %v611, %v610
      %v669 = vpack.c.b16 %v613, %v612
      %v670 = vpack.c.b16 %v615, %v614
      %v671 = vpack.c.b16 %v617, %v616
      %v672 = vpack.c.b16 %v619, %v618
      %v673 = vpack.c.b16 %v621, %v620
      %v674 = vpack.c.b16 %v623, %v622
      %v675 = vpack.c.b16 %v625, %v624
      %v676 = vpack.c.b16 %v627, %v626
      %v677 = vpack.c.b16 %v629, %v628
      %v678 = vpack.c.b16 %v631, %v630
      %v679 = vpack.c.b16 %v633, %v632
      %v680 = vpack.c.b16 %v635, %v634
      %v681 = vpack.c.b16 %v637, %v636
      %v682 = vpack.c.b16 %v639, %v638
      %v683 = vpack.c.b16 %v641, %v640
      %v684 = vpack.c.b16 %v643, %v642
      %v685 = vpack.c.b16 %v645, %v644
      %v686 = vpack.c.b16 %v647, %v646
      %v687 = vpack.c.b16 %v649, %v648
      %v688 = vpack.c.b16 %v651, %v650
      %v689 = vpack.c.b16 %v653, %v652
      %v798 = vunpack.c.l.b16 %v362
      %v799 = vunpack.c.l.b16 %v363
      %v800 = vunpack.c.l.b16 %v364
      %v801 = vunpack.c.l.b16 %v365
      %v802 = vunpack.c.l.b16 %v366
      %v803 = vunpack.c.l.b16 %v367
      %v804 = vunpack.c.l.b16 %v368
      %v805 = vunpack.c.l.b16 %v369
      %v806 = vunpack.c.l.b16 %v370
      %v807 = vunpack.c.l.b16 %v371
      %v808 = vunpack.c.l.b16 %v372
      %v809 = vunpack.c.l.b16 %v373
      %v810 = vunpack.c.l.b16 %v374
      %v811 = vunpack.c.l.b16 %v375
      %v812 = vunpack.c.l.b16 %v376
      %v813 = vunpack.c.l.b16 %v377
      %v814 = vunpack.c.l.b16 %v378
      %v815 = vunpack.c.l.b16 %v379
      %v816 = vunpack.c.l.b16 %v380
      %v817 = vunpack.c.l.b16 %v381
      %v818 = vunpack.c.l.b16 %v382
      %v819 = vunpack.c.l.b16 %v383
      %v820 = vunpack.c.l.b16 %v384
      %v821 = vunpack.c.l.b16 %v385
      %v822 = vunpack.c.l.b16 %v386
      %v823 = vunpack.c.l.b16 %v387
      %v824 = vunpack.c.l.b16 %v388
      %v825 = vunpack.c.l.b16 %v389
      %v826 = vunpack.c.l.b16 %v390
      %v827 = vunpack.c.l.b16 %v391
      %v828 = vunpack.c.l.b16 %v392
      %v829 = vunpack.c.l.b16 %v393
      %v830 = vunpack.c.l.b16 %v394
      %v831 = vunpack.c.l.b16 %v395
      %v832 = vunpack.c.l.b16 %v396
      %v833 = vunpack.c.l.b16 %v397
      %v834 = vunpack.c.l.b16 %v398
      %v835 = vunpack.c.l.b16 %v399
      %v836 = vunpack.c.l.b16 %v400
      %v837 = vunpack.c.l.b16 %v401
      %v838 = vunpack.c.l.b16 %v402
      %v839 = vunpack.c.l.b16 %v403
      %v840 = vunpack.c.l.b16 %v404
      %v841 = vunpack.c.l.b16 %v405
      %v842 = vunpack.c.l.b16 %v406
      %v843 = vunpack.c.l.b16 %v407
      %v844 = vunpack.c.l.b16 %v408
      %v845 = vunpack.c.l.b16 %v409
      %v846 = vunpack.c.l.b16 %v410
      %v847 = vunpack.c.l.b16 %v411
      %v848 = vunpack.c.l.b16 %v412
      %v849 = vunpack.c.l.b16 %v413
      %v850 = vunpack.c.l.b16 %v414
      %v851 = vunpack.c.l.b16 %v415
      %v852 = vunpack.c.l.b16 %v416
      %v853 = vunpack.c.l.b16 %v417
      %v854 = vunpack.c.l.b16 %v418
      %v855 = vunpack.c.l.b16 %v419
      %v856 = vunpack.c.l.b16 %v420
      %v857 = vunpack.c.l.b16 %v421
      %v858 = vunpack.c.l.b16 %v422
      %v859 = vunpack.c.l.b16 %v423
      %v860 = vunpack.c.l.b16 %v424
      %v861 = vunpack.c.l.b16 %v425
      %v862 = vunpack.c.l.b16 %v426
      %v863 = vunpack.c.l.b16 %v427
      %v864 = vunpack.c.l.b16 %v428
      %v865 = vunpack.c.l.b16 %v429
      %v866 = vunpack.c.l.b16 %v430
      %v867 = vunpack.c.l.b16 %v431
      %v868 = vunpack.c.l.b16 %v432
      %v869 = vunpack.c.l.b16 %v433
      %v870 = vpack.c.b16 %v799, %v798
      %v871 = vpack.c.b16 %v801, %v800
      %v872 = vpack.c.b16 %v803, %v802
      %v873 = vpack.c.b16 %v805, %v804
      %v874 = vpack.c.b16 %v807, %v806
      %v875 = vpack.c.b16 %v809, %v808
      %v876 = vpack.c.b16 %v811, %v810
      %v877 = vpack.c.b16 %v813, %v812
      %v878 = vpack.c.b16 %v815, %v814
      %v879 = vpack.c.b16 %v817, %v816
      %v880 = vpack.c.b16 %v819, %v818
      %v881 = vpack.c.b16 %v821, %v820
      %v882 = vpack.c.b16 %v823, %v822
      %v883 = vpack.c.b16 %v825, %v824
      %v884 = vpack.c.b16 %v827, %v826
      %v885 = vpack.c.b16 %v829, %v828
      %v886 = vpack.c.b16 %v831, %v830
      %v887 = vpack.c.b16 %v833, %v832
      %v888 = vpack.c.b16 %v835, %v834
      %v889 = vpack.c.b16 %v837, %v836
      %v890 = vpack.c.b16 %v839, %v838
      %v891 = vpack.c.b16 %v841, %v840
      %v892 = vpack.c.b16 %v843, %v842
      %v893 = vpack.c.b16 %v845, %v844
      %v894 = vpack.c.b16 %v847, %v846
      %v895 = vpack.c.b16 %v849, %v848
      %v896 = vpack.c.b16 %v851, %v850
      %v897 = vpack.c.b16 %v853, %v852
      %v898 = vpack.c.b16 %v855, %v854
      %v899 = vpack.c.b16 %v857, %v856
      %v900 = vpack.c.b16 %v859, %v858
      %v901 = vpack.c.b16 %v861, %v860
      %v902 = vpack.c.b16 %v863, %v862
      %v903 = vpack.c.b16 %v865, %v864
      %v904 = vpack.c.b16 %v867, %v866
      %v905 = vpack.c.b16 %v869, %v868
      %v1014 = vunpack.c.l.b16 %v438
      %v1015 = vunpack.c.l.b16 %v439
      %v1016 = vunpack.c.l.b16 %v440
      %v1017 = vunpack.c.l.b16 %v441
      %v1018 = vunpack.c.l.b16 %v442
      %v1019 = vunpack.c.l.b16 %v443
      %v1020 = vunpack.c.l.b16 %v444
      %v1021 = vunpack.c.l.b16 %v445
      %v1022 = vunpack.c.l.b16 %v446
      %v1023 = vunpack.c.l.b16 %v447
      %v1024 = vunpack.c.l.b16 %v448
      %v1025 = vunpack.c.l.b16 %v449
      %v1026 = vunpack.c.l.b16 %v450
      %v1027 = vunpack.c.l.b16 %v451
      %v1028 = vunpack.c.l.b16 %v452
      %v1029 = vunpack.c.l.b16 %v453
      %v1030 = vunpack.c.l.b16 %v454
      %v1031 = vunpack.c.l.b16 %v455
      %v1032 = vunpack.c.l.b16 %v456
      %v1033 = vunpack.c.l.b16 %v457
      %v1034 = vunpack.c.l.b16 %v458
      %v1035 = vunpack.c.l.b16 %v459
      %v1036 = vunpack.c.l.b16 %v460
      %v1037 = vunpack.c.l.b16 %v461
      %v1038 = vunpack.c.l.b16 %v462
      %v1039 = vunpack.c.l.b16 %v463
      %v1040 = vunpack.c.l.b16 %v464
      %v1041 = vunpack.c.l.b16 %v465
      %v1042 = vunpack.c.l.b16 %v466
      %v1043 = vunpack.c.l.b16 %v467
      %v1044 = vunpack.c.l.b16 %v468
      %v1045 = vunpack.c.l.b16 %v469
      %v1046 = vunpack.c.l.b16 %v470
      %v1047 = vunpack.c.l.b16 %v471
      %v1048 = vunpack.c.l.b16 %v472
      %v1049 = vunpack.c.l.b16 %v473
      %v1050 = vunpack.c.l.b16 %v474
      %v1051 = vunpack.c.l.b16 %v475
      %v1052 = vunpack.c.l.b16 %v476
      %v1053 = vunpack.c.l.b16 %v477
      %v1054 = vunpack.c.l.b16 %v478
      %v1055 = vunpack.c.l.b16 %v479
      %v1056 = vunpack.c.l.b16 %v480
      %v1057 = vunpack.c.l.b16 %v481
      %v1058 = vunpack.c.l.b16 %v482
      %v1059 = vunpack.c.l.b16 %v483
      %v1060 = vunpack.c.l.b16 %v484
      %v1061 = vunpack.c.l.b16 %v485
      %v1062 = vunpack.c.l.b16 %v486
      %v1063 = vunpack.c.l.b16 %v487
      %v1064 = vunpack.c.l.b16 %v488
      %v1065 = vunpack.c.l.b16 %v489
      %v1066 = vunpack.c.l.b16 %v490
      %v1067 = vunpack.c.l.b16 %v491
      %v1068 = vunpack.c.l.b16 %v492
      %v1069 = vunpack.c.l.b16 %v493
      %v1070 = vunpack.c.l.b16 %v494
      %v1071 = vunpack.c.l.b16 %v495
      %v1072 = vunpack.c.l.b16 %v496
      %v1073 = vunpack.c.l.b16 %v497
      %v1074 = vunpack.c.l.b16 %v498
      %v1075 = vunpack.c.l.b16 %v499
      %v1076 = vunpack.c.l.b16 %v500
      %v1077 = vunpack.c.l.b16 %v501
      %v1078 = vunpack.c.l.b16 %v502
      %v1079 = vunpack.c.l.b16 %v503
      %v1080 = vunpack.c.l.b16 %v504
      %v1081 = vunpack.c.l.b16 %v505
      %v1082 = vunpack.c.l.b16 %v506
      %v1083 = vunpack.c.l.b16 %v507
      %v1084 = vunpack.c.l.b16 %v508
      %v1085 = vunpack.c.l.b16 %v509
      %v1086 = vpack.c.b16 %v1015, %v1014
      %v1087 = vpack.c.b16 %v1017, %v1016
      %v1088 = vpack.c.b16 %v1019, %v1018
      %v1089 = vpack.c.b16 %v1021, %v1020
      %v1090 = vpack.c.b16 %v1023, %v1022
      %v1091 = vpack.c.b16 %v1025, %v1024
      %v1092 = vpack.c.b16 %v1027, %v1026
      %v1093 = vpack.c.b16 %v1029, %v1028
      %v1094 = vpack.c.b16 %v1031, %v1030
      %v1095 = vpack.c.b16 %v1033, %v1032
      %v1096 = vpack.c.b16 %v1035, %v1034
      %v1097 = vpack.c.b16 %v1037, %v1036
      %v1098 = vpack.c.b16 %v1039, %v1038
      %v1099 = vpack.c.b16 %v1041, %v1040
      %v1100 = vpack.c.b16 %v1043, %v1042
      %v1101 = vpack.c.b16 %v1045, %v1044
      %v1102 = vpack.c.b16 %v1047, %v1046
      %v1103 = vpack.c.b16 %v1049, %v1048
      %v1104 = vpack.c.b16 %v1051, %v1050
      %v1105 = vpack.c.b16 %v1053, %v1052
      %v1106 = vpack.c.b16 %v1055, %v1054
      %v1107 = vpack.c.b16 %v1057, %v1056
      %v1108 = vpack.c.b16 %v1059, %v1058
      %v1109 = vpack.c.b16 %v1061, %v1060
      %v1110 = vpack.c.b16 %v1063, %v1062
      %v1111 = vpack.c.b16 %v1065, %v1064
      %v1112 = vpack.c.b16 %v1067, %v1066
      %v1113 = vpack.c.b16 %v1069, %v1068
      %v1114 = vpack.c.b16 %v1071, %v1070
      %v1115 = vpack.c.b16 %v1073, %v1072
      %v1116 = vpack.c.b16 %v1075, %v1074
      %v1117 = vpack.c.b16 %v1077, %v1076
      %v1118 = vpack.c.b16 %v1079, %v1078
      %v1119 = vpack.c.b16 %v1081, %v1080
      %v1120 = vpack.c.b16 %v1083, %v1082
      %v1121 = vpack.c.b16 %v1085, %v1084
      %s1158 = scalar_lea.vmem %s1, 192
      %v1159 = vld [vmem:[%s1158] sm:$0xf]
      %v1160 = vld [vmem:[%s1158 + $0x4] sm:$0xf]
      %v1161 = vld [vmem:[%s1158 + $0x8] sm:$0xf]
      %v1162 = vld [vmem:[%s1158 + $0xc] sm:$0xf]
      %v1163 = vld [vmem:[%s1158 + $0x10] sm:$0xf]
      %v1164 = vld [vmem:[%s1158 + $0x14] sm:$0xf]
      %v1165 = vld [vmem:[%s1158 + $0x18] sm:$0xf]
      %v1166 = vld [vmem:[%s1158 + $0x1c] sm:$0xf]
      %v1167 = vld [vmem:[%s1158 + $0x20] sm:$0xf]
      %v1168 = vld [vmem:[%s1158 + $0x24] sm:$0xf]
      %v1169 = vld [vmem:[%s1158 + $0x28] sm:$0xf]
      %v1170 = vld [vmem:[%s1158 + $0x2c] sm:$0xf]
      %v1171 = vld [vmem:[%s1158 + $0x30] sm:$0xf]
      %v1172 = vld [vmem:[%s1158 + $0x34] sm:$0xf]
      %v1173 = vld [vmem:[%s1158 + $0x38] sm:$0xf]
      %v1174 = vld [vmem:[%s1158 + $0x3c] sm:$0xf]
      %v1175 = vld [vmem:[%s1158 + $0x40] sm:$0xf]
      %v1176 = vld [vmem:[%s1158 + $0x44] sm:$0xf]
      %v1177 = vld [vmem:[%s1158 + $0x48] sm:$0xf]
      %v1178 = vld [vmem:[%s1158 + $0x4c] sm:$0xf]
      %v1179 = vld [vmem:[%s1158 + $0x50] sm:$0xf]
      %v1180 = vld [vmem:[%s1158 + $0x54] sm:$0xf]
      %v1181 = vld [vmem:[%s1158 + $0x58] sm:$0xf]
      %v1182 = vld [vmem:[%s1158 + $0x5c] sm:$0xf]
      %v1183 = vld [vmem:[%s1158 + $0x60] sm:$0xf]
      %v1184 = vld [vmem:[%s1158 + $0x64] sm:$0xf]
      %v1185 = vld [vmem:[%s1158 + $0x68] sm:$0xf]
      %v1186 = vld [vmem:[%s1158 + $0x6c] sm:$0xf]
      %v1187 = vld [vmem:[%s1158 + $0x70] sm:$0xf]
      %v1188 = vld [vmem:[%s1158 + $0x74] sm:$0xf]
      %v1189 = vld [vmem:[%s1158 + $0x78] sm:$0xf]
      %v1190 = vld [vmem:[%s1158 + $0x7c] sm:$0xf]
      %v1191 = vld [vmem:[%s1158 + $0x80] sm:$0xf]
      %v1192 = vld [vmem:[%s1158 + $0x84] sm:$0xf]
      %v1193 = vld [vmem:[%s1158 + $0x88] sm:$0xf]
      %v1194 = vld [vmem:[%s1158 + $0x8c] sm:$0xf]
      %v1195 = vld [vmem:[%s1158 + $0x90] sm:$0xf]
      %v1196 = vld [vmem:[%s1158 + $0x94] sm:$0xf]
      %v1197 = vld [vmem:[%s1158 + $0x98] sm:$0xf]
      %v1198 = vld [vmem:[%s1158 + $0x9c] sm:$0xf]
      %v1199 = vld [vmem:[%s1158 + $0xa0] sm:$0xf]
      %v1200 = vld [vmem:[%s1158 + $0xa4] sm:$0xf]
      %v1201 = vld [vmem:[%s1158 + $0xa8] sm:$0xf]
      %v1202 = vld [vmem:[%s1158 + $0xac] sm:$0xf]
      %v1203 = vld [vmem:[%s1158 + $0xb0] sm:$0xf]
      %v1204 = vld [vmem:[%s1158 + $0xb4] sm:$0xf]
      %v1205 = vld [vmem:[%s1158 + $0xb8] sm:$0xf]
      %v1206 = vld [vmem:[%s1158 + $0xbc] sm:$0xf]
      %v1255 = vunpack.c.l.b16 %v1159
      %v1256 = vunpack.c.l.b16 %v1160
      %v1257 = vunpack.c.l.b16 %v1161
      %v1258 = vunpack.c.l.b16 %v1162
      %v1259 = vunpack.c.l.b16 %v1163
      %v1260 = vunpack.c.l.b16 %v1164
      %v1261 = vunpack.c.l.b16 %v1165
      %v1262 = vunpack.c.l.b16 %v1166
      %v1263 = vunpack.c.l.b16 %v1167
      %v1264 = vunpack.c.l.b16 %v1168
      %v1265 = vunpack.c.l.b16 %v1169
      %v1266 = vunpack.c.l.b16 %v1170
      %v1267 = vunpack.c.l.b16 %v1171
      %v1268 = vunpack.c.l.b16 %v1172
      %v1269 = vunpack.c.l.b16 %v1173
      %v1270 = vunpack.c.l.b16 %v1174
      %v1271 = vunpack.c.l.b16 %v1175
      %v1272 = vunpack.c.l.b16 %v1176
      %v1273 = vunpack.c.l.b16 %v1177
      %v1274 = vunpack.c.l.b16 %v1178
      %v1275 = vunpack.c.l.b16 %v1179
      %v1276 = vunpack.c.l.b16 %v1180
      %v1277 = vunpack.c.l.b16 %v1181
      %v1278 = vunpack.c.l.b16 %v1182
      %v1279 = vunpack.c.l.b16 %v1183
      %v1280 = vunpack.c.l.b16 %v1184
      %v1281 = vunpack.c.l.b16 %v1185
      %v1282 = vunpack.c.l.b16 %v1186
      %v1283 = vunpack.c.l.b16 %v1187
      %v1284 = vunpack.c.l.b16 %v1188
      %v1285 = vunpack.c.l.b16 %v1189
      %v1286 = vunpack.c.l.b16 %v1190
      %v1287 = vunpack.c.l.b16 %v1191
      %v1288 = vunpack.c.l.b16 %v1192
      %v1289 = vunpack.c.l.b16 %v1193
      %v1290 = vunpack.c.l.b16 %v1194
      %v1291 = vunpack.c.l.b16 %v1195
      %v1292 = vunpack.c.l.b16 %v1196
      %v1293 = vunpack.c.l.b16 %v1197
      %v1294 = vunpack.c.l.b16 %v1198
      %v1295 = vunpack.c.l.b16 %v1199
      %v1296 = vunpack.c.l.b16 %v1200
      %v1297 = vunpack.c.l.b16 %v1201
      %v1298 = vunpack.c.l.b16 %v1202
      %v1299 = vunpack.c.l.b16 %v1203
      %v1300 = vunpack.c.l.b16 %v1204
      %v1301 = vunpack.c.l.b16 %v1205
      %v1302 = vunpack.c.l.b16 %v1206
      %v1303 = vpack.c.b16 %v1256, %v1255
      %v1304 = vpack.c.b16 %v1258, %v1257
      %v1305 = vpack.c.b16 %v1260, %v1259
      %v1306 = vpack.c.b16 %v1262, %v1261
      %v1307 = vpack.c.b16 %v1264, %v1263
      %v1308 = vpack.c.b16 %v1266, %v1265
      %v1309 = vpack.c.b16 %v1268, %v1267
      %v1310 = vpack.c.b16 %v1270, %v1269
      %v1311 = vpack.c.b16 %v1272, %v1271
      %v1312 = vpack.c.b16 %v1274, %v1273
      %v1313 = vpack.c.b16 %v1276, %v1275
      %v1314 = vpack.c.b16 %v1278, %v1277
      %v1315 = vpack.c.b16 %v1280, %v1279
      %v1316 = vpack.c.b16 %v1282, %v1281
      %v1317 = vpack.c.b16 %v1284, %v1283
      %v1318 = vpack.c.b16 %v1286, %v1285
      %v1319 = vpack.c.b16 %v1288, %v1287
      %v1320 = vpack.c.b16 %v1290, %v1289
      %v1321 = vpack.c.b16 %v1292, %v1291
      %v1322 = vpack.c.b16 %v1294, %v1293
      %v1323 = vpack.c.b16 %v1296, %v1295
      %v1324 = vpack.c.b16 %v1298, %v1297
      %v1325 = vpack.c.b16 %v1300, %v1299
      %v1326 = vpack.c.b16 %v1302, %v1301
      %1351 = vmatprep.subr.bf16.mxu0 0
      %1352 = vmatpush1.bf16.msra.mxu0 %v1310
      %1353 = vmatprep.subr.bf16.mxu0 0
      %1354 = vmatpush1.bf16.msra.mxu0 %v1309
      %1355 = vmatprep.subr.bf16.mxu0 0
      %1356 = vmatpush1.bf16.msra.mxu0 %v1308
      %1357 = vmatprep.subr.bf16.mxu0 0
      %1358 = vmatpush1.bf16.msra.mxu0 %v1307
      %1359 = vmatprep.subr.bf16.mxu0 0
      %1360 = vmatpush1.bf16.msra.mxu0 %v1306
      %1361 = vmatprep.subr.bf16.mxu0 0
      %1362 = vmatpush1.bf16.msra.mxu0 %v1305
      %1363 = vmatprep.subr.bf16.mxu0 0
      %1364 = vmatpush1.bf16.msra.mxu0 %v1304
      %1365 = vmatprep.subr.bf16.mxu0 0
      %1366 = vmatpush1.bf16.msra.mxu0 %v1303
      %1367 = vmatprep.subr.bf16.mxu0 0
      %1368 = vmatpush2.bf16.msra.mxu0 %v1318
      %1369 = vmatprep.subr.bf16.mxu0 0
      %1370 = vmatpush2.bf16.msra.mxu0 %v1317
      %1371 = vmatprep.subr.bf16.mxu0 0
      %1372 = vmatpush2.bf16.msra.mxu0 %v1316
      %1373 = vmatprep.subr.bf16.mxu0 0
      %1374 = vmatpush2.bf16.msra.mxu0 %v1315
      %1375 = vmatprep.subr.bf16.mxu0 0
      %1376 = vmatpush2.bf16.msra.mxu0 %v1314
      %1377 = vmatprep.subr.bf16.mxu0 0
      %1378 = vmatpush2.bf16.msra.mxu0 %v1313
      %1379 = vmatprep.subr.bf16.mxu0 0
      %1380 = vmatpush2.bf16.msra.mxu0 %v1312
      %1381 = vmatprep.subr.bf16.mxu0 0
      %1382 = vmatpush2.bf16.msra.mxu0 %v1311
      %1383 = vmatprep.mubr.bf16.mxu0 %v870
      %1384 = vmatmul.mubr.bf16.gmra.mxu0 %v654
      %v1385 = vpop.f32.mrf.mxu0
      %v1386 = vadd.f32 0.0, %v1385
      %v1387 = vpop.f32.mrf.mxu0
      %v1388 = vpop.f32.mrf.mxu0
      %v1389 = vadd.f32 0.0, %v1388
      %v1390 = vpop.f32.mrf.mxu0
      %1391 = vmatprep.mubr.bf16.mxu0 %v871
      %1392 = vmatmul.mubr.bf16.gmra.mxu0 %v655
      %v1393 = vpop.f32.mrf.mxu0
      %v1394 = vadd.f32 0.0, %v1393
      %v1395 = vpop.f32.mrf.mxu0
      %v1396 = vpop.f32.mrf.mxu0
      %v1397 = vadd.f32 0.0, %v1396
      %v1398 = vpop.f32.mrf.mxu0
      %1399 = vmatprep.mubr.bf16.mxu0 %v872
      %1400 = vmatmul.mubr.bf16.gmra.mxu0 %v656
      %v1401 = vpop.f32.mrf.mxu0
      %v1402 = vadd.f32 0.0, %v1401
      %v1403 = vpop.f32.mrf.mxu0
      %v1404 = vpop.f32.mrf.mxu0
      %v1405 = vadd.f32 0.0, %v1404
      %v1406 = vpop.f32.mrf.mxu0
      %1407 = vmatprep.mubr.bf16.mxu0 %v873
      %1408 = vmatmul.mubr.bf16.gmra.mxu0 %v657
      %v1409 = vpop.f32.mrf.mxu0
      %v1410 = vadd.f32 0.0, %v1409
      %v1411 = vpop.f32.mrf.mxu0
      %v1412 = vpop.f32.mrf.mxu0
      %v1413 = vadd.f32 0.0, %v1412
      %v1414 = vpop.f32.mrf.mxu0
      %1415 = vmatprep.mubr.bf16.mxu0 %v874
      %1416 = vmatmul.mubr.bf16.gmra.mxu0 %v658
      %v1417 = vpop.f32.mrf.mxu0
      %v1418 = vadd.f32 0.0, %v1417
      %v1419 = vpop.f32.mrf.mxu0
      %v1420 = vpop.f32.mrf.mxu0
      %v1421 = vadd.f32 0.0, %v1420
      %v1422 = vpop.f32.mrf.mxu0
      %1423 = vmatprep.mubr.bf16.mxu0 %v875
      %1424 = vmatmul.mubr.bf16.gmra.mxu0 %v659
      %v1425 = vpop.f32.mrf.mxu0
      %v1426 = vadd.f32 0.0, %v1425
      %v1427 = vpop.f32.mrf.mxu0
      %v1428 = vpop.f32.mrf.mxu0
      %v1429 = vadd.f32 0.0, %v1428
      %v1430 = vpop.f32.mrf.mxu0
      %1431 = vmatprep.mubr.bf16.mxu0 %v876
      %1432 = vmatmul.mubr.bf16.gmra.mxu0 %v660
      %v1433 = vpop.f32.mrf.mxu0
      %v1434 = vadd.f32 0.0, %v1433
      %v1435 = vpop.f32.mrf.mxu0
      %v1436 = vpop.f32.mrf.mxu0
      %v1437 = vadd.f32 0.0, %v1436
      %v1438 = vpop.f32.mrf.mxu0
      %1439 = vmatprep.mubr.bf16.mxu0 %v877
      %1440 = vmatmul.mubr.bf16.gmra.mxu0 %v661
      %v1441 = vpop.f32.mrf.mxu0
      %v1442 = vadd.f32 0.0, %v1441
      %v1443 = vpop.f32.mrf.mxu0
      %v1444 = vpop.f32.mrf.mxu0
      %v1445 = vadd.f32 0.0, %v1444
      %v1446 = vpop.f32.mrf.mxu0
      %1447 = vmatprep.mubr.bf16.mxu0 %v878
      %1448 = vmatmul.mubr.bf16.gmra.mxu0 %v662
      %v1449 = vpop.f32.mrf.mxu0
      %v1450 = vadd.f32 0.0, %v1449
      %v1451 = vpop.f32.mrf.mxu0
      %v1452 = vpop.f32.mrf.mxu0
      %v1453 = vadd.f32 0.0, %v1452
      %v1454 = vpop.f32.mrf.mxu0
      %1455 = vmatprep.mubr.bf16.mxu0 %v879
      %1456 = vmatmul.mubr.bf16.gmra.mxu0 %v663
      %v1457 = vpop.f32.mrf.mxu0
      %v1458 = vadd.f32 0.0, %v1457
      %v1459 = vpop.f32.mrf.mxu0
      %v1460 = vpop.f32.mrf.mxu0
      %v1461 = vadd.f32 0.0, %v1460
      %v1462 = vpop.f32.mrf.mxu0
      %1463 = vmatprep.mubr.bf16.mxu0 %v880
      %1464 = vmatmul.mubr.bf16.gmra.mxu0 %v664
      %v1465 = vpop.f32.mrf.mxu0
      %v1466 = vadd.f32 0.0, %v1465
      %v1467 = vpop.f32.mrf.mxu0
      %v1468 = vpop.f32.mrf.mxu0
      %v1469 = vadd.f32 0.0, %v1468
      %v1470 = vpop.f32.mrf.mxu0
      %1471 = vmatprep.mubr.bf16.mxu0 %v881
      %1472 = vmatmul.mubr.bf16.gmra.mxu0 %v665
      %v1473 = vpop.f32.mrf.mxu0
      %v1474 = vadd.f32 0.0, %v1473
      %v1475 = vpop.f32.mrf.mxu0
      %v1476 = vpop.f32.mrf.mxu0
      %v1477 = vadd.f32 0.0, %v1476
      %v1478 = vpop.f32.mrf.mxu0
      %1479 = vmatprep.mubr.bf16.mxu0 %v882
      %1480 = vmatmul.mubr.bf16.gmra.mxu0 %v666
      %v1481 = vpop.f32.mrf.mxu0
      %v1482 = vadd.f32 0.0, %v1481
      %v1483 = vpop.f32.mrf.mxu0
      %v1484 = vpop.f32.mrf.mxu0
      %v1485 = vadd.f32 0.0, %v1484
      %v1486 = vpop.f32.mrf.mxu0
      %1487 = vmatprep.mubr.bf16.mxu0 %v883
      %1488 = vmatmul.mubr.bf16.gmra.mxu0 %v667
      %v1489 = vpop.f32.mrf.mxu0
      %v1490 = vadd.f32 0.0, %v1489
      %v1491 = vpop.f32.mrf.mxu0
      %v1492 = vpop.f32.mrf.mxu0
      %v1493 = vadd.f32 0.0, %v1492
      %v1494 = vpop.f32.mrf.mxu0
      %1495 = vmatprep.mubr.bf16.mxu0 %v884
      %1496 = vmatmul.mubr.bf16.gmra.mxu0 %v668
      %v1497 = vpop.f32.mrf.mxu0
      %v1498 = vadd.f32 0.0, %v1497
      %v1499 = vpop.f32.mrf.mxu0
      %v1500 = vpop.f32.mrf.mxu0
      %v1501 = vadd.f32 0.0, %v1500
      %v1502 = vpop.f32.mrf.mxu0
      %1503 = vmatprep.mubr.bf16.mxu0 %v885
      %1504 = vmatmul.mubr.bf16.gmra.mxu0 %v669
      %v1505 = vpop.f32.mrf.mxu0
      %v1506 = vadd.f32 0.0, %v1505
      %v1507 = vpop.f32.mrf.mxu0
      %v1508 = vpop.f32.mrf.mxu0
      %v1509 = vadd.f32 0.0, %v1508
      %v1510 = vpop.f32.mrf.mxu0
      %1511 = vmatprep.mubr.bf16.mxu0 %v886
      %1512 = vmatmul.mubr.bf16.gmra.mxu0 %v670
      %v1513 = vpop.f32.mrf.mxu0
      %v1514 = vadd.f32 0.0, %v1513
      %v1515 = vpop.f32.mrf.mxu0
      %v1516 = vpop.f32.mrf.mxu0
      %v1517 = vadd.f32 0.0, %v1516
      %v1518 = vpop.f32.mrf.mxu0
      %1519 = vmatprep.mubr.bf16.mxu0 %v887
      %1520 = vmatmul.mubr.bf16.gmra.mxu0 %v671
      %v1521 = vpop.f32.mrf.mxu0
      %v1522 = vadd.f32 0.0, %v1521
      %v1523 = vpop.f32.mrf.mxu0
      %v1524 = vpop.f32.mrf.mxu0
      %v1525 = vadd.f32 0.0, %v1524
      %v1526 = vpop.f32.mrf.mxu0
      %1527 = vmatprep.mubr.bf16.mxu0 %v888
      %1528 = vmatmul.mubr.bf16.gmra.mxu0 %v672
      %v1529 = vpop.f32.mrf.mxu0
      %v1530 = vadd.f32 0.0, %v1529
      %v1531 = vpop.f32.mrf.mxu0
      %v1532 = vpop.f32.mrf.mxu0
      %v1533 = vadd.f32 0.0, %v1532
      %v1534 = vpop.f32.mrf.mxu0
      %1535 = vmatprep.mubr.bf16.mxu0 %v889
      %1536 = vmatmul.mubr.bf16.gmra.mxu0 %v673
      %v1537 = vpop.f32.mrf.mxu0
      %v1538 = vadd.f32 0.0, %v1537
      %v1539 = vpop.f32.mrf.mxu0
      %v1540 = vpop.f32.mrf.mxu0
      %v1541 = vadd.f32 0.0, %v1540
      %v1542 = vpop.f32.mrf.mxu0
      %1543 = vmatprep.mubr.bf16.mxu0 %v890
      %1544 = vmatmul.mubr.bf16.gmra.mxu0 %v674
      %v1545 = vpop.f32.mrf.mxu0
      %v1546 = vadd.f32 0.0, %v1545
      %v1547 = vpop.f32.mrf.mxu0
      %v1548 = vpop.f32.mrf.mxu0
      %v1549 = vadd.f32 0.0, %v1548
      %v1550 = vpop.f32.mrf.mxu0
      %1551 = vmatprep.mubr.bf16.mxu0 %v891
      %1552 = vmatmul.mubr.bf16.gmra.mxu0 %v675
      %v1553 = vpop.f32.mrf.mxu0
      %v1554 = vadd.f32 0.0, %v1553
      %v1555 = vpop.f32.mrf.mxu0
      %v1556 = vpop.f32.mrf.mxu0
      %v1557 = vadd.f32 0.0, %v1556
      %v1558 = vpop.f32.mrf.mxu0
      %1559 = vmatprep.mubr.bf16.mxu0 %v892
      %1560 = vmatmul.mubr.bf16.gmra.mxu0 %v676
      %v1561 = vpop.f32.mrf.mxu0
      %v1562 = vadd.f32 0.0, %v1561
      %v1563 = vpop.f32.mrf.mxu0
      %v1564 = vpop.f32.mrf.mxu0
      %v1565 = vadd.f32 0.0, %v1564
      %v1566 = vpop.f32.mrf.mxu0
      %1567 = vmatprep.mubr.bf16.mxu0 %v893
      %1568 = vmatmul.mubr.bf16.gmra.mxu0 %v677
      %v1569 = vpop.f32.mrf.mxu0
      %v1570 = vadd.f32 0.0, %v1569
      %v1571 = vpop.f32.mrf.mxu0
      %v1572 = vpop.f32.mrf.mxu0
      %v1573 = vadd.f32 0.0, %v1572
      %v1574 = vpop.f32.mrf.mxu0
      %1575 = vmatprep.mubr.bf16.mxu0 %v894
      %1576 = vmatmul.mubr.bf16.gmra.mxu0 %v678
      %v1577 = vpop.f32.mrf.mxu0
      %v1578 = vadd.f32 0.0, %v1577
      %v1579 = vpop.f32.mrf.mxu0
      %v1580 = vpop.f32.mrf.mxu0
      %v1581 = vadd.f32 0.0, %v1580
      %v1582 = vpop.f32.mrf.mxu0
      %1583 = vmatprep.mubr.bf16.mxu0 %v895
      %1584 = vmatmul.mubr.bf16.gmra.mxu0 %v679
      %v1585 = vpop.f32.mrf.mxu0
      %v1586 = vadd.f32 0.0, %v1585
      %v1587 = vpop.f32.mrf.mxu0
      %v1588 = vpop.f32.mrf.mxu0
      %v1589 = vadd.f32 0.0, %v1588
      %v1590 = vpop.f32.mrf.mxu0
      %1591 = vmatprep.mubr.bf16.mxu0 %v896
      %1592 = vmatmul.mubr.bf16.gmra.mxu0 %v680
      %v1593 = vpop.f32.mrf.mxu0
      %v1594 = vadd.f32 0.0, %v1593
      %v1595 = vpop.f32.mrf.mxu0
      %v1596 = vpop.f32.mrf.mxu0
      %v1597 = vadd.f32 0.0, %v1596
      %v1598 = vpop.f32.mrf.mxu0
      %1599 = vmatprep.mubr.bf16.mxu0 %v897
      %1600 = vmatmul.mubr.bf16.gmra.mxu0 %v681
      %v1601 = vpop.f32.mrf.mxu0
      %v1602 = vadd.f32 0.0, %v1601
      %v1603 = vpop.f32.mrf.mxu0
      %v1604 = vpop.f32.mrf.mxu0
      %v1605 = vadd.f32 0.0, %v1604
      %v1606 = vpop.f32.mrf.mxu0
      %1607 = vmatprep.mubr.bf16.mxu0 %v898
      %1608 = vmatmul.mubr.bf16.gmra.mxu0 %v682
      %v1609 = vpop.f32.mrf.mxu0
      %v1610 = vadd.f32 0.0, %v1609
      %v1611 = vpop.f32.mrf.mxu0
      %v1612 = vpop.f32.mrf.mxu0
      %v1613 = vadd.f32 0.0, %v1612
      %v1614 = vpop.f32.mrf.mxu0
      %1615 = vmatprep.mubr.bf16.mxu0 %v899
      %1616 = vmatmul.mubr.bf16.gmra.mxu0 %v683
      %v1617 = vpop.f32.mrf.mxu0
      %v1618 = vadd.f32 0.0, %v1617
      %v1619 = vpop.f32.mrf.mxu0
      %v1620 = vpop.f32.mrf.mxu0
      %v1621 = vadd.f32 0.0, %v1620
      %v1622 = vpop.f32.mrf.mxu0
      %1623 = vmatprep.mubr.bf16.mxu0 %v900
      %1624 = vmatmul.mubr.bf16.gmra.mxu0 %v684
      %v1625 = vpop.f32.mrf.mxu0
      %v1626 = vadd.f32 0.0, %v1625
      %v1627 = vpop.f32.mrf.mxu0
      %v1628 = vpop.f32.mrf.mxu0
      %v1629 = vadd.f32 0.0, %v1628
      %v1630 = vpop.f32.mrf.mxu0
      %1631 = vmatprep.mubr.bf16.mxu0 %v901
      %1632 = vmatmul.mubr.bf16.gmra.mxu0 %v685
      %v1633 = vpop.f32.mrf.mxu0
      %v1634 = vadd.f32 0.0, %v1633
      %v1635 = vpop.f32.mrf.mxu0
      %v1636 = vpop.f32.mrf.mxu0
      %v1637 = vadd.f32 0.0, %v1636
      %v1638 = vpop.f32.mrf.mxu0
      %1639 = vmatprep.mubr.bf16.mxu0 %v902
      %1640 = vmatmul.mubr.bf16.gmra.mxu0 %v686
      %v1641 = vpop.f32.mrf.mxu0
      %v1642 = vadd.f32 0.0, %v1641
      %v1643 = vpop.f32.mrf.mxu0
      %v1644 = vpop.f32.mrf.mxu0
      %v1645 = vadd.f32 0.0, %v1644
      %v1646 = vpop.f32.mrf.mxu0
      %1647 = vmatprep.mubr.bf16.mxu0 %v903
      %1648 = vmatmul.mubr.bf16.gmra.mxu0 %v687
      %v1649 = vpop.f32.mrf.mxu0
      %v1650 = vadd.f32 0.0, %v1649
      %v1651 = vpop.f32.mrf.mxu0
      %v1652 = vpop.f32.mrf.mxu0
      %v1653 = vadd.f32 0.0, %v1652
      %v1654 = vpop.f32.mrf.mxu0
      %1655 = vmatprep.mubr.bf16.mxu0 %v904
      %1656 = vmatmul.mubr.bf16.gmra.mxu0 %v688
      %v1657 = vpop.f32.mrf.mxu0
      %v1658 = vadd.f32 0.0, %v1657
      %v1659 = vpop.f32.mrf.mxu0
      %v1660 = vpop.f32.mrf.mxu0
      %v1661 = vadd.f32 0.0, %v1660
      %v1662 = vpop.f32.mrf.mxu0
      %1663 = vmatprep.mubr.bf16.mxu0 %v905
      %1664 = vmatmul.mubr.bf16.gmra.mxu0 %v689
      %v1665 = vpop.f32.mrf.mxu0
      %v1666 = vadd.f32 0.0, %v1665
      %v1667 = vpop.f32.mrf.mxu0
      %v1668 = vpop.f32.mrf.mxu0
      %v1669 = vadd.f32 0.0, %v1668
      %v1670 = vpop.f32.mrf.mxu0
      %1671 = vdwg.mxu0
      %1672 = vmatprep.subr.bf16.mxu0 0
      %1673 = vmatpush1.bf16.msra.mxu0 %v1326
      %1674 = vmatprep.subr.bf16.mxu0 0
      %1675 = vmatpush1.bf16.msra.mxu0 %v1325
      %1676 = vmatprep.subr.bf16.mxu0 0
      %1677 = vmatpush1.bf16.msra.mxu0 %v1324
      %1678 = vmatprep.subr.bf16.mxu0 0
      %1679 = vmatpush1.bf16.msra.mxu0 %v1323
      %1680 = vmatprep.subr.bf16.mxu0 0
      %1681 = vmatpush1.bf16.msra.mxu0 %v1322
      %1682 = vmatprep.subr.bf16.mxu0 0
      %1683 = vmatpush1.bf16.msra.mxu0 %v1321
      %1684 = vmatprep.subr.bf16.mxu0 0
      %1685 = vmatpush1.bf16.msra.mxu0 %v1320
      %1686 = vmatprep.subr.bf16.mxu0 0
      %1687 = vmatpush1.bf16.msra.mxu0 %v1319
      %1688 = vmatprep.subr.bf16.mxu0 0
      %1689 = vmatpush2.bf16.msra.mxu0 0
      %1690 = vmatprep.subr.bf16.mxu0 0
      %1691 = vmatpush2.bf16.msra.mxu0 0
      %1692 = vmatprep.subr.bf16.mxu0 0
      %1693 = vmatpush2.bf16.msra.mxu0 0
      %1694 = vmatprep.subr.bf16.mxu0 0
      %1695 = vmatpush2.bf16.msra.mxu0 0
      %1696 = vmatprep.subr.bf16.mxu0 0
      %1697 = vmatpush2.bf16.msra.mxu0 0
      %1698 = vmatprep.subr.bf16.mxu0 0
      %1699 = vmatpush2.bf16.msra.mxu0 0
      %1700 = vmatprep.subr.bf16.mxu0 0
      %1701 = vmatpush2.bf16.msra.mxu0 0
      %1702 = vmatprep.subr.bf16.mxu0 0
      %1703 = vmatpush2.bf16.msra.mxu0 0
      %1704 = vmatprep.mubr.bf16.mxu0 0
      %1705 = vmatmul.mubr.bf16.gmra.mxu0 %v1086
      %v1706 = vpop.f32.mrf.mxu0
      %v1707 = vadd.f32 %v1386, %v1706
      %v1708 = vpop.f32.mrf.mxu0
      %v1709 = vpop.f32.mrf.mxu0
      %v1710 = vadd.f32 %v1389, %v1709
      %v1711 = vpop.f32.mrf.mxu0
      %1712 = vmatprep.mubr.bf16.mxu0 0
      %1713 = vmatmul.mubr.bf16.gmra.mxu0 %v1087
      %v1714 = vpop.f32.mrf.mxu0
      %v1715 = vadd.f32 %v1394, %v1714
      %v1716 = vpop.f32.mrf.mxu0
      %v1717 = vpop.f32.mrf.mxu0
      %v1718 = vadd.f32 %v1397, %v1717
      %v1719 = vpop.f32.mrf.mxu0
      %1720 = vmatprep.mubr.bf16.mxu0 0
      %1721 = vmatmul.mubr.bf16.gmra.mxu0 %v1088
      %v1722 = vpop.f32.mrf.mxu0
      %v1723 = vadd.f32 %v1402, %v1722
      %v1724 = vpop.f32.mrf.mxu0
      %v1725 = vpop.f32.mrf.mxu0
      %v1726 = vadd.f32 %v1405, %v1725
      %v1727 = vpop.f32.mrf.mxu0
      %1728 = vmatprep.mubr.bf16.mxu0 0
      %1729 = vmatmul.mubr.bf16.gmra.mxu0 %v1089
      %v1730 = vpop.f32.mrf.mxu0
      %v1731 = vadd.f32 %v1410, %v1730
      %v1732 = vpop.f32.mrf.mxu0
      %v1733 = vpop.f32.mrf.mxu0
      %v1734 = vadd.f32 %v1413, %v1733
      %v1735 = vpop.f32.mrf.mxu0
      %1736 = vmatprep.mubr.bf16.mxu0 0
      %1737 = vmatmul.mubr.bf16.gmra.mxu0 %v1090
      %v1738 = vpop.f32.mrf.mxu0
      %v1739 = vadd.f32 %v1418, %v1738
      %v1740 = vpop.f32.mrf.mxu0
      %v1741 = vpop.f32.mrf.mxu0
      %v1742 = vadd.f32 %v1421, %v1741
      %v1743 = vpop.f32.mrf.mxu0
      %1744 = vmatprep.mubr.bf16.mxu0 0
      %1745 = vmatmul.mubr.bf16.gmra.mxu0 %v1091
      %v1746 = vpop.f32.mrf.mxu0
      %v1747 = vadd.f32 %v1426, %v1746
      %v1748 = vpop.f32.mrf.mxu0
      %v1749 = vpop.f32.mrf.mxu0
      %v1750 = vadd.f32 %v1429, %v1749
      %v1751 = vpop.f32.mrf.mxu0
      %1752 = vmatprep.mubr.bf16.mxu0 0
      %1753 = vmatmul.mubr.bf16.gmra.mxu0 %v1092
      %v1754 = vpop.f32.mrf.mxu0
      %v1755 = vadd.f32 %v1434, %v1754
      %v1756 = vpop.f32.mrf.mxu0
      %v1757 = vpop.f32.mrf.mxu0
      %v1758 = vadd.f32 %v1437, %v1757
      %v1759 = vpop.f32.mrf.mxu0
      %1760 = vmatprep.mubr.bf16.mxu0 0
      %1761 = vmatmul.mubr.bf16.gmra.mxu0 %v1093
      %v1762 = vpop.f32.mrf.mxu0
      %v1763 = vadd.f32 %v1442, %v1762
      %v1764 = vpop.f32.mrf.mxu0
      %v1765 = vpop.f32.mrf.mxu0
      %v1766 = vadd.f32 %v1445, %v1765
      %v1767 = vpop.f32.mrf.mxu0
      %1768 = vmatprep.mubr.bf16.mxu0 0
      %1769 = vmatmul.mubr.bf16.gmra.mxu0 %v1094
      %v1770 = vpop.f32.mrf.mxu0
      %v1771 = vadd.f32 %v1450, %v1770
      %v1772 = vpop.f32.mrf.mxu0
      %v1773 = vpop.f32.mrf.mxu0
      %v1774 = vadd.f32 %v1453, %v1773
      %v1775 = vpop.f32.mrf.mxu0
      %1776 = vmatprep.mubr.bf16.mxu0 0
      %1777 = vmatmul.mubr.bf16.gmra.mxu0 %v1095
      %v1778 = vpop.f32.mrf.mxu0
      %v1779 = vadd.f32 %v1458, %v1778
      %v1780 = vpop.f32.mrf.mxu0
      %v1781 = vpop.f32.mrf.mxu0
      %v1782 = vadd.f32 %v1461, %v1781
      %v1783 = vpop.f32.mrf.mxu0
      %1784 = vmatprep.mubr.bf16.mxu0 0
      %1785 = vmatmul.mubr.bf16.gmra.mxu0 %v1096
      %v1786 = vpop.f32.mrf.mxu0
      %v1787 = vadd.f32 %v1466, %v1786
      %v1788 = vpop.f32.mrf.mxu0
      %v1789 = vpop.f32.mrf.mxu0
      %v1790 = vadd.f32 %v1469, %v1789
      %v1791 = vpop.f32.mrf.mxu0
      %1792 = vmatprep.mubr.bf16.mxu0 0
      %1793 = vmatmul.mubr.bf16.gmra.mxu0 %v1097
      %v1794 = vpop.f32.mrf.mxu0
      %v1795 = vadd.f32 %v1474, %v1794
      %v1796 = vpop.f32.mrf.mxu0
      %v1797 = vpop.f32.mrf.mxu0
      %v1798 = vadd.f32 %v1477, %v1797
      %v1799 = vpop.f32.mrf.mxu0
      %1800 = vmatprep.mubr.bf16.mxu0 0
      %1801 = vmatmul.mubr.bf16.gmra.mxu0 %v1098
      %v1802 = vpop.f32.mrf.mxu0
      %v1803 = vadd.f32 %v1482, %v1802
      %v1804 = vpop.f32.mrf.mxu0
      %v1805 = vpop.f32.mrf.mxu0
      %v1806 = vadd.f32 %v1485, %v1805
      %v1807 = vpop.f32.mrf.mxu0
      %1808 = vmatprep.mubr.bf16.mxu0 0
      %1809 = vmatmul.mubr.bf16.gmra.mxu0 %v1099
      %v1810 = vpop.f32.mrf.mxu0
      %v1811 = vadd.f32 %v1490, %v1810
      %v1812 = vpop.f32.mrf.mxu0
      %v1813 = vpop.f32.mrf.mxu0
      %v1814 = vadd.f32 %v1493, %v1813
      %v1815 = vpop.f32.mrf.mxu0
      %1816 = vmatprep.mubr.bf16.mxu0 0
      %1817 = vmatmul.mubr.bf16.gmra.mxu0 %v1100
      %v1818 = vpop.f32.mrf.mxu0
      %v1819 = vadd.f32 %v1498, %v1818
      %v1820 = vpop.f32.mrf.mxu0
      %v1821 = vpop.f32.mrf.mxu0
      %v1822 = vadd.f32 %v1501, %v1821
      %v1823 = vpop.f32.mrf.mxu0
      %1824 = vmatprep.mubr.bf16.mxu0 0
      %1825 = vmatmul.mubr.bf16.gmra.mxu0 %v1101
      %v1826 = vpop.f32.mrf.mxu0
      %v1827 = vadd.f32 %v1506, %v1826
      %v1828 = vpop.f32.mrf.mxu0
      %v1829 = vpop.f32.mrf.mxu0
      %v1830 = vadd.f32 %v1509, %v1829
      %v1831 = vpop.f32.mrf.mxu0
      %1832 = vmatprep.mubr.bf16.mxu0 0
      %1833 = vmatmul.mubr.bf16.gmra.mxu0 %v1102
      %v1834 = vpop.f32.mrf.mxu0
      %v1835 = vadd.f32 %v1514, %v1834
      %v1836 = vpop.f32.mrf.mxu0
      %v1837 = vpop.f32.mrf.mxu0
      %v1838 = vadd.f32 %v1517, %v1837
      %v1839 = vpop.f32.mrf.mxu0
      %1840 = vmatprep.mubr.bf16.mxu0 0
      %1841 = vmatmul.mubr.bf16.gmra.mxu0 %v1103
      %v1842 = vpop.f32.mrf.mxu0
      %v1843 = vadd.f32 %v1522, %v1842
      %v1844 = vpop.f32.mrf.mxu0
      %v1845 = vpop.f32.mrf.mxu0
      %v1846 = vadd.f32 %v1525, %v1845
      %v1847 = vpop.f32.mrf.mxu0
      %1848 = vmatprep.mubr.bf16.mxu0 0
      %1849 = vmatmul.mubr.bf16.gmra.mxu0 %v1104
      %v1850 = vpop.f32.mrf.mxu0
      %v1851 = vadd.f32 %v1530, %v1850
      %v1852 = vpop.f32.mrf.mxu0
      %v1853 = vpop.f32.mrf.mxu0
      %v1854 = vadd.f32 %v1533, %v1853
      %v1855 = vpop.f32.mrf.mxu0
      %1856 = vmatprep.mubr.bf16.mxu0 0
      %1857 = vmatmul.mubr.bf16.gmra.mxu0 %v1105
      %v1858 = vpop.f32.mrf.mxu0
      %v1859 = vadd.f32 %v1538, %v1858
      %v1860 = vpop.f32.mrf.mxu0
      %v1861 = vpop.f32.mrf.mxu0
      %v1862 = vadd.f32 %v1541, %v1861
      %v1863 = vpop.f32.mrf.mxu0
      %1864 = vmatprep.mubr.bf16.mxu0 0
      %1865 = vmatmul.mubr.bf16.gmra.mxu0 %v1106
      %v1866 = vpop.f32.mrf.mxu0
      %v1867 = vadd.f32 %v1546, %v1866
      %v1868 = vpop.f32.mrf.mxu0
      %v1869 = vpop.f32.mrf.mxu0
      %v1870 = vadd.f32 %v1549, %v1869
      %v1871 = vpop.f32.mrf.mxu0
      %1872 = vmatprep.mubr.bf16.mxu0 0
      %1873 = vmatmul.mubr.bf16.gmra.mxu0 %v1107
      %v1874 = vpop.f32.mrf.mxu0
      %v1875 = vadd.f32 %v1554, %v1874
      %v1876 = vpop.f32.mrf.mxu0
      %v1877 = vpop.f32.mrf.mxu0
      %v1878 = vadd.f32 %v1557, %v1877
      %v1879 = vpop.f32.mrf.mxu0
      %1880 = vmatprep.mubr.bf16.mxu0 0
      %1881 = vmatmul.mubr.bf16.gmra.mxu0 %v1108
      %v1882 = vpop.f32.mrf.mxu0
      %v1883 = vadd.f32 %v1562, %v1882
      %v1884 = vpop.f32.mrf.mxu0
      %v1885 = vpop.f32.mrf.mxu0
      %v1886 = vadd.f32 %v1565, %v1885
      %v1887 = vpop.f32.mrf.mxu0
      %1888 = vmatprep.mubr.bf16.mxu0 0
      %1889 = vmatmul.mubr.bf16.gmra.mxu0 %v1109
      %v1890 = vpop.f32.mrf.mxu0
      %v1891 = vadd.f32 %v1570, %v1890
      %v1892 = vpop.f32.mrf.mxu0
      %v1893 = vpop.f32.mrf.mxu0
      %v1894 = vadd.f32 %v1573, %v1893
      %v1895 = vpop.f32.mrf.mxu0
      %1896 = vmatprep.mubr.bf16.mxu0 0
      %1897 = vmatmul.mubr.bf16.gmra.mxu0 %v1110
      %v1898 = vpop.f32.mrf.mxu0
      %v1899 = vadd.f32 %v1578, %v1898
      %v1900 = vpop.f32.mrf.mxu0
      %v1901 = vpop.f32.mrf.mxu0
      %v1902 = vadd.f32 %v1581, %v1901
      %v1903 = vpop.f32.mrf.mxu0
      %1904 = vmatprep.mubr.bf16.mxu0 0
      %1905 = vmatmul.mubr.bf16.gmra.mxu0 %v1111
      %v1906 = vpop.f32.mrf.mxu0
      %v1907 = vadd.f32 %v1586, %v1906
      %v1908 = vpop.f32.mrf.mxu0
      %v1909 = vpop.f32.mrf.mxu0
      %v1910 = vadd.f32 %v1589, %v1909
      %v1911 = vpop.f32.mrf.mxu0
      %1912 = vmatprep.mubr.bf16.mxu0 0
      %1913 = vmatmul.mubr.bf16.gmra.mxu0 %v1112
      %v1914 = vpop.f32.mrf.mxu0
      %v1915 = vadd.f32 %v1594, %v1914
      %v1916 = vpop.f32.mrf.mxu0
      %v1917 = vpop.f32.mrf.mxu0
      %v1918 = vadd.f32 %v1597, %v1917
      %v1919 = vpop.f32.mrf.mxu0
      %1920 = vmatprep.mubr.bf16.mxu0 0
      %1921 = vmatmul.mubr.bf16.gmra.mxu0 %v1113
      %v1922 = vpop.f32.mrf.mxu0
      %v1923 = vadd.f32 %v1602, %v1922
      %v1924 = vpop.f32.mrf.mxu0
      %v1925 = vpop.f32.mrf.mxu0
      %v1926 = vadd.f32 %v1605, %v1925
      %v1927 = vpop.f32.mrf.mxu0
      %1928 = vmatprep.mubr.bf16.mxu0 0
      %1929 = vmatmul.mubr.bf16.gmra.mxu0 %v1114
      %v1930 = vpop.f32.mrf.mxu0
      %v1931 = vadd.f32 %v1610, %v1930
      %v1932 = vpop.f32.mrf.mxu0
      %v1933 = vpop.f32.mrf.mxu0
      %v1934 = vadd.f32 %v1613, %v1933
      %v1935 = vpop.f32.mrf.mxu0
      %1936 = vmatprep.mubr.bf16.mxu0 0
      %1937 = vmatmul.mubr.bf16.gmra.mxu0 %v1115
      %v1938 = vpop.f32.mrf.mxu0
      %v1939 = vadd.f32 %v1618, %v1938
      %v1940 = vpop.f32.mrf.mxu0
      %v1941 = vpop.f32.mrf.mxu0
      %v1942 = vadd.f32 %v1621, %v1941
      %v1943 = vpop.f32.mrf.mxu0
      %1944 = vmatprep.mubr.bf16.mxu0 0
      %1945 = vmatmul.mubr.bf16.gmra.mxu0 %v1116
      %v1946 = vpop.f32.mrf.mxu0
      %v1947 = vadd.f32 %v1626, %v1946
      %v1948 = vpop.f32.mrf.mxu0
      %v1949 = vpop.f32.mrf.mxu0
      %v1950 = vadd.f32 %v1629, %v1949
      %v1951 = vpop.f32.mrf.mxu0
      %1952 = vmatprep.mubr.bf16.mxu0 0
      %1953 = vmatmul.mubr.bf16.gmra.mxu0 %v1117
      %v1954 = vpop.f32.mrf.mxu0
      %v1955 = vadd.f32 %v1634, %v1954
      %v1956 = vpop.f32.mrf.mxu0
      %v1957 = vpop.f32.mrf.mxu0
      %v1958 = vadd.f32 %v1637, %v1957
      %v1959 = vpop.f32.mrf.mxu0
      %1960 = vmatprep.mubr.bf16.mxu0 0
      %1961 = vmatmul.mubr.bf16.gmra.mxu0 %v1118
      %v1962 = vpop.f32.mrf.mxu0
      %v1963 = vadd.f32 %v1642, %v1962
      %v1964 = vpop.f32.mrf.mxu0
      %v1965 = vpop.f32.mrf.mxu0
      %v1966 = vadd.f32 %v1645, %v1965
      %v1967 = vpop.f32.mrf.mxu0
      %1968 = vmatprep.mubr.bf16.mxu0 0
      %1969 = vmatmul.mubr.bf16.gmra.mxu0 %v1119
      %v1970 = vpop.f32.mrf.mxu0
      %v1971 = vadd.f32 %v1650, %v1970
      %v1972 = vpop.f32.mrf.mxu0
      %v1973 = vpop.f32.mrf.mxu0
      %v1974 = vadd.f32 %v1653, %v1973
      %v1975 = vpop.f32.mrf.mxu0
      %1976 = vmatprep.mubr.bf16.mxu0 0
      %1977 = vmatmul.mubr.bf16.gmra.mxu0 %v1120
      %v1978 = vpop.f32.mrf.mxu0
      %v1979 = vadd.f32 %v1658, %v1978
      %v1980 = vpop.f32.mrf.mxu0
      %v1981 = vpop.f32.mrf.mxu0
      %v1982 = vadd.f32 %v1661, %v1981
      %v1983 = vpop.f32.mrf.mxu0
      %1984 = vmatprep.mubr.bf16.mxu0 0
      %1985 = vmatmul.mubr.bf16.gmra.mxu0 %v1121
      %v1986 = vpop.f32.mrf.mxu0
      %v1987 = vadd.f32 %v1666, %v1986
      %v1988 = vpop.f32.mrf.mxu0
      %v1989 = vpop.f32.mrf.mxu0
      %v1990 = vadd.f32 %v1669, %v1989
      %v1991 = vpop.f32.mrf.mxu0
      %1992 = vdwg.mxu0
      %1993 = vst [vmem:[#allocation2] sm:$0xff] %v1707
      %1994 = vst [vmem:[#allocation2 + $0x8] sm:$0xff] %v1710
      %1995 = vst [vmem:[#allocation2 + $0x10] sm:$0xff] %v1715
      %1996 = vst [vmem:[#allocation2 + $0x18] sm:$0xff] %v1718
      %1997 = vst [vmem:[#allocation2 + $0x20] sm:$0xff] %v1723
      %1998 = vst [vmem:[#allocation2 + $0x28] sm:$0xff] %v1726
      %1999 = vst [vmem:[#allocation2 + $0x30] sm:$0xff] %v1731
      %2000 = vst [vmem:[#allocation2 + $0x38] sm:$0xff] %v1734
      %2001 = vst [vmem:[#allocation2 + $0x40] sm:$0xff] %v1739
      %2002 = vst [vmem:[#allocation2 + $0x48] sm:$0xff] %v1742
      %2003 = vst [vmem:[#allocation2 + $0x50] sm:$0xff] %v1747
      %2004 = vst [vmem:[#allocation2 + $0x58] sm:$0xff] %v1750
      %2005 = vst [vmem:[#allocation2 + $0x60] sm:$0xff] %v1755
      %2006 = vst [vmem:[#allocation2 + $0x68] sm:$0xff] %v1758
      %2007 = vst [vmem:[#allocation2 + $0x70] sm:$0xff] %v1763
      %2008 = vst [vmem:[#allocation2 + $0x78] sm:$0xff] %v1766
      %2009 = vst [vmem:[#allocation2 + $0x80] sm:$0xff] %v1771
      %2010 = vst [vmem:[#allocation2 + $0x88] sm:$0xff] %v1774
      %2011 = vst [vmem:[#allocation2 + $0x90] sm:$0xff] %v1779
      %2012 = vst [vmem:[#allocation2 + $0x98] sm:$0xff] %v1782
      %2013 = vst [vmem:[#allocation2 + $0xa0] sm:$0xff] %v1787
      %2014 = vst [vmem:[#allocation2 + $0xa8] sm:$0xff] %v1790
      %2015 = vst [vmem:[#allocation2 + $0xb0] sm:$0xff] %v1795
      %2016 = vst [vmem:[#allocation2 + $0xb8] sm:$0xff] %v1798
      %2017 = vst [vmem:[#allocation2 + $0xc0] sm:$0xff] %v1803
      %2018 = vst [vmem:[#allocation2 + $0xc8] sm:$0xff] %v1806
      %2019 = vst [vmem:[#allocation2 + $0xd0] sm:$0xff] %v1811
      %2020 = vst [vmem:[#allocation2 + $0xd8] sm:$0xff] %v1814
      %2021 = vst [vmem:[#allocation2 + $0xe0] sm:$0xff] %v1819
      %2022 = vst [vmem:[#allocation2 + $0xe8] sm:$0xff] %v1822
      %2023 = vst [vmem:[#allocation2 + $0xf0] sm:$0xff] %v1827
      %2024 = vst [vmem:[#allocation2 + $0xf8] sm:$0xff] %v1830
      %2025 = vst [vmem:[#allocation2 + $0x100] sm:$0xff] %v1835
      %2026 = vst [vmem:[#allocation2 + $0x108] sm:$0xff] %v1838
      %2027 = vst [vmem:[#allocation2 + $0x110] sm:$0xff] %v1843
      %2028 = vst [vmem:[#allocation2 + $0x118] sm:$0xff] %v1846
      %2029 = vst [vmem:[#allocation2 + $0x120] sm:$0xff] %v1851
      %2030 = vst [vmem:[#allocation2 + $0x128] sm:$0xff] %v1854
      %2031 = vst [vmem:[#allocation2 + $0x130] sm:$0xff] %v1859
      %2032 = vst [vmem:[#allocation2 + $0x138] sm:$0xff] %v1862
      %2033 = vst [vmem:[#allocation2 + $0x140] sm:$0xff] %v1867
      %2034 = vst [vmem:[#allocation2 + $0x148] sm:$0xff] %v1870
      %2035 = vst [vmem:[#allocation2 + $0x150] sm:$0xff] %v1875
      %2036 = vst [vmem:[#allocation2 + $0x158] sm:$0xff] %v1878
      %2037 = vst [vmem:[#allocation2 + $0x160] sm:$0xff] %v1883
      %2038 = vst [vmem:[#allocation2 + $0x168] sm:$0xff] %v1886
      %2039 = vst [vmem:[#allocation2 + $0x170] sm:$0xff] %v1891
      %2040 = vst [vmem:[#allocation2 + $0x178] sm:$0xff] %v1894
      %2041 = vst [vmem:[#allocation2 + $0x180] sm:$0xff] %v1899
      %2042 = vst [vmem:[#allocation2 + $0x188] sm:$0xff] %v1902
      %2043 = vst [vmem:[#allocation2 + $0x190] sm:$0xff] %v1907
      %2044 = vst [vmem:[#allocation2 + $0x198] sm:$0xff] %v1910
      %2045 = vst [vmem:[#allocation2 + $0x1a0] sm:$0xff] %v1915
      %2046 = vst [vmem:[#allocation2 + $0x1a8] sm:$0xff] %v1918
      %2047 = vst [vmem:[#allocation2 + $0x1b0] sm:$0xff] %v1923
      %2048 = vst [vmem:[#allocation2 + $0x1b8] sm:$0xff] %v1926
      %2049 = vst [vmem:[#allocation2 + $0x1c0] sm:$0xff] %v1931
      %2050 = vst [vmem:[#allocation2 + $0x1c8] sm:$0xff] %v1934
      %2051 = vst [vmem:[#allocation2 + $0x1d0] sm:$0xff] %v1939
      %2052 = vst [vmem:[#allocation2 + $0x1d8] sm:$0xff] %v1942
      %2053 = vst [vmem:[#allocation2 + $0x1e0] sm:$0xff] %v1947
      %2054 = vst [vmem:[#allocation2 + $0x1e8] sm:$0xff] %v1950
      %2055 = vst [vmem:[#allocation2 + $0x1f0] sm:$0xff] %v1955
      %2056 = vst [vmem:[#allocation2 + $0x1f8] sm:$0xff] %v1958
      %2057 = vst [vmem:[#allocation2 + $0x200] sm:$0xff] %v1963
      %2058 = vst [vmem:[#allocation2 + $0x208] sm:$0xff] %v1966
      %2059 = vst [vmem:[#allocation2 + $0x210] sm:$0xff] %v1971
      %2060 = vst [vmem:[#allocation2 + $0x218] sm:$0xff] %v1974
      %2061 = vst [vmem:[#allocation2 + $0x220] sm:$0xff] %v1979
      %2062 = vst [vmem:[#allocation2 + $0x228] sm:$0xff] %v1982
      %2063 = vst [vmem:[#allocation2 + $0x230] sm:$0xff] %v1987
      %2064 = vst [vmem:[#allocation2 + $0x238] sm:$0xff] %v1990
      %v2065 = vld [vmem:[%s1] sm:$0xf]
      %v2066 = vld [vmem:[%s1 + $0x4] sm:$0xf]
      %v2067 = vld [vmem:[%s1 + $0x8] sm:$0xf]
      %v2068 = vld [vmem:[%s1 + $0xc] sm:$0xf]
      %v2069 = vld [vmem:[%s1 + $0x10] sm:$0xf]
      %v2070 = vld [vmem:[%s1 + $0x14] sm:$0xf]
      %v2071 = vld [vmem:[%s1 + $0x18] sm:$0xf]
      %v2072 = vld [vmem:[%s1 + $0x1c] sm:$0xf]
      %v2073 = vld [vmem:[%s1 + $0x20] sm:$0xf]
      %v2074 = vld [vmem:[%s1 + $0x24] sm:$0xf]
      %v2075 = vld [vmem:[%s1 + $0x28] sm:$0xf]
      %v2076 = vld [vmem:[%s1 + $0x2c] sm:$0xf]
      %v2077 = vld [vmem:[%s1 + $0x30] sm:$0xf]
      %v2078 = vld [vmem:[%s1 + $0x34] sm:$0xf]
      %v2079 = vld [vmem:[%s1 + $0x38] sm:$0xf]
      %v2080 = vld [vmem:[%s1 + $0x3c] sm:$0xf]
      %v2081 = vld [vmem:[%s1 + $0x40] sm:$0xf]
      %v2082 = vld [vmem:[%s1 + $0x44] sm:$0xf]
      %v2083 = vld [vmem:[%s1 + $0x48] sm:$0xf]
      %v2084 = vld [vmem:[%s1 + $0x4c] sm:$0xf]
      %v2085 = vld [vmem:[%s1 + $0x50] sm:$0xf]
      %v2086 = vld [vmem:[%s1 + $0x54] sm:$0xf]
      %v2087 = vld [vmem:[%s1 + $0x58] sm:$0xf]
      %v2088 = vld [vmem:[%s1 + $0x5c] sm:$0xf]
      %v2089 = vld [vmem:[%s1 + $0x60] sm:$0xf]
      %v2090 = vld [vmem:[%s1 + $0x64] sm:$0xf]
      %v2091 = vld [vmem:[%s1 + $0x68] sm:$0xf]
      %v2092 = vld [vmem:[%s1 + $0x6c] sm:$0xf]
      %v2093 = vld [vmem:[%s1 + $0x70] sm:$0xf]
      %v2094 = vld [vmem:[%s1 + $0x74] sm:$0xf]
      %v2095 = vld [vmem:[%s1 + $0x78] sm:$0xf]
      %v2096 = vld [vmem:[%s1 + $0x7c] sm:$0xf]
      %v2097 = vld [vmem:[%s1 + $0x80] sm:$0xf]
      %v2098 = vld [vmem:[%s1 + $0x84] sm:$0xf]
      %v2099 = vld [vmem:[%s1 + $0x88] sm:$0xf]
      %v2100 = vld [vmem:[%s1 + $0x8c] sm:$0xf]
      %v2101 = vld [vmem:[%s1 + $0x90] sm:$0xf]
      %v2102 = vld [vmem:[%s1 + $0x94] sm:$0xf]
      %v2103 = vld [vmem:[%s1 + $0x98] sm:$0xf]
      %v2104 = vld [vmem:[%s1 + $0x9c] sm:$0xf]
      %v2105 = vld [vmem:[%s1 + $0xa0] sm:$0xf]
      %v2106 = vld [vmem:[%s1 + $0xa4] sm:$0xf]
      %v2107 = vld [vmem:[%s1 + $0xa8] sm:$0xf]
      %v2108 = vld [vmem:[%s1 + $0xac] sm:$0xf]
      %v2109 = vld [vmem:[%s1 + $0xb0] sm:$0xf]
      %v2110 = vld [vmem:[%s1 + $0xb4] sm:$0xf]
      %v2111 = vld [vmem:[%s1 + $0xb8] sm:$0xf]
      %v2112 = vld [vmem:[%s1 + $0xbc] sm:$0xf]
      %v2161 = vunpack.c.l.b16 %v2065
      %v2162 = vunpack.c.l.b16 %v2066
      %v2163 = vunpack.c.l.b16 %v2067
      %v2164 = vunpack.c.l.b16 %v2068
      %v2165 = vunpack.c.l.b16 %v2069
      %v2166 = vunpack.c.l.b16 %v2070
      %v2167 = vunpack.c.l.b16 %v2071
      %v2168 = vunpack.c.l.b16 %v2072
      %v2169 = vunpack.c.l.b16 %v2073
      %v2170 = vunpack.c.l.b16 %v2074
      %v2171 = vunpack.c.l.b16 %v2075
      %v2172 = vunpack.c.l.b16 %v2076
      %v2173 = vunpack.c.l.b16 %v2077
      %v2174 = vunpack.c.l.b16 %v2078
      %v2175 = vunpack.c.l.b16 %v2079
      %v2176 = vunpack.c.l.b16 %v2080
      %v2177 = vunpack.c.l.b16 %v2081
      %v2178 = vunpack.c.l.b16 %v2082
      %v2179 = vunpack.c.l.b16 %v2083
      %v2180 = vunpack.c.l.b16 %v2084
      %v2181 = vunpack.c.l.b16 %v2085
      %v2182 = vunpack.c.l.b16 %v2086
      %v2183 = vunpack.c.l.b16 %v2087
      %v2184 = vunpack.c.l.b16 %v2088
      %v2185 = vunpack.c.l.b16 %v2089
      %v2186 = vunpack.c.l.b16 %v2090
      %v2187 = vunpack.c.l.b16 %v2091
      %v2188 = vunpack.c.l.b16 %v2092
      %v2189 = vunpack.c.l.b16 %v2093
      %v2190 = vunpack.c.l.b16 %v2094
      %v2191 = vunpack.c.l.b16 %v2095
      %v2192 = vunpack.c.l.b16 %v2096
      %v2193 = vunpack.c.l.b16 %v2097
      %v2194 = vunpack.c.l.b16 %v2098
      %v2195 = vunpack.c.l.b16 %v2099
      %v2196 = vunpack.c.l.b16 %v2100
      %v2197 = vunpack.c.l.b16 %v2101
      %v2198 = vunpack.c.l.b16 %v2102
      %v2199 = vunpack.c.l.b16 %v2103
      %v2200 = vunpack.c.l.b16 %v2104
      %v2201 = vunpack.c.l.b16 %v2105
      %v2202 = vunpack.c.l.b16 %v2106
      %v2203 = vunpack.c.l.b16 %v2107
      %v2204 = vunpack.c.l.b16 %v2108
      %v2205 = vunpack.c.l.b16 %v2109
      %v2206 = vunpack.c.l.b16 %v2110
      %v2207 = vunpack.c.l.b16 %v2111
      %v2208 = vunpack.c.l.b16 %v2112
      %v2209 = vpack.c.b16 %v2162, %v2161
      %v2210 = vpack.c.b16 %v2164, %v2163
      %v2211 = vpack.c.b16 %v2166, %v2165
      %v2212 = vpack.c.b16 %v2168, %v2167
      %v2213 = vpack.c.b16 %v2170, %v2169
      %v2214 = vpack.c.b16 %v2172, %v2171
      %v2215 = vpack.c.b16 %v2174, %v2173
      %v2216 = vpack.c.b16 %v2176, %v2175
      %v2217 = vpack.c.b16 %v2178, %v2177
      %v2218 = vpack.c.b16 %v2180, %v2179
      %v2219 = vpack.c.b16 %v2182, %v2181
      %v2220 = vpack.c.b16 %v2184, %v2183
      %v2221 = vpack.c.b16 %v2186, %v2185
      %v2222 = vpack.c.b16 %v2188, %v2187
      %v2223 = vpack.c.b16 %v2190, %v2189
      %v2224 = vpack.c.b16 %v2192, %v2191
      %v2225 = vpack.c.b16 %v2194, %v2193
      %v2226 = vpack.c.b16 %v2196, %v2195
      %v2227 = vpack.c.b16 %v2198, %v2197
      %v2228 = vpack.c.b16 %v2200, %v2199
      %v2229 = vpack.c.b16 %v2202, %v2201
      %v2230 = vpack.c.b16 %v2204, %v2203
      %v2231 = vpack.c.b16 %v2206, %v2205
      %v2232 = vpack.c.b16 %v2208, %v2207
      %2257 = vmatprep.subr.bf16.mxu0 0
      %2258 = vmatpush1.bf16.msra.mxu0 %v2216
      %2259 = vmatprep.subr.bf16.mxu0 0
      %2260 = vmatpush1.bf16.msra.mxu0 %v2215
      %2261 = vmatprep.subr.bf16.mxu0 0
      %2262 = vmatpush1.bf16.msra.mxu0 %v2214
      %2263 = vmatprep.subr.bf16.mxu0 0
      %2264 = vmatpush1.bf16.msra.mxu0 %v2213
      %2265 = vmatprep.subr.bf16.mxu0 0
      %2266 = vmatpush1.bf16.msra.mxu0 %v2212
      %2267 = vmatprep.subr.bf16.mxu0 0
      %2268 = vmatpush1.bf16.msra.mxu0 %v2211
      %2269 = vmatprep.subr.bf16.mxu0 0
      %2270 = vmatpush1.bf16.msra.mxu0 %v2210
      %2271 = vmatprep.subr.bf16.mxu0 0
      %2272 = vmatpush1.bf16.msra.mxu0 %v2209
      %2273 = vmatprep.subr.bf16.mxu0 0
      %2274 = vmatpush2.bf16.msra.mxu0 %v2224
      %2275 = vmatprep.subr.bf16.mxu0 0
      %2276 = vmatpush2.bf16.msra.mxu0 %v2223
      %2277 = vmatprep.subr.bf16.mxu0 0
      %2278 = vmatpush2.bf16.msra.mxu0 %v2222
      %2279 = vmatprep.subr.bf16.mxu0 0
      %2280 = vmatpush2.bf16.msra.mxu0 %v2221
      %2281 = vmatprep.subr.bf16.mxu0 0
      %2282 = vmatpush2.bf16.msra.mxu0 %v2220
      %2283 = vmatprep.subr.bf16.mxu0 0
      %2284 = vmatpush2.bf16.msra.mxu0 %v2219
      %2285 = vmatprep.subr.bf16.mxu0 0
      %2286 = vmatpush2.bf16.msra.mxu0 %v2218
      %2287 = vmatprep.subr.bf16.mxu0 0
      %2288 = vmatpush2.bf16.msra.mxu0 %v2217
      %2289 = vmatprep.mubr.bf16.mxu0 %v870
      %2290 = vmatmul.mubr.bf16.gmra.mxu0 %v654
      %v2291 = vpop.f32.mrf.mxu0
      %v2292 = vadd.f32 0.0, %v2291
      %v2293 = vpop.f32.mrf.mxu0
      %v2294 = vpop.f32.mrf.mxu0
      %v2295 = vadd.f32 0.0, %v2294
      %v2296 = vpop.f32.mrf.mxu0
      %2297 = vmatprep.mubr.bf16.mxu0 %v871
      %2298 = vmatmul.mubr.bf16.gmra.mxu0 %v655
      %v2299 = vpop.f32.mrf.mxu0
      %v2300 = vadd.f32 0.0, %v2299
      %v2301 = vpop.f32.mrf.mxu0
      %v2302 = vpop.f32.mrf.mxu0
      %v2303 = vadd.f32 0.0, %v2302
      %v2304 = vpop.f32.mrf.mxu0
      %2305 = vmatprep.mubr.bf16.mxu0 %v872
      %2306 = vmatmul.mubr.bf16.gmra.mxu0 %v656
      %v2307 = vpop.f32.mrf.mxu0
      %v2308 = vadd.f32 0.0, %v2307
      %v2309 = vpop.f32.mrf.mxu0
      %v2310 = vpop.f32.mrf.mxu0
      %v2311 = vadd.f32 0.0, %v2310
      %v2312 = vpop.f32.mrf.mxu0
      %2313 = vmatprep.mubr.bf16.mxu0 %v873
      %2314 = vmatmul.mubr.bf16.gmra.mxu0 %v657
      %v2315 = vpop.f32.mrf.mxu0
      %v2316 = vadd.f32 0.0, %v2315
      %v2317 = vpop.f32.mrf.mxu0
      %v2318 = vpop.f32.mrf.mxu0
      %v2319 = vadd.f32 0.0, %v2318
      %v2320 = vpop.f32.mrf.mxu0
      %2321 = vmatprep.mubr.bf16.mxu0 %v874
      %2322 = vmatmul.mubr.bf16.gmra.mxu0 %v658
      %v2323 = vpop.f32.mrf.mxu0
      %v2324 = vadd.f32 0.0, %v2323
      %v2325 = vpop.f32.mrf.mxu0
      %v2326 = vpop.f32.mrf.mxu0
      %v2327 = vadd.f32 0.0, %v2326
      %v2328 = vpop.f32.mrf.mxu0
      %2329 = vmatprep.mubr.bf16.mxu0 %v875
      %2330 = vmatmul.mubr.bf16.gmra.mxu0 %v659
      %v2331 = vpop.f32.mrf.mxu0
      %v2332 = vadd.f32 0.0, %v2331
      %v2333 = vpop.f32.mrf.mxu0
      %v2334 = vpop.f32.mrf.mxu0
      %v2335 = vadd.f32 0.0, %v2334
      %v2336 = vpop.f32.mrf.mxu0
      %2337 = vmatprep.mubr.bf16.mxu0 %v876
      %2338 = vmatmul.mubr.bf16.gmra.mxu0 %v660
      %v2339 = vpop.f32.mrf.mxu0
      %v2340 = vadd.f32 0.0, %v2339
      %v2341 = vpop.f32.mrf.mxu0
      %v2342 = vpop.f32.mrf.mxu0
      %v2343 = vadd.f32 0.0, %v2342
      %v2344 = vpop.f32.mrf.mxu0
      %2345 = vmatprep.mubr.bf16.mxu0 %v877
      %2346 = vmatmul.mubr.bf16.gmra.mxu0 %v661
      %v2347 = vpop.f32.mrf.mxu0
      %v2348 = vadd.f32 0.0, %v2347
      %v2349 = vpop.f32.mrf.mxu0
      %v2350 = vpop.f32.mrf.mxu0
      %v2351 = vadd.f32 0.0, %v2350
      %v2352 = vpop.f32.mrf.mxu0
      %2353 = vmatprep.mubr.bf16.mxu0 %v878
      %2354 = vmatmul.mubr.bf16.gmra.mxu0 %v662
      %v2355 = vpop.f32.mrf.mxu0
      %v2356 = vadd.f32 0.0, %v2355
      %v2357 = vpop.f32.mrf.mxu0
      %v2358 = vpop.f32.mrf.mxu0
      %v2359 = vadd.f32 0.0, %v2358
      %v2360 = vpop.f32.mrf.mxu0
      %2361 = vmatprep.mubr.bf16.mxu0 %v879
      %2362 = vmatmul.mubr.bf16.gmra.mxu0 %v663
      %v2363 = vpop.f32.mrf.mxu0
      %v2364 = vadd.f32 0.0, %v2363
      %v2365 = vpop.f32.mrf.mxu0
      %v2366 = vpop.f32.mrf.mxu0
      %v2367 = vadd.f32 0.0, %v2366
      %v2368 = vpop.f32.mrf.mxu0
      %2369 = vmatprep.mubr.bf16.mxu0 %v880
      %2370 = vmatmul.mubr.bf16.gmra.mxu0 %v664
      %v2371 = vpop.f32.mrf.mxu0
      %v2372 = vadd.f32 0.0, %v2371
      %v2373 = vpop.f32.mrf.mxu0
      %v2374 = vpop.f32.mrf.mxu0
      %v2375 = vadd.f32 0.0, %v2374
      %v2376 = vpop.f32.mrf.mxu0
      %2377 = vmatprep.mubr.bf16.mxu0 %v881
      %2378 = vmatmul.mubr.bf16.gmra.mxu0 %v665
      %v2379 = vpop.f32.mrf.mxu0
      %v2380 = vadd.f32 0.0, %v2379
      %v2381 = vpop.f32.mrf.mxu0
      %v2382 = vpop.f32.mrf.mxu0
      %v2383 = vadd.f32 0.0, %v2382
      %v2384 = vpop.f32.mrf.mxu0
      %2385 = vmatprep.mubr.bf16.mxu0 %v882
      %2386 = vmatmul.mubr.bf16.gmra.mxu0 %v666
      %v2387 = vpop.f32.mrf.mxu0
      %v2388 = vadd.f32 0.0, %v2387
      %v2389 = vpop.f32.mrf.mxu0
      %v2390 = vpop.f32.mrf.mxu0
      %v2391 = vadd.f32 0.0, %v2390
      %v2392 = vpop.f32.mrf.mxu0
      %2393 = vmatprep.mubr.bf16.mxu0 %v883
      %2394 = vmatmul.mubr.bf16.gmra.mxu0 %v667
      %v2395 = vpop.f32.mrf.mxu0
      %v2396 = vadd.f32 0.0, %v2395
      %v2397 = vpop.f32.mrf.mxu0
      %v2398 = vpop.f32.mrf.mxu0
      %v2399 = vadd.f32 0.0, %v2398
      %v2400 = vpop.f32.mrf.mxu0
      %2401 = vmatprep.mubr.bf16.mxu0 %v884
      %2402 = vmatmul.mubr.bf16.gmra.mxu0 %v668
      %v2403 = vpop.f32.mrf.mxu0
      %v2404 = vadd.f32 0.0, %v2403
      %v2405 = vpop.f32.mrf.mxu0
      %v2406 = vpop.f32.mrf.mxu0
      %v2407 = vadd.f32 0.0, %v2406
      %v2408 = vpop.f32.mrf.mxu0
      %2409 = vmatprep.mubr.bf16.mxu0 %v885
      %2410 = vmatmul.mubr.bf16.gmra.mxu0 %v669
      %v2411 = vpop.f32.mrf.mxu0
      %v2412 = vadd.f32 0.0, %v2411
      %v2413 = vpop.f32.mrf.mxu0
      %v2414 = vpop.f32.mrf.mxu0
      %v2415 = vadd.f32 0.0, %v2414
      %v2416 = vpop.f32.mrf.mxu0
      %2417 = vmatprep.mubr.bf16.mxu0 %v886
      %2418 = vmatmul.mubr.bf16.gmra.mxu0 %v670
      %v2419 = vpop.f32.mrf.mxu0
      %v2420 = vadd.f32 0.0, %v2419
      %v2421 = vpop.f32.mrf.mxu0
      %v2422 = vpop.f32.mrf.mxu0
      %v2423 = vadd.f32 0.0, %v2422
      %v2424 = vpop.f32.mrf.mxu0
      %2425 = vmatprep.mubr.bf16.mxu0 %v887
      %2426 = vmatmul.mubr.bf16.gmra.mxu0 %v671
      %v2427 = vpop.f32.mrf.mxu0
      %v2428 = vadd.f32 0.0, %v2427
      %v2429 = vpop.f32.mrf.mxu0
      %v2430 = vpop.f32.mrf.mxu0
      %v2431 = vadd.f32 0.0, %v2430
      %v2432 = vpop.f32.mrf.mxu0
      %2433 = vmatprep.mubr.bf16.mxu0 %v888
      %2434 = vmatmul.mubr.bf16.gmra.mxu0 %v672
      %v2435 = vpop.f32.mrf.mxu0
      %v2436 = vadd.f32 0.0, %v2435
      %v2437 = vpop.f32.mrf.mxu0
      %v2438 = vpop.f32.mrf.mxu0
      %v2439 = vadd.f32 0.0, %v2438
      %v2440 = vpop.f32.mrf.mxu0
      %2441 = vmatprep.mubr.bf16.mxu0 %v889
      %2442 = vmatmul.mubr.bf16.gmra.mxu0 %v673
      %v2443 = vpop.f32.mrf.mxu0
      %v2444 = vadd.f32 0.0, %v2443
      %v2445 = vpop.f32.mrf.mxu0
      %v2446 = vpop.f32.mrf.mxu0
      %v2447 = vadd.f32 0.0, %v2446
      %v2448 = vpop.f32.mrf.mxu0
      %2449 = vmatprep.mubr.bf16.mxu0 %v890
      %2450 = vmatmul.mubr.bf16.gmra.mxu0 %v674
      %v2451 = vpop.f32.mrf.mxu0
      %v2452 = vadd.f32 0.0, %v2451
      %v2453 = vpop.f32.mrf.mxu0
      %v2454 = vpop.f32.mrf.mxu0
      %v2455 = vadd.f32 0.0, %v2454
      %v2456 = vpop.f32.mrf.mxu0
      %2457 = vmatprep.mubr.bf16.mxu0 %v891
      %2458 = vmatmul.mubr.bf16.gmra.mxu0 %v675
      %v2459 = vpop.f32.mrf.mxu0
      %v2460 = vadd.f32 0.0, %v2459
      %v2461 = vpop.f32.mrf.mxu0
      %v2462 = vpop.f32.mrf.mxu0
      %v2463 = vadd.f32 0.0, %v2462
      %v2464 = vpop.f32.mrf.mxu0
      %2465 = vmatprep.mubr.bf16.mxu0 %v892
      %2466 = vmatmul.mubr.bf16.gmra.mxu0 %v676
      %v2467 = vpop.f32.mrf.mxu0
      %v2468 = vadd.f32 0.0, %v2467
      %v2469 = vpop.f32.mrf.mxu0
      %v2470 = vpop.f32.mrf.mxu0
      %v2471 = vadd.f32 0.0, %v2470
      %v2472 = vpop.f32.mrf.mxu0
      %2473 = vmatprep.mubr.bf16.mxu0 %v893
      %2474 = vmatmul.mubr.bf16.gmra.mxu0 %v677
      %v2475 = vpop.f32.mrf.mxu0
      %v2476 = vadd.f32 0.0, %v2475
      %v2477 = vpop.f32.mrf.mxu0
      %v2478 = vpop.f32.mrf.mxu0
      %v2479 = vadd.f32 0.0, %v2478
      %v2480 = vpop.f32.mrf.mxu0
      %2481 = vmatprep.mubr.bf16.mxu0 %v894
      %2482 = vmatmul.mubr.bf16.gmra.mxu0 %v678
      %v2483 = vpop.f32.mrf.mxu0
      %v2484 = vadd.f32 0.0, %v2483
      %v2485 = vpop.f32.mrf.mxu0
      %v2486 = vpop.f32.mrf.mxu0
      %v2487 = vadd.f32 0.0, %v2486
      %v2488 = vpop.f32.mrf.mxu0
      %2489 = vmatprep.mubr.bf16.mxu0 %v895
      %2490 = vmatmul.mubr.bf16.gmra.mxu0 %v679
      %v2491 = vpop.f32.mrf.mxu0
      %v2492 = vadd.f32 0.0, %v2491
      %v2493 = vpop.f32.mrf.mxu0
      %v2494 = vpop.f32.mrf.mxu0
      %v2495 = vadd.f32 0.0, %v2494
      %v2496 = vpop.f32.mrf.mxu0
      %2497 = vmatprep.mubr.bf16.mxu0 %v896
      %2498 = vmatmul.mubr.bf16.gmra.mxu0 %v680
      %v2499 = vpop.f32.mrf.mxu0
      %v2500 = vadd.f32 0.0, %v2499
      %v2501 = vpop.f32.mrf.mxu0
      %v2502 = vpop.f32.mrf.mxu0
      %v2503 = vadd.f32 0.0, %v2502
      %v2504 = vpop.f32.mrf.mxu0
      %2505 = vmatprep.mubr.bf16.mxu0 %v897
      %2506 = vmatmul.mubr.bf16.gmra.mxu0 %v681
      %v2507 = vpop.f32.mrf.mxu0
      %v2508 = vadd.f32 0.0, %v2507
      %v2509 = vpop.f32.mrf.mxu0
      %v2510 = vpop.f32.mrf.mxu0
      %v2511 = vadd.f32 0.0, %v2510
      %v2512 = vpop.f32.mrf.mxu0
      %2513 = vmatprep.mubr.bf16.mxu0 %v898
      %2514 = vmatmul.mubr.bf16.gmra.mxu0 %v682
      %v2515 = vpop.f32.mrf.mxu0
      %v2516 = vadd.f32 0.0, %v2515
      %v2517 = vpop.f32.mrf.mxu0
      %v2518 = vpop.f32.mrf.mxu0
      %v2519 = vadd.f32 0.0, %v2518
      %v2520 = vpop.f32.mrf.mxu0
      %2521 = vmatprep.mubr.bf16.mxu0 %v899
      %2522 = vmatmul.mubr.bf16.gmra.mxu0 %v683
      %v2523 = vpop.f32.mrf.mxu0
      %v2524 = vadd.f32 0.0, %v2523
      %v2525 = vpop.f32.mrf.mxu0
      %v2526 = vpop.f32.mrf.mxu0
      %v2527 = vadd.f32 0.0, %v2526
      %v2528 = vpop.f32.mrf.mxu0
      %2529 = vmatprep.mubr.bf16.mxu0 %v900
      %2530 = vmatmul.mubr.bf16.gmra.mxu0 %v684
      %v2531 = vpop.f32.mrf.mxu0
      %v2532 = vadd.f32 0.0, %v2531
      %v2533 = vpop.f32.mrf.mxu0
      %v2534 = vpop.f32.mrf.mxu0
      %v2535 = vadd.f32 0.0, %v2534
      %v2536 = vpop.f32.mrf.mxu0
      %2537 = vmatprep.mubr.bf16.mxu0 %v901
      %2538 = vmatmul.mubr.bf16.gmra.mxu0 %v685
      %v2539 = vpop.f32.mrf.mxu0
      %v2540 = vadd.f32 0.0, %v2539
      %v2541 = vpop.f32.mrf.mxu0
      %v2542 = vpop.f32.mrf.mxu0
      %v2543 = vadd.f32 0.0, %v2542
      %v2544 = vpop.f32.mrf.mxu0
      %2545 = vmatprep.mubr.bf16.mxu0 %v902
      %2546 = vmatmul.mubr.bf16.gmra.mxu0 %v686
      %v2547 = vpop.f32.mrf.mxu0
      %v2548 = vadd.f32 0.0, %v2547
      %v2549 = vpop.f32.mrf.mxu0
      %v2550 = vpop.f32.mrf.mxu0
      %v2551 = vadd.f32 0.0, %v2550
      %v2552 = vpop.f32.mrf.mxu0
      %2553 = vmatprep.mubr.bf16.mxu0 %v903
      %2554 = vmatmul.mubr.bf16.gmra.mxu0 %v687
      %v2555 = vpop.f32.mrf.mxu0
      %v2556 = vadd.f32 0.0, %v2555
      %v2557 = vpop.f32.mrf.mxu0
      %v2558 = vpop.f32.mrf.mxu0
      %v2559 = vadd.f32 0.0, %v2558
      %v2560 = vpop.f32.mrf.mxu0
      %2561 = vmatprep.mubr.bf16.mxu0 %v904
      %2562 = vmatmul.mubr.bf16.gmra.mxu0 %v688
      %v2563 = vpop.f32.mrf.mxu0
      %v2564 = vadd.f32 0.0, %v2563
      %v2565 = vpop.f32.mrf.mxu0
      %v2566 = vpop.f32.mrf.mxu0
      %v2567 = vadd.f32 0.0, %v2566
      %v2568 = vpop.f32.mrf.mxu0
      %2569 = vmatprep.mubr.bf16.mxu0 %v905
      %2570 = vmatmul.mubr.bf16.gmra.mxu0 %v689
      %v2571 = vpop.f32.mrf.mxu0
      %v2572 = vadd.f32 0.0, %v2571
      %v2573 = vpop.f32.mrf.mxu0
      %v2574 = vpop.f32.mrf.mxu0
      %v2575 = vadd.f32 0.0, %v2574
      %v2576 = vpop.f32.mrf.mxu0
      %2577 = vdwg.mxu0
      %2578 = vmatprep.subr.bf16.mxu0 0
      %2579 = vmatpush1.bf16.msra.mxu0 %v2232
      %2580 = vmatprep.subr.bf16.mxu0 0
      %2581 = vmatpush1.bf16.msra.mxu0 %v2231
      %2582 = vmatprep.subr.bf16.mxu0 0
      %2583 = vmatpush1.bf16.msra.mxu0 %v2230
      %2584 = vmatprep.subr.bf16.mxu0 0
      %2585 = vmatpush1.bf16.msra.mxu0 %v2229
      %2586 = vmatprep.subr.bf16.mxu0 0
      %2587 = vmatpush1.bf16.msra.mxu0 %v2228
      %2588 = vmatprep.subr.bf16.mxu0 0
      %2589 = vmatpush1.bf16.msra.mxu0 %v2227
      %2590 = vmatprep.subr.bf16.mxu0 0
      %2591 = vmatpush1.bf16.msra.mxu0 %v2226
      %2592 = vmatprep.subr.bf16.mxu0 0
      %2593 = vmatpush1.bf16.msra.mxu0 %v2225
      %2594 = vmatprep.subr.bf16.mxu0 0
      %2595 = vmatpush2.bf16.msra.mxu0 0
      %2596 = vmatprep.subr.bf16.mxu0 0
      %2597 = vmatpush2.bf16.msra.mxu0 0
      %2598 = vmatprep.subr.bf16.mxu0 0
      %2599 = vmatpush2.bf16.msra.mxu0 0
      %2600 = vmatprep.subr.bf16.mxu0 0
      %2601 = vmatpush2.bf16.msra.mxu0 0
      %2602 = vmatprep.subr.bf16.mxu0 0
      %2603 = vmatpush2.bf16.msra.mxu0 0
      %2604 = vmatprep.subr.bf16.mxu0 0
      %2605 = vmatpush2.bf16.msra.mxu0 0
      %2606 = vmatprep.subr.bf16.mxu0 0
      %2607 = vmatpush2.bf16.msra.mxu0 0
      %2608 = vmatprep.subr.bf16.mxu0 0
      %2609 = vmatpush2.bf16.msra.mxu0 0
      %2610 = vmatprep.mubr.bf16.mxu0 0
      %2611 = vmatmul.mubr.bf16.gmra.mxu0 %v1086
      %v2612 = vpop.f32.mrf.mxu0
      %v2613 = vadd.f32 %v2292, %v2612
      %v2614 = vpop.f32.mrf.mxu0
      %v2615 = vpop.f32.mrf.mxu0
      %v2616 = vadd.f32 %v2295, %v2615
      %v2617 = vpop.f32.mrf.mxu0
      %2618 = vmatprep.mubr.bf16.mxu0 0
      %2619 = vmatmul.mubr.bf16.gmra.mxu0 %v1087
      %v2620 = vpop.f32.mrf.mxu0
      %v2621 = vadd.f32 %v2300, %v2620
      %v2622 = vpop.f32.mrf.mxu0
      %v2623 = vpop.f32.mrf.mxu0
      %v2624 = vadd.f32 %v2303, %v2623
      %v2625 = vpop.f32.mrf.mxu0
      %2626 = vmatprep.mubr.bf16.mxu0 0
      %2627 = vmatmul.mubr.bf16.gmra.mxu0 %v1088
      %v2628 = vpop.f32.mrf.mxu0
      %v2629 = vadd.f32 %v2308, %v2628
      %v2630 = vpop.f32.mrf.mxu0
      %v2631 = vpop.f32.mrf.mxu0
      %v2632 = vadd.f32 %v2311, %v2631
      %v2633 = vpop.f32.mrf.mxu0
      %2634 = vmatprep.mubr.bf16.mxu0 0
      %2635 = vmatmul.mubr.bf16.gmra.mxu0 %v1089
      %v2636 = vpop.f32.mrf.mxu0
      %v2637 = vadd.f32 %v2316, %v2636
      %v2638 = vpop.f32.mrf.mxu0
      %v2639 = vpop.f32.mrf.mxu0
      %v2640 = vadd.f32 %v2319, %v2639
      %v2641 = vpop.f32.mrf.mxu0
      %2642 = vmatprep.mubr.bf16.mxu0 0
      %2643 = vmatmul.mubr.bf16.gmra.mxu0 %v1090
      %v2644 = vpop.f32.mrf.mxu0
      %v2645 = vadd.f32 %v2324, %v2644
      %v2646 = vpop.f32.mrf.mxu0
      %v2647 = vpop.f32.mrf.mxu0
      %v2648 = vadd.f32 %v2327, %v2647
      %v2649 = vpop.f32.mrf.mxu0
      %2650 = vmatprep.mubr.bf16.mxu0 0
      %2651 = vmatmul.mubr.bf16.gmra.mxu0 %v1091
      %v2652 = vpop.f32.mrf.mxu0
      %v2653 = vadd.f32 %v2332, %v2652
      %v2654 = vpop.f32.mrf.mxu0
      %v2655 = vpop.f32.mrf.mxu0
      %v2656 = vadd.f32 %v2335, %v2655
      %v2657 = vpop.f32.mrf.mxu0
      %2658 = vmatprep.mubr.bf16.mxu0 0
      %2659 = vmatmul.mubr.bf16.gmra.mxu0 %v1092
      %v2660 = vpop.f32.mrf.mxu0
      %v2661 = vadd.f32 %v2340, %v2660
      %v2662 = vpop.f32.mrf.mxu0
      %v2663 = vpop.f32.mrf.mxu0
      %v2664 = vadd.f32 %v2343, %v2663
      %v2665 = vpop.f32.mrf.mxu0
      %2666 = vmatprep.mubr.bf16.mxu0 0
      %2667 = vmatmul.mubr.bf16.gmra.mxu0 %v1093
      %v2668 = vpop.f32.mrf.mxu0
      %v2669 = vadd.f32 %v2348, %v2668
      %v2670 = vpop.f32.mrf.mxu0
      %v2671 = vpop.f32.mrf.mxu0
      %v2672 = vadd.f32 %v2351, %v2671
      %v2673 = vpop.f32.mrf.mxu0
      %2674 = vmatprep.mubr.bf16.mxu0 0
      %2675 = vmatmul.mubr.bf16.gmra.mxu0 %v1094
      %v2676 = vpop.f32.mrf.mxu0
      %v2677 = vadd.f32 %v2356, %v2676
      %v2678 = vpop.f32.mrf.mxu0
      %v2679 = vpop.f32.mrf.mxu0
      %v2680 = vadd.f32 %v2359, %v2679
      %v2681 = vpop.f32.mrf.mxu0
      %2682 = vmatprep.mubr.bf16.mxu0 0
      %2683 = vmatmul.mubr.bf16.gmra.mxu0 %v1095
      %v2684 = vpop.f32.mrf.mxu0
      %v2685 = vadd.f32 %v2364, %v2684
      %v2686 = vpop.f32.mrf.mxu0
      %v2687 = vpop.f32.mrf.mxu0
      %v2688 = vadd.f32 %v2367, %v2687
      %v2689 = vpop.f32.mrf.mxu0
      %2690 = vmatprep.mubr.bf16.mxu0 0
      %2691 = vmatmul.mubr.bf16.gmra.mxu0 %v1096
      %v2692 = vpop.f32.mrf.mxu0
      %v2693 = vadd.f32 %v2372, %v2692
      %v2694 = vpop.f32.mrf.mxu0
      %v2695 = vpop.f32.mrf.mxu0
      %v2696 = vadd.f32 %v2375, %v2695
      %v2697 = vpop.f32.mrf.mxu0
      %2698 = vmatprep.mubr.bf16.mxu0 0
      %2699 = vmatmul.mubr.bf16.gmra.mxu0 %v1097
      %v2700 = vpop.f32.mrf.mxu0
      %v2701 = vadd.f32 %v2380, %v2700
      %v2702 = vpop.f32.mrf.mxu0
      %v2703 = vpop.f32.mrf.mxu0
      %v2704 = vadd.f32 %v2383, %v2703
      %v2705 = vpop.f32.mrf.mxu0
      %2706 = vmatprep.mubr.bf16.mxu0 0
      %2707 = vmatmul.mubr.bf16.gmra.mxu0 %v1098
      %v2708 = vpop.f32.mrf.mxu0
      %v2709 = vadd.f32 %v2388, %v2708
      %v2710 = vpop.f32.mrf.mxu0
      %v2711 = vpop.f32.mrf.mxu0
      %v2712 = vadd.f32 %v2391, %v2711
      %v2713 = vpop.f32.mrf.mxu0
      %2714 = vmatprep.mubr.bf16.mxu0 0
      %2715 = vmatmul.mubr.bf16.gmra.mxu0 %v1099
      %v2716 = vpop.f32.mrf.mxu0
      %v2717 = vadd.f32 %v2396, %v2716
      %v2718 = vpop.f32.mrf.mxu0
      %v2719 = vpop.f32.mrf.mxu0
      %v2720 = vadd.f32 %v2399, %v2719
      %v2721 = vpop.f32.mrf.mxu0
      %2722 = vmatprep.mubr.bf16.mxu0 0
      %2723 = vmatmul.mubr.bf16.gmra.mxu0 %v1100
      %v2724 = vpop.f32.mrf.mxu0
      %v2725 = vadd.f32 %v2404, %v2724
      %v2726 = vpop.f32.mrf.mxu0
      %v2727 = vpop.f32.mrf.mxu0
      %v2728 = vadd.f32 %v2407, %v2727
      %v2729 = vpop.f32.mrf.mxu0
      %2730 = vmatprep.mubr.bf16.mxu0 0
      %2731 = vmatmul.mubr.bf16.gmra.mxu0 %v1101
      %v2732 = vpop.f32.mrf.mxu0
      %v2733 = vadd.f32 %v2412, %v2732
      %v2734 = vpop.f32.mrf.mxu0
      %v2735 = vpop.f32.mrf.mxu0
      %v2736 = vadd.f32 %v2415, %v2735
      %v2737 = vpop.f32.mrf.mxu0
      %2738 = vmatprep.mubr.bf16.mxu0 0
      %2739 = vmatmul.mubr.bf16.gmra.mxu0 %v1102
      %v2740 = vpop.f32.mrf.mxu0
      %v2741 = vadd.f32 %v2420, %v2740
      %v2742 = vpop.f32.mrf.mxu0
      %v2743 = vpop.f32.mrf.mxu0
      %v2744 = vadd.f32 %v2423, %v2743
      %v2745 = vpop.f32.mrf.mxu0
      %2746 = vmatprep.mubr.bf16.mxu0 0
      %2747 = vmatmul.mubr.bf16.gmra.mxu0 %v1103
      %v2748 = vpop.f32.mrf.mxu0
      %v2749 = vadd.f32 %v2428, %v2748
      %v2750 = vpop.f32.mrf.mxu0
      %v2751 = vpop.f32.mrf.mxu0
      %v2752 = vadd.f32 %v2431, %v2751
      %v2753 = vpop.f32.mrf.mxu0
      %2754 = vmatprep.mubr.bf16.mxu0 0
      %2755 = vmatmul.mubr.bf16.gmra.mxu0 %v1104
      %v2756 = vpop.f32.mrf.mxu0
      %v2757 = vadd.f32 %v2436, %v2756
      %v2758 = vpop.f32.mrf.mxu0
      %v2759 = vpop.f32.mrf.mxu0
      %v2760 = vadd.f32 %v2439, %v2759
      %v2761 = vpop.f32.mrf.mxu0
      %2762 = vmatprep.mubr.bf16.mxu0 0
      %2763 = vmatmul.mubr.bf16.gmra.mxu0 %v1105
      %v2764 = vpop.f32.mrf.mxu0
      %v2765 = vadd.f32 %v2444, %v2764
      %v2766 = vpop.f32.mrf.mxu0
      %v2767 = vpop.f32.mrf.mxu0
      %v2768 = vadd.f32 %v2447, %v2767
      %v2769 = vpop.f32.mrf.mxu0
      %2770 = vmatprep.mubr.bf16.mxu0 0
      %2771 = vmatmul.mubr.bf16.gmra.mxu0 %v1106
      %v2772 = vpop.f32.mrf.mxu0
      %v2773 = vadd.f32 %v2452, %v2772
      %v2774 = vpop.f32.mrf.mxu0
      %v2775 = vpop.f32.mrf.mxu0
      %v2776 = vadd.f32 %v2455, %v2775
      %v2777 = vpop.f32.mrf.mxu0
      %2778 = vmatprep.mubr.bf16.mxu0 0
      %2779 = vmatmul.mubr.bf16.gmra.mxu0 %v1107
      %v2780 = vpop.f32.mrf.mxu0
      %v2781 = vadd.f32 %v2460, %v2780
      %v2782 = vpop.f32.mrf.mxu0
      %v2783 = vpop.f32.mrf.mxu0
      %v2784 = vadd.f32 %v2463, %v2783
      %v2785 = vpop.f32.mrf.mxu0
      %2786 = vmatprep.mubr.bf16.mxu0 0
      %2787 = vmatmul.mubr.bf16.gmra.mxu0 %v1108
      %v2788 = vpop.f32.mrf.mxu0
      %v2789 = vadd.f32 %v2468, %v2788
      %v2790 = vpop.f32.mrf.mxu0
      %v2791 = vpop.f32.mrf.mxu0
      %v2792 = vadd.f32 %v2471, %v2791
      %v2793 = vpop.f32.mrf.mxu0
      %2794 = vmatprep.mubr.bf16.mxu0 0
      %2795 = vmatmul.mubr.bf16.gmra.mxu0 %v1109
      %v2796 = vpop.f32.mrf.mxu0
      %v2797 = vadd.f32 %v2476, %v2796
      %v2798 = vpop.f32.mrf.mxu0
      %v2799 = vpop.f32.mrf.mxu0
      %v2800 = vadd.f32 %v2479, %v2799
      %v2801 = vpop.f32.mrf.mxu0
      %2802 = vmatprep.mubr.bf16.mxu0 0
      %2803 = vmatmul.mubr.bf16.gmra.mxu0 %v1110
      %v2804 = vpop.f32.mrf.mxu0
      %v2805 = vadd.f32 %v2484, %v2804
      %v2806 = vpop.f32.mrf.mxu0
      %v2807 = vpop.f32.mrf.mxu0
      %v2808 = vadd.f32 %v2487, %v2807
      %v2809 = vpop.f32.mrf.mxu0
      %2810 = vmatprep.mubr.bf16.mxu0 0
      %2811 = vmatmul.mubr.bf16.gmra.mxu0 %v1111
      %v2812 = vpop.f32.mrf.mxu0
      %v2813 = vadd.f32 %v2492, %v2812
      %v2814 = vpop.f32.mrf.mxu0
      %v2815 = vpop.f32.mrf.mxu0
      %v2816 = vadd.f32 %v2495, %v2815
      %v2817 = vpop.f32.mrf.mxu0
      %2818 = vmatprep.mubr.bf16.mxu0 0
      %2819 = vmatmul.mubr.bf16.gmra.mxu0 %v1112
      %v2820 = vpop.f32.mrf.mxu0
      %v2821 = vadd.f32 %v2500, %v2820
      %v2822 = vpop.f32.mrf.mxu0
      %v2823 = vpop.f32.mrf.mxu0
      %v2824 = vadd.f32 %v2503, %v2823
      %v2825 = vpop.f32.mrf.mxu0
      %2826 = vmatprep.mubr.bf16.mxu0 0
      %2827 = vmatmul.mubr.bf16.gmra.mxu0 %v1113
      %v2828 = vpop.f32.mrf.mxu0
      %v2829 = vadd.f32 %v2508, %v2828
      %v2830 = vpop.f32.mrf.mxu0
      %v2831 = vpop.f32.mrf.mxu0
      %v2832 = vadd.f32 %v2511, %v2831
      %v2833 = vpop.f32.mrf.mxu0
      %2834 = vmatprep.mubr.bf16.mxu0 0
      %2835 = vmatmul.mubr.bf16.gmra.mxu0 %v1114
      %v2836 = vpop.f32.mrf.mxu0
      %v2837 = vadd.f32 %v2516, %v2836
      %v2838 = vpop.f32.mrf.mxu0
      %v2839 = vpop.f32.mrf.mxu0
      %v2840 = vadd.f32 %v2519, %v2839
      %v2841 = vpop.f32.mrf.mxu0
      %2842 = vmatprep.mubr.bf16.mxu0 0
      %2843 = vmatmul.mubr.bf16.gmra.mxu0 %v1115
      %v2844 = vpop.f32.mrf.mxu0
      %v2845 = vadd.f32 %v2524, %v2844
      %v2846 = vpop.f32.mrf.mxu0
      %v2847 = vpop.f32.mrf.mxu0
      %v2848 = vadd.f32 %v2527, %v2847
      %v2849 = vpop.f32.mrf.mxu0
      %2850 = vmatprep.mubr.bf16.mxu0 0
      %2851 = vmatmul.mubr.bf16.gmra.mxu0 %v1116
      %v2852 = vpop.f32.mrf.mxu0
      %v2853 = vadd.f32 %v2532, %v2852
      %v2854 = vpop.f32.mrf.mxu0
      %v2855 = vpop.f32.mrf.mxu0
      %v2856 = vadd.f32 %v2535, %v2855
      %v2857 = vpop.f32.mrf.mxu0
      %2858 = vmatprep.mubr.bf16.mxu0 0
      %2859 = vmatmul.mubr.bf16.gmra.mxu0 %v1117
      %v2860 = vpop.f32.mrf.mxu0
      %v2861 = vadd.f32 %v2540, %v2860
      %v2862 = vpop.f32.mrf.mxu0
      %v2863 = vpop.f32.mrf.mxu0
      %v2864 = vadd.f32 %v2543, %v2863
      %v2865 = vpop.f32.mrf.mxu0
      %2866 = vmatprep.mubr.bf16.mxu0 0
      %2867 = vmatmul.mubr.bf16.gmra.mxu0 %v1118
      %v2868 = vpop.f32.mrf.mxu0
      %v2869 = vadd.f32 %v2548, %v2868
      %v2870 = vpop.f32.mrf.mxu0
      %v2871 = vpop.f32.mrf.mxu0
      %v2872 = vadd.f32 %v2551, %v2871
      %v2873 = vpop.f32.mrf.mxu0
      %2874 = vmatprep.mubr.bf16.mxu0 0
      %2875 = vmatmul.mubr.bf16.gmra.mxu0 %v1119
      %v2876 = vpop.f32.mrf.mxu0
      %v2877 = vadd.f32 %v2556, %v2876
      %v2878 = vpop.f32.mrf.mxu0
      %v2879 = vpop.f32.mrf.mxu0
      %v2880 = vadd.f32 %v2559, %v2879
      %v2881 = vpop.f32.mrf.mxu0
      %2882 = vmatprep.mubr.bf16.mxu0 0
      %2883 = vmatmul.mubr.bf16.gmra.mxu0 %v1120
      %v2884 = vpop.f32.mrf.mxu0
      %v2885 = vadd.f32 %v2564, %v2884
      %v2886 = vpop.f32.mrf.mxu0
      %v2887 = vpop.f32.mrf.mxu0
      %v2888 = vadd.f32 %v2567, %v2887
      %v2889 = vpop.f32.mrf.mxu0
      %2890 = vmatprep.mubr.bf16.mxu0 0
      %2891 = vmatmul.mubr.bf16.gmra.mxu0 %v1121
      %v2892 = vpop.f32.mrf.mxu0
      %v2893 = vadd.f32 %v2572, %v2892
      %v2894 = vpop.f32.mrf.mxu0
      %v2895 = vpop.f32.mrf.mxu0
      %v2896 = vadd.f32 %v2575, %v2895
      %v2897 = vpop.f32.mrf.mxu0
      %2898 = vdwg.mxu0
      %v2899 = vld [vmem:[#allocation2] sm:$0xff]
      %v2900 = vld [vmem:[#allocation2 + $0x8] sm:$0xff]
      %v2901 = vld [vmem:[#allocation2 + $0x10] sm:$0xff]
      %v2902 = vld [vmem:[#allocation2 + $0x18] sm:$0xff]
      %v2903 = vld [vmem:[#allocation2 + $0x20] sm:$0xff]
      %v2904 = vld [vmem:[#allocation2 + $0x28] sm:$0xff]
      %v2905 = vld [vmem:[#allocation2 + $0x30] sm:$0xff]
      %v2906 = vld [vmem:[#allocation2 + $0x38] sm:$0xff]
      %v2907 = vld [vmem:[#allocation2 + $0x40] sm:$0xff]
      %v2908 = vld [vmem:[#allocation2 + $0x48] sm:$0xff]
      %v2909 = vld [vmem:[#allocation2 + $0x50] sm:$0xff]
      %v2910 = vld [vmem:[#allocation2 + $0x58] sm:$0xff]
      %v2911 = vld [vmem:[#allocation2 + $0x60] sm:$0xff]
      %v2912 = vld [vmem:[#allocation2 + $0x68] sm:$0xff]
      %v2913 = vld [vmem:[#allocation2 + $0x70] sm:$0xff]
      %v2914 = vld [vmem:[#allocation2 + $0x78] sm:$0xff]
      %v2915 = vld [vmem:[#allocation2 + $0x80] sm:$0xff]
      %v2916 = vld [vmem:[#allocation2 + $0x88] sm:$0xff]
      %v2917 = vld [vmem:[#allocation2 + $0x90] sm:$0xff]
      %v2918 = vld [vmem:[#allocation2 + $0x98] sm:$0xff]
      %v2919 = vld [vmem:[#allocation2 + $0xa0] sm:$0xff]
      %v2920 = vld [vmem:[#allocation2 + $0xa8] sm:$0xff]
      %v2921 = vld [vmem:[#allocation2 + $0xb0] sm:$0xff]
      %v2922 = vld [vmem:[#allocation2 + $0xb8] sm:$0xff]
      %v2923 = vld [vmem:[#allocation2 + $0xc0] sm:$0xff]
      %v2924 = vld [vmem:[#allocation2 + $0xc8] sm:$0xff]
      %v2925 = vld [vmem:[#allocation2 + $0xd0] sm:$0xff]
      %v2926 = vld [vmem:[#allocation2 + $0xd8] sm:$0xff]
      %v2927 = vld [vmem:[#allocation2 + $0xe0] sm:$0xff]
      %v2928 = vld [vmem:[#allocation2 + $0xe8] sm:$0xff]
      %v2929 = vld [vmem:[#allocation2 + $0xf0] sm:$0xff]
      %v2930 = vld [vmem:[#allocation2 + $0xf8] sm:$0xff]
      %v2931 = vld [vmem:[#allocation2 + $0x100] sm:$0xff]
      %v2932 = vld [vmem:[#allocation2 + $0x108] sm:$0xff]
      %v2933 = vld [vmem:[#allocation2 + $0x110] sm:$0xff]
      %v2934 = vld [vmem:[#allocation2 + $0x118] sm:$0xff]
      %v2935 = vld [vmem:[#allocation2 + $0x120] sm:$0xff]
      %v2936 = vld [vmem:[#allocation2 + $0x128] sm:$0xff]
      %v2937 = vld [vmem:[#allocation2 + $0x130] sm:$0xff]
      %v2938 = vld [vmem:[#allocation2 + $0x138] sm:$0xff]
      %v2939 = vld [vmem:[#allocation2 + $0x140] sm:$0xff]
      %v2940 = vld [vmem:[#allocation2 + $0x148] sm:$0xff]
      %v2941 = vld [vmem:[#allocation2 + $0x150] sm:$0xff]
      %v2942 = vld [vmem:[#allocation2 + $0x158] sm:$0xff]
      %v2943 = vld [vmem:[#allocation2 + $0x160] sm:$0xff]
      %v2944 = vld [vmem:[#allocation2 + $0x168] sm:$0xff]
      %v2945 = vld [vmem:[#allocation2 + $0x170] sm:$0xff]
      %v2946 = vld [vmem:[#allocation2 + $0x178] sm:$0xff]
      %v2947 = vld [vmem:[#allocation2 + $0x180] sm:$0xff]
      %v2948 = vld [vmem:[#allocation2 + $0x188] sm:$0xff]
      %v2949 = vld [vmem:[#allocation2 + $0x190] sm:$0xff]
      %v2950 = vld [vmem:[#allocation2 + $0x198] sm:$0xff]
      %v2951 = vld [vmem:[#allocation2 + $0x1a0] sm:$0xff]
      %v2952 = vld [vmem:[#allocation2 + $0x1a8] sm:$0xff]
      %v2953 = vld [vmem:[#allocation2 + $0x1b0] sm:$0xff]
      %v2954 = vld [vmem:[#allocation2 + $0x1b8] sm:$0xff]
      %v2955 = vld [vmem:[#allocation2 + $0x1c0] sm:$0xff]
      %v2956 = vld [vmem:[#allocation2 + $0x1c8] sm:$0xff]
      %v2957 = vld [vmem:[#allocation2 + $0x1d0] sm:$0xff]
      %v2958 = vld [vmem:[#allocation2 + $0x1d8] sm:$0xff]
      %v2959 = vld [vmem:[#allocation2 + $0x1e0] sm:$0xff]
      %v2960 = vld [vmem:[#allocation2 + $0x1e8] sm:$0xff]
      %v2961 = vld [vmem:[#allocation2 + $0x1f0] sm:$0xff]
      %v2962 = vld [vmem:[#allocation2 + $0x1f8] sm:$0xff]
      %v2963 = vld [vmem:[#allocation2 + $0x200] sm:$0xff]
      %v2964 = vld [vmem:[#allocation2 + $0x208] sm:$0xff]
      %v2965 = vld [vmem:[#allocation2 + $0x210] sm:$0xff]
      %v2966 = vld [vmem:[#allocation2 + $0x218] sm:$0xff]
      %v2967 = vld [vmem:[#allocation2 + $0x220] sm:$0xff]
      %v2968 = vld [vmem:[#allocation2 + $0x228] sm:$0xff]
      %v2969 = vld [vmem:[#allocation2 + $0x230] sm:$0xff]
      %v2970 = vld [vmem:[#allocation2 + $0x238] sm:$0xff]
      %v2971 = vrot.slane %v2613, 7
      %v2972 = vrot.slane %v2616, 7
      %v2973 = vrot.slane %v2621, 7
      %v2974 = vrot.slane %v2624, 7
      %v2975 = vrot.slane %v2629, 7
      %v2976 = vrot.slane %v2632, 7
      %v2977 = vrot.slane %v2637, 7
      %v2978 = vrot.slane %v2640, 7
      %v2979 = vrot.slane %v2645, 7
      %v2980 = vrot.slane %v2648, 7
      %v2981 = vrot.slane %v2653, 7
      %v2982 = vrot.slane %v2656, 7
      %v2983 = vrot.slane %v2661, 7
      %v2984 = vrot.slane %v2664, 7
      %v2985 = vrot.slane %v2669, 7
      %v2986 = vrot.slane %v2672, 7
      %v2987 = vrot.slane %v2677, 7
      %v2988 = vrot.slane %v2680, 7
      %v2989 = vrot.slane %v2685, 7
      %v2990 = vrot.slane %v2688, 7
      %v2991 = vrot.slane %v2693, 7
      %v2992 = vrot.slane %v2696, 7
      %v2993 = vrot.slane %v2701, 7
      %v2994 = vrot.slane %v2704, 7
      %v2995 = vrot.slane %v2709, 7
      %v2996 = vrot.slane %v2712, 7
      %v2997 = vrot.slane %v2717, 7
      %v2998 = vrot.slane %v2720, 7
      %v2999 = vrot.slane %v2725, 7
      %v3000 = vrot.slane %v2728, 7
      %v3001 = vrot.slane %v2733, 7
      %v3002 = vrot.slane %v2736, 7
      %v3003 = vrot.slane %v2741, 7
      %v3004 = vrot.slane %v2744, 7
      %v3005 = vrot.slane %v2749, 7
      %v3006 = vrot.slane %v2752, 7
      %v3007 = vrot.slane %v2757, 7
      %v3008 = vrot.slane %v2760, 7
      %v3009 = vrot.slane %v2765, 7
      %v3010 = vrot.slane %v2768, 7
      %v3011 = vrot.slane %v2773, 7
      %v3012 = vrot.slane %v2776, 7
      %v3013 = vrot.slane %v2781, 7
      %v3014 = vrot.slane %v2784, 7
      %v3015 = vrot.slane %v2789, 7
      %v3016 = vrot.slane %v2792, 7
      %v3017 = vrot.slane %v2797, 7
      %v3018 = vrot.slane %v2800, 7
      %v3019 = vrot.slane %v2805, 7
      %v3020 = vrot.slane %v2808, 7
      %v3021 = vrot.slane %v2813, 7
      %v3022 = vrot.slane %v2816, 7
      %v3023 = vrot.slane %v2821, 7
      %v3024 = vrot.slane %v2824, 7
      %v3025 = vrot.slane %v2829, 7
      %v3026 = vrot.slane %v2832, 7
      %v3027 = vrot.slane %v2837, 7
      %v3028 = vrot.slane %v2840, 7
      %v3029 = vrot.slane %v2845, 7
      %v3030 = vrot.slane %v2848, 7
      %v3031 = vrot.slane %v2853, 7
      %v3032 = vrot.slane %v2856, 7
      %v3033 = vrot.slane %v2861, 7
      %v3034 = vrot.slane %v2864, 7
      %v3035 = vrot.slane %v2869, 7
      %v3036 = vrot.slane %v2872, 7
      %v3037 = vrot.slane %v2877, 7
      %v3038 = vrot.slane %v2880, 7
      %v3039 = vrot.slane %v2885, 7
      %v3040 = vrot.slane %v2888, 7
      %v3041 = vrot.slane %v2893, 7
      %v3042 = vrot.slane %v2896, 7
      %v3043 = vlaneseq
      %v3044 = vshrl.u32 %v3043, 7
      %vm3045 = vcmp.lt.s32.totalorder %v3044, 1
      %v3046 = vsel %vm3045, %v3041, %v3042
      %v3047 = vsel %vm3045, %v3040, %v3041
      %v3048 = vsel %vm3045, %v3039, %v3040
      %v3049 = vsel %vm3045, %v3038, %v3039
      %v3050 = vsel %vm3045, %v3037, %v3038
      %v3051 = vsel %vm3045, %v3036, %v3037
      %v3052 = vsel %vm3045, %v3035, %v3036
      %v3053 = vsel %vm3045, %v3034, %v3035
      %v3054 = vsel %vm3045, %v3033, %v3034
      %v3055 = vsel %vm3045, %v3032, %v3033
      %v3056 = vsel %vm3045, %v3031, %v3032
      %v3057 = vsel %vm3045, %v3030, %v3031
      %v3058 = vsel %vm3045, %v3029, %v3030
      %v3059 = vsel %vm3045, %v3028, %v3029
      %v3060 = vsel %vm3045, %v3027, %v3028
      %v3061 = vsel %vm3045, %v3026, %v3027
      %v3062 = vsel %vm3045, %v3025, %v3026
      %v3063 = vsel %vm3045, %v3024, %v3025
      %v3064 = vsel %vm3045, %v3023, %v3024
      %v3065 = vsel %vm3045, %v3022, %v3023
      %v3066 = vsel %vm3045, %v3021, %v3022
      %v3067 = vsel %vm3045, %v3020, %v3021
      %v3068 = vsel %vm3045, %v3019, %v3020
      %v3069 = vsel %vm3045, %v3018, %v3019
      %v3070 = vsel %vm3045, %v3017, %v3018
      %v3071 = vsel %vm3045, %v3016, %v3017
      %v3072 = vsel %vm3045, %v3015, %v3016
      %v3073 = vsel %vm3045, %v3014, %v3015
      %v3074 = vsel %vm3045, %v3013, %v3014
      %v3075 = vsel %vm3045, %v3012, %v3013
      %v3076 = vsel %vm3045, %v3011, %v3012
      %v3077 = vsel %vm3045, %v3010, %v3011
      %v3078 = vsel %vm3045, %v3009, %v3010
      %v3079 = vsel %vm3045, %v3008, %v3009
      %v3080 = vsel %vm3045, %v3007, %v3008
      %v3081 = vsel %vm3045, %v3006, %v3007
      %v3082 = vsel %vm3045, %v3005, %v3006
      %v3083 = vsel %vm3045, %v3004, %v3005
      %v3084 = vsel %vm3045, %v3003, %v3004
      %v3085 = vsel %vm3045, %v3002, %v3003
      %v3086 = vsel %vm3045, %v3001, %v3002
      %v3087 = vsel %vm3045, %v3000, %v3001
      %v3088 = vsel %vm3045, %v2999, %v3000
      %v3089 = vsel %vm3045, %v2998, %v2999
      %v3090 = vsel %vm3045, %v2997, %v2998
      %v3091 = vsel %vm3045, %v2996, %v2997
      %v3092 = vsel %vm3045, %v2995, %v2996
      %v3093 = vsel %vm3045, %v2994, %v2995
      %v3094 = vsel %vm3045, %v2993, %v2994
      %v3095 = vsel %vm3045, %v2992, %v2993
      %v3096 = vsel %vm3045, %v2991, %v2992
      %v3097 = vsel %vm3045, %v2990, %v2991
      %v3098 = vsel %vm3045, %v2989, %v2990
      %v3099 = vsel %vm3045, %v2988, %v2989
      %v3100 = vsel %vm3045, %v2987, %v2988
      %v3101 = vsel %vm3045, %v2986, %v2987
      %v3102 = vsel %vm3045, %v2985, %v2986
      %v3103 = vsel %vm3045, %v2984, %v2985
      %v3104 = vsel %vm3045, %v2983, %v2984
      %v3105 = vsel %vm3045, %v2982, %v2983
      %v3106 = vsel %vm3045, %v2981, %v2982
      %v3107 = vsel %vm3045, %v2980, %v2981
      %v3108 = vsel %vm3045, %v2979, %v2980
      %v3109 = vsel %vm3045, %v2978, %v2979
      %v3110 = vsel %vm3045, %v2977, %v2978
      %v3111 = vsel %vm3045, %v2976, %v2977
      %v3112 = vsel %vm3045, %v2975, %v2976
      %v3113 = vsel %vm3045, %v2974, %v2975
      %v3114 = vsel %vm3045, %v2973, %v2974
      %v3115 = vsel %vm3045, %v2972, %v2973
      %v3116 = vsel %vm3045, %v2971, %v2972
      %v3117 = vsel %vm3045, %v3042, %v2971
      %v3118 = vadd.f32 %v2899, %v3117
      %v3119 = vadd.f32 %v2900, %v3116
      %v3120 = vadd.f32 %v2901, %v3115
      %v3121 = vadd.f32 %v2902, %v3114
      %v3122 = vadd.f32 %v2903, %v3113
      %v3123 = vadd.f32 %v2904, %v3112
      %v3124 = vadd.f32 %v2905, %v3111
      %v3125 = vadd.f32 %v2906, %v3110
      %v3126 = vadd.f32 %v2907, %v3109
      %v3127 = vadd.f32 %v2908, %v3108
      %v3128 = vadd.f32 %v2909, %v3107
      %v3129 = vadd.f32 %v2910, %v3106
      %v3130 = vadd.f32 %v2911, %v3105
      %v3131 = vadd.f32 %v2912, %v3104
      %v3132 = vadd.f32 %v2913, %v3103
      %v3133 = vadd.f32 %v2914, %v3102
      %v3134 = vadd.f32 %v2915, %v3101
      %v3135 = vadd.f32 %v2916, %v3100
      %v3136 = vadd.f32 %v2917, %v3099
      %v3137 = vadd.f32 %v2918, %v3098
      %v3138 = vadd.f32 %v2919, %v3097
      %v3139 = vadd.f32 %v2920, %v3096
      %v3140 = vadd.f32 %v2921, %v3095
      %v3141 = vadd.f32 %v2922, %v3094
      %v3142 = vadd.f32 %v2923, %v3093
      %v3143 = vadd.f32 %v2924, %v3092
      %v3144 = vadd.f32 %v2925, %v3091
      %v3145 = vadd.f32 %v2926, %v3090
      %v3146 = vadd.f32 %v2927, %v3089
      %v3147 = vadd.f32 %v2928, %v3088
      %v3148 = vadd.f32 %v2929, %v3087
      %v3149 = vadd.f32 %v2930, %v3086
      %v3150 = vadd.f32 %v2931, %v3085
      %v3151 = vadd.f32 %v2932, %v3084
      %v3152 = vadd.f32 %v2933, %v3083
      %v3153 = vadd.f32 %v2934, %v3082
      %v3154 = vadd.f32 %v2935, %v3081
      %v3155 = vadd.f32 %v2936, %v3080
      %v3156 = vadd.f32 %v2937, %v3079
      %v3157 = vadd.f32 %v2938, %v3078
      %v3158 = vadd.f32 %v2939, %v3077
      %v3159 = vadd.f32 %v2940, %v3076
      %v3160 = vadd.f32 %v2941, %v3075
      %v3161 = vadd.f32 %v2942, %v3074
      %v3162 = vadd.f32 %v2943, %v3073
      %v3163 = vadd.f32 %v2944, %v3072
      %v3164 = vadd.f32 %v2945, %v3071
      %v3165 = vadd.f32 %v2946, %v3070
      %v3166 = vadd.f32 %v2947, %v3069
      %v3167 = vadd.f32 %v2948, %v3068
      %v3168 = vadd.f32 %v2949, %v3067
      %v3169 = vadd.f32 %v2950, %v3066
      %v3170 = vadd.f32 %v2951, %v3065
      %v3171 = vadd.f32 %v2952, %v3064
      %v3172 = vadd.f32 %v2953, %v3063
      %v3173 = vadd.f32 %v2954, %v3062
      %v3174 = vadd.f32 %v2955, %v3061
      %v3175 = vadd.f32 %v2956, %v3060
      %v3176 = vadd.f32 %v2957, %v3059
      %v3177 = vadd.f32 %v2958, %v3058
      %v3178 = vadd.f32 %v2959, %v3057
      %v3179 = vadd.f32 %v2960, %v3056
      %v3180 = vadd.f32 %v2961, %v3055
      %v3181 = vadd.f32 %v2962, %v3054
      %v3182 = vadd.f32 %v2963, %v3053
      %v3183 = vadd.f32 %v2964, %v3052
      %v3184 = vadd.f32 %v2965, %v3051
      %v3185 = vadd.f32 %v2966, %v3050
      %v3186 = vadd.f32 %v2967, %v3049
      %v3187 = vadd.f32 %v2968, %v3048
      %v3188 = vadd.f32 %v2969, %v3047
      %v3189 = vadd.f32 %v2970, %v3046
      %3190 = vst [vmem:[#allocation2] sm:$0xff] %v3118
      %3191 = vst [vmem:[#allocation2 + $0x8] sm:$0xff] %v3119
      %3192 = vst [vmem:[#allocation2 + $0x10] sm:$0xff] %v3120
      %3193 = vst [vmem:[#allocation2 + $0x18] sm:$0xff] %v3121
      %3194 = vst [vmem:[#allocation2 + $0x20] sm:$0xff] %v3122
      %3195 = vst [vmem:[#allocation2 + $0x28] sm:$0xff] %v3123
      %3196 = vst [vmem:[#allocation2 + $0x30] sm:$0xff] %v3124
      %3197 = vst [vmem:[#allocation2 + $0x38] sm:$0xff] %v3125
      %3198 = vst [vmem:[#allocation2 + $0x40] sm:$0xff] %v3126
      %3199 = vst [vmem:[#allocation2 + $0x48] sm:$0xff] %v3127
      %3200 = vst [vmem:[#allocation2 + $0x50] sm:$0xff] %v3128
      %3201 = vst [vmem:[#allocation2 + $0x58] sm:$0xff] %v3129
      %3202 = vst [vmem:[#allocation2 + $0x60] sm:$0xff] %v3130
      %3203 = vst [vmem:[#allocation2 + $0x68] sm:$0xff] %v3131
      %3204 = vst [vmem:[#allocation2 + $0x70] sm:$0xff] %v3132
      %3205 = vst [vmem:[#allocation2 + $0x78] sm:$0xff] %v3133
      %3206 = vst [vmem:[#allocation2 + $0x80] sm:$0xff] %v3134
      %3207 = vst [vmem:[#allocation2 + $0x88] sm:$0xff] %v3135
      %3208 = vst [vmem:[#allocation2 + $0x90] sm:$0xff] %v3136
      %3209 = vst [vmem:[#allocation2 + $0x98] sm:$0xff] %v3137
      %3210 = vst [vmem:[#allocation2 + $0xa0] sm:$0xff] %v3138
      %3211 = vst [vmem:[#allocation2 + $0xa8] sm:$0xff] %v3139
      %3212 = vst [vmem:[#allocation2 + $0xb0] sm:$0xff] %v3140
      %3213 = vst [vmem:[#allocation2 + $0xb8] sm:$0xff] %v3141
      %3214 = vst [vmem:[#allocation2 + $0xc0] sm:$0xff] %v3142
      %3215 = vst [vmem:[#allocation2 + $0xc8] sm:$0xff] %v3143
      %3216 = vst [vmem:[#allocation2 + $0xd0] sm:$0xff] %v3144
      %3217 = vst [vmem:[#allocation2 + $0xd8] sm:$0xff] %v3145
      %3218 = vst [vmem:[#allocation2 + $0xe0] sm:$0xff] %v3146
      %3219 = vst [vmem:[#allocation2 + $0xe8] sm:$0xff] %v3147
      %3220 = vst [vmem:[#allocation2 + $0xf0] sm:$0xff] %v3148
      %3221 = vst [vmem:[#allocation2 + $0xf8] sm:$0xff] %v3149
      %3222 = vst [vmem:[#allocation2 + $0x100] sm:$0xff] %v3150
      %3223 = vst [vmem:[#allocation2 + $0x108] sm:$0xff] %v3151
      %3224 = vst [vmem:[#allocation2 + $0x110] sm:$0xff] %v3152
      %3225 = vst [vmem:[#allocation2 + $0x118] sm:$0xff] %v3153
      %3226 = vst [vmem:[#allocation2 + $0x120] sm:$0xff] %v3154
      %3227 = vst [vmem:[#allocation2 + $0x128] sm:$0xff] %v3155
      %3228 = vst [vmem:[#allocation2 + $0x130] sm:$0xff] %v3156
      %3229 = vst [vmem:[#allocation2 + $0x138] sm:$0xff] %v3157
      %3230 = vst [vmem:[#allocation2 + $0x140] sm:$0xff] %v3158
      %3231 = vst [vmem:[#allocation2 + $0x148] sm:$0xff] %v3159
      %3232 = vst [vmem:[#allocation2 + $0x150] sm:$0xff] %v3160
      %3233 = vst [vmem:[#allocation2 + $0x158] sm:$0xff] %v3161
      %3234 = vst [vmem:[#allocation2 + $0x160] sm:$0xff] %v3162
      %3235 = vst [vmem:[#allocation2 + $0x168] sm:$0xff] %v3163
      %3236 = vst [vmem:[#allocation2 + $0x170] sm:$0xff] %v3164
      %3237 = vst [vmem:[#allocation2 + $0x178] sm:$0xff] %v3165
      %3238 = vst [vmem:[#allocation2 + $0x180] sm:$0xff] %v3166
      %3239 = vst [vmem:[#allocation2 + $0x188] sm:$0xff] %v3167
      %3240 = vst [vmem:[#allocation2 + $0x190] sm:$0xff] %v3168
      %3241 = vst [vmem:[#allocation2 + $0x198] sm:$0xff] %v3169
      %3242 = vst [vmem:[#allocation2 + $0x1a0] sm:$0xff] %v3170
      %3243 = vst [vmem:[#allocation2 + $0x1a8] sm:$0xff] %v3171
      %3244 = vst [vmem:[#allocation2 + $0x1b0] sm:$0xff] %v3172
      %3245 = vst [vmem:[#allocation2 + $0x1b8] sm:$0xff] %v3173
      %3246 = vst [vmem:[#allocation2 + $0x1c0] sm:$0xff] %v3174
      %3247 = vst [vmem:[#allocation2 + $0x1c8] sm:$0xff] %v3175
      %3248 = vst [vmem:[#allocation2 + $0x1d0] sm:$0xff] %v3176
      %3249 = vst [vmem:[#allocation2 + $0x1d8] sm:$0xff] %v3177
      %3250 = vst [vmem:[#allocation2 + $0x1e0] sm:$0xff] %v3178
      %3251 = vst [vmem:[#allocation2 + $0x1e8] sm:$0xff] %v3179
      %3252 = vst [vmem:[#allocation2 + $0x1f0] sm:$0xff] %v3180
      %3253 = vst [vmem:[#allocation2 + $0x1f8] sm:$0xff] %v3181
      %3254 = vst [vmem:[#allocation2 + $0x200] sm:$0xff] %v3182
      %3255 = vst [vmem:[#allocation2 + $0x208] sm:$0xff] %v3183
      %3256 = vst [vmem:[#allocation2 + $0x210] sm:$0xff] %v3184
      %3257 = vst [vmem:[#allocation2 + $0x218] sm:$0xff] %v3185
      %3258 = vst [vmem:[#allocation2 + $0x220] sm:$0xff] %v3186
      %3259 = vst [vmem:[#allocation2 + $0x228] sm:$0xff] %v3187
      %3260 = vst [vmem:[#allocation2 + $0x230] sm:$0xff] %v3188
      %3261 = vst [vmem:[#allocation2 + $0x238] sm:$0xff] %v3189
      %s3262 = scalar_lea.vmem %s1, 384
      %v3263 = vld [vmem:[%s3262] sm:$0xf]
      %v3264 = vld [vmem:[%s3262 + $0x4] sm:$0xf]
      %v3265 = vld [vmem:[%s3262 + $0x8] sm:$0xf]
      %v3266 = vld [vmem:[%s3262 + $0xc] sm:$0xf]
      %v3267 = vld [vmem:[%s3262 + $0x10] sm:$0xf]
      %v3268 = vld [vmem:[%s3262 + $0x14] sm:$0xf]
      %v3269 = vld [vmem:[%s3262 + $0x18] sm:$0xf]
      %v3270 = vld [vmem:[%s3262 + $0x1c] sm:$0xf]
      %v3271 = vld [vmem:[%s3262 + $0x20] sm:$0xf]
      %v3272 = vld [vmem:[%s3262 + $0x24] sm:$0xf]
      %v3273 = vld [vmem:[%s3262 + $0x28] sm:$0xf]
      %v3274 = vld [vmem:[%s3262 + $0x2c] sm:$0xf]
      %v3275 = vld [vmem:[%s3262 + $0x30] sm:$0xf]
      %v3276 = vld [vmem:[%s3262 + $0x34] sm:$0xf]
      %v3277 = vld [vmem:[%s3262 + $0x38] sm:$0xf]
      %v3278 = vld [vmem:[%s3262 + $0x3c] sm:$0xf]
      %v3279 = vld [vmem:[%s3262 + $0x40] sm:$0xf]
      %v3280 = vld [vmem:[%s3262 + $0x44] sm:$0xf]
      %v3281 = vld [vmem:[%s3262 + $0x48] sm:$0xf]
      %v3282 = vld [vmem:[%s3262 + $0x4c] sm:$0xf]
      %v3283 = vld [vmem:[%s3262 + $0x50] sm:$0xf]
      %v3284 = vld [vmem:[%s3262 + $0x54] sm:$0xf]
      %v3285 = vld [vmem:[%s3262 + $0x58] sm:$0xf]
      %v3286 = vld [vmem:[%s3262 + $0x5c] sm:$0xf]
      %v3287 = vld [vmem:[%s3262 + $0x60] sm:$0xf]
      %v3288 = vld [vmem:[%s3262 + $0x64] sm:$0xf]
      %v3289 = vld [vmem:[%s3262 + $0x68] sm:$0xf]
      %v3290 = vld [vmem:[%s3262 + $0x6c] sm:$0xf]
      %v3291 = vld [vmem:[%s3262 + $0x70] sm:$0xf]
      %v3292 = vld [vmem:[%s3262 + $0x74] sm:$0xf]
      %v3293 = vld [vmem:[%s3262 + $0x78] sm:$0xf]
      %v3294 = vld [vmem:[%s3262 + $0x7c] sm:$0xf]
      %v3295 = vld [vmem:[%s3262 + $0x80] sm:$0xf]
      %v3296 = vld [vmem:[%s3262 + $0x84] sm:$0xf]
      %v3297 = vld [vmem:[%s3262 + $0x88] sm:$0xf]
      %v3298 = vld [vmem:[%s3262 + $0x8c] sm:$0xf]
      %v3299 = vld [vmem:[%s3262 + $0x90] sm:$0xf]
      %v3300 = vld [vmem:[%s3262 + $0x94] sm:$0xf]
      %v3301 = vld [vmem:[%s3262 + $0x98] sm:$0xf]
      %v3302 = vld [vmem:[%s3262 + $0x9c] sm:$0xf]
      %v3303 = vld [vmem:[%s3262 + $0xa0] sm:$0xf]
      %v3304 = vld [vmem:[%s3262 + $0xa4] sm:$0xf]
      %v3305 = vld [vmem:[%s3262 + $0xa8] sm:$0xf]
      %v3306 = vld [vmem:[%s3262 + $0xac] sm:$0xf]
      %v3307 = vld [vmem:[%s3262 + $0xb0] sm:$0xf]
      %v3308 = vld [vmem:[%s3262 + $0xb4] sm:$0xf]
      %v3309 = vld [vmem:[%s3262 + $0xb8] sm:$0xf]
      %v3310 = vld [vmem:[%s3262 + $0xbc] sm:$0xf]
      %v3359 = vunpack.c.l.b16 %v3263
      %v3360 = vunpack.c.l.b16 %v3264
      %v3361 = vunpack.c.l.b16 %v3265
      %v3362 = vunpack.c.l.b16 %v3266
      %v3363 = vunpack.c.l.b16 %v3267
      %v3364 = vunpack.c.l.b16 %v3268
      %v3365 = vunpack.c.l.b16 %v3269
      %v3366 = vunpack.c.l.b16 %v3270
      %v3367 = vunpack.c.l.b16 %v3271
      %v3368 = vunpack.c.l.b16 %v3272
      %v3369 = vunpack.c.l.b16 %v3273
      %v3370 = vunpack.c.l.b16 %v3274
      %v3371 = vunpack.c.l.b16 %v3275
      %v3372 = vunpack.c.l.b16 %v3276
      %v3373 = vunpack.c.l.b16 %v3277
      %v3374 = vunpack.c.l.b16 %v3278
      %v3375 = vunpack.c.l.b16 %v3279
      %v3376 = vunpack.c.l.b16 %v3280
      %v3377 = vunpack.c.l.b16 %v3281
      %v3378 = vunpack.c.l.b16 %v3282
      %v3379 = vunpack.c.l.b16 %v3283
      %v3380 = vunpack.c.l.b16 %v3284
      %v3381 = vunpack.c.l.b16 %v3285
      %v3382 = vunpack.c.l.b16 %v3286
      %v3383 = vunpack.c.l.b16 %v3287
      %v3384 = vunpack.c.l.b16 %v3288
      %v3385 = vunpack.c.l.b16 %v3289
      %v3386 = vunpack.c.l.b16 %v3290
      %v3387 = vunpack.c.l.b16 %v3291
      %v3388 = vunpack.c.l.b16 %v3292
      %v3389 = vunpack.c.l.b16 %v3293
      %v3390 = vunpack.c.l.b16 %v3294
      %v3391 = vunpack.c.l.b16 %v3295
      %v3392 = vunpack.c.l.b16 %v3296
      %v3393 = vunpack.c.l.b16 %v3297
      %v3394 = vunpack.c.l.b16 %v3298
      %v3395 = vunpack.c.l.b16 %v3299
      %v3396 = vunpack.c.l.b16 %v3300
      %v3397 = vunpack.c.l.b16 %v3301
      %v3398 = vunpack.c.l.b16 %v3302
      %v3399 = vunpack.c.l.b16 %v3303
      %v3400 = vunpack.c.l.b16 %v3304
      %v3401 = vunpack.c.l.b16 %v3305
      %v3402 = vunpack.c.l.b16 %v3306
      %v3403 = vunpack.c.l.b16 %v3307
      %v3404 = vunpack.c.l.b16 %v3308
      %v3405 = vunpack.c.l.b16 %v3309
      %v3406 = vunpack.c.l.b16 %v3310
      %v3407 = vpack.c.b16 %v3360, %v3359
      %v3408 = vpack.c.b16 %v3362, %v3361
      %v3409 = vpack.c.b16 %v3364, %v3363
      %v3410 = vpack.c.b16 %v3366, %v3365
      %v3411 = vpack.c.b16 %v3368, %v3367
      %v3412 = vpack.c.b16 %v3370, %v3369
      %v3413 = vpack.c.b16 %v3372, %v3371
      %v3414 = vpack.c.b16 %v3374, %v3373
      %v3415 = vpack.c.b16 %v3376, %v3375
      %v3416 = vpack.c.b16 %v3378, %v3377
      %v3417 = vpack.c.b16 %v3380, %v3379
      %v3418 = vpack.c.b16 %v3382, %v3381
      %v3419 = vpack.c.b16 %v3384, %v3383
      %v3420 = vpack.c.b16 %v3386, %v3385
      %v3421 = vpack.c.b16 %v3388, %v3387
      %v3422 = vpack.c.b16 %v3390, %v3389
      %v3423 = vpack.c.b16 %v3392, %v3391
      %v3424 = vpack.c.b16 %v3394, %v3393
      %v3425 = vpack.c.b16 %v3396, %v3395
      %v3426 = vpack.c.b16 %v3398, %v3397
      %v3427 = vpack.c.b16 %v3400, %v3399
      %v3428 = vpack.c.b16 %v3402, %v3401
      %v3429 = vpack.c.b16 %v3404, %v3403
      %v3430 = vpack.c.b16 %v3406, %v3405
      %3455 = vmatprep.subr.bf16.mxu0 0
      %3456 = vmatpush1.bf16.msra.mxu0 %v3414
      %3457 = vmatprep.subr.bf16.mxu0 0
      %3458 = vmatpush1.bf16.msra.mxu0 %v3413
      %3459 = vmatprep.subr.bf16.mxu0 0
      %3460 = vmatpush1.bf16.msra.mxu0 %v3412
      %3461 = vmatprep.subr.bf16.mxu0 0
      %3462 = vmatpush1.bf16.msra.mxu0 %v3411
      %3463 = vmatprep.subr.bf16.mxu0 0
      %3464 = vmatpush1.bf16.msra.mxu0 %v3410
      %3465 = vmatprep.subr.bf16.mxu0 0
      %3466 = vmatpush1.bf16.msra.mxu0 %v3409
      %3467 = vmatprep.subr.bf16.mxu0 0
      %3468 = vmatpush1.bf16.msra.mxu0 %v3408
      %3469 = vmatprep.subr.bf16.mxu0 0
      %3470 = vmatpush1.bf16.msra.mxu0 %v3407
      %3471 = vmatprep.subr.bf16.mxu0 0
      %3472 = vmatpush2.bf16.msra.mxu0 %v3422
      %3473 = vmatprep.subr.bf16.mxu0 0
      %3474 = vmatpush2.bf16.msra.mxu0 %v3421
      %3475 = vmatprep.subr.bf16.mxu0 0
      %3476 = vmatpush2.bf16.msra.mxu0 %v3420
      %3477 = vmatprep.subr.bf16.mxu0 0
      %3478 = vmatpush2.bf16.msra.mxu0 %v3419
      %3479 = vmatprep.subr.bf16.mxu0 0
      %3480 = vmatpush2.bf16.msra.mxu0 %v3418
      %3481 = vmatprep.subr.bf16.mxu0 0
      %3482 = vmatpush2.bf16.msra.mxu0 %v3417
      %3483 = vmatprep.subr.bf16.mxu0 0
      %3484 = vmatpush2.bf16.msra.mxu0 %v3416
      %3485 = vmatprep.subr.bf16.mxu0 0
      %3486 = vmatpush2.bf16.msra.mxu0 %v3415
      %3487 = vmatprep.mubr.bf16.mxu0 %v870
      %3488 = vmatmul.mubr.bf16.gmra.mxu0 %v654
      %v3489 = vpop.f32.mrf.mxu0
      %v3490 = vadd.f32 0.0, %v3489
      %v3491 = vpop.f32.mrf.mxu0
      %v3492 = vpop.f32.mrf.mxu0
      %v3493 = vadd.f32 0.0, %v3492
      %v3494 = vpop.f32.mrf.mxu0
      %3495 = vmatprep.mubr.bf16.mxu0 %v871
      %3496 = vmatmul.mubr.bf16.gmra.mxu0 %v655
      %v3497 = vpop.f32.mrf.mxu0
      %v3498 = vadd.f32 0.0, %v3497
      %v3499 = vpop.f32.mrf.mxu0
      %v3500 = vpop.f32.mrf.mxu0
      %v3501 = vadd.f32 0.0, %v3500
      %v3502 = vpop.f32.mrf.mxu0
      %3503 = vmatprep.mubr.bf16.mxu0 %v872
      %3504 = vmatmul.mubr.bf16.gmra.mxu0 %v656
      %v3505 = vpop.f32.mrf.mxu0
      %v3506 = vadd.f32 0.0, %v3505
      %v3507 = vpop.f32.mrf.mxu0
      %v3508 = vpop.f32.mrf.mxu0
      %v3509 = vadd.f32 0.0, %v3508
      %v3510 = vpop.f32.mrf.mxu0
      %3511 = vmatprep.mubr.bf16.mxu0 %v873
      %3512 = vmatmul.mubr.bf16.gmra.mxu0 %v657
      %v3513 = vpop.f32.mrf.mxu0
      %v3514 = vadd.f32 0.0, %v3513
      %v3515 = vpop.f32.mrf.mxu0
      %v3516 = vpop.f32.mrf.mxu0
      %v3517 = vadd.f32 0.0, %v3516
      %v3518 = vpop.f32.mrf.mxu0
      %3519 = vmatprep.mubr.bf16.mxu0 %v874
      %3520 = vmatmul.mubr.bf16.gmra.mxu0 %v658
      %v3521 = vpop.f32.mrf.mxu0
      %v3522 = vadd.f32 0.0, %v3521
      %v3523 = vpop.f32.mrf.mxu0
      %v3524 = vpop.f32.mrf.mxu0
      %v3525 = vadd.f32 0.0, %v3524
      %v3526 = vpop.f32.mrf.mxu0
      %3527 = vmatprep.mubr.bf16.mxu0 %v875
      %3528 = vmatmul.mubr.bf16.gmra.mxu0 %v659
      %v3529 = vpop.f32.mrf.mxu0
      %v3530 = vadd.f32 0.0, %v3529
      %v3531 = vpop.f32.mrf.mxu0
      %v3532 = vpop.f32.mrf.mxu0
      %v3533 = vadd.f32 0.0, %v3532
      %v3534 = vpop.f32.mrf.mxu0
      %3535 = vmatprep.mubr.bf16.mxu0 %v876
      %3536 = vmatmul.mubr.bf16.gmra.mxu0 %v660
      %v3537 = vpop.f32.mrf.mxu0
      %v3538 = vadd.f32 0.0, %v3537
      %v3539 = vpop.f32.mrf.mxu0
      %v3540 = vpop.f32.mrf.mxu0
      %v3541 = vadd.f32 0.0, %v3540
      %v3542 = vpop.f32.mrf.mxu0
      %3543 = vmatprep.mubr.bf16.mxu0 %v877
      %3544 = vmatmul.mubr.bf16.gmra.mxu0 %v661
      %v3545 = vpop.f32.mrf.mxu0
      %v3546 = vadd.f32 0.0, %v3545
      %v3547 = vpop.f32.mrf.mxu0
      %v3548 = vpop.f32.mrf.mxu0
      %v3549 = vadd.f32 0.0, %v3548
      %v3550 = vpop.f32.mrf.mxu0
      %3551 = vmatprep.mubr.bf16.mxu0 %v878
      %3552 = vmatmul.mubr.bf16.gmra.mxu0 %v662
      %v3553 = vpop.f32.mrf.mxu0
      %v3554 = vadd.f32 0.0, %v3553
      %v3555 = vpop.f32.mrf.mxu0
      %v3556 = vpop.f32.mrf.mxu0
      %v3557 = vadd.f32 0.0, %v3556
      %v3558 = vpop.f32.mrf.mxu0
      %3559 = vmatprep.mubr.bf16.mxu0 %v879
      %3560 = vmatmul.mubr.bf16.gmra.mxu0 %v663
      %v3561 = vpop.f32.mrf.mxu0
      %v3562 = vadd.f32 0.0, %v3561
      %v3563 = vpop.f32.mrf.mxu0
      %v3564 = vpop.f32.mrf.mxu0
      %v3565 = vadd.f32 0.0, %v3564
      %v3566 = vpop.f32.mrf.mxu0
      %3567 = vmatprep.mubr.bf16.mxu0 %v880
      %3568 = vmatmul.mubr.bf16.gmra.mxu0 %v664
      %v3569 = vpop.f32.mrf.mxu0
      %v3570 = vadd.f32 0.0, %v3569
      %v3571 = vpop.f32.mrf.mxu0
      %v3572 = vpop.f32.mrf.mxu0
      %v3573 = vadd.f32 0.0, %v3572
      %v3574 = vpop.f32.mrf.mxu0
      %3575 = vmatprep.mubr.bf16.mxu0 %v881
      %3576 = vmatmul.mubr.bf16.gmra.mxu0 %v665
      %v3577 = vpop.f32.mrf.mxu0
      %v3578 = vadd.f32 0.0, %v3577
      %v3579 = vpop.f32.mrf.mxu0
      %v3580 = vpop.f32.mrf.mxu0
      %v3581 = vadd.f32 0.0, %v3580
      %v3582 = vpop.f32.mrf.mxu0
      %3583 = vmatprep.mubr.bf16.mxu0 %v882
      %3584 = vmatmul.mubr.bf16.gmra.mxu0 %v666
      %v3585 = vpop.f32.mrf.mxu0
      %v3586 = vadd.f32 0.0, %v3585
      %v3587 = vpop.f32.mrf.mxu0
      %v3588 = vpop.f32.mrf.mxu0
      %v3589 = vadd.f32 0.0, %v3588
      %v3590 = vpop.f32.mrf.mxu0
      %3591 = vmatprep.mubr.bf16.mxu0 %v883
      %3592 = vmatmul.mubr.bf16.gmra.mxu0 %v667
      %v3593 = vpop.f32.mrf.mxu0
      %v3594 = vadd.f32 0.0, %v3593
      %v3595 = vpop.f32.mrf.mxu0
      %v3596 = vpop.f32.mrf.mxu0
      %v3597 = vadd.f32 0.0, %v3596
      %v3598 = vpop.f32.mrf.mxu0
      %3599 = vmatprep.mubr.bf16.mxu0 %v884
      %3600 = vmatmul.mubr.bf16.gmra.mxu0 %v668
      %v3601 = vpop.f32.mrf.mxu0
      %v3602 = vadd.f32 0.0, %v3601
      %v3603 = vpop.f32.mrf.mxu0
      %v3604 = vpop.f32.mrf.mxu0
      %v3605 = vadd.f32 0.0, %v3604
      %v3606 = vpop.f32.mrf.mxu0
      %3607 = vmatprep.mubr.bf16.mxu0 %v885
      %3608 = vmatmul.mubr.bf16.gmra.mxu0 %v669
      %v3609 = vpop.f32.mrf.mxu0
      %v3610 = vadd.f32 0.0, %v3609
      %v3611 = vpop.f32.mrf.mxu0
      %v3612 = vpop.f32.mrf.mxu0
      %v3613 = vadd.f32 0.0, %v3612
      %v3614 = vpop.f32.mrf.mxu0
      %3615 = vmatprep.mubr.bf16.mxu0 %v886
      %3616 = vmatmul.mubr.bf16.gmra.mxu0 %v670
      %v3617 = vpop.f32.mrf.mxu0
      %v3618 = vadd.f32 0.0, %v3617
      %v3619 = vpop.f32.mrf.mxu0
      %v3620 = vpop.f32.mrf.mxu0
      %v3621 = vadd.f32 0.0, %v3620
      %v3622 = vpop.f32.mrf.mxu0
      %3623 = vmatprep.mubr.bf16.mxu0 %v887
      %3624 = vmatmul.mubr.bf16.gmra.mxu0 %v671
      %v3625 = vpop.f32.mrf.mxu0
      %v3626 = vadd.f32 0.0, %v3625
      %v3627 = vpop.f32.mrf.mxu0
      %v3628 = vpop.f32.mrf.mxu0
      %v3629 = vadd.f32 0.0, %v3628
      %v3630 = vpop.f32.mrf.mxu0
      %3631 = vmatprep.mubr.bf16.mxu0 %v888
      %3632 = vmatmul.mubr.bf16.gmra.mxu0 %v672
      %v3633 = vpop.f32.mrf.mxu0
      %v3634 = vadd.f32 0.0, %v3633
      %v3635 = vpop.f32.mrf.mxu0
      %v3636 = vpop.f32.mrf.mxu0
      %v3637 = vadd.f32 0.0, %v3636
      %v3638 = vpop.f32.mrf.mxu0
      %3639 = vmatprep.mubr.bf16.mxu0 %v889
      %3640 = vmatmul.mubr.bf16.gmra.mxu0 %v673
      %v3641 = vpop.f32.mrf.mxu0
      %v3642 = vadd.f32 0.0, %v3641
      %v3643 = vpop.f32.mrf.mxu0
      %v3644 = vpop.f32.mrf.mxu0
      %v3645 = vadd.f32 0.0, %v3644
      %v3646 = vpop.f32.mrf.mxu0
      %3647 = vmatprep.mubr.bf16.mxu0 %v890
      %3648 = vmatmul.mubr.bf16.gmra.mxu0 %v674
      %v3649 = vpop.f32.mrf.mxu0
      %v3650 = vadd.f32 0.0, %v3649
      %v3651 = vpop.f32.mrf.mxu0
      %v3652 = vpop.f32.mrf.mxu0
      %v3653 = vadd.f32 0.0, %v3652
      %v3654 = vpop.f32.mrf.mxu0
      %3655 = vmatprep.mubr.bf16.mxu0 %v891
      %3656 = vmatmul.mubr.bf16.gmra.mxu0 %v675
      %v3657 = vpop.f32.mrf.mxu0
      %v3658 = vadd.f32 0.0, %v3657
      %v3659 = vpop.f32.mrf.mxu0
      %v3660 = vpop.f32.mrf.mxu0
      %v3661 = vadd.f32 0.0, %v3660
      %v3662 = vpop.f32.mrf.mxu0
      %3663 = vmatprep.mubr.bf16.mxu0 %v892
      %3664 = vmatmul.mubr.bf16.gmra.mxu0 %v676
      %v3665 = vpop.f32.mrf.mxu0
      %v3666 = vadd.f32 0.0, %v3665
      %v3667 = vpop.f32.mrf.mxu0
      %v3668 = vpop.f32.mrf.mxu0
      %v3669 = vadd.f32 0.0, %v3668
      %v3670 = vpop.f32.mrf.mxu0
      %3671 = vmatprep.mubr.bf16.mxu0 %v893
      %3672 = vmatmul.mubr.bf16.gmra.mxu0 %v677
      %v3673 = vpop.f32.mrf.mxu0
      %v3674 = vadd.f32 0.0, %v3673
      %v3675 = vpop.f32.mrf.mxu0
      %v3676 = vpop.f32.mrf.mxu0
      %v3677 = vadd.f32 0.0, %v3676
      %v3678 = vpop.f32.mrf.mxu0
      %3679 = vmatprep.mubr.bf16.mxu0 %v894
      %3680 = vmatmul.mubr.bf16.gmra.mxu0 %v678
      %v3681 = vpop.f32.mrf.mxu0
      %v3682 = vadd.f32 0.0, %v3681
      %v3683 = vpop.f32.mrf.mxu0
      %v3684 = vpop.f32.mrf.mxu0
      %v3685 = vadd.f32 0.0, %v3684
      %v3686 = vpop.f32.mrf.mxu0
      %3687 = vmatprep.mubr.bf16.mxu0 %v895
      %3688 = vmatmul.mubr.bf16.gmra.mxu0 %v679
      %v3689 = vpop.f32.mrf.mxu0
      %v3690 = vadd.f32 0.0, %v3689
      %v3691 = vpop.f32.mrf.mxu0
      %v3692 = vpop.f32.mrf.mxu0
      %v3693 = vadd.f32 0.0, %v3692
      %v3694 = vpop.f32.mrf.mxu0
      %3695 = vmatprep.mubr.bf16.mxu0 %v896
      %3696 = vmatmul.mubr.bf16.gmra.mxu0 %v680
      %v3697 = vpop.f32.mrf.mxu0
      %v3698 = vadd.f32 0.0, %v3697
      %v3699 = vpop.f32.mrf.mxu0
      %v3700 = vpop.f32.mrf.mxu0
      %v3701 = vadd.f32 0.0, %v3700
      %v3702 = vpop.f32.mrf.mxu0
      %3703 = vmatprep.mubr.bf16.mxu0 %v897
      %3704 = vmatmul.mubr.bf16.gmra.mxu0 %v681
      %v3705 = vpop.f32.mrf.mxu0
      %v3706 = vadd.f32 0.0, %v3705
      %v3707 = vpop.f32.mrf.mxu0
      %v3708 = vpop.f32.mrf.mxu0
      %v3709 = vadd.f32 0.0, %v3708
      %v3710 = vpop.f32.mrf.mxu0
      %3711 = vmatprep.mubr.bf16.mxu0 %v898
      %3712 = vmatmul.mubr.bf16.gmra.mxu0 %v682
      %v3713 = vpop.f32.mrf.mxu0
      %v3714 = vadd.f32 0.0, %v3713
      %v3715 = vpop.f32.mrf.mxu0
      %v3716 = vpop.f32.mrf.mxu0
      %v3717 = vadd.f32 0.0, %v3716
      %v3718 = vpop.f32.mrf.mxu0
      %3719 = vmatprep.mubr.bf16.mxu0 %v899
      %3720 = vmatmul.mubr.bf16.gmra.mxu0 %v683
      %v3721 = vpop.f32.mrf.mxu0
      %v3722 = vadd.f32 0.0, %v3721
      %v3723 = vpop.f32.mrf.mxu0
      %v3724 = vpop.f32.mrf.mxu0
      %v3725 = vadd.f32 0.0, %v3724
      %v3726 = vpop.f32.mrf.mxu0
      %3727 = vmatprep.mubr.bf16.mxu0 %v900
      %3728 = vmatmul.mubr.bf16.gmra.mxu0 %v684
      %v3729 = vpop.f32.mrf.mxu0
      %v3730 = vadd.f32 0.0, %v3729
      %v3731 = vpop.f32.mrf.mxu0
      %v3732 = vpop.f32.mrf.mxu0
      %v3733 = vadd.f32 0.0, %v3732
      %v3734 = vpop.f32.mrf.mxu0
      %3735 = vmatprep.mubr.bf16.mxu0 %v901
      %3736 = vmatmul.mubr.bf16.gmra.mxu0 %v685
      %v3737 = vpop.f32.mrf.mxu0
      %v3738 = vadd.f32 0.0, %v3737
      %v3739 = vpop.f32.mrf.mxu0
      %v3740 = vpop.f32.mrf.mxu0
      %v3741 = vadd.f32 0.0, %v3740
      %v3742 = vpop.f32.mrf.mxu0
      %3743 = vmatprep.mubr.bf16.mxu0 %v902
      %3744 = vmatmul.mubr.bf16.gmra.mxu0 %v686
      %v3745 = vpop.f32.mrf.mxu0
      %v3746 = vadd.f32 0.0, %v3745
      %v3747 = vpop.f32.mrf.mxu0
      %v3748 = vpop.f32.mrf.mxu0
      %v3749 = vadd.f32 0.0, %v3748
      %v3750 = vpop.f32.mrf.mxu0
      %3751 = vmatprep.mubr.bf16.mxu0 %v903
      %3752 = vmatmul.mubr.bf16.gmra.mxu0 %v687
      %v3753 = vpop.f32.mrf.mxu0
      %v3754 = vadd.f32 0.0, %v3753
      %v3755 = vpop.f32.mrf.mxu0
      %v3756 = vpop.f32.mrf.mxu0
      %v3757 = vadd.f32 0.0, %v3756
      %v3758 = vpop.f32.mrf.mxu0
      %3759 = vmatprep.mubr.bf16.mxu0 %v904
      %3760 = vmatmul.mubr.bf16.gmra.mxu0 %v688
      %v3761 = vpop.f32.mrf.mxu0
      %v3762 = vadd.f32 0.0, %v3761
      %v3763 = vpop.f32.mrf.mxu0
      %v3764 = vpop.f32.mrf.mxu0
      %v3765 = vadd.f32 0.0, %v3764
      %v3766 = vpop.f32.mrf.mxu0
      %3767 = vmatprep.mubr.bf16.mxu0 %v905
      %3768 = vmatmul.mubr.bf16.gmra.mxu0 %v689
      %v3769 = vpop.f32.mrf.mxu0
      %v3770 = vadd.f32 0.0, %v3769
      %v3771 = vpop.f32.mrf.mxu0
      %v3772 = vpop.f32.mrf.mxu0
      %v3773 = vadd.f32 0.0, %v3772
      %v3774 = vpop.f32.mrf.mxu0
      %3775 = vdwg.mxu0
      %3776 = vmatprep.subr.bf16.mxu0 0
      %3777 = vmatpush1.bf16.msra.mxu0 %v3430
      %3778 = vmatprep.subr.bf16.mxu0 0
      %3779 = vmatpush1.bf16.msra.mxu0 %v3429
      %3780 = vmatprep.subr.bf16.mxu0 0
      %3781 = vmatpush1.bf16.msra.mxu0 %v3428
      %3782 = vmatprep.subr.bf16.mxu0 0
      %3783 = vmatpush1.bf16.msra.mxu0 %v3427
      %3784 = vmatprep.subr.bf16.mxu0 0
      %3785 = vmatpush1.bf16.msra.mxu0 %v3426
      %3786 = vmatprep.subr.bf16.mxu0 0
      %3787 = vmatpush1.bf16.msra.mxu0 %v3425
      %3788 = vmatprep.subr.bf16.mxu0 0
      %3789 = vmatpush1.bf16.msra.mxu0 %v3424
      %3790 = vmatprep.subr.bf16.mxu0 0
      %3791 = vmatpush1.bf16.msra.mxu0 %v3423
      %3792 = vmatprep.subr.bf16.mxu0 0
      %3793 = vmatpush2.bf16.msra.mxu0 0
      %3794 = vmatprep.subr.bf16.mxu0 0
      %3795 = vmatpush2.bf16.msra.mxu0 0
      %3796 = vmatprep.subr.bf16.mxu0 0
      %3797 = vmatpush2.bf16.msra.mxu0 0
      %3798 = vmatprep.subr.bf16.mxu0 0
      %3799 = vmatpush2.bf16.msra.mxu0 0
      %3800 = vmatprep.subr.bf16.mxu0 0
      %3801 = vmatpush2.bf16.msra.mxu0 0
      %3802 = vmatprep.subr.bf16.mxu0 0
      %3803 = vmatpush2.bf16.msra.mxu0 0
      %3804 = vmatprep.subr.bf16.mxu0 0
      %3805 = vmatpush2.bf16.msra.mxu0 0
      %3806 = vmatprep.subr.bf16.mxu0 0
      %3807 = vmatpush2.bf16.msra.mxu0 0
      %3808 = vmatprep.mubr.bf16.mxu0 0
      %3809 = vmatmul.mubr.bf16.gmra.mxu0 %v1086
      %v3810 = vpop.f32.mrf.mxu0
      %v3811 = vadd.f32 %v3490, %v3810
      %v3812 = vpop.f32.mrf.mxu0
      %v3813 = vpop.f32.mrf.mxu0
      %v3814 = vadd.f32 %v3493, %v3813
      %v3815 = vpop.f32.mrf.mxu0
      %3816 = vmatprep.mubr.bf16.mxu0 0
      %3817 = vmatmul.mubr.bf16.gmra.mxu0 %v1087
      %v3818 = vpop.f32.mrf.mxu0
      %v3819 = vadd.f32 %v3498, %v3818
      %v3820 = vpop.f32.mrf.mxu0
      %v3821 = vpop.f32.mrf.mxu0
      %v3822 = vadd.f32 %v3501, %v3821
      %v3823 = vpop.f32.mrf.mxu0
      %3824 = vmatprep.mubr.bf16.mxu0 0
      %3825 = vmatmul.mubr.bf16.gmra.mxu0 %v1088
      %v3826 = vpop.f32.mrf.mxu0
      %v3827 = vadd.f32 %v3506, %v3826
      %v3828 = vpop.f32.mrf.mxu0
      %v3829 = vpop.f32.mrf.mxu0
      %v3830 = vadd.f32 %v3509, %v3829
      %v3831 = vpop.f32.mrf.mxu0
      %3832 = vmatprep.mubr.bf16.mxu0 0
      %3833 = vmatmul.mubr.bf16.gmra.mxu0 %v1089
      %v3834 = vpop.f32.mrf.mxu0
      %v3835 = vadd.f32 %v3514, %v3834
      %v3836 = vpop.f32.mrf.mxu0
      %v3837 = vpop.f32.mrf.mxu0
      %v3838 = vadd.f32 %v3517, %v3837
      %v3839 = vpop.f32.mrf.mxu0
      %3840 = vmatprep.mubr.bf16.mxu0 0
      %3841 = vmatmul.mubr.bf16.gmra.mxu0 %v1090
      %v3842 = vpop.f32.mrf.mxu0
      %v3843 = vadd.f32 %v3522, %v3842
      %v3844 = vpop.f32.mrf.mxu0
      %v3845 = vpop.f32.mrf.mxu0
      %v3846 = vadd.f32 %v3525, %v3845
      %v3847 = vpop.f32.mrf.mxu0
      %3848 = vmatprep.mubr.bf16.mxu0 0
      %3849 = vmatmul.mubr.bf16.gmra.mxu0 %v1091
      %v3850 = vpop.f32.mrf.mxu0
      %v3851 = vadd.f32 %v3530, %v3850
      %v3852 = vpop.f32.mrf.mxu0
      %v3853 = vpop.f32.mrf.mxu0
      %v3854 = vadd.f32 %v3533, %v3853
      %v3855 = vpop.f32.mrf.mxu0
      %3856 = vmatprep.mubr.bf16.mxu0 0
      %3857 = vmatmul.mubr.bf16.gmra.mxu0 %v1092
      %v3858 = vpop.f32.mrf.mxu0
      %v3859 = vadd.f32 %v3538, %v3858
      %v3860 = vpop.f32.mrf.mxu0
      %v3861 = vpop.f32.mrf.mxu0
      %v3862 = vadd.f32 %v3541, %v3861
      %v3863 = vpop.f32.mrf.mxu0
      %3864 = vmatprep.mubr.bf16.mxu0 0
      %3865 = vmatmul.mubr.bf16.gmra.mxu0 %v1093
      %v3866 = vpop.f32.mrf.mxu0
      %v3867 = vadd.f32 %v3546, %v3866
      %v3868 = vpop.f32.mrf.mxu0
      %v3869 = vpop.f32.mrf.mxu0
      %v3870 = vadd.f32 %v3549, %v3869
      %v3871 = vpop.f32.mrf.mxu0
      %3872 = vmatprep.mubr.bf16.mxu0 0
      %3873 = vmatmul.mubr.bf16.gmra.mxu0 %v1094
      %v3874 = vpop.f32.mrf.mxu0
      %v3875 = vadd.f32 %v3554, %v3874
      %v3876 = vpop.f32.mrf.mxu0
      %v3877 = vpop.f32.mrf.mxu0
      %v3878 = vadd.f32 %v3557, %v3877
      %v3879 = vpop.f32.mrf.mxu0
      %3880 = vmatprep.mubr.bf16.mxu0 0
      %3881 = vmatmul.mubr.bf16.gmra.mxu0 %v1095
      %v3882 = vpop.f32.mrf.mxu0
      %v3883 = vadd.f32 %v3562, %v3882
      %v3884 = vpop.f32.mrf.mxu0
      %v3885 = vpop.f32.mrf.mxu0
      %v3886 = vadd.f32 %v3565, %v3885
      %v3887 = vpop.f32.mrf.mxu0
      %3888 = vmatprep.mubr.bf16.mxu0 0
      %3889 = vmatmul.mubr.bf16.gmra.mxu0 %v1096
      %v3890 = vpop.f32.mrf.mxu0
      %v3891 = vadd.f32 %v3570, %v3890
      %v3892 = vpop.f32.mrf.mxu0
      %v3893 = vpop.f32.mrf.mxu0
      %v3894 = vadd.f32 %v3573, %v3893
      %v3895 = vpop.f32.mrf.mxu0
      %3896 = vmatprep.mubr.bf16.mxu0 0
      %3897 = vmatmul.mubr.bf16.gmra.mxu0 %v1097
      %v3898 = vpop.f32.mrf.mxu0
      %v3899 = vadd.f32 %v3578, %v3898
      %v3900 = vpop.f32.mrf.mxu0
      %v3901 = vpop.f32.mrf.mxu0
      %v3902 = vadd.f32 %v3581, %v3901
      %v3903 = vpop.f32.mrf.mxu0
      %3904 = vmatprep.mubr.bf16.mxu0 0
      %3905 = vmatmul.mubr.bf16.gmra.mxu0 %v1098
      %v3906 = vpop.f32.mrf.mxu0
      %v3907 = vadd.f32 %v3586, %v3906
      %v3908 = vpop.f32.mrf.mxu0
      %v3909 = vpop.f32.mrf.mxu0
      %v3910 = vadd.f32 %v3589, %v3909
      %v3911 = vpop.f32.mrf.mxu0
      %3912 = vmatprep.mubr.bf16.mxu0 0
      %3913 = vmatmul.mubr.bf16.gmra.mxu0 %v1099
      %v3914 = vpop.f32.mrf.mxu0
      %v3915 = vadd.f32 %v3594, %v3914
      %v3916 = vpop.f32.mrf.mxu0
      %v3917 = vpop.f32.mrf.mxu0
      %v3918 = vadd.f32 %v3597, %v3917
      %v3919 = vpop.f32.mrf.mxu0
      %3920 = vmatprep.mubr.bf16.mxu0 0
      %3921 = vmatmul.mubr.bf16.gmra.mxu0 %v1100
      %v3922 = vpop.f32.mrf.mxu0
      %v3923 = vadd.f32 %v3602, %v3922
      %v3924 = vpop.f32.mrf.mxu0
      %v3925 = vpop.f32.mrf.mxu0
      %v3926 = vadd.f32 %v3605, %v3925
      %v3927 = vpop.f32.mrf.mxu0
      %3928 = vmatprep.mubr.bf16.mxu0 0
      %3929 = vmatmul.mubr.bf16.gmra.mxu0 %v1101
      %v3930 = vpop.f32.mrf.mxu0
      %v3931 = vadd.f32 %v3610, %v3930
      %v3932 = vpop.f32.mrf.mxu0
      %v3933 = vpop.f32.mrf.mxu0
      %v3934 = vadd.f32 %v3613, %v3933
      %v3935 = vpop.f32.mrf.mxu0
      %3936 = vmatprep.mubr.bf16.mxu0 0
      %3937 = vmatmul.mubr.bf16.gmra.mxu0 %v1102
      %v3938 = vpop.f32.mrf.mxu0
      %v3939 = vadd.f32 %v3618, %v3938
      %v3940 = vpop.f32.mrf.mxu0
      %v3941 = vpop.f32.mrf.mxu0
      %v3942 = vadd.f32 %v3621, %v3941
      %v3943 = vpop.f32.mrf.mxu0
      %3944 = vmatprep.mubr.bf16.mxu0 0
      %3945 = vmatmul.mubr.bf16.gmra.mxu0 %v1103
      %v3946 = vpop.f32.mrf.mxu0
      %v3947 = vadd.f32 %v3626, %v3946
      %v3948 = vpop.f32.mrf.mxu0
      %v3949 = vpop.f32.mrf.mxu0
      %v3950 = vadd.f32 %v3629, %v3949
      %v3951 = vpop.f32.mrf.mxu0
      %3952 = vmatprep.mubr.bf16.mxu0 0
      %3953 = vmatmul.mubr.bf16.gmra.mxu0 %v1104
      %v3954 = vpop.f32.mrf.mxu0
      %v3955 = vadd.f32 %v3634, %v3954
      %v3956 = vpop.f32.mrf.mxu0
      %v3957 = vpop.f32.mrf.mxu0
      %v3958 = vadd.f32 %v3637, %v3957
      %v3959 = vpop.f32.mrf.mxu0
      %3960 = vmatprep.mubr.bf16.mxu0 0
      %3961 = vmatmul.mubr.bf16.gmra.mxu0 %v1105
      %v3962 = vpop.f32.mrf.mxu0
      %v3963 = vadd.f32 %v3642, %v3962
      %v3964 = vpop.f32.mrf.mxu0
      %v3965 = vpop.f32.mrf.mxu0
      %v3966 = vadd.f32 %v3645, %v3965
      %v3967 = vpop.f32.mrf.mxu0
      %3968 = vmatprep.mubr.bf16.mxu0 0
      %3969 = vmatmul.mubr.bf16.gmra.mxu0 %v1106
      %v3970 = vpop.f32.mrf.mxu0
      %v3971 = vadd.f32 %v3650, %v3970
      %v3972 = vpop.f32.mrf.mxu0
      %v3973 = vpop.f32.mrf.mxu0
      %v3974 = vadd.f32 %v3653, %v3973
      %v3975 = vpop.f32.mrf.mxu0
      %3976 = vmatprep.mubr.bf16.mxu0 0
      %3977 = vmatmul.mubr.bf16.gmra.mxu0 %v1107
      %v3978 = vpop.f32.mrf.mxu0
      %v3979 = vadd.f32 %v3658, %v3978
      %v3980 = vpop.f32.mrf.mxu0
      %v3981 = vpop.f32.mrf.mxu0
      %v3982 = vadd.f32 %v3661, %v3981
      %v3983 = vpop.f32.mrf.mxu0
      %3984 = vmatprep.mubr.bf16.mxu0 0
      %3985 = vmatmul.mubr.bf16.gmra.mxu0 %v1108
      %v3986 = vpop.f32.mrf.mxu0
      %v3987 = vadd.f32 %v3666, %v3986
      %v3988 = vpop.f32.mrf.mxu0
      %v3989 = vpop.f32.mrf.mxu0
      %v3990 = vadd.f32 %v3669, %v3989
      %v3991 = vpop.f32.mrf.mxu0
      %3992 = vmatprep.mubr.bf16.mxu0 0
      %3993 = vmatmul.mubr.bf16.gmra.mxu0 %v1109
      %v3994 = vpop.f32.mrf.mxu0
      %v3995 = vadd.f32 %v3674, %v3994
      %v3996 = vpop.f32.mrf.mxu0
      %v3997 = vpop.f32.mrf.mxu0
      %v3998 = vadd.f32 %v3677, %v3997
      %v3999 = vpop.f32.mrf.mxu0
      %4000 = vmatprep.mubr.bf16.mxu0 0
      %4001 = vmatmul.mubr.bf16.gmra.mxu0 %v1110
      %v4002 = vpop.f32.mrf.mxu0
      %v4003 = vadd.f32 %v3682, %v4002
      %v4004 = vpop.f32.mrf.mxu0
      %v4005 = vpop.f32.mrf.mxu0
      %v4006 = vadd.f32 %v3685, %v4005
      %v4007 = vpop.f32.mrf.mxu0
      %4008 = vmatprep.mubr.bf16.mxu0 0
      %4009 = vmatmul.mubr.bf16.gmra.mxu0 %v1111
      %v4010 = vpop.f32.mrf.mxu0
      %v4011 = vadd.f32 %v3690, %v4010
      %v4012 = vpop.f32.mrf.mxu0
      %v4013 = vpop.f32.mrf.mxu0
      %v4014 = vadd.f32 %v3693, %v4013
      %v4015 = vpop.f32.mrf.mxu0
      %4016 = vmatprep.mubr.bf16.mxu0 0
      %4017 = vmatmul.mubr.bf16.gmra.mxu0 %v1112
      %v4018 = vpop.f32.mrf.mxu0
      %v4019 = vadd.f32 %v3698, %v4018
      %v4020 = vpop.f32.mrf.mxu0
      %v4021 = vpop.f32.mrf.mxu0
      %v4022 = vadd.f32 %v3701, %v4021
      %v4023 = vpop.f32.mrf.mxu0
      %4024 = vmatprep.mubr.bf16.mxu0 0
      %4025 = vmatmul.mubr.bf16.gmra.mxu0 %v1113
      %v4026 = vpop.f32.mrf.mxu0
      %v4027 = vadd.f32 %v3706, %v4026
      %v4028 = vpop.f32.mrf.mxu0
      %v4029 = vpop.f32.mrf.mxu0
      %v4030 = vadd.f32 %v3709, %v4029
      %v4031 = vpop.f32.mrf.mxu0
      %4032 = vmatprep.mubr.bf16.mxu0 0
      %4033 = vmatmul.mubr.bf16.gmra.mxu0 %v1114
      %v4034 = vpop.f32.mrf.mxu0
      %v4035 = vadd.f32 %v3714, %v4034
      %v4036 = vpop.f32.mrf.mxu0
      %v4037 = vpop.f32.mrf.mxu0
      %v4038 = vadd.f32 %v3717, %v4037
      %v4039 = vpop.f32.mrf.mxu0
      %4040 = vmatprep.mubr.bf16.mxu0 0
      %4041 = vmatmul.mubr.bf16.gmra.mxu0 %v1115
      %v4042 = vpop.f32.mrf.mxu0
      %v4043 = vadd.f32 %v3722, %v4042
      %v4044 = vpop.f32.mrf.mxu0
      %v4045 = vpop.f32.mrf.mxu0
      %v4046 = vadd.f32 %v3725, %v4045
      %v4047 = vpop.f32.mrf.mxu0
      %4048 = vmatprep.mubr.bf16.mxu0 0
      %4049 = vmatmul.mubr.bf16.gmra.mxu0 %v1116
      %v4050 = vpop.f32.mrf.mxu0
      %v4051 = vadd.f32 %v3730, %v4050
      %v4052 = vpop.f32.mrf.mxu0
      %v4053 = vpop.f32.mrf.mxu0
      %v4054 = vadd.f32 %v3733, %v4053
      %v4055 = vpop.f32.mrf.mxu0
      %4056 = vmatprep.mubr.bf16.mxu0 0
      %4057 = vmatmul.mubr.bf16.gmra.mxu0 %v1117
      %v4058 = vpop.f32.mrf.mxu0
      %v4059 = vadd.f32 %v3738, %v4058
      %v4060 = vpop.f32.mrf.mxu0
      %v4061 = vpop.f32.mrf.mxu0
      %v4062 = vadd.f32 %v3741, %v4061
      %v4063 = vpop.f32.mrf.mxu0
      %4064 = vmatprep.mubr.bf16.mxu0 0
      %4065 = vmatmul.mubr.bf16.gmra.mxu0 %v1118
      %v4066 = vpop.f32.mrf.mxu0
      %v4067 = vadd.f32 %v3746, %v4066
      %v4068 = vpop.f32.mrf.mxu0
      %v4069 = vpop.f32.mrf.mxu0
      %v4070 = vadd.f32 %v3749, %v4069
      %v4071 = vpop.f32.mrf.mxu0
      %4072 = vmatprep.mubr.bf16.mxu0 0
      %4073 = vmatmul.mubr.bf16.gmra.mxu0 %v1119
      %v4074 = vpop.f32.mrf.mxu0
      %v4075 = vadd.f32 %v3754, %v4074
      %v4076 = vpop.f32.mrf.mxu0
      %v4077 = vpop.f32.mrf.mxu0
      %v4078 = vadd.f32 %v3757, %v4077
      %v4079 = vpop.f32.mrf.mxu0
      %4080 = vmatprep.mubr.bf16.mxu0 0
      %4081 = vmatmul.mubr.bf16.gmra.mxu0 %v1120
      %v4082 = vpop.f32.mrf.mxu0
      %v4083 = vadd.f32 %v3762, %v4082
      %v4084 = vpop.f32.mrf.mxu0
      %v4085 = vpop.f32.mrf.mxu0
      %v4086 = vadd.f32 %v3765, %v4085
      %v4087 = vpop.f32.mrf.mxu0
      %4088 = vmatprep.mubr.bf16.mxu0 0
      %4089 = vmatmul.mubr.bf16.gmra.mxu0 %v1121
      %v4090 = vpop.f32.mrf.mxu0
      %v4091 = vadd.f32 %v3770, %v4090
      %v4092 = vpop.f32.mrf.mxu0
      %v4093 = vpop.f32.mrf.mxu0
      %v4094 = vadd.f32 %v3773, %v4093
      %v4095 = vpop.f32.mrf.mxu0
      %4096 = vdwg.mxu0
      %v4097 = vld [vmem:[#allocation2] sm:$0xff]
      %v4098 = vld [vmem:[#allocation2 + $0x8] sm:$0xff]
      %v4099 = vld [vmem:[#allocation2 + $0x10] sm:$0xff]
      %v4100 = vld [vmem:[#allocation2 + $0x18] sm:$0xff]
      %v4101 = vld [vmem:[#allocation2 + $0x20] sm:$0xff]
      %v4102 = vld [vmem:[#allocation2 + $0x28] sm:$0xff]
      %v4103 = vld [vmem:[#allocation2 + $0x30] sm:$0xff]
      %v4104 = vld [vmem:[#allocation2 + $0x38] sm:$0xff]
      %v4105 = vld [vmem:[#allocation2 + $0x40] sm:$0xff]
      %v4106 = vld [vmem:[#allocation2 + $0x48] sm:$0xff]
      %v4107 = vld [vmem:[#allocation2 + $0x50] sm:$0xff]
      %v4108 = vld [vmem:[#allocation2 + $0x58] sm:$0xff]
      %v4109 = vld [vmem:[#allocation2 + $0x60] sm:$0xff]
      %v4110 = vld [vmem:[#allocation2 + $0x68] sm:$0xff]
      %v4111 = vld [vmem:[#allocation2 + $0x70] sm:$0xff]
      %v4112 = vld [vmem:[#allocation2 + $0x78] sm:$0xff]
      %v4113 = vld [vmem:[#allocation2 + $0x80] sm:$0xff]
      %v4114 = vld [vmem:[#allocation2 + $0x88] sm:$0xff]
      %v4115 = vld [vmem:[#allocation2 + $0x90] sm:$0xff]
      %v4116 = vld [vmem:[#allocation2 + $0x98] sm:$0xff]
      %v4117 = vld [vmem:[#allocation2 + $0xa0] sm:$0xff]
      %v4118 = vld [vmem:[#allocation2 + $0xa8] sm:$0xff]
      %v4119 = vld [vmem:[#allocation2 + $0xb0] sm:$0xff]
      %v4120 = vld [vmem:[#allocation2 + $0xb8] sm:$0xff]
      %v4121 = vld [vmem:[#allocation2 + $0xc0] sm:$0xff]
      %v4122 = vld [vmem:[#allocation2 + $0xc8] sm:$0xff]
      %v4123 = vld [vmem:[#allocation2 + $0xd0] sm:$0xff]
      %v4124 = vld [vmem:[#allocation2 + $0xd8] sm:$0xff]
      %v4125 = vld [vmem:[#allocation2 + $0xe0] sm:$0xff]
      %v4126 = vld [vmem:[#allocation2 + $0xe8] sm:$0xff]
      %v4127 = vld [vmem:[#allocation2 + $0xf0] sm:$0xff]
      %v4128 = vld [vmem:[#allocation2 + $0xf8] sm:$0xff]
      %v4129 = vld [vmem:[#allocation2 + $0x100] sm:$0xff]
      %v4130 = vld [vmem:[#allocation2 + $0x108] sm:$0xff]
      %v4131 = vld [vmem:[#allocation2 + $0x110] sm:$0xff]
      %v4132 = vld [vmem:[#allocation2 + $0x118] sm:$0xff]
      %v4133 = vld [vmem:[#allocation2 + $0x120] sm:$0xff]
      %v4134 = vld [vmem:[#allocation2 + $0x128] sm:$0xff]
      %v4135 = vld [vmem:[#allocation2 + $0x130] sm:$0xff]
      %v4136 = vld [vmem:[#allocation2 + $0x138] sm:$0xff]
      %v4137 = vld [vmem:[#allocation2 + $0x140] sm:$0xff]
      %v4138 = vld [vmem:[#allocation2 + $0x148] sm:$0xff]
      %v4139 = vld [vmem:[#allocation2 + $0x150] sm:$0xff]
      %v4140 = vld [vmem:[#allocation2 + $0x158] sm:$0xff]
      %v4141 = vld [vmem:[#allocation2 + $0x160] sm:$0xff]
      %v4142 = vld [vmem:[#allocation2 + $0x168] sm:$0xff]
      %v4143 = vld [vmem:[#allocation2 + $0x170] sm:$0xff]
      %v4144 = vld [vmem:[#allocation2 + $0x178] sm:$0xff]
      %v4145 = vld [vmem:[#allocation2 + $0x180] sm:$0xff]
      %v4146 = vld [vmem:[#allocation2 + $0x188] sm:$0xff]
      %v4147 = vld [vmem:[#allocation2 + $0x190] sm:$0xff]
      %v4148 = vld [vmem:[#allocation2 + $0x198] sm:$0xff]
      %v4149 = vld [vmem:[#allocation2 + $0x1a0] sm:$0xff]
      %v4150 = vld [vmem:[#allocation2 + $0x1a8] sm:$0xff]
      %v4151 = vld [vmem:[#allocation2 + $0x1b0] sm:$0xff]
      %v4152 = vld [vmem:[#allocation2 + $0x1b8] sm:$0xff]
      %v4153 = vld [vmem:[#allocation2 + $0x1c0] sm:$0xff]
      %v4154 = vld [vmem:[#allocation2 + $0x1c8] sm:$0xff]
      %v4155 = vld [vmem:[#allocation2 + $0x1d0] sm:$0xff]
      %v4156 = vld [vmem:[#allocation2 + $0x1d8] sm:$0xff]
      %v4157 = vld [vmem:[#allocation2 + $0x1e0] sm:$0xff]
      %v4158 = vld [vmem:[#allocation2 + $0x1e8] sm:$0xff]
      %v4159 = vld [vmem:[#allocation2 + $0x1f0] sm:$0xff]
      %v4160 = vld [vmem:[#allocation2 + $0x1f8] sm:$0xff]
      %v4161 = vld [vmem:[#allocation2 + $0x200] sm:$0xff]
      %v4162 = vld [vmem:[#allocation2 + $0x208] sm:$0xff]
      %v4163 = vld [vmem:[#allocation2 + $0x210] sm:$0xff]
      %v4164 = vld [vmem:[#allocation2 + $0x218] sm:$0xff]
      %v4165 = vld [vmem:[#allocation2 + $0x220] sm:$0xff]
      %v4166 = vld [vmem:[#allocation2 + $0x228] sm:$0xff]
      %v4167 = vld [vmem:[#allocation2 + $0x230] sm:$0xff]
      %v4168 = vld [vmem:[#allocation2 + $0x238] sm:$0xff]
      %v4169 = vrot.slane %v3811, 1
      %v4170 = vrot.slane %v3814, 1
      %v4171 = vrot.slane %v3819, 1
      %v4172 = vrot.slane %v3822, 1
      %v4173 = vrot.slane %v3827, 1
      %v4174 = vrot.slane %v3830, 1
      %v4175 = vrot.slane %v3835, 1
      %v4176 = vrot.slane %v3838, 1
      %v4177 = vrot.slane %v3843, 1
      %v4178 = vrot.slane %v3846, 1
      %v4179 = vrot.slane %v3851, 1
      %v4180 = vrot.slane %v3854, 1
      %v4181 = vrot.slane %v3859, 1
      %v4182 = vrot.slane %v3862, 1
      %v4183 = vrot.slane %v3867, 1
      %v4184 = vrot.slane %v3870, 1
      %v4185 = vrot.slane %v3875, 1
      %v4186 = vrot.slane %v3878, 1
      %v4187 = vrot.slane %v3883, 1
      %v4188 = vrot.slane %v3886, 1
      %v4189 = vrot.slane %v3891, 1
      %v4190 = vrot.slane %v3894, 1
      %v4191 = vrot.slane %v3899, 1
      %v4192 = vrot.slane %v3902, 1
      %v4193 = vrot.slane %v3907, 1
      %v4194 = vrot.slane %v3910, 1
      %v4195 = vrot.slane %v3915, 1
      %v4196 = vrot.slane %v3918, 1
      %v4197 = vrot.slane %v3923, 1
      %v4198 = vrot.slane %v3926, 1
      %v4199 = vrot.slane %v3931, 1
      %v4200 = vrot.slane %v3934, 1
      %v4201 = vrot.slane %v3939, 1
      %v4202 = vrot.slane %v3942, 1
      %v4203 = vrot.slane %v3947, 1
      %v4204 = vrot.slane %v3950, 1
      %v4205 = vrot.slane %v3955, 1
      %v4206 = vrot.slane %v3958, 1
      %v4207 = vrot.slane %v3963, 1
      %v4208 = vrot.slane %v3966, 1
      %v4209 = vrot.slane %v3971, 1
      %v4210 = vrot.slane %v3974, 1
      %v4211 = vrot.slane %v3979, 1
      %v4212 = vrot.slane %v3982, 1
      %v4213 = vrot.slane %v3987, 1
      %v4214 = vrot.slane %v3990, 1
      %v4215 = vrot.slane %v3995, 1
      %v4216 = vrot.slane %v3998, 1
      %v4217 = vrot.slane %v4003, 1
      %v4218 = vrot.slane %v4006, 1
      %v4219 = vrot.slane %v4011, 1
      %v4220 = vrot.slane %v4014, 1
      %v4221 = vrot.slane %v4019, 1
      %v4222 = vrot.slane %v4022, 1
      %v4223 = vrot.slane %v4027, 1
      %v4224 = vrot.slane %v4030, 1
      %v4225 = vrot.slane %v4035, 1
      %v4226 = vrot.slane %v4038, 1
      %v4227 = vrot.slane %v4043, 1
      %v4228 = vrot.slane %v4046, 1
      %v4229 = vrot.slane %v4051, 1
      %v4230 = vrot.slane %v4054, 1
      %v4231 = vrot.slane %v4059, 1
      %v4232 = vrot.slane %v4062, 1
      %v4233 = vrot.slane %v4067, 1
      %v4234 = vrot.slane %v4070, 1
      %v4235 = vrot.slane %v4075, 1
      %v4236 = vrot.slane %v4078, 1
      %v4237 = vrot.slane %v4083, 1
      %v4238 = vrot.slane %v4086, 1
      %v4239 = vrot.slane %v4091, 1
      %v4240 = vrot.slane %v4094, 1
      %vm4241 = vcmp.lt.s32.totalorder %v3044, 7
      %v4242 = vsel %vm4241, %v4239, %v4240
      %v4243 = vsel %vm4241, %v4238, %v4239
      %v4244 = vsel %vm4241, %v4237, %v4238
      %v4245 = vsel %vm4241, %v4236, %v4237
      %v4246 = vsel %vm4241, %v4235, %v4236
      %v4247 = vsel %vm4241, %v4234, %v4235
      %v4248 = vsel %vm4241, %v4233, %v4234
      %v4249 = vsel %vm4241, %v4232, %v4233
      %v4250 = vsel %vm4241, %v4231, %v4232
      %v4251 = vsel %vm4241, %v4230, %v4231
      %v4252 = vsel %vm4241, %v4229, %v4230
      %v4253 = vsel %vm4241, %v4228, %v4229
      %v4254 = vsel %vm4241, %v4227, %v4228
      %v4255 = vsel %vm4241, %v4226, %v4227
      %v4256 = vsel %vm4241, %v4225, %v4226
      %v4257 = vsel %vm4241, %v4224, %v4225
      %v4258 = vsel %vm4241, %v4223, %v4224
      %v4259 = vsel %vm4241, %v4222, %v4223
      %v4260 = vsel %vm4241, %v4221, %v4222
      %v4261 = vsel %vm4241, %v4220, %v4221
      %v4262 = vsel %vm4241, %v4219, %v4220
      %v4263 = vsel %vm4241, %v4218, %v4219
      %v4264 = vsel %vm4241, %v4217, %v4218
      %v4265 = vsel %vm4241, %v4216, %v4217
      %v4266 = vsel %vm4241, %v4215, %v4216
      %v4267 = vsel %vm4241, %v4214, %v4215
      %v4268 = vsel %vm4241, %v4213, %v4214
      %v4269 = vsel %vm4241, %v4212, %v4213
      %v4270 = vsel %vm4241, %v4211, %v4212
      %v4271 = vsel %vm4241, %v4210, %v4211
      %v4272 = vsel %vm4241, %v4209, %v4210
      %v4273 = vsel %vm4241, %v4208, %v4209
      %v4274 = vsel %vm4241, %v4207, %v4208
      %v4275 = vsel %vm4241, %v4206, %v4207
      %v4276 = vsel %vm4241, %v4205, %v4206
      %v4277 = vsel %vm4241, %v4204, %v4205
      %v4278 = vsel %vm4241, %v4203, %v4204
      %v4279 = vsel %vm4241, %v4202, %v4203
      %v4280 = vsel %vm4241, %v4201, %v4202
      %v4281 = vsel %vm4241, %v4200, %v4201
      %v4282 = vsel %vm4241, %v4199, %v4200
      %v4283 = vsel %vm4241, %v4198, %v4199
      %v4284 = vsel %vm4241, %v4197, %v4198
      %v4285 = vsel %vm4241, %v4196, %v4197
      %v4286 = vsel %vm4241, %v4195, %v4196
      %v4287 = vsel %vm4241, %v4194, %v4195
      %v4288 = vsel %vm4241, %v4193, %v4194
      %v4289 = vsel %vm4241, %v4192, %v4193
      %v4290 = vsel %vm4241, %v4191, %v4192
      %v4291 = vsel %vm4241, %v4190, %v4191
      %v4292 = vsel %vm4241, %v4189, %v4190
      %v4293 = vsel %vm4241, %v4188, %v4189
      %v4294 = vsel %vm4241, %v4187, %v4188
      %v4295 = vsel %vm4241, %v4186, %v4187
      %v4296 = vsel %vm4241, %v4185, %v4186
      %v4297 = vsel %vm4241, %v4184, %v4185
      %v4298 = vsel %vm4241, %v4183, %v4184
      %v4299 = vsel %vm4241, %v4182, %v4183
      %v4300 = vsel %vm4241, %v4181, %v4182
      %v4301 = vsel %vm4241, %v4180, %v4181
      %v4302 = vsel %vm4241, %v4179, %v4180
      %v4303 = vsel %vm4241, %v4178, %v4179
      %v4304 = vsel %vm4241, %v4177, %v4178
      %v4305 = vsel %vm4241, %v4176, %v4177
      %v4306 = vsel %vm4241, %v4175, %v4176
      %v4307 = vsel %vm4241, %v4174, %v4175
      %v4308 = vsel %vm4241, %v4173, %v4174
      %v4309 = vsel %vm4241, %v4172, %v4173
      %v4310 = vsel %vm4241, %v4171, %v4172
      %v4311 = vsel %vm4241, %v4170, %v4171
      %v4312 = vsel %vm4241, %v4169, %v4170
      %v4313 = vsel %vm4241, %v4240, %v4169
      %v4314 = vadd.f32 %v4097, %v4312
      %v4315 = vadd.f32 %v4098, %v4311
      %v4316 = vadd.f32 %v4099, %v4310
      %v4317 = vadd.f32 %v4100, %v4309
      %v4318 = vadd.f32 %v4101, %v4308
      %v4319 = vadd.f32 %v4102, %v4307
      %v4320 = vadd.f32 %v4103, %v4306
      %v4321 = vadd.f32 %v4104, %v4305
      %v4322 = vadd.f32 %v4105, %v4304
      %v4323 = vadd.f32 %v4106, %v4303
      %v4324 = vadd.f32 %v4107, %v4302
      %v4325 = vadd.f32 %v4108, %v4301
      %v4326 = vadd.f32 %v4109, %v4300
      %v4327 = vadd.f32 %v4110, %v4299
      %v4328 = vadd.f32 %v4111, %v4298
      %v4329 = vadd.f32 %v4112, %v4297
      %v4330 = vadd.f32 %v4113, %v4296
      %v4331 = vadd.f32 %v4114, %v4295
      %v4332 = vadd.f32 %v4115, %v4294
      %v4333 = vadd.f32 %v4116, %v4293
      %v4334 = vadd.f32 %v4117, %v4292
      %v4335 = vadd.f32 %v4118, %v4291
      %v4336 = vadd.f32 %v4119, %v4290
      %v4337 = vadd.f32 %v4120, %v4289
      %v4338 = vadd.f32 %v4121, %v4288
      %v4339 = vadd.f32 %v4122, %v4287
      %v4340 = vadd.f32 %v4123, %v4286
      %v4341 = vadd.f32 %v4124, %v4285
      %v4342 = vadd.f32 %v4125, %v4284
      %v4343 = vadd.f32 %v4126, %v4283
      %v4344 = vadd.f32 %v4127, %v4282
      %v4345 = vadd.f32 %v4128, %v4281
      %v4346 = vadd.f32 %v4129, %v4280
      %v4347 = vadd.f32 %v4130, %v4279
      %v4348 = vadd.f32 %v4131, %v4278
      %v4349 = vadd.f32 %v4132, %v4277
      %v4350 = vadd.f32 %v4133, %v4276
      %v4351 = vadd.f32 %v4134, %v4275
      %v4352 = vadd.f32 %v4135, %v4274
      %v4353 = vadd.f32 %v4136, %v4273
      %v4354 = vadd.f32 %v4137, %v4272
      %v4355 = vadd.f32 %v4138, %v4271
      %v4356 = vadd.f32 %v4139, %v4270
      %v4357 = vadd.f32 %v4140, %v4269
      %v4358 = vadd.f32 %v4141, %v4268
      %v4359 = vadd.f32 %v4142, %v4267
      %v4360 = vadd.f32 %v4143, %v4266
      %v4361 = vadd.f32 %v4144, %v4265
      %v4362 = vadd.f32 %v4145, %v4264
      %v4363 = vadd.f32 %v4146, %v4263
      %v4364 = vadd.f32 %v4147, %v4262
      %v4365 = vadd.f32 %v4148, %v4261
      %v4366 = vadd.f32 %v4149, %v4260
      %v4367 = vadd.f32 %v4150, %v4259
      %v4368 = vadd.f32 %v4151, %v4258
      %v4369 = vadd.f32 %v4152, %v4257
      %v4370 = vadd.f32 %v4153, %v4256
      %v4371 = vadd.f32 %v4154, %v4255
      %v4372 = vadd.f32 %v4155, %v4254
      %v4373 = vadd.f32 %v4156, %v4253
      %v4374 = vadd.f32 %v4157, %v4252
      %v4375 = vadd.f32 %v4158, %v4251
      %v4376 = vadd.f32 %v4159, %v4250
      %v4377 = vadd.f32 %v4160, %v4249
      %v4378 = vadd.f32 %v4161, %v4248
      %v4379 = vadd.f32 %v4162, %v4247
      %v4380 = vadd.f32 %v4163, %v4246
      %v4381 = vadd.f32 %v4164, %v4245
      %v4382 = vadd.f32 %v4165, %v4244
      %v4383 = vadd.f32 %v4166, %v4243
      %v4384 = vadd.f32 %v4167, %v4242
      %v4385 = vadd.f32 %v4168, %v4313
      %4386 = vst [vmem:[#allocation2] sm:$0xff] %v4314
      %4387 = vst [vmem:[#allocation2 + $0x8] sm:$0xff] %v4315
      %4388 = vst [vmem:[#allocation2 + $0x10] sm:$0xff] %v4316
      %4389 = vst [vmem:[#allocation2 + $0x18] sm:$0xff] %v4317
      %4390 = vst [vmem:[#allocation2 + $0x20] sm:$0xff] %v4318
      %4391 = vst [vmem:[#allocation2 + $0x28] sm:$0xff] %v4319
      %4392 = vst [vmem:[#allocation2 + $0x30] sm:$0xff] %v4320
      %4393 = vst [vmem:[#allocation2 + $0x38] sm:$0xff] %v4321
      %4394 = vst [vmem:[#allocation2 + $0x40] sm:$0xff] %v4322
      %4395 = vst [vmem:[#allocation2 + $0x48] sm:$0xff] %v4323
      %4396 = vst [vmem:[#allocation2 + $0x50] sm:$0xff] %v4324
      %4397 = vst [vmem:[#allocation2 + $0x58] sm:$0xff] %v4325
      %4398 = vst [vmem:[#allocation2 + $0x60] sm:$0xff] %v4326
      %4399 = vst [vmem:[#allocation2 + $0x68] sm:$0xff] %v4327
      %4400 = vst [vmem:[#allocation2 + $0x70] sm:$0xff] %v4328
      %4401 = vst [vmem:[#allocation2 + $0x78] sm:$0xff] %v4329
      %4402 = vst [vmem:[#allocation2 + $0x80] sm:$0xff] %v4330
      %4403 = vst [vmem:[#allocation2 + $0x88] sm:$0xff] %v4331
      %4404 = vst [vmem:[#allocation2 + $0x90] sm:$0xff] %v4332
      %4405 = vst [vmem:[#allocation2 + $0x98] sm:$0xff] %v4333
      %4406 = vst [vmem:[#allocation2 + $0xa0] sm:$0xff] %v4334
      %4407 = vst [vmem:[#allocation2 + $0xa8] sm:$0xff] %v4335
      %4408 = vst [vmem:[#allocation2 + $0xb0] sm:$0xff] %v4336
      %4409 = vst [vmem:[#allocation2 + $0xb8] sm:$0xff] %v4337
      %4410 = vst [vmem:[#allocation2 + $0xc0] sm:$0xff] %v4338
      %4411 = vst [vmem:[#allocation2 + $0xc8] sm:$0xff] %v4339
      %4412 = vst [vmem:[#allocation2 + $0xd0] sm:$0xff] %v4340
      %4413 = vst [vmem:[#allocation2 + $0xd8] sm:$0xff] %v4341
      %4414 = vst [vmem:[#allocation2 + $0xe0] sm:$0xff] %v4342
      %4415 = vst [vmem:[#allocation2 + $0xe8] sm:$0xff] %v4343
      %4416 = vst [vmem:[#allocation2 + $0xf0] sm:$0xff] %v4344
      %4417 = vst [vmem:[#allocation2 + $0xf8] sm:$0xff] %v4345
      %4418 = vst [vmem:[#allocation2 + $0x100] sm:$0xff] %v4346
      %4419 = vst [vmem:[#allocation2 + $0x108] sm:$0xff] %v4347
      %4420 = vst [vmem:[#allocation2 + $0x110] sm:$0xff] %v4348
      %4421 = vst [vmem:[#allocation2 + $0x118] sm:$0xff] %v4349
      %4422 = vst [vmem:[#allocation2 + $0x120] sm:$0xff] %v4350
      %4423 = vst [vmem:[#allocation2 + $0x128] sm:$0xff] %v4351
      %4424 = vst [vmem:[#allocation2 + $0x130] sm:$0xff] %v4352
      %4425 = vst [vmem:[#allocation2 + $0x138] sm:$0xff] %v4353
      %4426 = vst [vmem:[#allocation2 + $0x140] sm:$0xff] %v4354
      %4427 = vst [vmem:[#allocation2 + $0x148] sm:$0xff] %v4355
      %4428 = vst [vmem:[#allocation2 + $0x150] sm:$0xff] %v4356
      %4429 = vst [vmem:[#allocation2 + $0x158] sm:$0xff] %v4357
      %4430 = vst [vmem:[#allocation2 + $0x160] sm:$0xff] %v4358
      %4431 = vst [vmem:[#allocation2 + $0x168] sm:$0xff] %v4359
      %4432 = vst [vmem:[#allocation2 + $0x170] sm:$0xff] %v4360
      %4433 = vst [vmem:[#allocation2 + $0x178] sm:$0xff] %v4361
      %4434 = vst [vmem:[#allocation2 + $0x180] sm:$0xff] %v4362
      %4435 = vst [vmem:[#allocation2 + $0x188] sm:$0xff] %v4363
      %4436 = vst [vmem:[#allocation2 + $0x190] sm:$0xff] %v4364
      %4437 = vst [vmem:[#allocation2 + $0x198] sm:$0xff] %v4365
      %4438 = vst [vmem:[#allocation2 + $0x1a0] sm:$0xff] %v4366
      %4439 = vst [vmem:[#allocation2 + $0x1a8] sm:$0xff] %v4367
      %4440 = vst [vmem:[#allocation2 + $0x1b0] sm:$0xff] %v4368
      %4441 = vst [vmem:[#allocation2 + $0x1b8] sm:$0xff] %v4369
      %4442 = vst [vmem:[#allocation2 + $0x1c0] sm:$0xff] %v4370
      %4443 = vst [vmem:[#allocation2 + $0x1c8] sm:$0xff] %v4371
      %4444 = vst [vmem:[#allocation2 + $0x1d0] sm:$0xff] %v4372
      %4445 = vst [vmem:[#allocation2 + $0x1d8] sm:$0xff] %v4373
      %4446 = vst [vmem:[#allocation2 + $0x1e0] sm:$0xff] %v4374
      %4447 = vst [vmem:[#allocation2 + $0x1e8] sm:$0xff] %v4375
      %4448 = vst [vmem:[#allocation2 + $0x1f0] sm:$0xff] %v4376
      %4449 = vst [vmem:[#allocation2 + $0x1f8] sm:$0xff] %v4377
      %4450 = vst [vmem:[#allocation2 + $0x200] sm:$0xff] %v4378
      %4451 = vst [vmem:[#allocation2 + $0x208] sm:$0xff] %v4379
      %4452 = vst [vmem:[#allocation2 + $0x210] sm:$0xff] %v4380
      %4453 = vst [vmem:[#allocation2 + $0x218] sm:$0xff] %v4381
      %4454 = vst [vmem:[#allocation2 + $0x220] sm:$0xff] %v4382
      %4455 = vst [vmem:[#allocation2 + $0x228] sm:$0xff] %v4383
      %4456 = vst [vmem:[#allocation2 + $0x230] sm:$0xff] %v4384
      %4457 = vst [vmem:[#allocation2 + $0x238] sm:$0xff] %v4385
      %v4458 = vld [vmem:[#allocation2] sm:$0xff]
      %v4459 = vld [vmem:[#allocation2 + $0x8] sm:$0xff]
      %v4460 = vld [vmem:[#allocation2 + $0x10] sm:$0xff]
      %v4461 = vld [vmem:[#allocation2 + $0x18] sm:$0xff]
      %v4462 = vld [vmem:[#allocation2 + $0x20] sm:$0xff]
      %v4463 = vld [vmem:[#allocation2 + $0x28] sm:$0xff]
      %v4464 = vld [vmem:[#allocation2 + $0x30] sm:$0xff]
      %v4465 = vld [vmem:[#allocation2 + $0x38] sm:$0xff]
      %v4466 = vld [vmem:[#allocation2 + $0x40] sm:$0xff]
      %v4467 = vld [vmem:[#allocation2 + $0x48] sm:$0xff]
      %v4468 = vld [vmem:[#allocation2 + $0x50] sm:$0xff]
      %v4469 = vld [vmem:[#allocation2 + $0x58] sm:$0xff]
      %v4470 = vld [vmem:[#allocation2 + $0x60] sm:$0xff]
      %v4471 = vld [vmem:[#allocation2 + $0x68] sm:$0xff]
      %v4472 = vld [vmem:[#allocation2 + $0x70] sm:$0xff]
      %v4473 = vld [vmem:[#allocation2 + $0x78] sm:$0xff]
      %v4474 = vld [vmem:[#allocation2 + $0x80] sm:$0xff]
      %v4475 = vld [vmem:[#allocation2 + $0x88] sm:$0xff]
      %v4476 = vld [vmem:[#allocation2 + $0x90] sm:$0xff]
      %v4477 = vld [vmem:[#allocation2 + $0x98] sm:$0xff]
      %v4478 = vld [vmem:[#allocation2 + $0xa0] sm:$0xff]
      %v4479 = vld [vmem:[#allocation2 + $0xa8] sm:$0xff]
      %v4480 = vld [vmem:[#allocation2 + $0xb0] sm:$0xff]
      %v4481 = vld [vmem:[#allocation2 + $0xb8] sm:$0xff]
      %v4482 = vld [vmem:[#allocation2 + $0xc0] sm:$0xff]
      %v4483 = vld [vmem:[#allocation2 + $0xc8] sm:$0xff]
      %v4484 = vld [vmem:[#allocation2 + $0xd0] sm:$0xff]
      %v4485 = vld [vmem:[#allocation2 + $0xd8] sm:$0xff]
      %v4486 = vld [vmem:[#allocation2 + $0xe0] sm:$0xff]
      %v4487 = vld [vmem:[#allocation2 + $0xe8] sm:$0xff]
      %v4488 = vld [vmem:[#allocation2 + $0xf0] sm:$0xff]
      %v4489 = vld [vmem:[#allocation2 + $0xf8] sm:$0xff]
      %v4490 = vld [vmem:[#allocation2 + $0x100] sm:$0xff]
      %v4491 = vld [vmem:[#allocation2 + $0x108] sm:$0xff]
      %v4492 = vld [vmem:[#allocation2 + $0x110] sm:$0xff]
      %v4493 = vld [vmem:[#allocation2 + $0x118] sm:$0xff]
      %v4494 = vld [vmem:[#allocation2 + $0x120] sm:$0xff]
      %v4495 = vld [vmem:[#allocation2 + $0x128] sm:$0xff]
      %v4496 = vld [vmem:[#allocation2 + $0x130] sm:$0xff]
      %v4497 = vld [vmem:[#allocation2 + $0x138] sm:$0xff]
      %v4498 = vld [vmem:[#allocation2 + $0x140] sm:$0xff]
      %v4499 = vld [vmem:[#allocation2 + $0x148] sm:$0xff]
      %v4500 = vld [vmem:[#allocation2 + $0x150] sm:$0xff]
      %v4501 = vld [vmem:[#allocation2 + $0x158] sm:$0xff]
      %v4502 = vld [vmem:[#allocation2 + $0x160] sm:$0xff]
      %v4503 = vld [vmem:[#allocation2 + $0x168] sm:$0xff]
      %v4504 = vld [vmem:[#allocation2 + $0x170] sm:$0xff]
      %v4505 = vld [vmem:[#allocation2 + $0x178] sm:$0xff]
      %v4506 = vld [vmem:[#allocation2 + $0x180] sm:$0xff]
      %v4507 = vld [vmem:[#allocation2 + $0x188] sm:$0xff]
      %v4508 = vld [vmem:[#allocation2 + $0x190] sm:$0xff]
      %v4509 = vld [vmem:[#allocation2 + $0x198] sm:$0xff]
      %v4510 = vld [vmem:[#allocation2 + $0x1a0] sm:$0xff]
      %v4511 = vld [vmem:[#allocation2 + $0x1a8] sm:$0xff]
      %v4512 = vld [vmem:[#allocation2 + $0x1b0] sm:$0xff]
      %v4513 = vld [vmem:[#allocation2 + $0x1b8] sm:$0xff]
      %v4514 = vld [vmem:[#allocation2 + $0x1c0] sm:$0xff]
      %v4515 = vld [vmem:[#allocation2 + $0x1c8] sm:$0xff]
      %v4516 = vld [vmem:[#allocation2 + $0x1d0] sm:$0xff]
      %v4517 = vld [vmem:[#allocation2 + $0x1d8] sm:$0xff]
      %v4518 = vld [vmem:[#allocation2 + $0x1e0] sm:$0xff]
      %v4519 = vld [vmem:[#allocation2 + $0x1e8] sm:$0xff]
      %v4520 = vld [vmem:[#allocation2 + $0x1f0] sm:$0xff]
      %v4521 = vld [vmem:[#allocation2 + $0x1f8] sm:$0xff]
      %v4522 = vld [vmem:[#allocation2 + $0x200] sm:$0xff]
      %v4523 = vld [vmem:[#allocation2 + $0x208] sm:$0xff]
      %v4524 = vld [vmem:[#allocation2 + $0x210] sm:$0xff]
      %v4525 = vld [vmem:[#allocation2 + $0x218] sm:$0xff]
      %v4526 = vld [vmem:[#allocation2 + $0x220] sm:$0xff]
      %v4527 = vld [vmem:[#allocation2 + $0x228] sm:$0xff]
      %v4528 = vld [vmem:[#allocation2 + $0x230] sm:$0xff]
      %v4529 = vld [vmem:[#allocation2 + $0x238] sm:$0xff]
      %v4530 = vld [vmem:[%s3] sm:$0x1]
      %v4532 = vlaneseq
      %v4533 = vshrl.u32 %v4532, 7
      %v4534 = vsub.s32 0, %v4533
      %v4535 = vrot.slane %v4530, %v4534
      %v4537 = vadd.f32 %v4458, %v4535
      %v4538 = vadd.f32 %v4459, %v4535
      %v4539 = vadd.f32 %v4460, %v4535
      %v4540 = vadd.f32 %v4461, %v4535
      %v4541 = vadd.f32 %v4462, %v4535
      %v4542 = vadd.f32 %v4463, %v4535
      %v4543 = vadd.f32 %v4464, %v4535
      %v4544 = vadd.f32 %v4465, %v4535
      %v4545 = vadd.f32 %v4466, %v4535
      %v4546 = vadd.f32 %v4467, %v4535
      %v4547 = vadd.f32 %v4468, %v4535
      %v4548 = vadd.f32 %v4469, %v4535
      %v4549 = vadd.f32 %v4470, %v4535
      %v4550 = vadd.f32 %v4471, %v4535
      %v4551 = vadd.f32 %v4472, %v4535
      %v4552 = vadd.f32 %v4473, %v4535
      %v4553 = vadd.f32 %v4474, %v4535
      %v4554 = vadd.f32 %v4475, %v4535
      %v4555 = vadd.f32 %v4476, %v4535
      %v4556 = vadd.f32 %v4477, %v4535
      %v4557 = vadd.f32 %v4478, %v4535
      %v4558 = vadd.f32 %v4479, %v4535
      %v4559 = vadd.f32 %v4480, %v4535
      %v4560 = vadd.f32 %v4481, %v4535
      %v4561 = vadd.f32 %v4482, %v4535
      %v4562 = vadd.f32 %v4483, %v4535
      %v4563 = vadd.f32 %v4484, %v4535
      %v4564 = vadd.f32 %v4485, %v4535
      %v4565 = vadd.f32 %v4486, %v4535
      %v4566 = vadd.f32 %v4487, %v4535
      %v4567 = vadd.f32 %v4488, %v4535
      %v4568 = vadd.f32 %v4489, %v4535
      %v4569 = vadd.f32 %v4490, %v4535
      %v4570 = vadd.f32 %v4491, %v4535
      %v4571 = vadd.f32 %v4492, %v4535
      %v4572 = vadd.f32 %v4493, %v4535
      %v4573 = vadd.f32 %v4494, %v4535
      %v4574 = vadd.f32 %v4495, %v4535
      %v4575 = vadd.f32 %v4496, %v4535
      %v4576 = vadd.f32 %v4497, %v4535
      %v4577 = vadd.f32 %v4498, %v4535
      %v4578 = vadd.f32 %v4499, %v4535
      %v4579 = vadd.f32 %v4500, %v4535
      %v4580 = vadd.f32 %v4501, %v4535
      %v4581 = vadd.f32 %v4502, %v4535
      %v4582 = vadd.f32 %v4503, %v4535
      %v4583 = vadd.f32 %v4504, %v4535
      %v4584 = vadd.f32 %v4505, %v4535
      %v4585 = vadd.f32 %v4506, %v4535
      %v4586 = vadd.f32 %v4507, %v4535
      %v4587 = vadd.f32 %v4508, %v4535
      %v4588 = vadd.f32 %v4509, %v4535
      %v4589 = vadd.f32 %v4510, %v4535
      %v4590 = vadd.f32 %v4511, %v4535
      %v4591 = vadd.f32 %v4512, %v4535
      %v4592 = vadd.f32 %v4513, %v4535
      %v4593 = vadd.f32 %v4514, %v4535
      %v4594 = vadd.f32 %v4515, %v4535
      %v4595 = vadd.f32 %v4516, %v4535
      %v4596 = vadd.f32 %v4517, %v4535
      %v4597 = vadd.f32 %v4518, %v4535
      %v4598 = vadd.f32 %v4519, %v4535
      %v4599 = vadd.f32 %v4520, %v4535
      %v4600 = vadd.f32 %v4521, %v4535
      %v4601 = vadd.f32 %v4522, %v4535
      %v4602 = vadd.f32 %v4523, %v4535
      %v4603 = vadd.f32 %v4524, %v4535
      %v4604 = vadd.f32 %v4525, %v4535
      %v4605 = vadd.f32 %v4526, %v4535
      %v4606 = vadd.f32 %v4527, %v4535
      %v4607 = vadd.f32 %v4528, %v4535
      %v4608 = vadd.f32 %v4529, %v4535
      %v4609 = vmax.f32 %v4537, 0.0
      %v4610 = vmax.f32 %v4538, 0.0
      %v4611 = vmax.f32 %v4539, 0.0
      %v4612 = vmax.f32 %v4540, 0.0
      %v4613 = vmax.f32 %v4541, 0.0
      %v4614 = vmax.f32 %v4542, 0.0
      %v4615 = vmax.f32 %v4543, 0.0
      %v4616 = vmax.f32 %v4544, 0.0
      %v4617 = vmax.f32 %v4545, 0.0
      %v4618 = vmax.f32 %v4546, 0.0
      %v4619 = vmax.f32 %v4547, 0.0
      %v4620 = vmax.f32 %v4548, 0.0
      %v4621 = vmax.f32 %v4549, 0.0
      %v4622 = vmax.f32 %v4550, 0.0
      %v4623 = vmax.f32 %v4551, 0.0
      %v4624 = vmax.f32 %v4552, 0.0
      %v4625 = vmax.f32 %v4553, 0.0
      %v4626 = vmax.f32 %v4554, 0.0
      %v4627 = vmax.f32 %v4555, 0.0
      %v4628 = vmax.f32 %v4556, 0.0
      %v4629 = vmax.f32 %v4557, 0.0
      %v4630 = vmax.f32 %v4558, 0.0
      %v4631 = vmax.f32 %v4559, 0.0
      %v4632 = vmax.f32 %v4560, 0.0
      %v4633 = vmax.f32 %v4561, 0.0
      %v4634 = vmax.f32 %v4562, 0.0
      %v4635 = vmax.f32 %v4563, 0.0
      %v4636 = vmax.f32 %v4564, 0.0
      %v4637 = vmax.f32 %v4565, 0.0
      %v4638 = vmax.f32 %v4566, 0.0
      %v4639 = vmax.f32 %v4567, 0.0
      %v4640 = vmax.f32 %v4568, 0.0
      %v4641 = vmax.f32 %v4569, 0.0
      %v4642 = vmax.f32 %v4570, 0.0
      %v4643 = vmax.f32 %v4571, 0.0
      %v4644 = vmax.f32 %v4572, 0.0
      %v4645 = vmax.f32 %v4573, 0.0
      %v4646 = vmax.f32 %v4574, 0.0
      %v4647 = vmax.f32 %v4575, 0.0
      %v4648 = vmax.f32 %v4576, 0.0
      %v4649 = vmax.f32 %v4577, 0.0
      %v4650 = vmax.f32 %v4578, 0.0
      %v4651 = vmax.f32 %v4579, 0.0
      %v4652 = vmax.f32 %v4580, 0.0
      %v4653 = vmax.f32 %v4581, 0.0
      %v4654 = vmax.f32 %v4582, 0.0
      %v4655 = vmax.f32 %v4583, 0.0
      %v4656 = vmax.f32 %v4584, 0.0
      %v4657 = vmax.f32 %v4585, 0.0
      %v4658 = vmax.f32 %v4586, 0.0
      %v4659 = vmax.f32 %v4587, 0.0
      %v4660 = vmax.f32 %v4588, 0.0
      %v4661 = vmax.f32 %v4589, 0.0
      %v4662 = vmax.f32 %v4590, 0.0
      %v4663 = vmax.f32 %v4591, 0.0
      %v4664 = vmax.f32 %v4592, 0.0
      %v4665 = vmax.f32 %v4593, 0.0
      %v4666 = vmax.f32 %v4594, 0.0
      %v4667 = vmax.f32 %v4595, 0.0
      %v4668 = vmax.f32 %v4596, 0.0
      %v4669 = vmax.f32 %v4597, 0.0
      %v4670 = vmax.f32 %v4598, 0.0
      %v4671 = vmax.f32 %v4599, 0.0
      %v4672 = vmax.f32 %v4600, 0.0
      %v4673 = vmax.f32 %v4601, 0.0
      %v4674 = vmax.f32 %v4602, 0.0
      %v4675 = vmax.f32 %v4603, 0.0
      %v4676 = vmax.f32 %v4604, 0.0
      %v4677 = vmax.f32 %v4605, 0.0
      %v4678 = vmax.f32 %v4606, 0.0
      %v4679 = vmax.f32 %v4607, 0.0
      %v4680 = vmax.f32 %v4608, 0.0
      %v4681 = vld [vmem:[%s5] sm:$0xff]
      %v4682 = vld [vmem:[%s5 + $0x8] sm:$0xff]
      %v4683 = vld [vmem:[%s5 + $0x10] sm:$0xff]
      %v4684 = vld [vmem:[%s5 + $0x18] sm:$0xff]
      %v4685 = vld [vmem:[%s5 + $0x20] sm:$0xff]
      %v4686 = vld [vmem:[%s5 + $0x28] sm:$0xff]
      %v4687 = vld [vmem:[%s5 + $0x30] sm:$0xff]
      %v4688 = vld [vmem:[%s5 + $0x38] sm:$0xff]
      %v4689 = vld [vmem:[%s5 + $0x40] sm:$0xff]
      %v4690 = vld [vmem:[%s5 + $0x48] sm:$0xff]
      %v4691 = vld [vmem:[%s5 + $0x50] sm:$0xff]
      %v4692 = vld [vmem:[%s5 + $0x58] sm:$0xff]
      %v4693 = vld [vmem:[%s5 + $0x60] sm:$0xff]
      %v4694 = vld [vmem:[%s5 + $0x68] sm:$0xff]
      %v4695 = vld [vmem:[%s5 + $0x70] sm:$0xff]
      %v4696 = vld [vmem:[%s5 + $0x78] sm:$0xff]
      %v4697 = vld [vmem:[%s5 + $0x80] sm:$0xff]
      %v4698 = vld [vmem:[%s5 + $0x88] sm:$0xff]
      %v4699 = vld [vmem:[%s5 + $0x90] sm:$0xff]
      %v4700 = vld [vmem:[%s5 + $0x98] sm:$0xff]
      %v4701 = vld [vmem:[%s5 + $0xa0] sm:$0xff]
      %v4702 = vld [vmem:[%s5 + $0xa8] sm:$0xff]
      %v4703 = vld [vmem:[%s5 + $0xb0] sm:$0xff]
      %v4704 = vld [vmem:[%s5 + $0xb8] sm:$0xff]
      %v4705 = vld [vmem:[%s5 + $0xc0] sm:$0xff]
      %v4706 = vld [vmem:[%s5 + $0xc8] sm:$0xff]
      %v4707 = vld [vmem:[%s5 + $0xd0] sm:$0xff]
      %v4708 = vld [vmem:[%s5 + $0xd8] sm:$0xff]
      %v4709 = vld [vmem:[%s5 + $0xe0] sm:$0xff]
      %v4710 = vld [vmem:[%s5 + $0xe8] sm:$0xff]
      %v4711 = vld [vmem:[%s5 + $0xf0] sm:$0xff]
      %v4712 = vld [vmem:[%s5 + $0xf8] sm:$0xff]
      %v4713 = vld [vmem:[%s5 + $0x100] sm:$0xff]
      %v4714 = vld [vmem:[%s5 + $0x108] sm:$0xff]
      %v4715 = vld [vmem:[%s5 + $0x110] sm:$0xff]
      %v4716 = vld [vmem:[%s5 + $0x118] sm:$0xff]
      %v4717 = vld [vmem:[%s5 + $0x120] sm:$0xff]
      %v4718 = vld [vmem:[%s5 + $0x128] sm:$0xff]
      %v4719 = vld [vmem:[%s5 + $0x130] sm:$0xff]
      %v4720 = vld [vmem:[%s5 + $0x138] sm:$0xff]
      %v4721 = vld [vmem:[%s5 + $0x140] sm:$0xff]
      %v4722 = vld [vmem:[%s5 + $0x148] sm:$0xff]
      %v4723 = vld [vmem:[%s5 + $0x150] sm:$0xff]
      %v4724 = vld [vmem:[%s5 + $0x158] sm:$0xff]
      %v4725 = vld [vmem:[%s5 + $0x160] sm:$0xff]
      %v4726 = vld [vmem:[%s5 + $0x168] sm:$0xff]
      %v4727 = vld [vmem:[%s5 + $0x170] sm:$0xff]
      %v4728 = vld [vmem:[%s5 + $0x178] sm:$0xff]
      %v4729 = vld [vmem:[%s5 + $0x180] sm:$0xff]
      %v4730 = vld [vmem:[%s5 + $0x188] sm:$0xff]
      %v4731 = vld [vmem:[%s5 + $0x190] sm:$0xff]
      %v4732 = vld [vmem:[%s5 + $0x198] sm:$0xff]
      %v4733 = vld [vmem:[%s5 + $0x1a0] sm:$0xff]
      %v4734 = vld [vmem:[%s5 + $0x1a8] sm:$0xff]
      %v4735 = vld [vmem:[%s5 + $0x1b0] sm:$0xff]
      %v4736 = vld [vmem:[%s5 + $0x1b8] sm:$0xff]
      %v4737 = vld [vmem:[%s5 + $0x1c0] sm:$0xff]
      %v4738 = vld [vmem:[%s5 + $0x1c8] sm:$0xff]
      %v4739 = vld [vmem:[%s5 + $0x1d0] sm:$0xff]
      %v4740 = vld [vmem:[%s5 + $0x1d8] sm:$0xff]
      %v4741 = vld [vmem:[%s5 + $0x1e0] sm:$0xff]
      %v4742 = vld [vmem:[%s5 + $0x1e8] sm:$0xff]
      %v4743 = vld [vmem:[%s5 + $0x1f0] sm:$0xff]
      %v4744 = vld [vmem:[%s5 + $0x1f8] sm:$0xff]
      %v4745 = vld [vmem:[%s5 + $0x200] sm:$0xff]
      %v4746 = vld [vmem:[%s5 + $0x208] sm:$0xff]
      %v4747 = vld [vmem:[%s5 + $0x210] sm:$0xff]
      %v4748 = vld [vmem:[%s5 + $0x218] sm:$0xff]
      %v4749 = vld [vmem:[%s5 + $0x220] sm:$0xff]
      %v4750 = vld [vmem:[%s5 + $0x228] sm:$0xff]
      %v4751 = vld [vmem:[%s5 + $0x230] sm:$0xff]
      %v4752 = vld [vmem:[%s5 + $0x238] sm:$0xff]
      %4754 = vset.pattern.permute.xlu0 0
      %4755 = vperm.xlu0 %4754, %v4681
      %v4756 = vpop.permute.xlu0 %4755
      %4759 = vset.pattern.permute.xlu0 0
      %4760 = vperm.xlu0 %4759, %v4682
      %v4761 = vpop.permute.xlu0 %4760
      %4764 = vset.pattern.permute.xlu0 0
      %4765 = vperm.xlu0 %4764, %v4683
      %v4766 = vpop.permute.xlu0 %4765
      %4769 = vset.pattern.permute.xlu0 0
      %4770 = vperm.xlu0 %4769, %v4684
      %v4771 = vpop.permute.xlu0 %4770
      %4774 = vset.pattern.permute.xlu0 0
      %4775 = vperm.xlu0 %4774, %v4685
      %v4776 = vpop.permute.xlu0 %4775
      %4779 = vset.pattern.permute.xlu0 0
      %4780 = vperm.xlu0 %4779, %v4686
      %v4781 = vpop.permute.xlu0 %4780
      %4784 = vset.pattern.permute.xlu0 0
      %4785 = vperm.xlu0 %4784, %v4687
      %v4786 = vpop.permute.xlu0 %4785
      %4789 = vset.pattern.permute.xlu0 0
      %4790 = vperm.xlu0 %4789, %v4688
      %v4791 = vpop.permute.xlu0 %4790
      %4794 = vset.pattern.permute.xlu0 0
      %4795 = vperm.xlu0 %4794, %v4689
      %v4796 = vpop.permute.xlu0 %4795
      %4799 = vset.pattern.permute.xlu0 0
      %4800 = vperm.xlu0 %4799, %v4690
      %v4801 = vpop.permute.xlu0 %4800
      %4804 = vset.pattern.permute.xlu0 0
      %4805 = vperm.xlu0 %4804, %v4691
      %v4806 = vpop.permute.xlu0 %4805
      %4809 = vset.pattern.permute.xlu0 0
      %4810 = vperm.xlu0 %4809, %v4692
      %v4811 = vpop.permute.xlu0 %4810
      %4814 = vset.pattern.permute.xlu0 0
      %4815 = vperm.xlu0 %4814, %v4693
      %v4816 = vpop.permute.xlu0 %4815
      %4819 = vset.pattern.permute.xlu0 0
      %4820 = vperm.xlu0 %4819, %v4694
      %v4821 = vpop.permute.xlu0 %4820
      %4824 = vset.pattern.permute.xlu0 0
      %4825 = vperm.xlu0 %4824, %v4695
      %v4826 = vpop.permute.xlu0 %4825
      %4829 = vset.pattern.permute.xlu0 0
      %4830 = vperm.xlu0 %4829, %v4696
      %v4831 = vpop.permute.xlu0 %4830
      %4834 = vset.pattern.permute.xlu0 0
      %4835 = vperm.xlu0 %4834, %v4697
      %v4836 = vpop.permute.xlu0 %4835
      %4839 = vset.pattern.permute.xlu0 0
      %4840 = vperm.xlu0 %4839, %v4698
      %v4841 = vpop.permute.xlu0 %4840
      %4844 = vset.pattern.permute.xlu0 0
      %4845 = vperm.xlu0 %4844, %v4699
      %v4846 = vpop.permute.xlu0 %4845
      %4849 = vset.pattern.permute.xlu0 0
      %4850 = vperm.xlu0 %4849, %v4700
      %v4851 = vpop.permute.xlu0 %4850
      %4854 = vset.pattern.permute.xlu0 0
      %4855 = vperm.xlu0 %4854, %v4701
      %v4856 = vpop.permute.xlu0 %4855
      %4859 = vset.pattern.permute.xlu0 0
      %4860 = vperm.xlu0 %4859, %v4702
      %v4861 = vpop.permute.xlu0 %4860
      %4864 = vset.pattern.permute.xlu0 0
      %4865 = vperm.xlu0 %4864, %v4703
      %v4866 = vpop.permute.xlu0 %4865
      %4869 = vset.pattern.permute.xlu0 0
      %4870 = vperm.xlu0 %4869, %v4704
      %v4871 = vpop.permute.xlu0 %4870
      %4874 = vset.pattern.permute.xlu0 0
      %4875 = vperm.xlu0 %4874, %v4705
      %v4876 = vpop.permute.xlu0 %4875
      %4879 = vset.pattern.permute.xlu0 0
      %4880 = vperm.xlu0 %4879, %v4706
      %v4881 = vpop.permute.xlu0 %4880
      %4884 = vset.pattern.permute.xlu0 0
      %4885 = vperm.xlu0 %4884, %v4707
      %v4886 = vpop.permute.xlu0 %4885
      %4889 = vset.pattern.permute.xlu0 0
      %4890 = vperm.xlu0 %4889, %v4708
      %v4891 = vpop.permute.xlu0 %4890
      %4894 = vset.pattern.permute.xlu0 0
      %4895 = vperm.xlu0 %4894, %v4709
      %v4896 = vpop.permute.xlu0 %4895
      %4899 = vset.pattern.permute.xlu0 0
      %4900 = vperm.xlu0 %4899, %v4710
      %v4901 = vpop.permute.xlu0 %4900
      %4904 = vset.pattern.permute.xlu0 0
      %4905 = vperm.xlu0 %4904, %v4711
      %v4906 = vpop.permute.xlu0 %4905
      %4909 = vset.pattern.permute.xlu0 0
      %4910 = vperm.xlu0 %4909, %v4712
      %v4911 = vpop.permute.xlu0 %4910
      %4914 = vset.pattern.permute.xlu0 0
      %4915 = vperm.xlu0 %4914, %v4713
      %v4916 = vpop.permute.xlu0 %4915
      %4919 = vset.pattern.permute.xlu0 0
      %4920 = vperm.xlu0 %4919, %v4714
      %v4921 = vpop.permute.xlu0 %4920
      %4924 = vset.pattern.permute.xlu0 0
      %4925 = vperm.xlu0 %4924, %v4715
      %v4926 = vpop.permute.xlu0 %4925
      %4929 = vset.pattern.permute.xlu0 0
      %4930 = vperm.xlu0 %4929, %v4716
      %v4931 = vpop.permute.xlu0 %4930
      %4934 = vset.pattern.permute.xlu0 0
      %4935 = vperm.xlu0 %4934, %v4717
      %v4936 = vpop.permute.xlu0 %4935
      %4939 = vset.pattern.permute.xlu0 0
      %4940 = vperm.xlu0 %4939, %v4718
      %v4941 = vpop.permute.xlu0 %4940
      %4944 = vset.pattern.permute.xlu0 0
      %4945 = vperm.xlu0 %4944, %v4719
      %v4946 = vpop.permute.xlu0 %4945
      %4949 = vset.pattern.permute.xlu0 0
      %4950 = vperm.xlu0 %4949, %v4720
      %v4951 = vpop.permute.xlu0 %4950
      %4954 = vset.pattern.permute.xlu0 0
      %4955 = vperm.xlu0 %4954, %v4721
      %v4956 = vpop.permute.xlu0 %4955
      %4959 = vset.pattern.permute.xlu0 0
      %4960 = vperm.xlu0 %4959, %v4722
      %v4961 = vpop.permute.xlu0 %4960
      %4964 = vset.pattern.permute.xlu0 0
      %4965 = vperm.xlu0 %4964, %v4723
      %v4966 = vpop.permute.xlu0 %4965
      %4969 = vset.pattern.permute.xlu0 0
      %4970 = vperm.xlu0 %4969, %v4724
      %v4971 = vpop.permute.xlu0 %4970
      %4974 = vset.pattern.permute.xlu0 0
      %4975 = vperm.xlu0 %4974, %v4725
      %v4976 = vpop.permute.xlu0 %4975
      %4979 = vset.pattern.permute.xlu0 0
      %4980 = vperm.xlu0 %4979, %v4726
      %v4981 = vpop.permute.xlu0 %4980
      %4984 = vset.pattern.permute.xlu0 0
      %4985 = vperm.xlu0 %4984, %v4727
      %v4986 = vpop.permute.xlu0 %4985
      %4989 = vset.pattern.permute.xlu0 0
      %4990 = vperm.xlu0 %4989, %v4728
      %v4991 = vpop.permute.xlu0 %4990
      %4994 = vset.pattern.permute.xlu0 0
      %4995 = vperm.xlu0 %4994, %v4729
      %v4996 = vpop.permute.xlu0 %4995
      %4999 = vset.pattern.permute.xlu0 0
      %5000 = vperm.xlu0 %4999, %v4730
      %v5001 = vpop.permute.xlu0 %5000
      %5004 = vset.pattern.permute.xlu0 0
      %5005 = vperm.xlu0 %5004, %v4731
      %v5006 = vpop.permute.xlu0 %5005
      %5009 = vset.pattern.permute.xlu0 0
      %5010 = vperm.xlu0 %5009, %v4732
      %v5011 = vpop.permute.xlu0 %5010
      %5014 = vset.pattern.permute.xlu0 0
      %5015 = vperm.xlu0 %5014, %v4733
      %v5016 = vpop.permute.xlu0 %5015
      %5019 = vset.pattern.permute.xlu0 0
      %5020 = vperm.xlu0 %5019, %v4734
      %v5021 = vpop.permute.xlu0 %5020
      %5024 = vset.pattern.permute.xlu0 0
      %5025 = vperm.xlu0 %5024, %v4735
      %v5026 = vpop.permute.xlu0 %5025
      %5029 = vset.pattern.permute.xlu0 0
      %5030 = vperm.xlu0 %5029, %v4736
      %v5031 = vpop.permute.xlu0 %5030
      %5034 = vset.pattern.permute.xlu0 0
      %5035 = vperm.xlu0 %5034, %v4737
      %v5036 = vpop.permute.xlu0 %5035
      %5039 = vset.pattern.permute.xlu0 0
      %5040 = vperm.xlu0 %5039, %v4738
      %v5041 = vpop.permute.xlu0 %5040
      %5044 = vset.pattern.permute.xlu0 0
      %5045 = vperm.xlu0 %5044, %v4739
      %v5046 = vpop.permute.xlu0 %5045
      %5049 = vset.pattern.permute.xlu0 0
      %5050 = vperm.xlu0 %5049, %v4740
      %v5051 = vpop.permute.xlu0 %5050
      %5054 = vset.pattern.permute.xlu0 0
      %5055 = vperm.xlu0 %5054, %v4741
      %v5056 = vpop.permute.xlu0 %5055
      %5059 = vset.pattern.permute.xlu0 0
      %5060 = vperm.xlu0 %5059, %v4742
      %v5061 = vpop.permute.xlu0 %5060
      %5064 = vset.pattern.permute.xlu0 0
      %5065 = vperm.xlu0 %5064, %v4743
      %v5066 = vpop.permute.xlu0 %5065
      %5069 = vset.pattern.permute.xlu0 0
      %5070 = vperm.xlu0 %5069, %v4744
      %v5071 = vpop.permute.xlu0 %5070
      %5074 = vset.pattern.permute.xlu0 0
      %5075 = vperm.xlu0 %5074, %v4745
      %v5076 = vpop.permute.xlu0 %5075
      %5079 = vset.pattern.permute.xlu0 0
      %5080 = vperm.xlu0 %5079, %v4746
      %v5081 = vpop.permute.xlu0 %5080
      %5084 = vset.pattern.permute.xlu0 0
      %5085 = vperm.xlu0 %5084, %v4747
      %v5086 = vpop.permute.xlu0 %5085
      %5089 = vset.pattern.permute.xlu0 0
      %5090 = vperm.xlu0 %5089, %v4748
      %v5091 = vpop.permute.xlu0 %5090
      %5094 = vset.pattern.permute.xlu0 0
      %5095 = vperm.xlu0 %5094, %v4749
      %v5096 = vpop.permute.xlu0 %5095
      %5099 = vset.pattern.permute.xlu0 0
      %5100 = vperm.xlu0 %5099, %v4750
      %v5101 = vpop.permute.xlu0 %5100
      %5104 = vset.pattern.permute.xlu0 0
      %5105 = vperm.xlu0 %5104, %v4751
      %v5106 = vpop.permute.xlu0 %5105
      %5109 = vset.pattern.permute.xlu0 0
      %5110 = vperm.xlu0 %5109, %v4752
      %v5111 = vpop.permute.xlu0 %5110
      %v5113 = vmul.f32 %v4609, %v4756
      %v5114 = vmul.f32 %v4610, %v4761
      %v5115 = vmul.f32 %v4611, %v4766
      %v5116 = vmul.f32 %v4612, %v4771
      %v5117 = vmul.f32 %v4613, %v4776
      %v5118 = vmul.f32 %v4614, %v4781
      %v5119 = vmul.f32 %v4615, %v4786
      %v5120 = vmul.f32 %v4616, %v4791
      %v5121 = vmul.f32 %v4617, %v4796
      %v5122 = vmul.f32 %v4618, %v4801
      %v5123 = vmul.f32 %v4619, %v4806
      %v5124 = vmul.f32 %v4620, %v4811
      %v5125 = vmul.f32 %v4621, %v4816
      %v5126 = vmul.f32 %v4622, %v4821
      %v5127 = vmul.f32 %v4623, %v4826
      %v5128 = vmul.f32 %v4624, %v4831
      %v5129 = vmul.f32 %v4625, %v4836
      %v5130 = vmul.f32 %v4626, %v4841
      %v5131 = vmul.f32 %v4627, %v4846
      %v5132 = vmul.f32 %v4628, %v4851
      %v5133 = vmul.f32 %v4629, %v4856
      %v5134 = vmul.f32 %v4630, %v4861
      %v5135 = vmul.f32 %v4631, %v4866
      %v5136 = vmul.f32 %v4632, %v4871
      %v5137 = vmul.f32 %v4633, %v4876
      %v5138 = vmul.f32 %v4634, %v4881
      %v5139 = vmul.f32 %v4635, %v4886
      %v5140 = vmul.f32 %v4636, %v4891
      %v5141 = vmul.f32 %v4637, %v4896
      %v5142 = vmul.f32 %v4638, %v4901
      %v5143 = vmul.f32 %v4639, %v4906
      %v5144 = vmul.f32 %v4640, %v4911
      %v5145 = vmul.f32 %v4641, %v4916
      %v5146 = vmul.f32 %v4642, %v4921
      %v5147 = vmul.f32 %v4643, %v4926
      %v5148 = vmul.f32 %v4644, %v4931
      %v5149 = vmul.f32 %v4645, %v4936
      %v5150 = vmul.f32 %v4646, %v4941
      %v5151 = vmul.f32 %v4647, %v4946
      %v5152 = vmul.f32 %v4648, %v4951
      %v5153 = vmul.f32 %v4649, %v4956
      %v5154 = vmul.f32 %v4650, %v4961
      %v5155 = vmul.f32 %v4651, %v4966
      %v5156 = vmul.f32 %v4652, %v4971
      %v5157 = vmul.f32 %v4653, %v4976
      %v5158 = vmul.f32 %v4654, %v4981
      %v5159 = vmul.f32 %v4655, %v4986
      %v5160 = vmul.f32 %v4656, %v4991
      %v5161 = vmul.f32 %v4657, %v4996
      %v5162 = vmul.f32 %v4658, %v5001
      %v5163 = vmul.f32 %v4659, %v5006
      %v5164 = vmul.f32 %v4660, %v5011
      %v5165 = vmul.f32 %v4661, %v5016
      %v5166 = vmul.f32 %v4662, %v5021
      %v5167 = vmul.f32 %v4663, %v5026
      %v5168 = vmul.f32 %v4664, %v5031
      %v5169 = vmul.f32 %v4665, %v5036
      %v5170 = vmul.f32 %v4666, %v5041
      %v5171 = vmul.f32 %v4667, %v5046
      %v5172 = vmul.f32 %v4668, %v5051
      %v5173 = vmul.f32 %v4669, %v5056
      %v5174 = vmul.f32 %v4670, %v5061
      %v5175 = vmul.f32 %v4671, %v5066
      %v5176 = vmul.f32 %v4672, %v5071
      %v5177 = vmul.f32 %v4673, %v5076
      %v5178 = vmul.f32 %v4674, %v5081
      %v5179 = vmul.f32 %v4675, %v5086
      %v5180 = vmul.f32 %v4676, %v5091
      %v5181 = vmul.f32 %v4677, %v5096
      %v5182 = vmul.f32 %v4678, %v5101
      %v5183 = vmul.f32 %v4679, %v5106
      %v5184 = vmul.f32 %v4680, %v5111
      %v5185 = vpack.c.bf16 %v5114, %v5113
      %v5186 = vpack.c.bf16 %v5116, %v5115
      %v5187 = vpack.c.bf16 %v5118, %v5117
      %v5188 = vpack.c.bf16 %v5120, %v5119
      %v5189 = vpack.c.bf16 %v5122, %v5121
      %v5190 = vpack.c.bf16 %v5124, %v5123
      %v5191 = vpack.c.bf16 %v5126, %v5125
      %v5192 = vpack.c.bf16 %v5128, %v5127
      %v5193 = vpack.c.bf16 %v5130, %v5129
      %v5194 = vpack.c.bf16 %v5132, %v5131
      %v5195 = vpack.c.bf16 %v5134, %v5133
      %v5196 = vpack.c.bf16 %v5136, %v5135
      %v5197 = vpack.c.bf16 %v5138, %v5137
      %v5198 = vpack.c.bf16 %v5140, %v5139
      %v5199 = vpack.c.bf16 %v5142, %v5141
      %v5200 = vpack.c.bf16 %v5144, %v5143
      %v5201 = vpack.c.bf16 %v5146, %v5145
      %v5202 = vpack.c.bf16 %v5148, %v5147
      %v5203 = vpack.c.bf16 %v5150, %v5149
      %v5204 = vpack.c.bf16 %v5152, %v5151
      %v5205 = vpack.c.bf16 %v5154, %v5153
      %v5206 = vpack.c.bf16 %v5156, %v5155
      %v5207 = vpack.c.bf16 %v5158, %v5157
      %v5208 = vpack.c.bf16 %v5160, %v5159
      %v5209 = vpack.c.bf16 %v5162, %v5161
      %v5210 = vpack.c.bf16 %v5164, %v5163
      %v5211 = vpack.c.bf16 %v5166, %v5165
      %v5212 = vpack.c.bf16 %v5168, %v5167
      %v5213 = vpack.c.bf16 %v5170, %v5169
      %v5214 = vpack.c.bf16 %v5172, %v5171
      %v5215 = vpack.c.bf16 %v5174, %v5173
      %v5216 = vpack.c.bf16 %v5176, %v5175
      %v5217 = vpack.c.bf16 %v5178, %v5177
      %v5218 = vpack.c.bf16 %v5180, %v5179
      %v5219 = vpack.c.bf16 %v5182, %v5181
      %v5220 = vpack.c.bf16 %v5184, %v5183
      %v5257 = vunpack.c.l.b16 %v5185
      %v5258 = vunpack.c.h.b16 %v5185
      %v5259 = vunpack.c.l.b16 %v5186
      %v5260 = vunpack.c.h.b16 %v5186
      %v5261 = vunpack.c.l.b16 %v5187
      %v5262 = vunpack.c.h.b16 %v5187
      %v5263 = vunpack.c.l.b16 %v5188
      %v5264 = vunpack.c.h.b16 %v5188
      %v5265 = vunpack.c.l.b16 %v5189
      %v5266 = vunpack.c.h.b16 %v5189
      %v5267 = vunpack.c.l.b16 %v5190
      %v5268 = vunpack.c.h.b16 %v5190
      %v5269 = vunpack.c.l.b16 %v5191
      %v5270 = vunpack.c.h.b16 %v5191
      %v5271 = vunpack.c.l.b16 %v5192
      %v5272 = vunpack.c.h.b16 %v5192
      %v5273 = vunpack.c.l.b16 %v5193
      %v5274 = vunpack.c.h.b16 %v5193
      %v5275 = vunpack.c.l.b16 %v5194
      %v5276 = vunpack.c.h.b16 %v5194
      %v5277 = vunpack.c.l.b16 %v5195
      %v5278 = vunpack.c.h.b16 %v5195
      %v5279 = vunpack.c.l.b16 %v5196
      %v5280 = vunpack.c.h.b16 %v5196
      %v5281 = vunpack.c.l.b16 %v5197
      %v5282 = vunpack.c.h.b16 %v5197
      %v5283 = vunpack.c.l.b16 %v5198
      %v5284 = vunpack.c.h.b16 %v5198
      %v5285 = vunpack.c.l.b16 %v5199
      %v5286 = vunpack.c.h.b16 %v5199
      %v5287 = vunpack.c.l.b16 %v5200
      %v5288 = vunpack.c.h.b16 %v5200
      %v5289 = vunpack.c.l.b16 %v5201
      %v5290 = vunpack.c.h.b16 %v5201
      %v5291 = vunpack.c.l.b16 %v5202
      %v5292 = vunpack.c.h.b16 %v5202
      %v5293 = vunpack.c.l.b16 %v5203
      %v5294 = vunpack.c.h.b16 %v5203
      %v5295 = vunpack.c.l.b16 %v5204
      %v5296 = vunpack.c.h.b16 %v5204
      %v5297 = vunpack.c.l.b16 %v5205
      %v5298 = vunpack.c.h.b16 %v5205
      %v5299 = vunpack.c.l.b16 %v5206
      %v5300 = vunpack.c.h.b16 %v5206
      %v5301 = vunpack.c.l.b16 %v5207
      %v5302 = vunpack.c.h.b16 %v5207
      %v5303 = vunpack.c.l.b16 %v5208
      %v5304 = vunpack.c.h.b16 %v5208
      %v5305 = vunpack.c.l.b16 %v5209
      %v5306 = vunpack.c.h.b16 %v5209
      %v5307 = vunpack.c.l.b16 %v5210
      %v5308 = vunpack.c.h.b16 %v5210
      %v5309 = vunpack.c.l.b16 %v5211
      %v5310 = vunpack.c.h.b16 %v5211
      %v5311 = vunpack.c.l.b16 %v5212
      %v5312 = vunpack.c.h.b16 %v5212
      %v5313 = vunpack.c.l.b16 %v5213
      %v5314 = vunpack.c.h.b16 %v5213
      %v5315 = vunpack.c.l.b16 %v5214
      %v5316 = vunpack.c.h.b16 %v5214
      %v5317 = vunpack.c.l.b16 %v5215
      %v5318 = vunpack.c.h.b16 %v5215
      %v5319 = vunpack.c.l.b16 %v5216
      %v5320 = vunpack.c.h.b16 %v5216
      %v5321 = vunpack.c.l.b16 %v5217
      %v5322 = vunpack.c.h.b16 %v5217
      %v5323 = vunpack.c.l.b16 %v5218
      %v5324 = vunpack.c.h.b16 %v5218
      %v5325 = vunpack.c.l.b16 %v5219
      %v5326 = vunpack.c.h.b16 %v5219
      %v5327 = vunpack.c.l.b16 %v5220
      %v5328 = vunpack.c.h.b16 %v5220
      %v5329 = vpack.c.b16 %v5257, %v5257
      %v5330 = vpack.c.b16 %v5258, %v5258
      %v5331 = vpack.c.b16 %v5259, %v5259
      %v5332 = vpack.c.b16 %v5260, %v5260
      %v5333 = vpack.c.b16 %v5261, %v5261
      %v5334 = vpack.c.b16 %v5262, %v5262
      %v5335 = vpack.c.b16 %v5263, %v5263
      %v5336 = vpack.c.b16 %v5264, %v5264
      %v5337 = vpack.c.b16 %v5265, %v5265
      %v5338 = vpack.c.b16 %v5266, %v5266
      %v5339 = vpack.c.b16 %v5267, %v5267
      %v5340 = vpack.c.b16 %v5268, %v5268
      %v5341 = vpack.c.b16 %v5269, %v5269
      %v5342 = vpack.c.b16 %v5270, %v5270
      %v5343 = vpack.c.b16 %v5271, %v5271
      %v5344 = vpack.c.b16 %v5272, %v5272
      %v5345 = vpack.c.b16 %v5273, %v5273
      %v5346 = vpack.c.b16 %v5274, %v5274
      %v5347 = vpack.c.b16 %v5275, %v5275
      %v5348 = vpack.c.b16 %v5276, %v5276
      %v5349 = vpack.c.b16 %v5277, %v5277
      %v5350 = vpack.c.b16 %v5278, %v5278
      %v5351 = vpack.c.b16 %v5279, %v5279
      %v5352 = vpack.c.b16 %v5280, %v5280
      %v5353 = vpack.c.b16 %v5281, %v5281
      %v5354 = vpack.c.b16 %v5282, %v5282
      %v5355 = vpack.c.b16 %v5283, %v5283
      %v5356 = vpack.c.b16 %v5284, %v5284
      %v5357 = vpack.c.b16 %v5285, %v5285
      %v5358 = vpack.c.b16 %v5286, %v5286
      %v5359 = vpack.c.b16 %v5287, %v5287
      %v5360 = vpack.c.b16 %v5288, %v5288
      %v5361 = vpack.c.b16 %v5289, %v5289
      %v5362 = vpack.c.b16 %v5290, %v5290
      %v5363 = vpack.c.b16 %v5291, %v5291
      %v5364 = vpack.c.b16 %v5292, %v5292
      %v5365 = vpack.c.b16 %v5293, %v5293
      %v5366 = vpack.c.b16 %v5294, %v5294
      %v5367 = vpack.c.b16 %v5295, %v5295
      %v5368 = vpack.c.b16 %v5296, %v5296
      %v5369 = vpack.c.b16 %v5297, %v5297
      %v5370 = vpack.c.b16 %v5298, %v5298
      %v5371 = vpack.c.b16 %v5299, %v5299
      %v5372 = vpack.c.b16 %v5300, %v5300
      %v5373 = vpack.c.b16 %v5301, %v5301
      %v5374 = vpack.c.b16 %v5302, %v5302
      %v5375 = vpack.c.b16 %v5303, %v5303
      %v5376 = vpack.c.b16 %v5304, %v5304
      %v5377 = vpack.c.b16 %v5305, %v5305
      %v5378 = vpack.c.b16 %v5306, %v5306
      %v5379 = vpack.c.b16 %v5307, %v5307
      %v5380 = vpack.c.b16 %v5308, %v5308
      %v5381 = vpack.c.b16 %v5309, %v5309
      %v5382 = vpack.c.b16 %v5310, %v5310
      %v5383 = vpack.c.b16 %v5311, %v5311
      %v5384 = vpack.c.b16 %v5312, %v5312
      %v5385 = vpack.c.b16 %v5313, %v5313
      %v5386 = vpack.c.b16 %v5314, %v5314
      %v5387 = vpack.c.b16 %v5315, %v5315
      %v5388 = vpack.c.b16 %v5316, %v5316
      %v5389 = vpack.c.b16 %v5317, %v5317
      %v5390 = vpack.c.b16 %v5318, %v5318
      %v5391 = vpack.c.b16 %v5319, %v5319
      %v5392 = vpack.c.b16 %v5320, %v5320
      %v5393 = vpack.c.b16 %v5321, %v5321
      %v5394 = vpack.c.b16 %v5322, %v5322
      %v5395 = vpack.c.b16 %v5323, %v5323
      %v5396 = vpack.c.b16 %v5324, %v5324
      %v5397 = vpack.c.b16 %v5325, %v5325
      %v5398 = vpack.c.b16 %v5326, %v5326
      %v5399 = vpack.c.b16 %v5327, %v5327
      %v5400 = vpack.c.b16 %v5328, %v5328
      %5473 = vst [vmem:[#allocation3] sm:$0xf] %v5329
      %5474 = vst [vmem:[#allocation3 + $0x4] sm:$0xf] %v5330
      %5475 = vst [vmem:[#allocation3 + $0x8] sm:$0xf] %v5331
      %5476 = vst [vmem:[#allocation3 + $0xc] sm:$0xf] %v5332
      %5477 = vst [vmem:[#allocation3 + $0x10] sm:$0xf] %v5333
      %5478 = vst [vmem:[#allocation3 + $0x14] sm:$0xf] %v5334
      %5479 = vst [vmem:[#allocation3 + $0x18] sm:$0xf] %v5335
      %5480 = vst [vmem:[#allocation3 + $0x1c] sm:$0xf] %v5336
      %5481 = vst [vmem:[#allocation3 + $0x20] sm:$0xf] %v5337
      %5482 = vst [vmem:[#allocation3 + $0x24] sm:$0xf] %v5338
      %5483 = vst [vmem:[#allocation3 + $0x28] sm:$0xf] %v5339
      %5484 = vst [vmem:[#allocation3 + $0x2c] sm:$0xf] %v5340
      %5485 = vst [vmem:[#allocation3 + $0x30] sm:$0xf] %v5341
      %5486 = vst [vmem:[#allocation3 + $0x34] sm:$0xf] %v5342
      %5487 = vst [vmem:[#allocation3 + $0x38] sm:$0xf] %v5343
      %5488 = vst [vmem:[#allocation3 + $0x3c] sm:$0xf] %v5344
      %5489 = vst [vmem:[#allocation3 + $0x40] sm:$0xf] %v5345
      %5490 = vst [vmem:[#allocation3 + $0x44] sm:$0xf] %v5346
      %5491 = vst [vmem:[#allocation3 + $0x48] sm:$0xf] %v5347
      %5492 = vst [vmem:[#allocation3 + $0x4c] sm:$0xf] %v5348
      %5493 = vst [vmem:[#allocation3 + $0x50] sm:$0xf] %v5349
      %5494 = vst [vmem:[#allocation3 + $0x54] sm:$0xf] %v5350
      %5495 = vst [vmem:[#allocation3 + $0x58] sm:$0xf] %v5351
      %5496 = vst [vmem:[#allocation3 + $0x5c] sm:$0xf] %v5352
      %5497 = vst [vmem:[#allocation3 + $0x60] sm:$0xf] %v5353
      %5498 = vst [vmem:[#allocation3 + $0x64] sm:$0xf] %v5354
      %5499 = vst [vmem:[#allocation3 + $0x68] sm:$0xf] %v5355
      %5500 = vst [vmem:[#allocation3 + $0x6c] sm:$0xf] %v5356
      %5501 = vst [vmem:[#allocation3 + $0x70] sm:$0xf] %v5357
      %5502 = vst [vmem:[#allocation3 + $0x74] sm:$0xf] %v5358
      %5503 = vst [vmem:[#allocation3 + $0x78] sm:$0xf] %v5359
      %5504 = vst [vmem:[#allocation3 + $0x7c] sm:$0xf] %v5360
      %5505 = vst [vmem:[#allocation3 + $0x80] sm:$0xf] %v5361
      %5506 = vst [vmem:[#allocation3 + $0x84] sm:$0xf] %v5362
      %5507 = vst [vmem:[#allocation3 + $0x88] sm:$0xf] %v5363
      %5508 = vst [vmem:[#allocation3 + $0x8c] sm:$0xf] %v5364
      %5509 = vst [vmem:[#allocation3 + $0x90] sm:$0xf] %v5365
      %5510 = vst [vmem:[#allocation3 + $0x94] sm:$0xf] %v5366
      %5511 = vst [vmem:[#allocation3 + $0x98] sm:$0xf] %v5367
      %5512 = vst [vmem:[#allocation3 + $0x9c] sm:$0xf] %v5368
      %5513 = vst [vmem:[#allocation3 + $0xa0] sm:$0xf] %v5369
      %5514 = vst [vmem:[#allocation3 + $0xa4] sm:$0xf] %v5370
      %5515 = vst [vmem:[#allocation3 + $0xa8] sm:$0xf] %v5371
      %5516 = vst [vmem:[#allocation3 + $0xac] sm:$0xf] %v5372
      %5517 = vst [vmem:[#allocation3 + $0xb0] sm:$0xf] %v5373
      %5518 = vst [vmem:[#allocation3 + $0xb4] sm:$0xf] %v5374
      %5519 = vst [vmem:[#allocation3 + $0xb8] sm:$0xf] %v5375
      %5520 = vst [vmem:[#allocation3 + $0xbc] sm:$0xf] %v5376
      %5521 = vst [vmem:[#allocation3 + $0xc0] sm:$0xf] %v5377
      %5522 = vst [vmem:[#allocation3 + $0xc4] sm:$0xf] %v5378
      %5523 = vst [vmem:[#allocation3 + $0xc8] sm:$0xf] %v5379
      %5524 = vst [vmem:[#allocation3 + $0xcc] sm:$0xf] %v5380
      %5525 = vst [vmem:[#allocation3 + $0xd0] sm:$0xf] %v5381
      %5526 = vst [vmem:[#allocation3 + $0xd4] sm:$0xf] %v5382
      %5527 = vst [vmem:[#allocation3 + $0xd8] sm:$0xf] %v5383
      %5528 = vst [vmem:[#allocation3 + $0xdc] sm:$0xf] %v5384
      %5529 = vst [vmem:[#allocation3 + $0xe0] sm:$0xf] %v5385
      %5530 = vst [vmem:[#allocation3 + $0xe4] sm:$0xf] %v5386
      %5531 = vst [vmem:[#allocation3 + $0xe8] sm:$0xf] %v5387
      %5532 = vst [vmem:[#allocation3 + $0xec] sm:$0xf] %v5388
      %5533 = vst [vmem:[#allocation3 + $0xf0] sm:$0xf] %v5389
      %5534 = vst [vmem:[#allocation3 + $0xf4] sm:$0xf] %v5390
      %5535 = vst [vmem:[#allocation3 + $0xf8] sm:$0xf] %v5391
      %5536 = vst [vmem:[#allocation3 + $0xfc] sm:$0xf] %v5392
      %5537 = vst [vmem:[#allocation3 + $0x100] sm:$0xf] %v5393
      %5538 = vst [vmem:[#allocation3 + $0x104] sm:$0xf] %v5394
      %5539 = vst [vmem:[#allocation3 + $0x108] sm:$0xf] %v5395
      %5540 = vst [vmem:[#allocation3 + $0x10c] sm:$0xf] %v5396
      %5541 = vst [vmem:[#allocation3 + $0x110] sm:$0xf] %v5397
      %5542 = vst [vmem:[#allocation3 + $0x114] sm:$0xf] %v5398
      %5543 = vst [vmem:[#allocation3 + $0x118] sm:$0xf] %v5399
      %5544 = vst [vmem:[#allocation3 + $0x11c] sm:$0xf] %v5400
      %p5545 = scmp.eq.s32.totalorder %s22, 0
      // Predicated region
      $region45: #{basic_block_forward.1} parent=43 // pred_check
        %p5546 = pneg %p5545
      $region46: #{basic_block_forward.1} parent=43 // pred_check_branch
        %5548 = sbr.rel (%p5546) target = $region48
      $region47: #{basic_block_forward.1} parent=43 // pred_region
        %5549 = vst [vmem:[#allocation3] sm:$0xf] 0
        %5550 = vst [vmem:[#allocation3 + $0x4] sm:$0xf] 0
        %5551 = vst [vmem:[#allocation3 + $0x8] sm:$0xf] 0
        %5552 = vst [vmem:[#allocation3 + $0xc] sm:$0xf] 0
        %5553 = vst [vmem:[#allocation3 + $0x110] sm:$0xf] 0
        %5554 = vst [vmem:[#allocation3 + $0x114] sm:$0xf] 0
        %5555 = vst [vmem:[#allocation3 + $0x118] sm:$0xf] 0
        %5556 = vst [vmem:[#allocation3 + $0x11c] sm:$0xf] 0
      $region48: #{basic_block_forward.1} parent=43 // pred_fallthru
        _
      %v5557 = vld [vmem:[#allocation3] sm:$0xf]
      %v5558 = vld [vmem:[#allocation3 + $0x4] sm:$0xf]
      %v5559 = vld [vmem:[#allocation3 + $0x8] sm:$0xf]
      %v5560 = vld [vmem:[#allocation3 + $0xc] sm:$0xf]
      %v5561 = vld [vmem:[#allocation3 + $0x10] sm:$0xf]
      %v5562 = vld [vmem:[#allocation3 + $0x14] sm:$0xf]
      %v5563 = vld [vmem:[#allocation3 + $0x18] sm:$0xf]
      %v5564 = vld [vmem:[#allocation3 + $0x1c] sm:$0xf]
      %v5565 = vld [vmem:[#allocation3 + $0x20] sm:$0xf]
      %v5566 = vld [vmem:[#allocation3 + $0x24] sm:$0xf]
      %v5567 = vld [vmem:[#allocation3 + $0x28] sm:$0xf]
      %v5568 = vld [vmem:[#allocation3 + $0x2c] sm:$0xf]
      %v5569 = vld [vmem:[#allocation3 + $0x30] sm:$0xf]
      %v5570 = vld [vmem:[#allocation3 + $0x34] sm:$0xf]
      %v5571 = vld [vmem:[#allocation3 + $0x38] sm:$0xf]
      %v5572 = vld [vmem:[#allocation3 + $0x3c] sm:$0xf]
      %v5573 = vld [vmem:[#allocation3 + $0x40] sm:$0xf]
      %v5574 = vld [vmem:[#allocation3 + $0x44] sm:$0xf]
      %v5575 = vld [vmem:[#allocation3 + $0x48] sm:$0xf]
      %v5576 = vld [vmem:[#allocation3 + $0x4c] sm:$0xf]
      %v5577 = vld [vmem:[#allocation3 + $0x50] sm:$0xf]
      %v5578 = vld [vmem:[#allocation3 + $0x54] sm:$0xf]
      %v5579 = vld [vmem:[#allocation3 + $0x58] sm:$0xf]
      %v5580 = vld [vmem:[#allocation3 + $0x5c] sm:$0xf]
      %v5581 = vld [vmem:[#allocation3 + $0x60] sm:$0xf]
      %v5582 = vld [vmem:[#allocation3 + $0x64] sm:$0xf]
      %v5583 = vld [vmem:[#allocation3 + $0x68] sm:$0xf]
      %v5584 = vld [vmem:[#allocation3 + $0x6c] sm:$0xf]
      %v5585 = vld [vmem:[#allocation3 + $0x70] sm:$0xf]
      %v5586 = vld [vmem:[#allocation3 + $0x74] sm:$0xf]
      %v5587 = vld [vmem:[#allocation3 + $0x78] sm:$0xf]
      %v5588 = vld [vmem:[#allocation3 + $0x7c] sm:$0xf]
      %v5589 = vld [vmem:[#allocation3 + $0x80] sm:$0xf]
      %v5590 = vld [vmem:[#allocation3 + $0x84] sm:$0xf]
      %v5591 = vld [vmem:[#allocation3 + $0x88] sm:$0xf]
      %v5592 = vld [vmem:[#allocation3 + $0x8c] sm:$0xf]
      %v5593 = vld [vmem:[#allocation3 + $0x90] sm:$0xf]
      %v5594 = vld [vmem:[#allocation3 + $0x94] sm:$0xf]
      %v5595 = vld [vmem:[#allocation3 + $0x98] sm:$0xf]
      %v5596 = vld [vmem:[#allocation3 + $0x9c] sm:$0xf]
      %v5597 = vld [vmem:[#allocation3 + $0xa0] sm:$0xf]
      %v5598 = vld [vmem:[#allocation3 + $0xa4] sm:$0xf]
      %v5599 = vld [vmem:[#allocation3 + $0xa8] sm:$0xf]
      %v5600 = vld [vmem:[#allocation3 + $0xac] sm:$0xf]
      %v5601 = vld [vmem:[#allocation3 + $0xb0] sm:$0xf]
      %v5602 = vld [vmem:[#allocation3 + $0xb4] sm:$0xf]
      %v5603 = vld [vmem:[#allocation3 + $0xb8] sm:$0xf]
      %v5604 = vld [vmem:[#allocation3 + $0xbc] sm:$0xf]
      %v5605 = vld [vmem:[#allocation3 + $0xc0] sm:$0xf]
      %v5606 = vld [vmem:[#allocation3 + $0xc4] sm:$0xf]
      %v5607 = vld [vmem:[#allocation3 + $0xc8] sm:$0xf]
      %v5608 = vld [vmem:[#allocation3 + $0xcc] sm:$0xf]
      %v5609 = vld [vmem:[#allocation3 + $0xd0] sm:$0xf]
      %v5610 = vld [vmem:[#allocation3 + $0xd4] sm:$0xf]
      %v5611 = vld [vmem:[#allocation3 + $0xd8] sm:$0xf]
      %v5612 = vld [vmem:[#allocation3 + $0xdc] sm:$0xf]
      %v5613 = vld [vmem:[#allocation3 + $0xe0] sm:$0xf]
      %v5614 = vld [vmem:[#allocation3 + $0xe4] sm:$0xf]
      %v5615 = vld [vmem:[#allocation3 + $0xe8] sm:$0xf]
      %v5616 = vld [vmem:[#allocation3 + $0xec] sm:$0xf]
      %v5617 = vld [vmem:[#allocation3 + $0xf0] sm:$0xf]
      %v5618 = vld [vmem:[#allocation3 + $0xf4] sm:$0xf]
      %v5619 = vld [vmem:[#allocation3 + $0xf8] sm:$0xf]
      %v5620 = vld [vmem:[#allocation3 + $0xfc] sm:$0xf]
      %v5621 = vld [vmem:[#allocation3 + $0x100] sm:$0xf]
      %v5622 = vld [vmem:[#allocation3 + $0x104] sm:$0xf]
      %v5623 = vld [vmem:[#allocation3 + $0x108] sm:$0xf]
      %v5624 = vld [vmem:[#allocation3 + $0x10c] sm:$0xf]
      %v5625 = vld [vmem:[#allocation3 + $0x20] sm:$0xf]
      %v5626 = vld [vmem:[#allocation3 + $0x24] sm:$0xf]
      %v5627 = vld [vmem:[#allocation3 + $0x28] sm:$0xf]
      %v5628 = vld [vmem:[#allocation3 + $0x2c] sm:$0xf]
      %v5629 = vld [vmem:[#allocation3 + $0x30] sm:$0xf]
      %v5630 = vld [vmem:[#allocation3 + $0x34] sm:$0xf]
      %v5631 = vld [vmem:[#allocation3 + $0x38] sm:$0xf]
      %v5632 = vld [vmem:[#allocation3 + $0x3c] sm:$0xf]
      %v5633 = vld [vmem:[#allocation3 + $0x40] sm:$0xf]
      %v5634 = vld [vmem:[#allocation3 + $0x44] sm:$0xf]
      %v5635 = vld [vmem:[#allocation3 + $0x48] sm:$0xf]
      %v5636 = vld [vmem:[#allocation3 + $0x4c] sm:$0xf]
      %v5637 = vld [vmem:[#allocation3 + $0x50] sm:$0xf]
      %v5638 = vld [vmem:[#allocation3 + $0x54] sm:$0xf]
      %v5639 = vld [vmem:[#allocation3 + $0x58] sm:$0xf]
      %v5640 = vld [vmem:[#allocation3 + $0x5c] sm:$0xf]
      %v5641 = vld [vmem:[#allocation3 + $0x60] sm:$0xf]
      %v5642 = vld [vmem:[#allocation3 + $0x64] sm:$0xf]
      %v5643 = vld [vmem:[#allocation3 + $0x68] sm:$0xf]
      %v5644 = vld [vmem:[#allocation3 + $0x6c] sm:$0xf]
      %v5645 = vld [vmem:[#allocation3 + $0x70] sm:$0xf]
      %v5646 = vld [vmem:[#allocation3 + $0x74] sm:$0xf]
      %v5647 = vld [vmem:[#allocation3 + $0x78] sm:$0xf]
      %v5648 = vld [vmem:[#allocation3 + $0x7c] sm:$0xf]
      %v5649 = vld [vmem:[#allocation3 + $0x80] sm:$0xf]
      %v5650 = vld [vmem:[#allocation3 + $0x84] sm:$0xf]
      %v5651 = vld [vmem:[#allocation3 + $0x88] sm:$0xf]
      %v5652 = vld [vmem:[#allocation3 + $0x8c] sm:$0xf]
      %v5653 = vld [vmem:[#allocation3 + $0x90] sm:$0xf]
      %v5654 = vld [vmem:[#allocation3 + $0x94] sm:$0xf]
      %v5655 = vld [vmem:[#allocation3 + $0x98] sm:$0xf]
      %v5656 = vld [vmem:[#allocation3 + $0x9c] sm:$0xf]
      %v5657 = vld [vmem:[#allocation3 + $0xa0] sm:$0xf]
      %v5658 = vld [vmem:[#allocation3 + $0xa4] sm:$0xf]
      %v5659 = vld [vmem:[#allocation3 + $0xa8] sm:$0xf]
      %v5660 = vld [vmem:[#allocation3 + $0xac] sm:$0xf]
      %v5661 = vld [vmem:[#allocation3 + $0xb0] sm:$0xf]
      %v5662 = vld [vmem:[#allocation3 + $0xb4] sm:$0xf]
      %v5663 = vld [vmem:[#allocation3 + $0xb8] sm:$0xf]
      %v5664 = vld [vmem:[#allocation3 + $0xbc] sm:$0xf]
      %v5665 = vld [vmem:[#allocation3 + $0xc0] sm:$0xf]
      %v5666 = vld [vmem:[#allocation3 + $0xc4] sm:$0xf]
      %v5667 = vld [vmem:[#allocation3 + $0xc8] sm:$0xf]
      %v5668 = vld [vmem:[#allocation3 + $0xcc] sm:$0xf]
      %v5669 = vld [vmem:[#allocation3 + $0xd0] sm:$0xf]
      %v5670 = vld [vmem:[#allocation3 + $0xd4] sm:$0xf]
      %v5671 = vld [vmem:[#allocation3 + $0xd8] sm:$0xf]
      %v5672 = vld [vmem:[#allocation3 + $0xdc] sm:$0xf]
      %v5673 = vld [vmem:[#allocation3 + $0xe0] sm:$0xf]
      %v5674 = vld [vmem:[#allocation3 + $0xe4] sm:$0xf]
      %v5675 = vld [vmem:[#allocation3 + $0xe8] sm:$0xf]
      %v5676 = vld [vmem:[#allocation3 + $0xec] sm:$0xf]
      %v5677 = vld [vmem:[#allocation3 + $0xf0] sm:$0xf]
      %v5678 = vld [vmem:[#allocation3 + $0xf4] sm:$0xf]
      %v5679 = vld [vmem:[#allocation3 + $0xf8] sm:$0xf]
      %v5680 = vld [vmem:[#allocation3 + $0xfc] sm:$0xf]
      %v5681 = vld [vmem:[#allocation3 + $0x100] sm:$0xf]
      %v5682 = vld [vmem:[#allocation3 + $0x104] sm:$0xf]
      %v5683 = vld [vmem:[#allocation3 + $0x108] sm:$0xf]
      %v5684 = vld [vmem:[#allocation3 + $0x10c] sm:$0xf]
      %v5685 = vld [vmem:[#allocation3 + $0x110] sm:$0xf]
      %v5686 = vld [vmem:[#allocation3 + $0x114] sm:$0xf]
      %v5687 = vld [vmem:[#allocation3 + $0x118] sm:$0xf]
      %v5688 = vld [vmem:[#allocation3 + $0x11c] sm:$0xf]
      %v5753 = vunpack.c.l.b16 %v5557
      %v5754 = vunpack.c.l.b16 %v5558
      %v5755 = vunpack.c.l.b16 %v5559
      %v5756 = vunpack.c.l.b16 %v5560
      %v5757 = vunpack.c.l.b16 %v5561
      %v5758 = vunpack.c.l.b16 %v5562
      %v5759 = vunpack.c.l.b16 %v5563
      %v5760 = vunpack.c.l.b16 %v5564
      %v5761 = vunpack.c.l.b16 %v5565
      %v5762 = vunpack.c.l.b16 %v5566
      %v5763 = vunpack.c.l.b16 %v5567
      %v5764 = vunpack.c.l.b16 %v5568
      %v5765 = vunpack.c.l.b16 %v5569
      %v5766 = vunpack.c.l.b16 %v5570
      %v5767 = vunpack.c.l.b16 %v5571
      %v5768 = vunpack.c.l.b16 %v5572
      %v5769 = vunpack.c.l.b16 %v5573
      %v5770 = vunpack.c.l.b16 %v5574
      %v5771 = vunpack.c.l.b16 %v5575
      %v5772 = vunpack.c.l.b16 %v5576
      %v5773 = vunpack.c.l.b16 %v5577
      %v5774 = vunpack.c.l.b16 %v5578
      %v5775 = vunpack.c.l.b16 %v5579
      %v5776 = vunpack.c.l.b16 %v5580
      %v5777 = vunpack.c.l.b16 %v5581
      %v5778 = vunpack.c.l.b16 %v5582
      %v5779 = vunpack.c.l.b16 %v5583
      %v5780 = vunpack.c.l.b16 %v5584
      %v5781 = vunpack.c.l.b16 %v5585
      %v5782 = vunpack.c.l.b16 %v5586
      %v5783 = vunpack.c.l.b16 %v5587
      %v5784 = vunpack.c.l.b16 %v5588
      %v5785 = vunpack.c.l.b16 %v5589
      %v5786 = vunpack.c.l.b16 %v5590
      %v5787 = vunpack.c.l.b16 %v5591
      %v5788 = vunpack.c.l.b16 %v5592
      %v5789 = vunpack.c.l.b16 %v5593
      %v5790 = vunpack.c.l.b16 %v5594
      %v5791 = vunpack.c.l.b16 %v5595
      %v5792 = vunpack.c.l.b16 %v5596
      %v5793 = vunpack.c.l.b16 %v5597
      %v5794 = vunpack.c.l.b16 %v5598
      %v5795 = vunpack.c.l.b16 %v5599
      %v5796 = vunpack.c.l.b16 %v5600
      %v5797 = vunpack.c.l.b16 %v5601
      %v5798 = vunpack.c.l.b16 %v5602
      %v5799 = vunpack.c.l.b16 %v5603
      %v5800 = vunpack.c.l.b16 %v5604
      %v5801 = vunpack.c.l.b16 %v5605
      %v5802 = vunpack.c.l.b16 %v5606
      %v5803 = vunpack.c.l.b16 %v5607
      %v5804 = vunpack.c.l.b16 %v5608
      %v5805 = vunpack.c.l.b16 %v5609
      %v5806 = vunpack.c.l.b16 %v5610
      %v5807 = vunpack.c.l.b16 %v5611
      %v5808 = vunpack.c.l.b16 %v5612
      %v5809 = vunpack.c.l.b16 %v5613
      %v5810 = vunpack.c.l.b16 %v5614
      %v5811 = vunpack.c.l.b16 %v5615
      %v5812 = vunpack.c.l.b16 %v5616
      %v5813 = vunpack.c.l.b16 %v5617
      %v5814 = vunpack.c.l.b16 %v5618
      %v5815 = vunpack.c.l.b16 %v5619
      %v5816 = vunpack.c.l.b16 %v5620
      %v5817 = vpack.c.b16 %v5754, %v5753
      %v5818 = vpack.c.b16 %v5756, %v5755
      %v5819 = vpack.c.b16 %v5758, %v5757
      %v5820 = vpack.c.b16 %v5760, %v5759
      %v5821 = vpack.c.b16 %v5762, %v5761
      %v5822 = vpack.c.b16 %v5764, %v5763
      %v5823 = vpack.c.b16 %v5766, %v5765
      %v5824 = vpack.c.b16 %v5768, %v5767
      %v5825 = vpack.c.b16 %v5770, %v5769
      %v5826 = vpack.c.b16 %v5772, %v5771
      %v5827 = vpack.c.b16 %v5774, %v5773
      %v5828 = vpack.c.b16 %v5776, %v5775
      %v5829 = vpack.c.b16 %v5778, %v5777
      %v5830 = vpack.c.b16 %v5780, %v5779
      %v5831 = vpack.c.b16 %v5782, %v5781
      %v5832 = vpack.c.b16 %v5784, %v5783
      %v5833 = vpack.c.b16 %v5786, %v5785
      %v5834 = vpack.c.b16 %v5788, %v5787
      %v5835 = vpack.c.b16 %v5790, %v5789
      %v5836 = vpack.c.b16 %v5792, %v5791
      %v5837 = vpack.c.b16 %v5794, %v5793
      %v5838 = vpack.c.b16 %v5796, %v5795
      %v5839 = vpack.c.b16 %v5798, %v5797
      %v5840 = vpack.c.b16 %v5800, %v5799
      %v5841 = vpack.c.b16 %v5802, %v5801
      %v5842 = vpack.c.b16 %v5804, %v5803
      %v5843 = vpack.c.b16 %v5806, %v5805
      %v5844 = vpack.c.b16 %v5808, %v5807
      %v5845 = vpack.c.b16 %v5810, %v5809
      %v5846 = vpack.c.b16 %v5812, %v5811
      %v5847 = vpack.c.b16 %v5814, %v5813
      %v5848 = vpack.c.b16 %v5816, %v5815
      %v5885 = vunpack.c.l.b16 %v5621
      %v5886 = vunpack.c.l.b16 %v5622
      %v5887 = vunpack.c.l.b16 %v5623
      %v5888 = vunpack.c.l.b16 %v5624
      %v5889 = vpack.c.b16 %v5886, %v5885
      %v5890 = vpack.c.b16 %v5888, %v5887
      %v5957 = vunpack.c.l.b16 %v5625
      %v5958 = vunpack.c.l.b16 %v5626
      %v5959 = vunpack.c.l.b16 %v5627
      %v5960 = vunpack.c.l.b16 %v5628
      %v5961 = vunpack.c.l.b16 %v5629
      %v5962 = vunpack.c.l.b16 %v5630
      %v5963 = vunpack.c.l.b16 %v5631
      %v5964 = vunpack.c.l.b16 %v5632
      %v5965 = vunpack.c.l.b16 %v5633
      %v5966 = vunpack.c.l.b16 %v5634
      %v5967 = vunpack.c.l.b16 %v5635
      %v5968 = vunpack.c.l.b16 %v5636
      %v5969 = vunpack.c.l.b16 %v5637
      %v5970 = vunpack.c.l.b16 %v5638
      %v5971 = vunpack.c.l.b16 %v5639
      %v5972 = vunpack.c.l.b16 %v5640
      %v5973 = vunpack.c.l.b16 %v5641
      %v5974 = vunpack.c.l.b16 %v5642
      %v5975 = vunpack.c.l.b16 %v5643
      %v5976 = vunpack.c.l.b16 %v5644
      %v5977 = vunpack.c.l.b16 %v5645
      %v5978 = vunpack.c.l.b16 %v5646
      %v5979 = vunpack.c.l.b16 %v5647
      %v5980 = vunpack.c.l.b16 %v5648
      %v5981 = vunpack.c.l.b16 %v5649
      %v5982 = vunpack.c.l.b16 %v5650
      %v5983 = vunpack.c.l.b16 %v5651
      %v5984 = vunpack.c.l.b16 %v5652
      %v5985 = vunpack.c.l.b16 %v5653
      %v5986 = vunpack.c.l.b16 %v5654
      %v5987 = vunpack.c.l.b16 %v5655
      %v5988 = vunpack.c.l.b16 %v5656
      %v5989 = vunpack.c.l.b16 %v5657
      %v5990 = vunpack.c.l.b16 %v5658
      %v5991 = vunpack.c.l.b16 %v5659
      %v5992 = vunpack.c.l.b16 %v5660
      %v5993 = vunpack.c.l.b16 %v5661
      %v5994 = vunpack.c.l.b16 %v5662
      %v5995 = vunpack.c.l.b16 %v5663
      %v5996 = vunpack.c.l.b16 %v5664
      %v5997 = vunpack.c.l.b16 %v5665
      %v5998 = vunpack.c.l.b16 %v5666
      %v5999 = vunpack.c.l.b16 %v5667
      %v6000 = vunpack.c.l.b16 %v5668
      %v6001 = vunpack.c.l.b16 %v5669
      %v6002 = vunpack.c.l.b16 %v5670
      %v6003 = vunpack.c.l.b16 %v5671
      %v6004 = vunpack.c.l.b16 %v5672
      %v6005 = vunpack.c.l.b16 %v5673
      %v6006 = vunpack.c.l.b16 %v5674
      %v6007 = vunpack.c.l.b16 %v5675
      %v6008 = vunpack.c.l.b16 %v5676
      %v6009 = vunpack.c.l.b16 %v5677
      %v6010 = vunpack.c.l.b16 %v5678
      %v6011 = vunpack.c.l.b16 %v5679
      %v6012 = vunpack.c.l.b16 %v5680
      %v6013 = vunpack.c.l.b16 %v5681
      %v6014 = vunpack.c.l.b16 %v5682
      %v6015 = vunpack.c.l.b16 %v5683
      %v6016 = vunpack.c.l.b16 %v5684
      %v6017 = vunpack.c.l.b16 %v5685
      %v6018 = vunpack.c.l.b16 %v5686
      %v6019 = vunpack.c.l.b16 %v5687
      %v6020 = vunpack.c.l.b16 %v5688
      %v6021 = vpack.c.b16 %v5958, %v5957
      %v6022 = vpack.c.b16 %v5960, %v5959
      %v6023 = vpack.c.b16 %v5962, %v5961
      %v6024 = vpack.c.b16 %v5964, %v5963
      %v6025 = vpack.c.b16 %v5966, %v5965
      %v6026 = vpack.c.b16 %v5968, %v5967
      %v6027 = vpack.c.b16 %v5970, %v5969
      %v6028 = vpack.c.b16 %v5972, %v5971
      %v6029 = vpack.c.b16 %v5974, %v5973
      %v6030 = vpack.c.b16 %v5976, %v5975
      %v6031 = vpack.c.b16 %v5978, %v5977
      %v6032 = vpack.c.b16 %v5980, %v5979
      %v6033 = vpack.c.b16 %v5982, %v5981
      %v6034 = vpack.c.b16 %v5984, %v5983
      %v6035 = vpack.c.b16 %v5986, %v5985
      %v6036 = vpack.c.b16 %v5988, %v5987
      %v6037 = vpack.c.b16 %v5990, %v5989
      %v6038 = vpack.c.b16 %v5992, %v5991
      %v6039 = vpack.c.b16 %v5994, %v5993
      %v6040 = vpack.c.b16 %v5996, %v5995
      %v6041 = vpack.c.b16 %v5998, %v5997
      %v6042 = vpack.c.b16 %v6000, %v5999
      %v6043 = vpack.c.b16 %v6002, %v6001
      %v6044 = vpack.c.b16 %v6004, %v6003
      %v6045 = vpack.c.b16 %v6006, %v6005
      %v6046 = vpack.c.b16 %v6008, %v6007
      %v6047 = vpack.c.b16 %v6010, %v6009
      %v6048 = vpack.c.b16 %v6012, %v6011
      %v6049 = vpack.c.b16 %v6014, %v6013
      %v6050 = vpack.c.b16 %v6016, %v6015
      %v6051 = vpack.c.b16 %v6018, %v6017
      %v6052 = vpack.c.b16 %v6020, %v6019
      %s6085 = scalar_lea.vmem %s2, 192
      %v6086 = vld [vmem:[%s6085] sm:$0xf]
      %v6087 = vld [vmem:[%s6085 + $0x4] sm:$0xf]
      %v6088 = vld [vmem:[%s6085 + $0x8] sm:$0xf]
      %v6089 = vld [vmem:[%s6085 + $0xc] sm:$0xf]
      %v6090 = vld [vmem:[%s6085 + $0x10] sm:$0xf]
      %v6091 = vld [vmem:[%s6085 + $0x14] sm:$0xf]
      %v6092 = vld [vmem:[%s6085 + $0x18] sm:$0xf]
      %v6093 = vld [vmem:[%s6085 + $0x1c] sm:$0xf]
      %v6094 = vld [vmem:[%s6085 + $0x20] sm:$0xf]
      %v6095 = vld [vmem:[%s6085 + $0x24] sm:$0xf]
      %v6096 = vld [vmem:[%s6085 + $0x28] sm:$0xf]
      %v6097 = vld [vmem:[%s6085 + $0x2c] sm:$0xf]
      %v6098 = vld [vmem:[%s6085 + $0x30] sm:$0xf]
      %v6099 = vld [vmem:[%s6085 + $0x34] sm:$0xf]
      %v6100 = vld [vmem:[%s6085 + $0x38] sm:$0xf]
      %v6101 = vld [vmem:[%s6085 + $0x3c] sm:$0xf]
      %v6102 = vld [vmem:[%s6085 + $0x40] sm:$0xf]
      %v6103 = vld [vmem:[%s6085 + $0x44] sm:$0xf]
      %v6104 = vld [vmem:[%s6085 + $0x48] sm:$0xf]
      %v6105 = vld [vmem:[%s6085 + $0x4c] sm:$0xf]
      %v6106 = vld [vmem:[%s6085 + $0x50] sm:$0xf]
      %v6107 = vld [vmem:[%s6085 + $0x54] sm:$0xf]
      %v6108 = vld [vmem:[%s6085 + $0x58] sm:$0xf]
      %v6109 = vld [vmem:[%s6085 + $0x5c] sm:$0xf]
      %v6110 = vld [vmem:[%s6085 + $0x60] sm:$0xf]
      %v6111 = vld [vmem:[%s6085 + $0x64] sm:$0xf]
      %v6112 = vld [vmem:[%s6085 + $0x68] sm:$0xf]
      %v6113 = vld [vmem:[%s6085 + $0x6c] sm:$0xf]
      %v6114 = vld [vmem:[%s6085 + $0x70] sm:$0xf]
      %v6115 = vld [vmem:[%s6085 + $0x74] sm:$0xf]
      %v6116 = vld [vmem:[%s6085 + $0x78] sm:$0xf]
      %v6117 = vld [vmem:[%s6085 + $0x7c] sm:$0xf]
      %v6118 = vld [vmem:[%s6085 + $0x80] sm:$0xf]
      %v6119 = vld [vmem:[%s6085 + $0x84] sm:$0xf]
      %v6120 = vld [vmem:[%s6085 + $0x88] sm:$0xf]
      %v6121 = vld [vmem:[%s6085 + $0x8c] sm:$0xf]
      %v6122 = vld [vmem:[%s6085 + $0x90] sm:$0xf]
      %v6123 = vld [vmem:[%s6085 + $0x94] sm:$0xf]
      %v6124 = vld [vmem:[%s6085 + $0x98] sm:$0xf]
      %v6125 = vld [vmem:[%s6085 + $0x9c] sm:$0xf]
      %v6126 = vld [vmem:[%s6085 + $0xa0] sm:$0xf]
      %v6127 = vld [vmem:[%s6085 + $0xa4] sm:$0xf]
      %v6128 = vld [vmem:[%s6085 + $0xa8] sm:$0xf]
      %v6129 = vld [vmem:[%s6085 + $0xac] sm:$0xf]
      %v6130 = vld [vmem:[%s6085 + $0xb0] sm:$0xf]
      %v6131 = vld [vmem:[%s6085 + $0xb4] sm:$0xf]
      %v6132 = vld [vmem:[%s6085 + $0xb8] sm:$0xf]
      %v6133 = vld [vmem:[%s6085 + $0xbc] sm:$0xf]
      %v6182 = vunpack.c.l.b16 %v6086
      %v6183 = vunpack.c.l.b16 %v6087
      %v6184 = vunpack.c.l.b16 %v6088
      %v6185 = vunpack.c.l.b16 %v6089
      %v6186 = vunpack.c.l.b16 %v6090
      %v6187 = vunpack.c.l.b16 %v6091
      %v6188 = vunpack.c.l.b16 %v6092
      %v6189 = vunpack.c.l.b16 %v6093
      %v6190 = vunpack.c.l.b16 %v6094
      %v6191 = vunpack.c.l.b16 %v6095
      %v6192 = vunpack.c.l.b16 %v6096
      %v6193 = vunpack.c.l.b16 %v6097
      %v6194 = vunpack.c.l.b16 %v6098
      %v6195 = vunpack.c.l.b16 %v6099
      %v6196 = vunpack.c.l.b16 %v6100
      %v6197 = vunpack.c.l.b16 %v6101
      %v6198 = vunpack.c.l.b16 %v6102
      %v6199 = vunpack.c.l.b16 %v6103
      %v6200 = vunpack.c.l.b16 %v6104
      %v6201 = vunpack.c.l.b16 %v6105
      %v6202 = vunpack.c.l.b16 %v6106
      %v6203 = vunpack.c.l.b16 %v6107
      %v6204 = vunpack.c.l.b16 %v6108
      %v6205 = vunpack.c.l.b16 %v6109
      %v6206 = vunpack.c.l.b16 %v6110
      %v6207 = vunpack.c.l.b16 %v6111
      %v6208 = vunpack.c.l.b16 %v6112
      %v6209 = vunpack.c.l.b16 %v6113
      %v6210 = vunpack.c.l.b16 %v6114
      %v6211 = vunpack.c.l.b16 %v6115
      %v6212 = vunpack.c.l.b16 %v6116
      %v6213 = vunpack.c.l.b16 %v6117
      %v6214 = vunpack.c.l.b16 %v6118
      %v6215 = vunpack.c.l.b16 %v6119
      %v6216 = vunpack.c.l.b16 %v6120
      %v6217 = vunpack.c.l.b16 %v6121
      %v6218 = vunpack.c.l.b16 %v6122
      %v6219 = vunpack.c.l.b16 %v6123
      %v6220 = vunpack.c.l.b16 %v6124
      %v6221 = vunpack.c.l.b16 %v6125
      %v6222 = vunpack.c.l.b16 %v6126
      %v6223 = vunpack.c.l.b16 %v6127
      %v6224 = vunpack.c.l.b16 %v6128
      %v6225 = vunpack.c.l.b16 %v6129
      %v6226 = vunpack.c.l.b16 %v6130
      %v6227 = vunpack.c.l.b16 %v6131
      %v6228 = vunpack.c.l.b16 %v6132
      %v6229 = vunpack.c.l.b16 %v6133
      %v6230 = vpack.c.b16 %v6183, %v6182
      %v6231 = vpack.c.b16 %v6185, %v6184
      %v6232 = vpack.c.b16 %v6187, %v6186
      %v6233 = vpack.c.b16 %v6189, %v6188
      %v6234 = vpack.c.b16 %v6191, %v6190
      %v6235 = vpack.c.b16 %v6193, %v6192
      %v6236 = vpack.c.b16 %v6195, %v6194
      %v6237 = vpack.c.b16 %v6197, %v6196
      %v6238 = vpack.c.b16 %v6199, %v6198
      %v6239 = vpack.c.b16 %v6201, %v6200
      %v6240 = vpack.c.b16 %v6203, %v6202
      %v6241 = vpack.c.b16 %v6205, %v6204
      %v6242 = vpack.c.b16 %v6207, %v6206
      %v6243 = vpack.c.b16 %v6209, %v6208
      %v6244 = vpack.c.b16 %v6211, %v6210
      %v6245 = vpack.c.b16 %v6213, %v6212
      %v6246 = vpack.c.b16 %v6215, %v6214
      %v6247 = vpack.c.b16 %v6217, %v6216
      %v6248 = vpack.c.b16 %v6219, %v6218
      %v6249 = vpack.c.b16 %v6221, %v6220
      %v6250 = vpack.c.b16 %v6223, %v6222
      %v6251 = vpack.c.b16 %v6225, %v6224
      %v6252 = vpack.c.b16 %v6227, %v6226
      %v6253 = vpack.c.b16 %v6229, %v6228
      %6278 = vmatprep.subr.bf16.mxu0 0
      %6279 = vmatpush1.bf16.msra.mxu0 %v6237
      %6280 = vmatprep.subr.bf16.mxu0 0
      %6281 = vmatpush1.bf16.msra.mxu0 %v6236
      %6282 = vmatprep.subr.bf16.mxu0 0
      %6283 = vmatpush1.bf16.msra.mxu0 %v6235
      %6284 = vmatprep.subr.bf16.mxu0 0
      %6285 = vmatpush1.bf16.msra.mxu0 %v6234
      %6286 = vmatprep.subr.bf16.mxu0 0
      %6287 = vmatpush1.bf16.msra.mxu0 %v6233
      %6288 = vmatprep.subr.bf16.mxu0 0
      %6289 = vmatpush1.bf16.msra.mxu0 %v6232
      %6290 = vmatprep.subr.bf16.mxu0 0
      %6291 = vmatpush1.bf16.msra.mxu0 %v6231
      %6292 = vmatprep.subr.bf16.mxu0 0
      %6293 = vmatpush1.bf16.msra.mxu0 %v6230
      %6294 = vmatprep.subr.bf16.mxu0 0
      %6295 = vmatpush2.bf16.msra.mxu0 %v6245
      %6296 = vmatprep.subr.bf16.mxu0 0
      %6297 = vmatpush2.bf16.msra.mxu0 %v6244
      %6298 = vmatprep.subr.bf16.mxu0 0
      %6299 = vmatpush2.bf16.msra.mxu0 %v6243
      %6300 = vmatprep.subr.bf16.mxu0 0
      %6301 = vmatpush2.bf16.msra.mxu0 %v6242
      %6302 = vmatprep.subr.bf16.mxu0 0
      %6303 = vmatpush2.bf16.msra.mxu0 %v6241
      %6304 = vmatprep.subr.bf16.mxu0 0
      %6305 = vmatpush2.bf16.msra.mxu0 %v6240
      %6306 = vmatprep.subr.bf16.mxu0 0
      %6307 = vmatpush2.bf16.msra.mxu0 %v6239
      %6308 = vmatprep.subr.bf16.mxu0 0
      %6309 = vmatpush2.bf16.msra.mxu0 %v6238
      %6310 = vmatprep.mubr.bf16.mxu0 %v5819
      %6311 = vmatmul.mubr.bf16.gmra.mxu0 %v5817
      %v6312 = vpop.f32.mrf.mxu0
      %v6313 = vadd.f32 0.0, %v6312
      %v6314 = vpop.f32.mrf.mxu0
      %v6315 = vpop.f32.mrf.mxu0
      %v6316 = vadd.f32 0.0, %v6315
      %v6317 = vpop.f32.mrf.mxu0
      %6318 = vmatprep.mubr.bf16.mxu0 %v5820
      %6319 = vmatmul.mubr.bf16.gmra.mxu0 %v5818
      %v6320 = vpop.f32.mrf.mxu0
      %v6321 = vadd.f32 0.0, %v6320
      %v6322 = vpop.f32.mrf.mxu0
      %v6323 = vpop.f32.mrf.mxu0
      %v6324 = vadd.f32 0.0, %v6323
      %v6325 = vpop.f32.mrf.mxu0
      %6326 = vmatprep.mubr.bf16.mxu0 %v5821
      %6327 = vmatmul.mubr.bf16.gmra.mxu0 %v5819
      %v6328 = vpop.f32.mrf.mxu0
      %v6329 = vadd.f32 0.0, %v6328
      %v6330 = vpop.f32.mrf.mxu0
      %v6331 = vpop.f32.mrf.mxu0
      %v6332 = vadd.f32 0.0, %v6331
      %v6333 = vpop.f32.mrf.mxu0
      %6334 = vmatprep.mubr.bf16.mxu0 %v5822
      %6335 = vmatmul.mubr.bf16.gmra.mxu0 %v5820
      %v6336 = vpop.f32.mrf.mxu0
      %v6337 = vadd.f32 0.0, %v6336
      %v6338 = vpop.f32.mrf.mxu0
      %v6339 = vpop.f32.mrf.mxu0
      %v6340 = vadd.f32 0.0, %v6339
      %v6341 = vpop.f32.mrf.mxu0
      %6342 = vmatprep.mubr.bf16.mxu0 %v5823
      %6343 = vmatmul.mubr.bf16.gmra.mxu0 %v5821
      %v6344 = vpop.f32.mrf.mxu0
      %v6345 = vadd.f32 0.0, %v6344
      %v6346 = vpop.f32.mrf.mxu0
      %v6347 = vpop.f32.mrf.mxu0
      %v6348 = vadd.f32 0.0, %v6347
      %v6349 = vpop.f32.mrf.mxu0
      %6350 = vmatprep.mubr.bf16.mxu0 %v5824
      %6351 = vmatmul.mubr.bf16.gmra.mxu0 %v5822
      %v6352 = vpop.f32.mrf.mxu0
      %v6353 = vadd.f32 0.0, %v6352
      %v6354 = vpop.f32.mrf.mxu0
      %v6355 = vpop.f32.mrf.mxu0
      %v6356 = vadd.f32 0.0, %v6355
      %v6357 = vpop.f32.mrf.mxu0
      %6358 = vmatprep.mubr.bf16.mxu0 %v5825
      %6359 = vmatmul.mubr.bf16.gmra.mxu0 %v5823
      %v6360 = vpop.f32.mrf.mxu0
      %v6361 = vadd.f32 0.0, %v6360
      %v6362 = vpop.f32.mrf.mxu0
      %v6363 = vpop.f32.mrf.mxu0
      %v6364 = vadd.f32 0.0, %v6363
      %v6365 = vpop.f32.mrf.mxu0
      %6366 = vmatprep.mubr.bf16.mxu0 %v5826
      %6367 = vmatmul.mubr.bf16.gmra.mxu0 %v5824
      %v6368 = vpop.f32.mrf.mxu0
      %v6369 = vadd.f32 0.0, %v6368
      %v6370 = vpop.f32.mrf.mxu0
      %v6371 = vpop.f32.mrf.mxu0
      %v6372 = vadd.f32 0.0, %v6371
      %v6373 = vpop.f32.mrf.mxu0
      %6374 = vmatprep.mubr.bf16.mxu0 %v5827
      %6375 = vmatmul.mubr.bf16.gmra.mxu0 %v5825
      %v6376 = vpop.f32.mrf.mxu0
      %v6377 = vadd.f32 0.0, %v6376
      %v6378 = vpop.f32.mrf.mxu0
      %v6379 = vpop.f32.mrf.mxu0
      %v6380 = vadd.f32 0.0, %v6379
      %v6381 = vpop.f32.mrf.mxu0
      %6382 = vmatprep.mubr.bf16.mxu0 %v5828
      %6383 = vmatmul.mubr.bf16.gmra.mxu0 %v5826
      %v6384 = vpop.f32.mrf.mxu0
      %v6385 = vadd.f32 0.0, %v6384
      %v6386 = vpop.f32.mrf.mxu0
      %v6387 = vpop.f32.mrf.mxu0
      %v6388 = vadd.f32 0.0, %v6387
      %v6389 = vpop.f32.mrf.mxu0
      %6390 = vmatprep.mubr.bf16.mxu0 %v5829
      %6391 = vmatmul.mubr.bf16.gmra.mxu0 %v5827
      %v6392 = vpop.f32.mrf.mxu0
      %v6393 = vadd.f32 0.0, %v6392
      %v6394 = vpop.f32.mrf.mxu0
      %v6395 = vpop.f32.mrf.mxu0
      %v6396 = vadd.f32 0.0, %v6395
      %v6397 = vpop.f32.mrf.mxu0
      %6398 = vmatprep.mubr.bf16.mxu0 %v5830
      %6399 = vmatmul.mubr.bf16.gmra.mxu0 %v5828
      %v6400 = vpop.f32.mrf.mxu0
      %v6401 = vadd.f32 0.0, %v6400
      %v6402 = vpop.f32.mrf.mxu0
      %v6403 = vpop.f32.mrf.mxu0
      %v6404 = vadd.f32 0.0, %v6403
      %v6405 = vpop.f32.mrf.mxu0
      %6406 = vmatprep.mubr.bf16.mxu0 %v5831
      %6407 = vmatmul.mubr.bf16.gmra.mxu0 %v5829
      %v6408 = vpop.f32.mrf.mxu0
      %v6409 = vadd.f32 0.0, %v6408
      %v6410 = vpop.f32.mrf.mxu0
      %v6411 = vpop.f32.mrf.mxu0
      %v6412 = vadd.f32 0.0, %v6411
      %v6413 = vpop.f32.mrf.mxu0
      %6414 = vmatprep.mubr.bf16.mxu0 %v5832
      %6415 = vmatmul.mubr.bf16.gmra.mxu0 %v5830
      %v6416 = vpop.f32.mrf.mxu0
      %v6417 = vadd.f32 0.0, %v6416
      %v6418 = vpop.f32.mrf.mxu0
      %v6419 = vpop.f32.mrf.mxu0
      %v6420 = vadd.f32 0.0, %v6419
      %v6421 = vpop.f32.mrf.mxu0
      %6422 = vmatprep.mubr.bf16.mxu0 %v5833
      %6423 = vmatmul.mubr.bf16.gmra.mxu0 %v5831
      %v6424 = vpop.f32.mrf.mxu0
      %v6425 = vadd.f32 0.0, %v6424
      %v6426 = vpop.f32.mrf.mxu0
      %v6427 = vpop.f32.mrf.mxu0
      %v6428 = vadd.f32 0.0, %v6427
      %v6429 = vpop.f32.mrf.mxu0
      %6430 = vmatprep.mubr.bf16.mxu0 %v5834
      %6431 = vmatmul.mubr.bf16.gmra.mxu0 %v5832
      %v6432 = vpop.f32.mrf.mxu0
      %v6433 = vadd.f32 0.0, %v6432
      %v6434 = vpop.f32.mrf.mxu0
      %v6435 = vpop.f32.mrf.mxu0
      %v6436 = vadd.f32 0.0, %v6435
      %v6437 = vpop.f32.mrf.mxu0
      %6438 = vmatprep.mubr.bf16.mxu0 %v5835
      %6439 = vmatmul.mubr.bf16.gmra.mxu0 %v5833
      %v6440 = vpop.f32.mrf.mxu0
      %v6441 = vadd.f32 0.0, %v6440
      %v6442 = vpop.f32.mrf.mxu0
      %v6443 = vpop.f32.mrf.mxu0
      %v6444 = vadd.f32 0.0, %v6443
      %v6445 = vpop.f32.mrf.mxu0
      %6446 = vmatprep.mubr.bf16.mxu0 %v5836
      %6447 = vmatmul.mubr.bf16.gmra.mxu0 %v5834
      %v6448 = vpop.f32.mrf.mxu0
      %v6449 = vadd.f32 0.0, %v6448
      %v6450 = vpop.f32.mrf.mxu0
      %v6451 = vpop.f32.mrf.mxu0
      %v6452 = vadd.f32 0.0, %v6451
      %v6453 = vpop.f32.mrf.mxu0
      %6454 = vmatprep.mubr.bf16.mxu0 %v5837
      %6455 = vmatmul.mubr.bf16.gmra.mxu0 %v5835
      %v6456 = vpop.f32.mrf.mxu0
      %v6457 = vadd.f32 0.0, %v6456
      %v6458 = vpop.f32.mrf.mxu0
      %v6459 = vpop.f32.mrf.mxu0
      %v6460 = vadd.f32 0.0, %v6459
      %v6461 = vpop.f32.mrf.mxu0
      %6462 = vmatprep.mubr.bf16.mxu0 %v5838
      %6463 = vmatmul.mubr.bf16.gmra.mxu0 %v5836
      %v6464 = vpop.f32.mrf.mxu0
      %v6465 = vadd.f32 0.0, %v6464
      %v6466 = vpop.f32.mrf.mxu0
      %v6467 = vpop.f32.mrf.mxu0
      %v6468 = vadd.f32 0.0, %v6467
      %v6469 = vpop.f32.mrf.mxu0
      %6470 = vmatprep.mubr.bf16.mxu0 %v5839
      %6471 = vmatmul.mubr.bf16.gmra.mxu0 %v5837
      %v6472 = vpop.f32.mrf.mxu0
      %v6473 = vadd.f32 0.0, %v6472
      %v6474 = vpop.f32.mrf.mxu0
      %v6475 = vpop.f32.mrf.mxu0
      %v6476 = vadd.f32 0.0, %v6475
      %v6477 = vpop.f32.mrf.mxu0
      %6478 = vmatprep.mubr.bf16.mxu0 %v5840
      %6479 = vmatmul.mubr.bf16.gmra.mxu0 %v5838
      %v6480 = vpop.f32.mrf.mxu0
      %v6481 = vadd.f32 0.0, %v6480
      %v6482 = vpop.f32.mrf.mxu0
      %v6483 = vpop.f32.mrf.mxu0
      %v6484 = vadd.f32 0.0, %v6483
      %v6485 = vpop.f32.mrf.mxu0
      %6486 = vmatprep.mubr.bf16.mxu0 %v5841
      %6487 = vmatmul.mubr.bf16.gmra.mxu0 %v5839
      %v6488 = vpop.f32.mrf.mxu0
      %v6489 = vadd.f32 0.0, %v6488
      %v6490 = vpop.f32.mrf.mxu0
      %v6491 = vpop.f32.mrf.mxu0
      %v6492 = vadd.f32 0.0, %v6491
      %v6493 = vpop.f32.mrf.mxu0
      %6494 = vmatprep.mubr.bf16.mxu0 %v5842
      %6495 = vmatmul.mubr.bf16.gmra.mxu0 %v5840
      %v6496 = vpop.f32.mrf.mxu0
      %v6497 = vadd.f32 0.0, %v6496
      %v6498 = vpop.f32.mrf.mxu0
      %v6499 = vpop.f32.mrf.mxu0
      %v6500 = vadd.f32 0.0, %v6499
      %v6501 = vpop.f32.mrf.mxu0
      %6502 = vmatprep.mubr.bf16.mxu0 %v5843
      %6503 = vmatmul.mubr.bf16.gmra.mxu0 %v5841
      %v6504 = vpop.f32.mrf.mxu0
      %v6505 = vadd.f32 0.0, %v6504
      %v6506 = vpop.f32.mrf.mxu0
      %v6507 = vpop.f32.mrf.mxu0
      %v6508 = vadd.f32 0.0, %v6507
      %v6509 = vpop.f32.mrf.mxu0
      %6510 = vmatprep.mubr.bf16.mxu0 %v5844
      %6511 = vmatmul.mubr.bf16.gmra.mxu0 %v5842
      %v6512 = vpop.f32.mrf.mxu0
      %v6513 = vadd.f32 0.0, %v6512
      %v6514 = vpop.f32.mrf.mxu0
      %v6515 = vpop.f32.mrf.mxu0
      %v6516 = vadd.f32 0.0, %v6515
      %v6517 = vpop.f32.mrf.mxu0
      %6518 = vmatprep.mubr.bf16.mxu0 %v5845
      %6519 = vmatmul.mubr.bf16.gmra.mxu0 %v5843
      %v6520 = vpop.f32.mrf.mxu0
      %v6521 = vadd.f32 0.0, %v6520
      %v6522 = vpop.f32.mrf.mxu0
      %v6523 = vpop.f32.mrf.mxu0
      %v6524 = vadd.f32 0.0, %v6523
      %v6525 = vpop.f32.mrf.mxu0
      %6526 = vmatprep.mubr.bf16.mxu0 %v5846
      %6527 = vmatmul.mubr.bf16.gmra.mxu0 %v5844
      %v6528 = vpop.f32.mrf.mxu0
      %v6529 = vadd.f32 0.0, %v6528
      %v6530 = vpop.f32.mrf.mxu0
      %v6531 = vpop.f32.mrf.mxu0
      %v6532 = vadd.f32 0.0, %v6531
      %v6533 = vpop.f32.mrf.mxu0
      %6534 = vmatprep.mubr.bf16.mxu0 %v5847
      %6535 = vmatmul.mubr.bf16.gmra.mxu0 %v5845
      %v6536 = vpop.f32.mrf.mxu0
      %v6537 = vadd.f32 0.0, %v6536
      %v6538 = vpop.f32.mrf.mxu0
      %v6539 = vpop.f32.mrf.mxu0
      %v6540 = vadd.f32 0.0, %v6539
      %v6541 = vpop.f32.mrf.mxu0
      %6542 = vmatprep.mubr.bf16.mxu0 %v5848
      %6543 = vmatmul.mubr.bf16.gmra.mxu0 %v5846
      %v6544 = vpop.f32.mrf.mxu0
      %v6545 = vadd.f32 0.0, %v6544
      %v6546 = vpop.f32.mrf.mxu0
      %v6547 = vpop.f32.mrf.mxu0
      %v6548 = vadd.f32 0.0, %v6547
      %v6549 = vpop.f32.mrf.mxu0
      %6550 = vmatprep.mubr.bf16.mxu0 %v5889
      %6551 = vmatmul.mubr.bf16.gmra.mxu0 %v5847
      %v6552 = vpop.f32.mrf.mxu0
      %v6553 = vadd.f32 0.0, %v6552
      %v6554 = vpop.f32.mrf.mxu0
      %v6555 = vpop.f32.mrf.mxu0
      %v6556 = vadd.f32 0.0, %v6555
      %v6557 = vpop.f32.mrf.mxu0
      %6558 = vmatprep.mubr.bf16.mxu0 %v5890
      %6559 = vmatmul.mubr.bf16.gmra.mxu0 %v5848
      %v6560 = vpop.f32.mrf.mxu0
      %v6561 = vadd.f32 0.0, %v6560
      %v6562 = vpop.f32.mrf.mxu0
      %v6563 = vpop.f32.mrf.mxu0
      %v6564 = vadd.f32 0.0, %v6563
      %v6565 = vpop.f32.mrf.mxu0
      %6566 = vdwg.mxu0
      %6567 = vmatprep.subr.bf16.mxu0 0
      %6568 = vmatpush1.bf16.msra.mxu0 %v6253
      %6569 = vmatprep.subr.bf16.mxu0 0
      %6570 = vmatpush1.bf16.msra.mxu0 %v6252
      %6571 = vmatprep.subr.bf16.mxu0 0
      %6572 = vmatpush1.bf16.msra.mxu0 %v6251
      %6573 = vmatprep.subr.bf16.mxu0 0
      %6574 = vmatpush1.bf16.msra.mxu0 %v6250
      %6575 = vmatprep.subr.bf16.mxu0 0
      %6576 = vmatpush1.bf16.msra.mxu0 %v6249
      %6577 = vmatprep.subr.bf16.mxu0 0
      %6578 = vmatpush1.bf16.msra.mxu0 %v6248
      %6579 = vmatprep.subr.bf16.mxu0 0
      %6580 = vmatpush1.bf16.msra.mxu0 %v6247
      %6581 = vmatprep.subr.bf16.mxu0 0
      %6582 = vmatpush1.bf16.msra.mxu0 %v6246
      %6583 = vmatprep.subr.bf16.mxu0 0
      %6584 = vmatpush2.bf16.msra.mxu0 0
      %6585 = vmatprep.subr.bf16.mxu0 0
      %6586 = vmatpush2.bf16.msra.mxu0 0
      %6587 = vmatprep.subr.bf16.mxu0 0
      %6588 = vmatpush2.bf16.msra.mxu0 0
      %6589 = vmatprep.subr.bf16.mxu0 0
      %6590 = vmatpush2.bf16.msra.mxu0 0
      %6591 = vmatprep.subr.bf16.mxu0 0
      %6592 = vmatpush2.bf16.msra.mxu0 0
      %6593 = vmatprep.subr.bf16.mxu0 0
      %6594 = vmatpush2.bf16.msra.mxu0 0
      %6595 = vmatprep.subr.bf16.mxu0 0
      %6596 = vmatpush2.bf16.msra.mxu0 0
      %6597 = vmatprep.subr.bf16.mxu0 0
      %6598 = vmatpush2.bf16.msra.mxu0 0
      %6599 = vmatprep.mubr.bf16.mxu0 0
      %6600 = vmatmul.mubr.bf16.gmra.mxu0 %v6021
      %v6601 = vpop.f32.mrf.mxu0
      %v6602 = vadd.f32 %v6313, %v6601
      %v6603 = vpop.f32.mrf.mxu0
      %v6604 = vpop.f32.mrf.mxu0
      %v6605 = vadd.f32 %v6316, %v6604
      %v6606 = vpop.f32.mrf.mxu0
      %6607 = vmatprep.mubr.bf16.mxu0 0
      %6608 = vmatmul.mubr.bf16.gmra.mxu0 %v6022
      %v6609 = vpop.f32.mrf.mxu0
      %v6610 = vadd.f32 %v6321, %v6609
      %v6611 = vpop.f32.mrf.mxu0
      %v6612 = vpop.f32.mrf.mxu0
      %v6613 = vadd.f32 %v6324, %v6612
      %v6614 = vpop.f32.mrf.mxu0
      %6615 = vmatprep.mubr.bf16.mxu0 0
      %6616 = vmatmul.mubr.bf16.gmra.mxu0 %v6023
      %v6617 = vpop.f32.mrf.mxu0
      %v6618 = vadd.f32 %v6329, %v6617
      %v6619 = vpop.f32.mrf.mxu0
      %v6620 = vpop.f32.mrf.mxu0
      %v6621 = vadd.f32 %v6332, %v6620
      %v6622 = vpop.f32.mrf.mxu0
      %6623 = vmatprep.mubr.bf16.mxu0 0
      %6624 = vmatmul.mubr.bf16.gmra.mxu0 %v6024
      %v6625 = vpop.f32.mrf.mxu0
      %v6626 = vadd.f32 %v6337, %v6625
      %v6627 = vpop.f32.mrf.mxu0
      %v6628 = vpop.f32.mrf.mxu0
      %v6629 = vadd.f32 %v6340, %v6628
      %v6630 = vpop.f32.mrf.mxu0
      %6631 = vmatprep.mubr.bf16.mxu0 0
      %6632 = vmatmul.mubr.bf16.gmra.mxu0 %v6025
      %v6633 = vpop.f32.mrf.mxu0
      %v6634 = vadd.f32 %v6345, %v6633
      %v6635 = vpop.f32.mrf.mxu0
      %v6636 = vpop.f32.mrf.mxu0
      %v6637 = vadd.f32 %v6348, %v6636
      %v6638 = vpop.f32.mrf.mxu0
      %6639 = vmatprep.mubr.bf16.mxu0 0
      %6640 = vmatmul.mubr.bf16.gmra.mxu0 %v6026
      %v6641 = vpop.f32.mrf.mxu0
      %v6642 = vadd.f32 %v6353, %v6641
      %v6643 = vpop.f32.mrf.mxu0
      %v6644 = vpop.f32.mrf.mxu0
      %v6645 = vadd.f32 %v6356, %v6644
      %v6646 = vpop.f32.mrf.mxu0
      %6647 = vmatprep.mubr.bf16.mxu0 0
      %6648 = vmatmul.mubr.bf16.gmra.mxu0 %v6027
      %v6649 = vpop.f32.mrf.mxu0
      %v6650 = vadd.f32 %v6361, %v6649
      %v6651 = vpop.f32.mrf.mxu0
      %v6652 = vpop.f32.mrf.mxu0
      %v6653 = vadd.f32 %v6364, %v6652
      %v6654 = vpop.f32.mrf.mxu0
      %6655 = vmatprep.mubr.bf16.mxu0 0
      %6656 = vmatmul.mubr.bf16.gmra.mxu0 %v6028
      %v6657 = vpop.f32.mrf.mxu0
      %v6658 = vadd.f32 %v6369, %v6657
      %v6659 = vpop.f32.mrf.mxu0
      %v6660 = vpop.f32.mrf.mxu0
      %v6661 = vadd.f32 %v6372, %v6660
      %v6662 = vpop.f32.mrf.mxu0
      %6663 = vmatprep.mubr.bf16.mxu0 0
      %6664 = vmatmul.mubr.bf16.gmra.mxu0 %v6029
      %v6665 = vpop.f32.mrf.mxu0
      %v6666 = vadd.f32 %v6377, %v6665
      %v6667 = vpop.f32.mrf.mxu0
      %v6668 = vpop.f32.mrf.mxu0
      %v6669 = vadd.f32 %v6380, %v6668
      %v6670 = vpop.f32.mrf.mxu0
      %6671 = vmatprep.mubr.bf16.mxu0 0
      %6672 = vmatmul.mubr.bf16.gmra.mxu0 %v6030
      %v6673 = vpop.f32.mrf.mxu0
      %v6674 = vadd.f32 %v6385, %v6673
      %v6675 = vpop.f32.mrf.mxu0
      %v6676 = vpop.f32.mrf.mxu0
      %v6677 = vadd.f32 %v6388, %v6676
      %v6678 = vpop.f32.mrf.mxu0
      %6679 = vmatprep.mubr.bf16.mxu0 0
      %6680 = vmatmul.mubr.bf16.gmra.mxu0 %v6031
      %v6681 = vpop.f32.mrf.mxu0
      %v6682 = vadd.f32 %v6393, %v6681
      %v6683 = vpop.f32.mrf.mxu0
      %v6684 = vpop.f32.mrf.mxu0
      %v6685 = vadd.f32 %v6396, %v6684
      %v6686 = vpop.f32.mrf.mxu0
      %6687 = vmatprep.mubr.bf16.mxu0 0
      %6688 = vmatmul.mubr.bf16.gmra.mxu0 %v6032
      %v6689 = vpop.f32.mrf.mxu0
      %v6690 = vadd.f32 %v6401, %v6689
      %v6691 = vpop.f32.mrf.mxu0
      %v6692 = vpop.f32.mrf.mxu0
      %v6693 = vadd.f32 %v6404, %v6692
      %v6694 = vpop.f32.mrf.mxu0
      %6695 = vmatprep.mubr.bf16.mxu0 0
      %6696 = vmatmul.mubr.bf16.gmra.mxu0 %v6033
      %v6697 = vpop.f32.mrf.mxu0
      %v6698 = vadd.f32 %v6409, %v6697
      %v6699 = vpop.f32.mrf.mxu0
      %v6700 = vpop.f32.mrf.mxu0
      %v6701 = vadd.f32 %v6412, %v6700
      %v6702 = vpop.f32.mrf.mxu0
      %6703 = vmatprep.mubr.bf16.mxu0 0
      %6704 = vmatmul.mubr.bf16.gmra.mxu0 %v6034
      %v6705 = vpop.f32.mrf.mxu0
      %v6706 = vadd.f32 %v6417, %v6705
      %v6707 = vpop.f32.mrf.mxu0
      %v6708 = vpop.f32.mrf.mxu0
      %v6709 = vadd.f32 %v6420, %v6708
      %v6710 = vpop.f32.mrf.mxu0
      %6711 = vmatprep.mubr.bf16.mxu0 0
      %6712 = vmatmul.mubr.bf16.gmra.mxu0 %v6035
      %v6713 = vpop.f32.mrf.mxu0
      %v6714 = vadd.f32 %v6425, %v6713
      %v6715 = vpop.f32.mrf.mxu0
      %v6716 = vpop.f32.mrf.mxu0
      %v6717 = vadd.f32 %v6428, %v6716
      %v6718 = vpop.f32.mrf.mxu0
      %6719 = vmatprep.mubr.bf16.mxu0 0
      %6720 = vmatmul.mubr.bf16.gmra.mxu0 %v6036
      %v6721 = vpop.f32.mrf.mxu0
      %v6722 = vadd.f32 %v6433, %v6721
      %v6723 = vpop.f32.mrf.mxu0
      %v6724 = vpop.f32.mrf.mxu0
      %v6725 = vadd.f32 %v6436, %v6724
      %v6726 = vpop.f32.mrf.mxu0
      %6727 = vmatprep.mubr.bf16.mxu0 0
      %6728 = vmatmul.mubr.bf16.gmra.mxu0 %v6037
      %v6729 = vpop.f32.mrf.mxu0
      %v6730 = vadd.f32 %v6441, %v6729
      %v6731 = vpop.f32.mrf.mxu0
      %v6732 = vpop.f32.mrf.mxu0
      %v6733 = vadd.f32 %v6444, %v6732
      %v6734 = vpop.f32.mrf.mxu0
      %6735 = vmatprep.mubr.bf16.mxu0 0
      %6736 = vmatmul.mubr.bf16.gmra.mxu0 %v6038
      %v6737 = vpop.f32.mrf.mxu0
      %v6738 = vadd.f32 %v6449, %v6737
      %v6739 = vpop.f32.mrf.mxu0
      %v6740 = vpop.f32.mrf.mxu0
      %v6741 = vadd.f32 %v6452, %v6740
      %v6742 = vpop.f32.mrf.mxu0
      %6743 = vmatprep.mubr.bf16.mxu0 0
      %6744 = vmatmul.mubr.bf16.gmra.mxu0 %v6039
      %v6745 = vpop.f32.mrf.mxu0
      %v6746 = vadd.f32 %v6457, %v6745
      %v6747 = vpop.f32.mrf.mxu0
      %v6748 = vpop.f32.mrf.mxu0
      %v6749 = vadd.f32 %v6460, %v6748
      %v6750 = vpop.f32.mrf.mxu0
      %6751 = vmatprep.mubr.bf16.mxu0 0
      %6752 = vmatmul.mubr.bf16.gmra.mxu0 %v6040
      %v6753 = vpop.f32.mrf.mxu0
      %v6754 = vadd.f32 %v6465, %v6753
      %v6755 = vpop.f32.mrf.mxu0
      %v6756 = vpop.f32.mrf.mxu0
      %v6757 = vadd.f32 %v6468, %v6756
      %v6758 = vpop.f32.mrf.mxu0
      %6759 = vmatprep.mubr.bf16.mxu0 0
      %6760 = vmatmul.mubr.bf16.gmra.mxu0 %v6041
      %v6761 = vpop.f32.mrf.mxu0
      %v6762 = vadd.f32 %v6473, %v6761
      %v6763 = vpop.f32.mrf.mxu0
      %v6764 = vpop.f32.mrf.mxu0
      %v6765 = vadd.f32 %v6476, %v6764
      %v6766 = vpop.f32.mrf.mxu0
      %6767 = vmatprep.mubr.bf16.mxu0 0
      %6768 = vmatmul.mubr.bf16.gmra.mxu0 %v6042
      %v6769 = vpop.f32.mrf.mxu0
      %v6770 = vadd.f32 %v6481, %v6769
      %v6771 = vpop.f32.mrf.mxu0
      %v6772 = vpop.f32.mrf.mxu0
      %v6773 = vadd.f32 %v6484, %v6772
      %v6774 = vpop.f32.mrf.mxu0
      %6775 = vmatprep.mubr.bf16.mxu0 0
      %6776 = vmatmul.mubr.bf16.gmra.mxu0 %v6043
      %v6777 = vpop.f32.mrf.mxu0
      %v6778 = vadd.f32 %v6489, %v6777
      %v6779 = vpop.f32.mrf.mxu0
      %v6780 = vpop.f32.mrf.mxu0
      %v6781 = vadd.f32 %v6492, %v6780
      %v6782 = vpop.f32.mrf.mxu0
      %6783 = vmatprep.mubr.bf16.mxu0 0
      %6784 = vmatmul.mubr.bf16.gmra.mxu0 %v6044
      %v6785 = vpop.f32.mrf.mxu0
      %v6786 = vadd.f32 %v6497, %v6785
      %v6787 = vpop.f32.mrf.mxu0
      %v6788 = vpop.f32.mrf.mxu0
      %v6789 = vadd.f32 %v6500, %v6788
      %v6790 = vpop.f32.mrf.mxu0
      %6791 = vmatprep.mubr.bf16.mxu0 0
      %6792 = vmatmul.mubr.bf16.gmra.mxu0 %v6045
      %v6793 = vpop.f32.mrf.mxu0
      %v6794 = vadd.f32 %v6505, %v6793
      %v6795 = vpop.f32.mrf.mxu0
      %v6796 = vpop.f32.mrf.mxu0
      %v6797 = vadd.f32 %v6508, %v6796
      %v6798 = vpop.f32.mrf.mxu0
      %6799 = vmatprep.mubr.bf16.mxu0 0
      %6800 = vmatmul.mubr.bf16.gmra.mxu0 %v6046
      %v6801 = vpop.f32.mrf.mxu0
      %v6802 = vadd.f32 %v6513, %v6801
      %v6803 = vpop.f32.mrf.mxu0
      %v6804 = vpop.f32.mrf.mxu0
      %v6805 = vadd.f32 %v6516, %v6804
      %v6806 = vpop.f32.mrf.mxu0
      %6807 = vmatprep.mubr.bf16.mxu0 0
      %6808 = vmatmul.mubr.bf16.gmra.mxu0 %v6047
      %v6809 = vpop.f32.mrf.mxu0
      %v6810 = vadd.f32 %v6521, %v6809
      %v6811 = vpop.f32.mrf.mxu0
      %v6812 = vpop.f32.mrf.mxu0
      %v6813 = vadd.f32 %v6524, %v6812
      %v6814 = vpop.f32.mrf.mxu0
      %6815 = vmatprep.mubr.bf16.mxu0 0
      %6816 = vmatmul.mubr.bf16.gmra.mxu0 %v6048
      %v6817 = vpop.f32.mrf.mxu0
      %v6818 = vadd.f32 %v6529, %v6817
      %v6819 = vpop.f32.mrf.mxu0
      %v6820 = vpop.f32.mrf.mxu0
      %v6821 = vadd.f32 %v6532, %v6820
      %v6822 = vpop.f32.mrf.mxu0
      %6823 = vmatprep.mubr.bf16.mxu0 0
      %6824 = vmatmul.mubr.bf16.gmra.mxu0 %v6049
      %v6825 = vpop.f32.mrf.mxu0
      %v6826 = vadd.f32 %v6537, %v6825
      %v6827 = vpop.f32.mrf.mxu0
      %v6828 = vpop.f32.mrf.mxu0
      %v6829 = vadd.f32 %v6540, %v6828
      %v6830 = vpop.f32.mrf.mxu0
      %6831 = vmatprep.mubr.bf16.mxu0 0
      %6832 = vmatmul.mubr.bf16.gmra.mxu0 %v6050
      %v6833 = vpop.f32.mrf.mxu0
      %v6834 = vadd.f32 %v6545, %v6833
      %v6835 = vpop.f32.mrf.mxu0
      %v6836 = vpop.f32.mrf.mxu0
      %v6837 = vadd.f32 %v6548, %v6836
      %v6838 = vpop.f32.mrf.mxu0
      %6839 = vmatprep.mubr.bf16.mxu0 0
      %6840 = vmatmul.mubr.bf16.gmra.mxu0 %v6051
      %v6841 = vpop.f32.mrf.mxu0
      %v6842 = vadd.f32 %v6553, %v6841
      %v6843 = vpop.f32.mrf.mxu0
      %v6844 = vpop.f32.mrf.mxu0
      %v6845 = vadd.f32 %v6556, %v6844
      %v6846 = vpop.f32.mrf.mxu0
      %6847 = vmatprep.mubr.bf16.mxu0 0
      %6848 = vmatmul.mubr.bf16.gmra.mxu0 %v6052
      %v6849 = vpop.f32.mrf.mxu0
      %v6850 = vadd.f32 %v6561, %v6849
      %v6851 = vpop.f32.mrf.mxu0
      %v6852 = vpop.f32.mrf.mxu0
      %v6853 = vadd.f32 %v6564, %v6852
      %v6854 = vpop.f32.mrf.mxu0
      %6855 = vdwg.mxu0
      %6856 = vst [vmem:[#allocation2] sm:$0xff] %v6602
      %6857 = vst [vmem:[#allocation2 + $0x8] sm:$0xff] %v6605
      %6858 = vst [vmem:[#allocation2 + $0x10] sm:$0xff] %v6610
      %6859 = vst [vmem:[#allocation2 + $0x18] sm:$0xff] %v6613
      %6860 = vst [vmem:[#allocation2 + $0x20] sm:$0xff] %v6618
      %6861 = vst [vmem:[#allocation2 + $0x28] sm:$0xff] %v6621
      %6862 = vst [vmem:[#allocation2 + $0x30] sm:$0xff] %v6626
      %6863 = vst [vmem:[#allocation2 + $0x38] sm:$0xff] %v6629
      %6864 = vst [vmem:[#allocation2 + $0x40] sm:$0xff] %v6634
      %6865 = vst [vmem:[#allocation2 + $0x48] sm:$0xff] %v6637
      %6866 = vst [vmem:[#allocation2 + $0x50] sm:$0xff] %v6642
      %6867 = vst [vmem:[#allocation2 + $0x58] sm:$0xff] %v6645
      %6868 = vst [vmem:[#allocation2 + $0x60] sm:$0xff] %v6650
      %6869 = vst [vmem:[#allocation2 + $0x68] sm:$0xff] %v6653
      %6870 = vst [vmem:[#allocation2 + $0x70] sm:$0xff] %v6658
      %6871 = vst [vmem:[#allocation2 + $0x78] sm:$0xff] %v6661
      %6872 = vst [vmem:[#allocation2 + $0x80] sm:$0xff] %v6666
      %6873 = vst [vmem:[#allocation2 + $0x88] sm:$0xff] %v6669
      %6874 = vst [vmem:[#allocation2 + $0x90] sm:$0xff] %v6674
      %6875 = vst [vmem:[#allocation2 + $0x98] sm:$0xff] %v6677
      %6876 = vst [vmem:[#allocation2 + $0xa0] sm:$0xff] %v6682
      %6877 = vst [vmem:[#allocation2 + $0xa8] sm:$0xff] %v6685
      %6878 = vst [vmem:[#allocation2 + $0xb0] sm:$0xff] %v6690
      %6879 = vst [vmem:[#allocation2 + $0xb8] sm:$0xff] %v6693
      %6880 = vst [vmem:[#allocation2 + $0xc0] sm:$0xff] %v6698
      %6881 = vst [vmem:[#allocation2 + $0xc8] sm:$0xff] %v6701
      %6882 = vst [vmem:[#allocation2 + $0xd0] sm:$0xff] %v6706
      %6883 = vst [vmem:[#allocation2 + $0xd8] sm:$0xff] %v6709
      %6884 = vst [vmem:[#allocation2 + $0xe0] sm:$0xff] %v6714
      %6885 = vst [vmem:[#allocation2 + $0xe8] sm:$0xff] %v6717
      %6886 = vst [vmem:[#allocation2 + $0xf0] sm:$0xff] %v6722
      %6887 = vst [vmem:[#allocation2 + $0xf8] sm:$0xff] %v6725
      %6888 = vst [vmem:[#allocation2 + $0x100] sm:$0xff] %v6730
      %6889 = vst [vmem:[#allocation2 + $0x108] sm:$0xff] %v6733
      %6890 = vst [vmem:[#allocation2 + $0x110] sm:$0xff] %v6738
      %6891 = vst [vmem:[#allocation2 + $0x118] sm:$0xff] %v6741
      %6892 = vst [vmem:[#allocation2 + $0x120] sm:$0xff] %v6746
      %6893 = vst [vmem:[#allocation2 + $0x128] sm:$0xff] %v6749
      %6894 = vst [vmem:[#allocation2 + $0x130] sm:$0xff] %v6754
      %6895 = vst [vmem:[#allocation2 + $0x138] sm:$0xff] %v6757
      %6896 = vst [vmem:[#allocation2 + $0x140] sm:$0xff] %v6762
      %6897 = vst [vmem:[#allocation2 + $0x148] sm:$0xff] %v6765
      %6898 = vst [vmem:[#allocation2 + $0x150] sm:$0xff] %v6770
      %6899 = vst [vmem:[#allocation2 + $0x158] sm:$0xff] %v6773
      %6900 = vst [vmem:[#allocation2 + $0x160] sm:$0xff] %v6778
      %6901 = vst [vmem:[#allocation2 + $0x168] sm:$0xff] %v6781
      %6902 = vst [vmem:[#allocation2 + $0x170] sm:$0xff] %v6786
      %6903 = vst [vmem:[#allocation2 + $0x178] sm:$0xff] %v6789
      %6904 = vst [vmem:[#allocation2 + $0x180] sm:$0xff] %v6794
      %6905 = vst [vmem:[#allocation2 + $0x188] sm:$0xff] %v6797
      %6906 = vst [vmem:[#allocation2 + $0x190] sm:$0xff] %v6802
      %6907 = vst [vmem:[#allocation2 + $0x198] sm:$0xff] %v6805
      %6908 = vst [vmem:[#allocation2 + $0x1a0] sm:$0xff] %v6810
      %6909 = vst [vmem:[#allocation2 + $0x1a8] sm:$0xff] %v6813
      %6910 = vst [vmem:[#allocation2 + $0x1b0] sm:$0xff] %v6818
      %6911 = vst [vmem:[#allocation2 + $0x1b8] sm:$0xff] %v6821
      %6912 = vst [vmem:[#allocation2 + $0x1c0] sm:$0xff] %v6826
      %6913 = vst [vmem:[#allocation2 + $0x1c8] sm:$0xff] %v6829
      %6914 = vst [vmem:[#allocation2 + $0x1d0] sm:$0xff] %v6834
      %6915 = vst [vmem:[#allocation2 + $0x1d8] sm:$0xff] %v6837
      %6916 = vst [vmem:[#allocation2 + $0x1e0] sm:$0xff] %v6842
      %6917 = vst [vmem:[#allocation2 + $0x1e8] sm:$0xff] %v6845
      %6918 = vst [vmem:[#allocation2 + $0x1f0] sm:$0xff] %v6850
      %6919 = vst [vmem:[#allocation2 + $0x1f8] sm:$0xff] %v6853
      %v6920 = vld [vmem:[%s2] sm:$0xf]
      %v6921 = vld [vmem:[%s2 + $0x4] sm:$0xf]
      %v6922 = vld [vmem:[%s2 + $0x8] sm:$0xf]
      %v6923 = vld [vmem:[%s2 + $0xc] sm:$0xf]
      %v6924 = vld [vmem:[%s2 + $0x10] sm:$0xf]
      %v6925 = vld [vmem:[%s2 + $0x14] sm:$0xf]
      %v6926 = vld [vmem:[%s2 + $0x18] sm:$0xf]
      %v6927 = vld [vmem:[%s2 + $0x1c] sm:$0xf]
      %v6928 = vld [vmem:[%s2 + $0x20] sm:$0xf]
      %v6929 = vld [vmem:[%s2 + $0x24] sm:$0xf]
      %v6930 = vld [vmem:[%s2 + $0x28] sm:$0xf]
      %v6931 = vld [vmem:[%s2 + $0x2c] sm:$0xf]
      %v6932 = vld [vmem:[%s2 + $0x30] sm:$0xf]
      %v6933 = vld [vmem:[%s2 + $0x34] sm:$0xf]
      %v6934 = vld [vmem:[%s2 + $0x38] sm:$0xf]
      %v6935 = vld [vmem:[%s2 + $0x3c] sm:$0xf]
      %v6936 = vld [vmem:[%s2 + $0x40] sm:$0xf]
      %v6937 = vld [vmem:[%s2 + $0x44] sm:$0xf]
      %v6938 = vld [vmem:[%s2 + $0x48] sm:$0xf]
      %v6939 = vld [vmem:[%s2 + $0x4c] sm:$0xf]
      %v6940 = vld [vmem:[%s2 + $0x50] sm:$0xf]
      %v6941 = vld [vmem:[%s2 + $0x54] sm:$0xf]
      %v6942 = vld [vmem:[%s2 + $0x58] sm:$0xf]
      %v6943 = vld [vmem:[%s2 + $0x5c] sm:$0xf]
      %v6944 = vld [vmem:[%s2 + $0x60] sm:$0xf]
      %v6945 = vld [vmem:[%s2 + $0x64] sm:$0xf]
      %v6946 = vld [vmem:[%s2 + $0x68] sm:$0xf]
      %v6947 = vld [vmem:[%s2 + $0x6c] sm:$0xf]
      %v6948 = vld [vmem:[%s2 + $0x70] sm:$0xf]
      %v6949 = vld [vmem:[%s2 + $0x74] sm:$0xf]
      %v6950 = vld [vmem:[%s2 + $0x78] sm:$0xf]
      %v6951 = vld [vmem:[%s2 + $0x7c] sm:$0xf]
      %v6952 = vld [vmem:[%s2 + $0x80] sm:$0xf]
      %v6953 = vld [vmem:[%s2 + $0x84] sm:$0xf]
      %v6954 = vld [vmem:[%s2 + $0x88] sm:$0xf]
      %v6955 = vld [vmem:[%s2 + $0x8c] sm:$0xf]
      %v6956 = vld [vmem:[%s2 + $0x90] sm:$0xf]
      %v6957 = vld [vmem:[%s2 + $0x94] sm:$0xf]
      %v6958 = vld [vmem:[%s2 + $0x98] sm:$0xf]
      %v6959 = vld [vmem:[%s2 + $0x9c] sm:$0xf]
      %v6960 = vld [vmem:[%s2 + $0xa0] sm:$0xf]
      %v6961 = vld [vmem:[%s2 + $0xa4] sm:$0xf]
      %v6962 = vld [vmem:[%s2 + $0xa8] sm:$0xf]
      %v6963 = vld [vmem:[%s2 + $0xac] sm:$0xf]
      %v6964 = vld [vmem:[%s2 + $0xb0] sm:$0xf]
      %v6965 = vld [vmem:[%s2 + $0xb4] sm:$0xf]
      %v6966 = vld [vmem:[%s2 + $0xb8] sm:$0xf]
      %v6967 = vld [vmem:[%s2 + $0xbc] sm:$0xf]
      %v7016 = vunpack.c.l.b16 %v6920
      %v7017 = vunpack.c.l.b16 %v6921
      %v7018 = vunpack.c.l.b16 %v6922
      %v7019 = vunpack.c.l.b16 %v6923
      %v7020 = vunpack.c.l.b16 %v6924
      %v7021 = vunpack.c.l.b16 %v6925
      %v7022 = vunpack.c.l.b16 %v6926
      %v7023 = vunpack.c.l.b16 %v6927
      %v7024 = vunpack.c.l.b16 %v6928
      %v7025 = vunpack.c.l.b16 %v6929
      %v7026 = vunpack.c.l.b16 %v6930
      %v7027 = vunpack.c.l.b16 %v6931
      %v7028 = vunpack.c.l.b16 %v6932
      %v7029 = vunpack.c.l.b16 %v6933
      %v7030 = vunpack.c.l.b16 %v6934
      %v7031 = vunpack.c.l.b16 %v6935
      %v7032 = vunpack.c.l.b16 %v6936
      %v7033 = vunpack.c.l.b16 %v6937
      %v7034 = vunpack.c.l.b16 %v6938
      %v7035 = vunpack.c.l.b16 %v6939
      %v7036 = vunpack.c.l.b16 %v6940
      %v7037 = vunpack.c.l.b16 %v6941
      %v7038 = vunpack.c.l.b16 %v6942
      %v7039 = vunpack.c.l.b16 %v6943
      %v7040 = vunpack.c.l.b16 %v6944
      %v7041 = vunpack.c.l.b16 %v6945
      %v7042 = vunpack.c.l.b16 %v6946
      %v7043 = vunpack.c.l.b16 %v6947
      %v7044 = vunpack.c.l.b16 %v6948
      %v7045 = vunpack.c.l.b16 %v6949
      %v7046 = vunpack.c.l.b16 %v6950
      %v7047 = vunpack.c.l.b16 %v6951
      %v7048 = vunpack.c.l.b16 %v6952
      %v7049 = vunpack.c.l.b16 %v6953
      %v7050 = vunpack.c.l.b16 %v6954
      %v7051 = vunpack.c.l.b16 %v6955
      %v7052 = vunpack.c.l.b16 %v6956
      %v7053 = vunpack.c.l.b16 %v6957
      %v7054 = vunpack.c.l.b16 %v6958
      %v7055 = vunpack.c.l.b16 %v6959
      %v7056 = vunpack.c.l.b16 %v6960
      %v7057 = vunpack.c.l.b16 %v6961
      %v7058 = vunpack.c.l.b16 %v6962
      %v7059 = vunpack.c.l.b16 %v6963
      %v7060 = vunpack.c.l.b16 %v6964
      %v7061 = vunpack.c.l.b16 %v6965
      %v7062 = vunpack.c.l.b16 %v6966
      %v7063 = vunpack.c.l.b16 %v6967
      %v7064 = vpack.c.b16 %v7017, %v7016
      %v7065 = vpack.c.b16 %v7019, %v7018
      %v7066 = vpack.c.b16 %v7021, %v7020
      %v7067 = vpack.c.b16 %v7023, %v7022
      %v7068 = vpack.c.b16 %v7025, %v7024
      %v7069 = vpack.c.b16 %v7027, %v7026
      %v7070 = vpack.c.b16 %v7029, %v7028
      %v7071 = vpack.c.b16 %v7031, %v7030
      %v7072 = vpack.c.b16 %v7033, %v7032
      %v7073 = vpack.c.b16 %v7035, %v7034
      %v7074 = vpack.c.b16 %v7037, %v7036
      %v7075 = vpack.c.b16 %v7039, %v7038
      %v7076 = vpack.c.b16 %v7041, %v7040
      %v7077 = vpack.c.b16 %v7043, %v7042
      %v7078 = vpack.c.b16 %v7045, %v7044
      %v7079 = vpack.c.b16 %v7047, %v7046
      %v7080 = vpack.c.b16 %v7049, %v7048
      %v7081 = vpack.c.b16 %v7051, %v7050
      %v7082 = vpack.c.b16 %v7053, %v7052
      %v7083 = vpack.c.b16 %v7055, %v7054
      %v7084 = vpack.c.b16 %v7057, %v7056
      %v7085 = vpack.c.b16 %v7059, %v7058
      %v7086 = vpack.c.b16 %v7061, %v7060
      %v7087 = vpack.c.b16 %v7063, %v7062
      %7112 = vmatprep.subr.bf16.mxu0 0
      %7113 = vmatpush1.bf16.msra.mxu0 %v7071
      %7114 = vmatprep.subr.bf16.mxu0 0
      %7115 = vmatpush1.bf16.msra.mxu0 %v7070
      %7116 = vmatprep.subr.bf16.mxu0 0
      %7117 = vmatpush1.bf16.msra.mxu0 %v7069
      %7118 = vmatprep.subr.bf16.mxu0 0
      %7119 = vmatpush1.bf16.msra.mxu0 %v7068
      %7120 = vmatprep.subr.bf16.mxu0 0
      %7121 = vmatpush1.bf16.msra.mxu0 %v7067
      %7122 = vmatprep.subr.bf16.mxu0 0
      %7123 = vmatpush1.bf16.msra.mxu0 %v7066
      %7124 = vmatprep.subr.bf16.mxu0 0
      %7125 = vmatpush1.bf16.msra.mxu0 %v7065
      %7126 = vmatprep.subr.bf16.mxu0 0
      %7127 = vmatpush1.bf16.msra.mxu0 %v7064
      %7128 = vmatprep.subr.bf16.mxu0 0
      %7129 = vmatpush2.bf16.msra.mxu0 %v7079
      %7130 = vmatprep.subr.bf16.mxu0 0
      %7131 = vmatpush2.bf16.msra.mxu0 %v7078
      %7132 = vmatprep.subr.bf16.mxu0 0
      %7133 = vmatpush2.bf16.msra.mxu0 %v7077
      %7134 = vmatprep.subr.bf16.mxu0 0
      %7135 = vmatpush2.bf16.msra.mxu0 %v7076
      %7136 = vmatprep.subr.bf16.mxu0 0
      %7137 = vmatpush2.bf16.msra.mxu0 %v7075
      %7138 = vmatprep.subr.bf16.mxu0 0
      %7139 = vmatpush2.bf16.msra.mxu0 %v7074
      %7140 = vmatprep.subr.bf16.mxu0 0
      %7141 = vmatpush2.bf16.msra.mxu0 %v7073
      %7142 = vmatprep.subr.bf16.mxu0 0
      %7143 = vmatpush2.bf16.msra.mxu0 %v7072
      %7144 = vmatprep.mubr.bf16.mxu0 %v5819
      %7145 = vmatmul.mubr.bf16.gmra.mxu0 %v5817
      %v7146 = vpop.f32.mrf.mxu0
      %v7147 = vadd.f32 0.0, %v7146
      %v7148 = vpop.f32.mrf.mxu0
      %v7149 = vpop.f32.mrf.mxu0
      %v7150 = vadd.f32 0.0, %v7149
      %v7151 = vpop.f32.mrf.mxu0
      %7152 = vmatprep.mubr.bf16.mxu0 %v5820
      %7153 = vmatmul.mubr.bf16.gmra.mxu0 %v5818
      %v7154 = vpop.f32.mrf.mxu0
      %v7155 = vadd.f32 0.0, %v7154
      %v7156 = vpop.f32.mrf.mxu0
      %v7157 = vpop.f32.mrf.mxu0
      %v7158 = vadd.f32 0.0, %v7157
      %v7159 = vpop.f32.mrf.mxu0
      %7160 = vmatprep.mubr.bf16.mxu0 %v5821
      %7161 = vmatmul.mubr.bf16.gmra.mxu0 %v5819
      %v7162 = vpop.f32.mrf.mxu0
      %v7163 = vadd.f32 0.0, %v7162
      %v7164 = vpop.f32.mrf.mxu0
      %v7165 = vpop.f32.mrf.mxu0
      %v7166 = vadd.f32 0.0, %v7165
      %v7167 = vpop.f32.mrf.mxu0
      %7168 = vmatprep.mubr.bf16.mxu0 %v5822
      %7169 = vmatmul.mubr.bf16.gmra.mxu0 %v5820
      %v7170 = vpop.f32.mrf.mxu0
      %v7171 = vadd.f32 0.0, %v7170
      %v7172 = vpop.f32.mrf.mxu0
      %v7173 = vpop.f32.mrf.mxu0
      %v7174 = vadd.f32 0.0, %v7173
      %v7175 = vpop.f32.mrf.mxu0
      %7176 = vmatprep.mubr.bf16.mxu0 %v5823
      %7177 = vmatmul.mubr.bf16.gmra.mxu0 %v5821
      %v7178 = vpop.f32.mrf.mxu0
      %v7179 = vadd.f32 0.0, %v7178
      %v7180 = vpop.f32.mrf.mxu0
      %v7181 = vpop.f32.mrf.mxu0
      %v7182 = vadd.f32 0.0, %v7181
      %v7183 = vpop.f32.mrf.mxu0
      %7184 = vmatprep.mubr.bf16.mxu0 %v5824
      %7185 = vmatmul.mubr.bf16.gmra.mxu0 %v5822
      %v7186 = vpop.f32.mrf.mxu0
      %v7187 = vadd.f32 0.0, %v7186
      %v7188 = vpop.f32.mrf.mxu0
      %v7189 = vpop.f32.mrf.mxu0
      %v7190 = vadd.f32 0.0, %v7189
      %v7191 = vpop.f32.mrf.mxu0
      %7192 = vmatprep.mubr.bf16.mxu0 %v5825
      %7193 = vmatmul.mubr.bf16.gmra.mxu0 %v5823
      %v7194 = vpop.f32.mrf.mxu0
      %v7195 = vadd.f32 0.0, %v7194
      %v7196 = vpop.f32.mrf.mxu0
      %v7197 = vpop.f32.mrf.mxu0
      %v7198 = vadd.f32 0.0, %v7197
      %v7199 = vpop.f32.mrf.mxu0
      %7200 = vmatprep.mubr.bf16.mxu0 %v5826
      %7201 = vmatmul.mubr.bf16.gmra.mxu0 %v5824
      %v7202 = vpop.f32.mrf.mxu0
      %v7203 = vadd.f32 0.0, %v7202
      %v7204 = vpop.f32.mrf.mxu0
      %v7205 = vpop.f32.mrf.mxu0
      %v7206 = vadd.f32 0.0, %v7205
      %v7207 = vpop.f32.mrf.mxu0
      %7208 = vmatprep.mubr.bf16.mxu0 %v5827
      %7209 = vmatmul.mubr.bf16.gmra.mxu0 %v5825
      %v7210 = vpop.f32.mrf.mxu0
      %v7211 = vadd.f32 0.0, %v7210
      %v7212 = vpop.f32.mrf.mxu0
      %v7213 = vpop.f32.mrf.mxu0
      %v7214 = vadd.f32 0.0, %v7213
      %v7215 = vpop.f32.mrf.mxu0
      %7216 = vmatprep.mubr.bf16.mxu0 %v5828
      %7217 = vmatmul.mubr.bf16.gmra.mxu0 %v5826
      %v7218 = vpop.f32.mrf.mxu0
      %v7219 = vadd.f32 0.0, %v7218
      %v7220 = vpop.f32.mrf.mxu0
      %v7221 = vpop.f32.mrf.mxu0
      %v7222 = vadd.f32 0.0, %v7221
      %v7223 = vpop.f32.mrf.mxu0
      %7224 = vmatprep.mubr.bf16.mxu0 %v5829
      %7225 = vmatmul.mubr.bf16.gmra.mxu0 %v5827
      %v7226 = vpop.f32.mrf.mxu0
      %v7227 = vadd.f32 0.0, %v7226
      %v7228 = vpop.f32.mrf.mxu0
      %v7229 = vpop.f32.mrf.mxu0
      %v7230 = vadd.f32 0.0, %v7229
      %v7231 = vpop.f32.mrf.mxu0
      %7232 = vmatprep.mubr.bf16.mxu0 %v5830
      %7233 = vmatmul.mubr.bf16.gmra.mxu0 %v5828
      %v7234 = vpop.f32.mrf.mxu0
      %v7235 = vadd.f32 0.0, %v7234
      %v7236 = vpop.f32.mrf.mxu0
      %v7237 = vpop.f32.mrf.mxu0
      %v7238 = vadd.f32 0.0, %v7237
      %v7239 = vpop.f32.mrf.mxu0
      %7240 = vmatprep.mubr.bf16.mxu0 %v5831
      %7241 = vmatmul.mubr.bf16.gmra.mxu0 %v5829
      %v7242 = vpop.f32.mrf.mxu0
      %v7243 = vadd.f32 0.0, %v7242
      %v7244 = vpop.f32.mrf.mxu0
      %v7245 = vpop.f32.mrf.mxu0
      %v7246 = vadd.f32 0.0, %v7245
      %v7247 = vpop.f32.mrf.mxu0
      %7248 = vmatprep.mubr.bf16.mxu0 %v5832
      %7249 = vmatmul.mubr.bf16.gmra.mxu0 %v5830
      %v7250 = vpop.f32.mrf.mxu0
      %v7251 = vadd.f32 0.0, %v7250
      %v7252 = vpop.f32.mrf.mxu0
      %v7253 = vpop.f32.mrf.mxu0
      %v7254 = vadd.f32 0.0, %v7253
      %v7255 = vpop.f32.mrf.mxu0
      %7256 = vmatprep.mubr.bf16.mxu0 %v5833
      %7257 = vmatmul.mubr.bf16.gmra.mxu0 %v5831
      %v7258 = vpop.f32.mrf.mxu0
      %v7259 = vadd.f32 0.0, %v7258
      %v7260 = vpop.f32.mrf.mxu0
      %v7261 = vpop.f32.mrf.mxu0
      %v7262 = vadd.f32 0.0, %v7261
      %v7263 = vpop.f32.mrf.mxu0
      %7264 = vmatprep.mubr.bf16.mxu0 %v5834
      %7265 = vmatmul.mubr.bf16.gmra.mxu0 %v5832
      %v7266 = vpop.f32.mrf.mxu0
      %v7267 = vadd.f32 0.0, %v7266
      %v7268 = vpop.f32.mrf.mxu0
      %v7269 = vpop.f32.mrf.mxu0
      %v7270 = vadd.f32 0.0, %v7269
      %v7271 = vpop.f32.mrf.mxu0
      %7272 = vmatprep.mubr.bf16.mxu0 %v5835
      %7273 = vmatmul.mubr.bf16.gmra.mxu0 %v5833
      %v7274 = vpop.f32.mrf.mxu0
      %v7275 = vadd.f32 0.0, %v7274
      %v7276 = vpop.f32.mrf.mxu0
      %v7277 = vpop.f32.mrf.mxu0
      %v7278 = vadd.f32 0.0, %v7277
      %v7279 = vpop.f32.mrf.mxu0
      %7280 = vmatprep.mubr.bf16.mxu0 %v5836
      %7281 = vmatmul.mubr.bf16.gmra.mxu0 %v5834
      %v7282 = vpop.f32.mrf.mxu0
      %v7283 = vadd.f32 0.0, %v7282
      %v7284 = vpop.f32.mrf.mxu0
      %v7285 = vpop.f32.mrf.mxu0
      %v7286 = vadd.f32 0.0, %v7285
      %v7287 = vpop.f32.mrf.mxu0
      %7288 = vmatprep.mubr.bf16.mxu0 %v5837
      %7289 = vmatmul.mubr.bf16.gmra.mxu0 %v5835
      %v7290 = vpop.f32.mrf.mxu0
      %v7291 = vadd.f32 0.0, %v7290
      %v7292 = vpop.f32.mrf.mxu0
      %v7293 = vpop.f32.mrf.mxu0
      %v7294 = vadd.f32 0.0, %v7293
      %v7295 = vpop.f32.mrf.mxu0
      %7296 = vmatprep.mubr.bf16.mxu0 %v5838
      %7297 = vmatmul.mubr.bf16.gmra.mxu0 %v5836
      %v7298 = vpop.f32.mrf.mxu0
      %v7299 = vadd.f32 0.0, %v7298
      %v7300 = vpop.f32.mrf.mxu0
      %v7301 = vpop.f32.mrf.mxu0
      %v7302 = vadd.f32 0.0, %v7301
      %v7303 = vpop.f32.mrf.mxu0
      %7304 = vmatprep.mubr.bf16.mxu0 %v5839
      %7305 = vmatmul.mubr.bf16.gmra.mxu0 %v5837
      %v7306 = vpop.f32.mrf.mxu0
      %v7307 = vadd.f32 0.0, %v7306
      %v7308 = vpop.f32.mrf.mxu0
      %v7309 = vpop.f32.mrf.mxu0
      %v7310 = vadd.f32 0.0, %v7309
      %v7311 = vpop.f32.mrf.mxu0
      %7312 = vmatprep.mubr.bf16.mxu0 %v5840
      %7313 = vmatmul.mubr.bf16.gmra.mxu0 %v5838
      %v7314 = vpop.f32.mrf.mxu0
      %v7315 = vadd.f32 0.0, %v7314
      %v7316 = vpop.f32.mrf.mxu0
      %v7317 = vpop.f32.mrf.mxu0
      %v7318 = vadd.f32 0.0, %v7317
      %v7319 = vpop.f32.mrf.mxu0
      %7320 = vmatprep.mubr.bf16.mxu0 %v5841
      %7321 = vmatmul.mubr.bf16.gmra.mxu0 %v5839
      %v7322 = vpop.f32.mrf.mxu0
      %v7323 = vadd.f32 0.0, %v7322
      %v7324 = vpop.f32.mrf.mxu0
      %v7325 = vpop.f32.mrf.mxu0
      %v7326 = vadd.f32 0.0, %v7325
      %v7327 = vpop.f32.mrf.mxu0
      %7328 = vmatprep.mubr.bf16.mxu0 %v5842
      %7329 = vmatmul.mubr.bf16.gmra.mxu0 %v5840
      %v7330 = vpop.f32.mrf.mxu0
      %v7331 = vadd.f32 0.0, %v7330
      %v7332 = vpop.f32.mrf.mxu0
      %v7333 = vpop.f32.mrf.mxu0
      %v7334 = vadd.f32 0.0, %v7333
      %v7335 = vpop.f32.mrf.mxu0
      %7336 = vmatprep.mubr.bf16.mxu0 %v5843
      %7337 = vmatmul.mubr.bf16.gmra.mxu0 %v5841
      %v7338 = vpop.f32.mrf.mxu0
      %v7339 = vadd.f32 0.0, %v7338
      %v7340 = vpop.f32.mrf.mxu0
      %v7341 = vpop.f32.mrf.mxu0
      %v7342 = vadd.f32 0.0, %v7341
      %v7343 = vpop.f32.mrf.mxu0
      %7344 = vmatprep.mubr.bf16.mxu0 %v5844
      %7345 = vmatmul.mubr.bf16.gmra.mxu0 %v5842
      %v7346 = vpop.f32.mrf.mxu0
      %v7347 = vadd.f32 0.0, %v7346
      %v7348 = vpop.f32.mrf.mxu0
      %v7349 = vpop.f32.mrf.mxu0
      %v7350 = vadd.f32 0.0, %v7349
      %v7351 = vpop.f32.mrf.mxu0
      %7352 = vmatprep.mubr.bf16.mxu0 %v5845
      %7353 = vmatmul.mubr.bf16.gmra.mxu0 %v5843
      %v7354 = vpop.f32.mrf.mxu0
      %v7355 = vadd.f32 0.0, %v7354
      %v7356 = vpop.f32.mrf.mxu0
      %v7357 = vpop.f32.mrf.mxu0
      %v7358 = vadd.f32 0.0, %v7357
      %v7359 = vpop.f32.mrf.mxu0
      %7360 = vmatprep.mubr.bf16.mxu0 %v5846
      %7361 = vmatmul.mubr.bf16.gmra.mxu0 %v5844
      %v7362 = vpop.f32.mrf.mxu0
      %v7363 = vadd.f32 0.0, %v7362
      %v7364 = vpop.f32.mrf.mxu0
      %v7365 = vpop.f32.mrf.mxu0
      %v7366 = vadd.f32 0.0, %v7365
      %v7367 = vpop.f32.mrf.mxu0
      %7368 = vmatprep.mubr.bf16.mxu0 %v5847
      %7369 = vmatmul.mubr.bf16.gmra.mxu0 %v5845
      %v7370 = vpop.f32.mrf.mxu0
      %v7371 = vadd.f32 0.0, %v7370
      %v7372 = vpop.f32.mrf.mxu0
      %v7373 = vpop.f32.mrf.mxu0
      %v7374 = vadd.f32 0.0, %v7373
      %v7375 = vpop.f32.mrf.mxu0
      %7376 = vmatprep.mubr.bf16.mxu0 %v5848
      %7377 = vmatmul.mubr.bf16.gmra.mxu0 %v5846
      %v7378 = vpop.f32.mrf.mxu0
      %v7379 = vadd.f32 0.0, %v7378
      %v7380 = vpop.f32.mrf.mxu0
      %v7381 = vpop.f32.mrf.mxu0
      %v7382 = vadd.f32 0.0, %v7381
      %v7383 = vpop.f32.mrf.mxu0
      %7384 = vmatprep.mubr.bf16.mxu0 %v5889
      %7385 = vmatmul.mubr.bf16.gmra.mxu0 %v5847
      %v7386 = vpop.f32.mrf.mxu0
      %v7387 = vadd.f32 0.0, %v7386
      %v7388 = vpop.f32.mrf.mxu0
      %v7389 = vpop.f32.mrf.mxu0
      %v7390 = vadd.f32 0.0, %v7389
      %v7391 = vpop.f32.mrf.mxu0
      %7392 = vmatprep.mubr.bf16.mxu0 %v5890
      %7393 = vmatmul.mubr.bf16.gmra.mxu0 %v5848
      %v7394 = vpop.f32.mrf.mxu0
      %v7395 = vadd.f32 0.0, %v7394
      %v7396 = vpop.f32.mrf.mxu0
      %v7397 = vpop.f32.mrf.mxu0
      %v7398 = vadd.f32 0.0, %v7397
      %v7399 = vpop.f32.mrf.mxu0
      %7400 = vdwg.mxu0
      %7401 = vmatprep.subr.bf16.mxu0 0
      %7402 = vmatpush1.bf16.msra.mxu0 %v7087
      %7403 = vmatprep.subr.bf16.mxu0 0
      %7404 = vmatpush1.bf16.msra.mxu0 %v7086
      %7405 = vmatprep.subr.bf16.mxu0 0
      %7406 = vmatpush1.bf16.msra.mxu0 %v7085
      %7407 = vmatprep.subr.bf16.mxu0 0
      %7408 = vmatpush1.bf16.msra.mxu0 %v7084
      %7409 = vmatprep.subr.bf16.mxu0 0
      %7410 = vmatpush1.bf16.msra.mxu0 %v7083
      %7411 = vmatprep.subr.bf16.mxu0 0
      %7412 = vmatpush1.bf16.msra.mxu0 %v7082
      %7413 = vmatprep.subr.bf16.mxu0 0
      %7414 = vmatpush1.bf16.msra.mxu0 %v7081
      %7415 = vmatprep.subr.bf16.mxu0 0
      %7416 = vmatpush1.bf16.msra.mxu0 %v7080
      %7417 = vmatprep.subr.bf16.mxu0 0
      %7418 = vmatpush2.bf16.msra.mxu0 0
      %7419 = vmatprep.subr.bf16.mxu0 0
      %7420 = vmatpush2.bf16.msra.mxu0 0
      %7421 = vmatprep.subr.bf16.mxu0 0
      %7422 = vmatpush2.bf16.msra.mxu0 0
      %7423 = vmatprep.subr.bf16.mxu0 0
      %7424 = vmatpush2.bf16.msra.mxu0 0
      %7425 = vmatprep.subr.bf16.mxu0 0
      %7426 = vmatpush2.bf16.msra.mxu0 0
      %7427 = vmatprep.subr.bf16.mxu0 0
      %7428 = vmatpush2.bf16.msra.mxu0 0
      %7429 = vmatprep.subr.bf16.mxu0 0
      %7430 = vmatpush2.bf16.msra.mxu0 0
      %7431 = vmatprep.subr.bf16.mxu0 0
      %7432 = vmatpush2.bf16.msra.mxu0 0
      %7433 = vmatprep.mubr.bf16.mxu0 0
      %7434 = vmatmul.mubr.bf16.gmra.mxu0 %v6021
      %v7435 = vpop.f32.mrf.mxu0
      %v7436 = vadd.f32 %v7147, %v7435
      %v7437 = vpop.f32.mrf.mxu0
      %v7438 = vpop.f32.mrf.mxu0
      %v7439 = vadd.f32 %v7150, %v7438
      %v7440 = vpop.f32.mrf.mxu0
      %7441 = vmatprep.mubr.bf16.mxu0 0
      %7442 = vmatmul.mubr.bf16.gmra.mxu0 %v6022
      %v7443 = vpop.f32.mrf.mxu0
      %v7444 = vadd.f32 %v7155, %v7443
      %v7445 = vpop.f32.mrf.mxu0
      %v7446 = vpop.f32.mrf.mxu0
      %v7447 = vadd.f32 %v7158, %v7446
      %v7448 = vpop.f32.mrf.mxu0
      %7449 = vmatprep.mubr.bf16.mxu0 0
      %7450 = vmatmul.mubr.bf16.gmra.mxu0 %v6023
      %v7451 = vpop.f32.mrf.mxu0
      %v7452 = vadd.f32 %v7163, %v7451
      %v7453 = vpop.f32.mrf.mxu0
      %v7454 = vpop.f32.mrf.mxu0
      %v7455 = vadd.f32 %v7166, %v7454
      %v7456 = vpop.f32.mrf.mxu0
      %7457 = vmatprep.mubr.bf16.mxu0 0
      %7458 = vmatmul.mubr.bf16.gmra.mxu0 %v6024
      %v7459 = vpop.f32.mrf.mxu0
      %v7460 = vadd.f32 %v7171, %v7459
      %v7461 = vpop.f32.mrf.mxu0
      %v7462 = vpop.f32.mrf.mxu0
      %v7463 = vadd.f32 %v7174, %v7462
      %v7464 = vpop.f32.mrf.mxu0
      %7465 = vmatprep.mubr.bf16.mxu0 0
      %7466 = vmatmul.mubr.bf16.gmra.mxu0 %v6025
      %v7467 = vpop.f32.mrf.mxu0
      %v7468 = vadd.f32 %v7179, %v7467
      %v7469 = vpop.f32.mrf.mxu0
      %v7470 = vpop.f32.mrf.mxu0
      %v7471 = vadd.f32 %v7182, %v7470
      %v7472 = vpop.f32.mrf.mxu0
      %7473 = vmatprep.mubr.bf16.mxu0 0
      %7474 = vmatmul.mubr.bf16.gmra.mxu0 %v6026
      %v7475 = vpop.f32.mrf.mxu0
      %v7476 = vadd.f32 %v7187, %v7475
      %v7477 = vpop.f32.mrf.mxu0
      %v7478 = vpop.f32.mrf.mxu0
      %v7479 = vadd.f32 %v7190, %v7478
      %v7480 = vpop.f32.mrf.mxu0
      %7481 = vmatprep.mubr.bf16.mxu0 0
      %7482 = vmatmul.mubr.bf16.gmra.mxu0 %v6027
      %v7483 = vpop.f32.mrf.mxu0
      %v7484 = vadd.f32 %v7195, %v7483
      %v7485 = vpop.f32.mrf.mxu0
      %v7486 = vpop.f32.mrf.mxu0
      %v7487 = vadd.f32 %v7198, %v7486
      %v7488 = vpop.f32.mrf.mxu0
      %7489 = vmatprep.mubr.bf16.mxu0 0
      %7490 = vmatmul.mubr.bf16.gmra.mxu0 %v6028
      %v7491 = vpop.f32.mrf.mxu0
      %v7492 = vadd.f32 %v7203, %v7491
      %v7493 = vpop.f32.mrf.mxu0
      %v7494 = vpop.f32.mrf.mxu0
      %v7495 = vadd.f32 %v7206, %v7494
      %v7496 = vpop.f32.mrf.mxu0
      %7497 = vmatprep.mubr.bf16.mxu0 0
      %7498 = vmatmul.mubr.bf16.gmra.mxu0 %v6029
      %v7499 = vpop.f32.mrf.mxu0
      %v7500 = vadd.f32 %v7211, %v7499
      %v7501 = vpop.f32.mrf.mxu0
      %v7502 = vpop.f32.mrf.mxu0
      %v7503 = vadd.f32 %v7214, %v7502
      %v7504 = vpop.f32.mrf.mxu0
      %7505 = vmatprep.mubr.bf16.mxu0 0
      %7506 = vmatmul.mubr.bf16.gmra.mxu0 %v6030
      %v7507 = vpop.f32.mrf.mxu0
      %v7508 = vadd.f32 %v7219, %v7507
      %v7509 = vpop.f32.mrf.mxu0
      %v7510 = vpop.f32.mrf.mxu0
      %v7511 = vadd.f32 %v7222, %v7510
      %v7512 = vpop.f32.mrf.mxu0
      %7513 = vmatprep.mubr.bf16.mxu0 0
      %7514 = vmatmul.mubr.bf16.gmra.mxu0 %v6031
      %v7515 = vpop.f32.mrf.mxu0
      %v7516 = vadd.f32 %v7227, %v7515
      %v7517 = vpop.f32.mrf.mxu0
      %v7518 = vpop.f32.mrf.mxu0
      %v7519 = vadd.f32 %v7230, %v7518
      %v7520 = vpop.f32.mrf.mxu0
      %7521 = vmatprep.mubr.bf16.mxu0 0
      %7522 = vmatmul.mubr.bf16.gmra.mxu0 %v6032
      %v7523 = vpop.f32.mrf.mxu0
      %v7524 = vadd.f32 %v7235, %v7523
      %v7525 = vpop.f32.mrf.mxu0
      %v7526 = vpop.f32.mrf.mxu0
      %v7527 = vadd.f32 %v7238, %v7526
      %v7528 = vpop.f32.mrf.mxu0
      %7529 = vmatprep.mubr.bf16.mxu0 0
      %7530 = vmatmul.mubr.bf16.gmra.mxu0 %v6033
      %v7531 = vpop.f32.mrf.mxu0
      %v7532 = vadd.f32 %v7243, %v7531
      %v7533 = vpop.f32.mrf.mxu0
      %v7534 = vpop.f32.mrf.mxu0
      %v7535 = vadd.f32 %v7246, %v7534
      %v7536 = vpop.f32.mrf.mxu0
      %7537 = vmatprep.mubr.bf16.mxu0 0
      %7538 = vmatmul.mubr.bf16.gmra.mxu0 %v6034
      %v7539 = vpop.f32.mrf.mxu0
      %v7540 = vadd.f32 %v7251, %v7539
      %v7541 = vpop.f32.mrf.mxu0
      %v7542 = vpop.f32.mrf.mxu0
      %v7543 = vadd.f32 %v7254, %v7542
      %v7544 = vpop.f32.mrf.mxu0
      %7545 = vmatprep.mubr.bf16.mxu0 0
      %7546 = vmatmul.mubr.bf16.gmra.mxu0 %v6035
      %v7547 = vpop.f32.mrf.mxu0
      %v7548 = vadd.f32 %v7259, %v7547
      %v7549 = vpop.f32.mrf.mxu0
      %v7550 = vpop.f32.mrf.mxu0
      %v7551 = vadd.f32 %v7262, %v7550
      %v7552 = vpop.f32.mrf.mxu0
      %7553 = vmatprep.mubr.bf16.mxu0 0
      %7554 = vmatmul.mubr.bf16.gmra.mxu0 %v6036
      %v7555 = vpop.f32.mrf.mxu0
      %v7556 = vadd.f32 %v7267, %v7555
      %v7557 = vpop.f32.mrf.mxu0
      %v7558 = vpop.f32.mrf.mxu0
      %v7559 = vadd.f32 %v7270, %v7558
      %v7560 = vpop.f32.mrf.mxu0
      %7561 = vmatprep.mubr.bf16.mxu0 0
      %7562 = vmatmul.mubr.bf16.gmra.mxu0 %v6037
      %v7563 = vpop.f32.mrf.mxu0
      %v7564 = vadd.f32 %v7275, %v7563
      %v7565 = vpop.f32.mrf.mxu0
      %v7566 = vpop.f32.mrf.mxu0
      %v7567 = vadd.f32 %v7278, %v7566
      %v7568 = vpop.f32.mrf.mxu0
      %7569 = vmatprep.mubr.bf16.mxu0 0
      %7570 = vmatmul.mubr.bf16.gmra.mxu0 %v6038
      %v7571 = vpop.f32.mrf.mxu0
      %v7572 = vadd.f32 %v7283, %v7571
      %v7573 = vpop.f32.mrf.mxu0
      %v7574 = vpop.f32.mrf.mxu0
      %v7575 = vadd.f32 %v7286, %v7574
      %v7576 = vpop.f32.mrf.mxu0
      %7577 = vmatprep.mubr.bf16.mxu0 0
      %7578 = vmatmul.mubr.bf16.gmra.mxu0 %v6039
      %v7579 = vpop.f32.mrf.mxu0
      %v7580 = vadd.f32 %v7291, %v7579
      %v7581 = vpop.f32.mrf.mxu0
      %v7582 = vpop.f32.mrf.mxu0
      %v7583 = vadd.f32 %v7294, %v7582
      %v7584 = vpop.f32.mrf.mxu0
      %7585 = vmatprep.mubr.bf16.mxu0 0
      %7586 = vmatmul.mubr.bf16.gmra.mxu0 %v6040
      %v7587 = vpop.f32.mrf.mxu0
      %v7588 = vadd.f32 %v7299, %v7587
      %v7589 = vpop.f32.mrf.mxu0
      %v7590 = vpop.f32.mrf.mxu0
      %v7591 = vadd.f32 %v7302, %v7590
      %v7592 = vpop.f32.mrf.mxu0
      %7593 = vmatprep.mubr.bf16.mxu0 0
      %7594 = vmatmul.mubr.bf16.gmra.mxu0 %v6041
      %v7595 = vpop.f32.mrf.mxu0
      %v7596 = vadd.f32 %v7307, %v7595
      %v7597 = vpop.f32.mrf.mxu0
      %v7598 = vpop.f32.mrf.mxu0
      %v7599 = vadd.f32 %v7310, %v7598
      %v7600 = vpop.f32.mrf.mxu0
      %7601 = vmatprep.mubr.bf16.mxu0 0
      %7602 = vmatmul.mubr.bf16.gmra.mxu0 %v6042
      %v7603 = vpop.f32.mrf.mxu0
      %v7604 = vadd.f32 %v7315, %v7603
      %v7605 = vpop.f32.mrf.mxu0
      %v7606 = vpop.f32.mrf.mxu0
      %v7607 = vadd.f32 %v7318, %v7606
      %v7608 = vpop.f32.mrf.mxu0
      %7609 = vmatprep.mubr.bf16.mxu0 0
      %7610 = vmatmul.mubr.bf16.gmra.mxu0 %v6043
      %v7611 = vpop.f32.mrf.mxu0
      %v7612 = vadd.f32 %v7323, %v7611
      %v7613 = vpop.f32.mrf.mxu0
      %v7614 = vpop.f32.mrf.mxu0
      %v7615 = vadd.f32 %v7326, %v7614
      %v7616 = vpop.f32.mrf.mxu0
      %7617 = vmatprep.mubr.bf16.mxu0 0
      %7618 = vmatmul.mubr.bf16.gmra.mxu0 %v6044
      %v7619 = vpop.f32.mrf.mxu0
      %v7620 = vadd.f32 %v7331, %v7619
      %v7621 = vpop.f32.mrf.mxu0
      %v7622 = vpop.f32.mrf.mxu0
      %v7623 = vadd.f32 %v7334, %v7622
      %v7624 = vpop.f32.mrf.mxu0
      %7625 = vmatprep.mubr.bf16.mxu0 0
      %7626 = vmatmul.mubr.bf16.gmra.mxu0 %v6045
      %v7627 = vpop.f32.mrf.mxu0
      %v7628 = vadd.f32 %v7339, %v7627
      %v7629 = vpop.f32.mrf.mxu0
      %v7630 = vpop.f32.mrf.mxu0
      %v7631 = vadd.f32 %v7342, %v7630
      %v7632 = vpop.f32.mrf.mxu0
      %7633 = vmatprep.mubr.bf16.mxu0 0
      %7634 = vmatmul.mubr.bf16.gmra.mxu0 %v6046
      %v7635 = vpop.f32.mrf.mxu0
      %v7636 = vadd.f32 %v7347, %v7635
      %v7637 = vpop.f32.mrf.mxu0
      %v7638 = vpop.f32.mrf.mxu0
      %v7639 = vadd.f32 %v7350, %v7638
      %v7640 = vpop.f32.mrf.mxu0
      %7641 = vmatprep.mubr.bf16.mxu0 0
      %7642 = vmatmul.mubr.bf16.gmra.mxu0 %v6047
      %v7643 = vpop.f32.mrf.mxu0
      %v7644 = vadd.f32 %v7355, %v7643
      %v7645 = vpop.f32.mrf.mxu0
      %v7646 = vpop.f32.mrf.mxu0
      %v7647 = vadd.f32 %v7358, %v7646
      %v7648 = vpop.f32.mrf.mxu0
      %7649 = vmatprep.mubr.bf16.mxu0 0
      %7650 = vmatmul.mubr.bf16.gmra.mxu0 %v6048
      %v7651 = vpop.f32.mrf.mxu0
      %v7652 = vadd.f32 %v7363, %v7651
      %v7653 = vpop.f32.mrf.mxu0
      %v7654 = vpop.f32.mrf.mxu0
      %v7655 = vadd.f32 %v7366, %v7654
      %v7656 = vpop.f32.mrf.mxu0
      %7657 = vmatprep.mubr.bf16.mxu0 0
      %7658 = vmatmul.mubr.bf16.gmra.mxu0 %v6049
      %v7659 = vpop.f32.mrf.mxu0
      %v7660 = vadd.f32 %v7371, %v7659
      %v7661 = vpop.f32.mrf.mxu0
      %v7662 = vpop.f32.mrf.mxu0
      %v7663 = vadd.f32 %v7374, %v7662
      %v7664 = vpop.f32.mrf.mxu0
      %7665 = vmatprep.mubr.bf16.mxu0 0
      %7666 = vmatmul.mubr.bf16.gmra.mxu0 %v6050
      %v7667 = vpop.f32.mrf.mxu0
      %v7668 = vadd.f32 %v7379, %v7667
      %v7669 = vpop.f32.mrf.mxu0
      %v7670 = vpop.f32.mrf.mxu0
      %v7671 = vadd.f32 %v7382, %v7670
      %v7672 = vpop.f32.mrf.mxu0
      %7673 = vmatprep.mubr.bf16.mxu0 0
      %7674 = vmatmul.mubr.bf16.gmra.mxu0 %v6051
      %v7675 = vpop.f32.mrf.mxu0
      %v7676 = vadd.f32 %v7387, %v7675
      %v7677 = vpop.f32.mrf.mxu0
      %v7678 = vpop.f32.mrf.mxu0
      %v7679 = vadd.f32 %v7390, %v7678
      %v7680 = vpop.f32.mrf.mxu0
      %7681 = vmatprep.mubr.bf16.mxu0 0
      %7682 = vmatmul.mubr.bf16.gmra.mxu0 %v6052
      %v7683 = vpop.f32.mrf.mxu0
      %v7684 = vadd.f32 %v7395, %v7683
      %v7685 = vpop.f32.mrf.mxu0
      %v7686 = vpop.f32.mrf.mxu0
      %v7687 = vadd.f32 %v7398, %v7686
      %v7688 = vpop.f32.mrf.mxu0
      %7689 = vdwg.mxu0
      %v7690 = vld [vmem:[#allocation2] sm:$0xff]
      %v7691 = vld [vmem:[#allocation2 + $0x8] sm:$0xff]
      %v7692 = vld [vmem:[#allocation2 + $0x10] sm:$0xff]
      %v7693 = vld [vmem:[#allocation2 + $0x18] sm:$0xff]
      %v7694 = vld [vmem:[#allocation2 + $0x20] sm:$0xff]
      %v7695 = vld [vmem:[#allocation2 + $0x28] sm:$0xff]
      %v7696 = vld [vmem:[#allocation2 + $0x30] sm:$0xff]
      %v7697 = vld [vmem:[#allocation2 + $0x38] sm:$0xff]
      %v7698 = vld [vmem:[#allocation2 + $0x40] sm:$0xff]
      %v7699 = vld [vmem:[#allocation2 + $0x48] sm:$0xff]
      %v7700 = vld [vmem:[#allocation2 + $0x50] sm:$0xff]
      %v7701 = vld [vmem:[#allocation2 + $0x58] sm:$0xff]
      %v7702 = vld [vmem:[#allocation2 + $0x60] sm:$0xff]
      %v7703 = vld [vmem:[#allocation2 + $0x68] sm:$0xff]
      %v7704 = vld [vmem:[#allocation2 + $0x70] sm:$0xff]
      %v7705 = vld [vmem:[#allocation2 + $0x78] sm:$0xff]
      %v7706 = vld [vmem:[#allocation2 + $0x80] sm:$0xff]
      %v7707 = vld [vmem:[#allocation2 + $0x88] sm:$0xff]
      %v7708 = vld [vmem:[#allocation2 + $0x90] sm:$0xff]
      %v7709 = vld [vmem:[#allocation2 + $0x98] sm:$0xff]
      %v7710 = vld [vmem:[#allocation2 + $0xa0] sm:$0xff]
      %v7711 = vld [vmem:[#allocation2 + $0xa8] sm:$0xff]
      %v7712 = vld [vmem:[#allocation2 + $0xb0] sm:$0xff]
      %v7713 = vld [vmem:[#allocation2 + $0xb8] sm:$0xff]
      %v7714 = vld [vmem:[#allocation2 + $0xc0] sm:$0xff]
      %v7715 = vld [vmem:[#allocation2 + $0xc8] sm:$0xff]
      %v7716 = vld [vmem:[#allocation2 + $0xd0] sm:$0xff]
      %v7717 = vld [vmem:[#allocation2 + $0xd8] sm:$0xff]
      %v7718 = vld [vmem:[#allocation2 + $0xe0] sm:$0xff]
      %v7719 = vld [vmem:[#allocation2 + $0xe8] sm:$0xff]
      %v7720 = vld [vmem:[#allocation2 + $0xf0] sm:$0xff]
      %v7721 = vld [vmem:[#allocation2 + $0xf8] sm:$0xff]
      %v7722 = vld [vmem:[#allocation2 + $0x100] sm:$0xff]
      %v7723 = vld [vmem:[#allocation2 + $0x108] sm:$0xff]
      %v7724 = vld [vmem:[#allocation2 + $0x110] sm:$0xff]
      %v7725 = vld [vmem:[#allocation2 + $0x118] sm:$0xff]
      %v7726 = vld [vmem:[#allocation2 + $0x120] sm:$0xff]
      %v7727 = vld [vmem:[#allocation2 + $0x128] sm:$0xff]
      %v7728 = vld [vmem:[#allocation2 + $0x130] sm:$0xff]
      %v7729 = vld [vmem:[#allocation2 + $0x138] sm:$0xff]
      %v7730 = vld [vmem:[#allocation2 + $0x140] sm:$0xff]
      %v7731 = vld [vmem:[#allocation2 + $0x148] sm:$0xff]
      %v7732 = vld [vmem:[#allocation2 + $0x150] sm:$0xff]
      %v7733 = vld [vmem:[#allocation2 + $0x158] sm:$0xff]
      %v7734 = vld [vmem:[#allocation2 + $0x160] sm:$0xff]
      %v7735 = vld [vmem:[#allocation2 + $0x168] sm:$0xff]
      %v7736 = vld [vmem:[#allocation2 + $0x170] sm:$0xff]
      %v7737 = vld [vmem:[#allocation2 + $0x178] sm:$0xff]
      %v7738 = vld [vmem:[#allocation2 + $0x180] sm:$0xff]
      %v7739 = vld [vmem:[#allocation2 + $0x188] sm:$0xff]
      %v7740 = vld [vmem:[#allocation2 + $0x190] sm:$0xff]
      %v7741 = vld [vmem:[#allocation2 + $0x198] sm:$0xff]
      %v7742 = vld [vmem:[#allocation2 + $0x1a0] sm:$0xff]
      %v7743 = vld [vmem:[#allocation2 + $0x1a8] sm:$0xff]
      %v7744 = vld [vmem:[#allocation2 + $0x1b0] sm:$0xff]
      %v7745 = vld [vmem:[#allocation2 + $0x1b8] sm:$0xff]
      %v7746 = vld [vmem:[#allocation2 + $0x1c0] sm:$0xff]
      %v7747 = vld [vmem:[#allocation2 + $0x1c8] sm:$0xff]
      %v7748 = vld [vmem:[#allocation2 + $0x1d0] sm:$0xff]
      %v7749 = vld [vmem:[#allocation2 + $0x1d8] sm:$0xff]
      %v7750 = vld [vmem:[#allocation2 + $0x1e0] sm:$0xff]
      %v7751 = vld [vmem:[#allocation2 + $0x1e8] sm:$0xff]
      %v7752 = vld [vmem:[#allocation2 + $0x1f0] sm:$0xff]
      %v7753 = vld [vmem:[#allocation2 + $0x1f8] sm:$0xff]
      %v7754 = vrot.slane %v7436, 7
      %v7755 = vrot.slane %v7439, 7
      %v7756 = vrot.slane %v7444, 7
      %v7757 = vrot.slane %v7447, 7
      %v7758 = vrot.slane %v7452, 7
      %v7759 = vrot.slane %v7455, 7
      %v7760 = vrot.slane %v7460, 7
      %v7761 = vrot.slane %v7463, 7
      %v7762 = vrot.slane %v7468, 7
      %v7763 = vrot.slane %v7471, 7
      %v7764 = vrot.slane %v7476, 7
      %v7765 = vrot.slane %v7479, 7
      %v7766 = vrot.slane %v7484, 7
      %v7767 = vrot.slane %v7487, 7
      %v7768 = vrot.slane %v7492, 7
      %v7769 = vrot.slane %v7495, 7
      %v7770 = vrot.slane %v7500, 7
      %v7771 = vrot.slane %v7503, 7
      %v7772 = vrot.slane %v7508, 7
      %v7773 = vrot.slane %v7511, 7
      %v7774 = vrot.slane %v7516, 7
      %v7775 = vrot.slane %v7519, 7
      %v7776 = vrot.slane %v7524, 7
      %v7777 = vrot.slane %v7527, 7
      %v7778 = vrot.slane %v7532, 7
      %v7779 = vrot.slane %v7535, 7
      %v7780 = vrot.slane %v7540, 7
      %v7781 = vrot.slane %v7543, 7
      %v7782 = vrot.slane %v7548, 7
      %v7783 = vrot.slane %v7551, 7
      %v7784 = vrot.slane %v7556, 7
      %v7785 = vrot.slane %v7559, 7
      %v7786 = vrot.slane %v7564, 7
      %v7787 = vrot.slane %v7567, 7
      %v7788 = vrot.slane %v7572, 7
      %v7789 = vrot.slane %v7575, 7
      %v7790 = vrot.slane %v7580, 7
      %v7791 = vrot.slane %v7583, 7
      %v7792 = vrot.slane %v7588, 7
      %v7793 = vrot.slane %v7591, 7
      %v7794 = vrot.slane %v7596, 7
      %v7795 = vrot.slane %v7599, 7
      %v7796 = vrot.slane %v7604, 7
      %v7797 = vrot.slane %v7607, 7
      %v7798 = vrot.slane %v7612, 7
      %v7799 = vrot.slane %v7615, 7
      %v7800 = vrot.slane %v7620, 7
      %v7801 = vrot.slane %v7623, 7
      %v7802 = vrot.slane %v7628, 7
      %v7803 = vrot.slane %v7631, 7
      %v7804 = vrot.slane %v7636, 7
      %v7805 = vrot.slane %v7639, 7
      %v7806 = vrot.slane %v7644, 7
      %v7807 = vrot.slane %v7647, 7
      %v7808 = vrot.slane %v7652, 7
      %v7809 = vrot.slane %v7655, 7
      %v7810 = vrot.slane %v7660, 7
      %v7811 = vrot.slane %v7663, 7
      %v7812 = vrot.slane %v7668, 7
      %v7813 = vrot.slane %v7671, 7
      %v7814 = vrot.slane %v7676, 7
      %v7815 = vrot.slane %v7679, 7
      %v7816 = vrot.slane %v7684, 7
      %v7817 = vrot.slane %v7687, 7
      %v7818 = vsel %vm3045, %v7816, %v7817
      %v7819 = vsel %vm3045, %v7815, %v7816
      %v7820 = vsel %vm3045, %v7814, %v7815
      %v7821 = vsel %vm3045, %v7813, %v7814
      %v7822 = vsel %vm3045, %v7812, %v7813
      %v7823 = vsel %vm3045, %v7811, %v7812
      %v7824 = vsel %vm3045, %v7810, %v7811
      %v7825 = vsel %vm3045, %v7809, %v7810
      %v7826 = vsel %vm3045, %v7808, %v7809
      %v7827 = vsel %vm3045, %v7807, %v7808
      %v7828 = vsel %vm3045, %v7806, %v7807
      %v7829 = vsel %vm3045, %v7805, %v7806
      %v7830 = vsel %vm3045, %v7804, %v7805
      %v7831 = vsel %vm3045, %v7803, %v7804
      %v7832 = vsel %vm3045, %v7802, %v7803
      %v7833 = vsel %vm3045, %v7801, %v7802
      %v7834 = vsel %vm3045, %v7800, %v7801
      %v7835 = vsel %vm3045, %v7799, %v7800
      %v7836 = vsel %vm3045, %v7798, %v7799
      %v7837 = vsel %vm3045, %v7797, %v7798
      %v7838 = vsel %vm3045, %v7796, %v7797
      %v7839 = vsel %vm3045, %v7795, %v7796
      %v7840 = vsel %vm3045, %v7794, %v7795
      %v7841 = vsel %vm3045, %v7793, %v7794
      %v7842 = vsel %vm3045, %v7792, %v7793
      %v7843 = vsel %vm3045, %v7791, %v7792
      %v7844 = vsel %vm3045, %v7790, %v7791
      %v7845 = vsel %vm3045, %v7789, %v7790
      %v7846 = vsel %vm3045, %v7788, %v7789
      %v7847 = vsel %vm3045, %v7787, %v7788
      %v7848 = vsel %vm3045, %v7786, %v7787
      %v7849 = vsel %vm3045, %v7785, %v7786
      %v7850 = vsel %vm3045, %v7784, %v7785
      %v7851 = vsel %vm3045, %v7783, %v7784
      %v7852 = vsel %vm3045, %v7782, %v7783
      %v7853 = vsel %vm3045, %v7781, %v7782
      %v7854 = vsel %vm3045, %v7780, %v7781
      %v7855 = vsel %vm3045, %v7779, %v7780
      %v7856 = vsel %vm3045, %v7778, %v7779
      %v7857 = vsel %vm3045, %v7777, %v7778
      %v7858 = vsel %vm3045, %v7776, %v7777
      %v7859 = vsel %vm3045, %v7775, %v7776
      %v7860 = vsel %vm3045, %v7774, %v7775
      %v7861 = vsel %vm3045, %v7773, %v7774
      %v7862 = vsel %vm3045, %v7772, %v7773
      %v7863 = vsel %vm3045, %v7771, %v7772
      %v7864 = vsel %vm3045, %v7770, %v7771
      %v7865 = vsel %vm3045, %v7769, %v7770
      %v7866 = vsel %vm3045, %v7768, %v7769
      %v7867 = vsel %vm3045, %v7767, %v7768
      %v7868 = vsel %vm3045, %v7766, %v7767
      %v7869 = vsel %vm3045, %v7765, %v7766
      %v7870 = vsel %vm3045, %v7764, %v7765
      %v7871 = vsel %vm3045, %v7763, %v7764
      %v7872 = vsel %vm3045, %v7762, %v7763
      %v7873 = vsel %vm3045, %v7761, %v7762
      %v7874 = vsel %vm3045, %v7760, %v7761
      %v7875 = vsel %vm3045, %v7759, %v7760
      %v7876 = vsel %vm3045, %v7758, %v7759
      %v7877 = vsel %vm3045, %v7757, %v7758
      %v7878 = vsel %vm3045, %v7756, %v7757
      %v7879 = vsel %vm3045, %v7755, %v7756
      %v7880 = vsel %vm3045, %v7754, %v7755
      %v7881 = vsel %vm3045, %v7817, %v7754
      %v7882 = vadd.f32 %v7690, %v7881
      %v7883 = vadd.f32 %v7691, %v7880
      %v7884 = vadd.f32 %v7692, %v7879
      %v7885 = vadd.f32 %v7693, %v7878
      %v7886 = vadd.f32 %v7694, %v7877
      %v7887 = vadd.f32 %v7695, %v7876
      %v7888 = vadd.f32 %v7696, %v7875
      %v7889 = vadd.f32 %v7697, %v7874
      %v7890 = vadd.f32 %v7698, %v7873
      %v7891 = vadd.f32 %v7699, %v7872
      %v7892 = vadd.f32 %v7700, %v7871
      %v7893 = vadd.f32 %v7701, %v7870
      %v7894 = vadd.f32 %v7702, %v7869
      %v7895 = vadd.f32 %v7703, %v7868
      %v7896 = vadd.f32 %v7704, %v7867
      %v7897 = vadd.f32 %v7705, %v7866
      %v7898 = vadd.f32 %v7706, %v7865
      %v7899 = vadd.f32 %v7707, %v7864
      %v7900 = vadd.f32 %v7708, %v7863
      %v7901 = vadd.f32 %v7709, %v7862
      %v7902 = vadd.f32 %v7710, %v7861
      %v7903 = vadd.f32 %v7711, %v7860
      %v7904 = vadd.f32 %v7712, %v7859
      %v7905 = vadd.f32 %v7713, %v7858
      %v7906 = vadd.f32 %v7714, %v7857
      %v7907 = vadd.f32 %v7715, %v7856
      %v7908 = vadd.f32 %v7716, %v7855
      %v7909 = vadd.f32 %v7717, %v7854
      %v7910 = vadd.f32 %v7718, %v7853
      %v7911 = vadd.f32 %v7719, %v7852
      %v7912 = vadd.f32 %v7720, %v7851
      %v7913 = vadd.f32 %v7721, %v7850
      %v7914 = vadd.f32 %v7722, %v7849
      %v7915 = vadd.f32 %v7723, %v7848
      %v7916 = vadd.f32 %v7724, %v7847
      %v7917 = vadd.f32 %v7725, %v7846
      %v7918 = vadd.f32 %v7726, %v7845
      %v7919 = vadd.f32 %v7727, %v7844
      %v7920 = vadd.f32 %v7728, %v7843
      %v7921 = vadd.f32 %v7729, %v7842
      %v7922 = vadd.f32 %v7730, %v7841
      %v7923 = vadd.f32 %v7731, %v7840
      %v7924 = vadd.f32 %v7732, %v7839
      %v7925 = vadd.f32 %v7733, %v7838
      %v7926 = vadd.f32 %v7734, %v7837
      %v7927 = vadd.f32 %v7735, %v7836
      %v7928 = vadd.f32 %v7736, %v7835
      %v7929 = vadd.f32 %v7737, %v7834
      %v7930 = vadd.f32 %v7738, %v7833
      %v7931 = vadd.f32 %v7739, %v7832
      %v7932 = vadd.f32 %v7740, %v7831
      %v7933 = vadd.f32 %v7741, %v7830
      %v7934 = vadd.f32 %v7742, %v7829
      %v7935 = vadd.f32 %v7743, %v7828
      %v7936 = vadd.f32 %v7744, %v7827
      %v7937 = vadd.f32 %v7745, %v7826
      %v7938 = vadd.f32 %v7746, %v7825
      %v7939 = vadd.f32 %v7747, %v7824
      %v7940 = vadd.f32 %v7748, %v7823
      %v7941 = vadd.f32 %v7749, %v7822
      %v7942 = vadd.f32 %v7750, %v7821
      %v7943 = vadd.f32 %v7751, %v7820
      %v7944 = vadd.f32 %v7752, %v7819
      %v7945 = vadd.f32 %v7753, %v7818
      %7946 = vst [vmem:[#allocation2] sm:$0xff] %v7882
      %7947 = vst [vmem:[#allocation2 + $0x8] sm:$0xff] %v7883
      %7948 = vst [vmem:[#allocation2 + $0x10] sm:$0xff] %v7884
      %7949 = vst [vmem:[#allocation2 + $0x18] sm:$0xff] %v7885
      %7950 = vst [vmem:[#allocation2 + $0x20] sm:$0xff] %v7886
      %7951 = vst [vmem:[#allocation2 + $0x28] sm:$0xff] %v7887
      %7952 = vst [vmem:[#allocation2 + $0x30] sm:$0xff] %v7888
      %7953 = vst [vmem:[#allocation2 + $0x38] sm:$0xff] %v7889
      %7954 = vst [vmem:[#allocation2 + $0x40] sm:$0xff] %v7890
      %7955 = vst [vmem:[#allocation2 + $0x48] sm:$0xff] %v7891
      %7956 = vst [vmem:[#allocation2 + $0x50] sm:$0xff] %v7892
      %7957 = vst [vmem:[#allocation2 + $0x58] sm:$0xff] %v7893
      %7958 = vst [vmem:[#allocation2 + $0x60] sm:$0xff] %v7894
      %7959 = vst [vmem:[#allocation2 + $0x68] sm:$0xff] %v7895
      %7960 = vst [vmem:[#allocation2 + $0x70] sm:$0xff] %v7896
      %7961 = vst [vmem:[#allocation2 + $0x78] sm:$0xff] %v7897
      %7962 = vst [vmem:[#allocation2 + $0x80] sm:$0xff] %v7898
      %7963 = vst [vmem:[#allocation2 + $0x88] sm:$0xff] %v7899
      %7964 = vst [vmem:[#allocation2 + $0x90] sm:$0xff] %v7900
      %7965 = vst [vmem:[#allocation2 + $0x98] sm:$0xff] %v7901
      %7966 = vst [vmem:[#allocation2 + $0xa0] sm:$0xff] %v7902
      %7967 = vst [vmem:[#allocation2 + $0xa8] sm:$0xff] %v7903
      %7968 = vst [vmem:[#allocation2 + $0xb0] sm:$0xff] %v7904
      %7969 = vst [vmem:[#allocation2 + $0xb8] sm:$0xff] %v7905
      %7970 = vst [vmem:[#allocation2 + $0xc0] sm:$0xff] %v7906
      %7971 = vst [vmem:[#allocation2 + $0xc8] sm:$0xff] %v7907
      %7972 = vst [vmem:[#allocation2 + $0xd0] sm:$0xff] %v7908
      %7973 = vst [vmem:[#allocation2 + $0xd8] sm:$0xff] %v7909
      %7974 = vst [vmem:[#allocation2 + $0xe0] sm:$0xff] %v7910
      %7975 = vst [vmem:[#allocation2 + $0xe8] sm:$0xff] %v7911
      %7976 = vst [vmem:[#allocation2 + $0xf0] sm:$0xff] %v7912
      %7977 = vst [vmem:[#allocation2 + $0xf8] sm:$0xff] %v7913
      %7978 = vst [vmem:[#allocation2 + $0x100] sm:$0xff] %v7914
      %7979 = vst [vmem:[#allocation2 + $0x108] sm:$0xff] %v7915
      %7980 = vst [vmem:[#allocation2 + $0x110] sm:$0xff] %v7916
      %7981 = vst [vmem:[#allocation2 + $0x118] sm:$0xff] %v7917
      %7982 = vst [vmem:[#allocation2 + $0x120] sm:$0xff] %v7918
      %7983 = vst [vmem:[#allocation2 + $0x128] sm:$0xff] %v7919
      %7984 = vst [vmem:[#allocation2 + $0x130] sm:$0xff] %v7920
      %7985 = vst [vmem:[#allocation2 + $0x138] sm:$0xff] %v7921
      %7986 = vst [vmem:[#allocation2 + $0x140] sm:$0xff] %v7922
      %7987 = vst [vmem:[#allocation2 + $0x148] sm:$0xff] %v7923
      %7988 = vst [vmem:[#allocation2 + $0x150] sm:$0xff] %v7924
      %7989 = vst [vmem:[#allocation2 + $0x158] sm:$0xff] %v7925
      %7990 = vst [vmem:[#allocation2 + $0x160] sm:$0xff] %v7926
      %7991 = vst [vmem:[#allocation2 + $0x168] sm:$0xff] %v7927
      %7992 = vst [vmem:[#allocation2 + $0x170] sm:$0xff] %v7928
      %7993 = vst [vmem:[#allocation2 + $0x178] sm:$0xff] %v7929
      %7994 = vst [vmem:[#allocation2 + $0x180] sm:$0xff] %v7930
      %7995 = vst [vmem:[#allocation2 + $0x188] sm:$0xff] %v7931
      %7996 = vst [vmem:[#allocation2 + $0x190] sm:$0xff] %v7932
      %7997 = vst [vmem:[#allocation2 + $0x198] sm:$0xff] %v7933
      %7998 = vst [vmem:[#allocation2 + $0x1a0] sm:$0xff] %v7934
      %7999 = vst [vmem:[#allocation2 + $0x1a8] sm:$0xff] %v7935
      %8000 = vst [vmem:[#allocation2 + $0x1b0] sm:$0xff] %v7936
      %8001 = vst [vmem:[#allocation2 + $0x1b8] sm:$0xff] %v7937
      %8002 = vst [vmem:[#allocation2 + $0x1c0] sm:$0xff] %v7938
      %8003 = vst [vmem:[#allocation2 + $0x1c8] sm:$0xff] %v7939
      %8004 = vst [vmem:[#allocation2 + $0x1d0] sm:$0xff] %v7940
      %8005 = vst [vmem:[#allocation2 + $0x1d8] sm:$0xff] %v7941
      %8006 = vst [vmem:[#allocation2 + $0x1e0] sm:$0xff] %v7942
      %8007 = vst [vmem:[#allocation2 + $0x1e8] sm:$0xff] %v7943
      %8008 = vst [vmem:[#allocation2 + $0x1f0] sm:$0xff] %v7944
      %8009 = vst [vmem:[#allocation2 + $0x1f8] sm:$0xff] %v7945
      %s8010 = scalar_lea.vmem %s2, 384
      %v8011 = vld [vmem:[%s8010] sm:$0xf]
      %v8012 = vld [vmem:[%s8010 + $0x4] sm:$0xf]
      %v8013 = vld [vmem:[%s8010 + $0x8] sm:$0xf]
      %v8014 = vld [vmem:[%s8010 + $0xc] sm:$0xf]
      %v8015 = vld [vmem:[%s8010 + $0x10] sm:$0xf]
      %v8016 = vld [vmem:[%s8010 + $0x14] sm:$0xf]
      %v8017 = vld [vmem:[%s8010 + $0x18] sm:$0xf]
      %v8018 = vld [vmem:[%s8010 + $0x1c] sm:$0xf]
      %v8019 = vld [vmem:[%s8010 + $0x20] sm:$0xf]
      %v8020 = vld [vmem:[%s8010 + $0x24] sm:$0xf]
      %v8021 = vld [vmem:[%s8010 + $0x28] sm:$0xf]
      %v8022 = vld [vmem:[%s8010 + $0x2c] sm:$0xf]
      %v8023 = vld [vmem:[%s8010 + $0x30] sm:$0xf]
      %v8024 = vld [vmem:[%s8010 + $0x34] sm:$0xf]
      %v8025 = vld [vmem:[%s8010 + $0x38] sm:$0xf]
      %v8026 = vld [vmem:[%s8010 + $0x3c] sm:$0xf]
      %v8027 = vld [vmem:[%s8010 + $0x40] sm:$0xf]
      %v8028 = vld [vmem:[%s8010 + $0x44] sm:$0xf]
      %v8029 = vld [vmem:[%s8010 + $0x48] sm:$0xf]
      %v8030 = vld [vmem:[%s8010 + $0x4c] sm:$0xf]
      %v8031 = vld [vmem:[%s8010 + $0x50] sm:$0xf]
      %v8032 = vld [vmem:[%s8010 + $0x54] sm:$0xf]
      %v8033 = vld [vmem:[%s8010 + $0x58] sm:$0xf]
      %v8034 = vld [vmem:[%s8010 + $0x5c] sm:$0xf]
      %v8035 = vld [vmem:[%s8010 + $0x60] sm:$0xf]
      %v8036 = vld [vmem:[%s8010 + $0x64] sm:$0xf]
      %v8037 = vld [vmem:[%s8010 + $0x68] sm:$0xf]
      %v8038 = vld [vmem:[%s8010 + $0x6c] sm:$0xf]
      %v8039 = vld [vmem:[%s8010 + $0x70] sm:$0xf]
      %v8040 = vld [vmem:[%s8010 + $0x74] sm:$0xf]
      %v8041 = vld [vmem:[%s8010 + $0x78] sm:$0xf]
      %v8042 = vld [vmem:[%s8010 + $0x7c] sm:$0xf]
      %v8043 = vld [vmem:[%s8010 + $0x80] sm:$0xf]
      %v8044 = vld [vmem:[%s8010 + $0x84] sm:$0xf]
      %v8045 = vld [vmem:[%s8010 + $0x88] sm:$0xf]
      %v8046 = vld [vmem:[%s8010 + $0x8c] sm:$0xf]
      %v8047 = vld [vmem:[%s8010 + $0x90] sm:$0xf]
      %v8048 = vld [vmem:[%s8010 + $0x94] sm:$0xf]
      %v8049 = vld [vmem:[%s8010 + $0x98] sm:$0xf]
      %v8050 = vld [vmem:[%s8010 + $0x9c] sm:$0xf]
      %v8051 = vld [vmem:[%s8010 + $0xa0] sm:$0xf]
      %v8052 = vld [vmem:[%s8010 + $0xa4] sm:$0xf]
      %v8053 = vld [vmem:[%s8010 + $0xa8] sm:$0xf]
      %v8054 = vld [vmem:[%s8010 + $0xac] sm:$0xf]
      %v8055 = vld [vmem:[%s8010 + $0xb0] sm:$0xf]
      %v8056 = vld [vmem:[%s8010 + $0xb4] sm:$0xf]
      %v8057 = vld [vmem:[%s8010 + $0xb8] sm:$0xf]
      %v8058 = vld [vmem:[%s8010 + $0xbc] sm:$0xf]
      %v8107 = vunpack.c.l.b16 %v8011
      %v8108 = vunpack.c.l.b16 %v8012
      %v8109 = vunpack.c.l.b16 %v8013
      %v8110 = vunpack.c.l.b16 %v8014
      %v8111 = vunpack.c.l.b16 %v8015
      %v8112 = vunpack.c.l.b16 %v8016
      %v8113 = vunpack.c.l.b16 %v8017
      %v8114 = vunpack.c.l.b16 %v8018
      %v8115 = vunpack.c.l.b16 %v8019
      %v8116 = vunpack.c.l.b16 %v8020
      %v8117 = vunpack.c.l.b16 %v8021
      %v8118 = vunpack.c.l.b16 %v8022
      %v8119 = vunpack.c.l.b16 %v8023
      %v8120 = vunpack.c.l.b16 %v8024
      %v8121 = vunpack.c.l.b16 %v8025
      %v8122 = vunpack.c.l.b16 %v8026
      %v8123 = vunpack.c.l.b16 %v8027
      %v8124 = vunpack.c.l.b16 %v8028
      %v8125 = vunpack.c.l.b16 %v8029
      %v8126 = vunpack.c.l.b16 %v8030
      %v8127 = vunpack.c.l.b16 %v8031
      %v8128 = vunpack.c.l.b16 %v8032
      %v8129 = vunpack.c.l.b16 %v8033
      %v8130 = vunpack.c.l.b16 %v8034
      %v8131 = vunpack.c.l.b16 %v8035
      %v8132 = vunpack.c.l.b16 %v8036
      %v8133 = vunpack.c.l.b16 %v8037
      %v8134 = vunpack.c.l.b16 %v8038
      %v8135 = vunpack.c.l.b16 %v8039
      %v8136 = vunpack.c.l.b16 %v8040
      %v8137 = vunpack.c.l.b16 %v8041
      %v8138 = vunpack.c.l.b16 %v8042
      %v8139 = vunpack.c.l.b16 %v8043
      %v8140 = vunpack.c.l.b16 %v8044
      %v8141 = vunpack.c.l.b16 %v8045
      %v8142 = vunpack.c.l.b16 %v8046
      %v8143 = vunpack.c.l.b16 %v8047
      %v8144 = vunpack.c.l.b16 %v8048
      %v8145 = vunpack.c.l.b16 %v8049
      %v8146 = vunpack.c.l.b16 %v8050
      %v8147 = vunpack.c.l.b16 %v8051
      %v8148 = vunpack.c.l.b16 %v8052
      %v8149 = vunpack.c.l.b16 %v8053
      %v8150 = vunpack.c.l.b16 %v8054
      %v8151 = vunpack.c.l.b16 %v8055
      %v8152 = vunpack.c.l.b16 %v8056
      %v8153 = vunpack.c.l.b16 %v8057
      %v8154 = vunpack.c.l.b16 %v8058
      %v8155 = vpack.c.b16 %v8108, %v8107
      %v8156 = vpack.c.b16 %v8110, %v8109
      %v8157 = vpack.c.b16 %v8112, %v8111
      %v8158 = vpack.c.b16 %v8114, %v8113
      %v8159 = vpack.c.b16 %v8116, %v8115
      %v8160 = vpack.c.b16 %v8118, %v8117
      %v8161 = vpack.c.b16 %v8120, %v8119
      %v8162 = vpack.c.b16 %v8122, %v8121
      %v8163 = vpack.c.b16 %v8124, %v8123
      %v8164 = vpack.c.b16 %v8126, %v8125
      %v8165 = vpack.c.b16 %v8128, %v8127
      %v8166 = vpack.c.b16 %v8130, %v8129
      %v8167 = vpack.c.b16 %v8132, %v8131
      %v8168 = vpack.c.b16 %v8134, %v8133
      %v8169 = vpack.c.b16 %v8136, %v8135
      %v8170 = vpack.c.b16 %v8138, %v8137
      %v8171 = vpack.c.b16 %v8140, %v8139
      %v8172 = vpack.c.b16 %v8142, %v8141
      %v8173 = vpack.c.b16 %v8144, %v8143
      %v8174 = vpack.c.b16 %v8146, %v8145
      %v8175 = vpack.c.b16 %v8148, %v8147
      %v8176 = vpack.c.b16 %v8150, %v8149
      %v8177 = vpack.c.b16 %v8152, %v8151
      %v8178 = vpack.c.b16 %v8154, %v8153
      %8203 = vmatprep.subr.bf16.mxu0 0
      %8204 = vmatpush1.bf16.msra.mxu0 %v8162
      %8205 = vmatprep.subr.bf16.mxu0 0
      %8206 = vmatpush1.bf16.msra.mxu0 %v8161
      %8207 = vmatprep.subr.bf16.mxu0 0
      %8208 = vmatpush1.bf16.msra.mxu0 %v8160
      %8209 = vmatprep.subr.bf16.mxu0 0
      %8210 = vmatpush1.bf16.msra.mxu0 %v8159
      %8211 = vmatprep.subr.bf16.mxu0 0
      %8212 = vmatpush1.bf16.msra.mxu0 %v8158
      %8213 = vmatprep.subr.bf16.mxu0 0
      %8214 = vmatpush1.bf16.msra.mxu0 %v8157
      %8215 = vmatprep.subr.bf16.mxu0 0
      %8216 = vmatpush1.bf16.msra.mxu0 %v8156
      %8217 = vmatprep.subr.bf16.mxu0 0
      %8218 = vmatpush1.bf16.msra.mxu0 %v8155
      %8219 = vmatprep.subr.bf16.mxu0 0
      %8220 = vmatpush2.bf16.msra.mxu0 %v8170
      %8221 = vmatprep.subr.bf16.mxu0 0
      %8222 = vmatpush2.bf16.msra.mxu0 %v8169
      %8223 = vmatprep.subr.bf16.mxu0 0
      %8224 = vmatpush2.bf16.msra.mxu0 %v8168
      %8225 = vmatprep.subr.bf16.mxu0 0
      %8226 = vmatpush2.bf16.msra.mxu0 %v8167
      %8227 = vmatprep.subr.bf16.mxu0 0
      %8228 = vmatpush2.bf16.msra.mxu0 %v8166
      %8229 = vmatprep.subr.bf16.mxu0 0
      %8230 = vmatpush2.bf16.msra.mxu0 %v8165
      %8231 = vmatprep.subr.bf16.mxu0 0
      %8232 = vmatpush2.bf16.msra.mxu0 %v8164
      %8233 = vmatprep.subr.bf16.mxu0 0
      %8234 = vmatpush2.bf16.msra.mxu0 %v8163
      %8235 = vmatprep.mubr.bf16.mxu0 %v5819
      %8236 = vmatmul.mubr.bf16.gmra.mxu0 %v5817
      %v8237 = vpop.f32.mrf.mxu0
      %v8238 = vadd.f32 0.0, %v8237
      %v8239 = vpop.f32.mrf.mxu0
      %v8240 = vpop.f32.mrf.mxu0
      %v8241 = vadd.f32 0.0, %v8240
      %v8242 = vpop.f32.mrf.mxu0
      %8243 = vmatprep.mubr.bf16.mxu0 %v5820
      %8244 = vmatmul.mubr.bf16.gmra.mxu0 %v5818
      %v8245 = vpop.f32.mrf.mxu0
      %v8246 = vadd.f32 0.0, %v8245
      %v8247 = vpop.f32.mrf.mxu0
      %v8248 = vpop.f32.mrf.mxu0
      %v8249 = vadd.f32 0.0, %v8248
      %v8250 = vpop.f32.mrf.mxu0
      %8251 = vmatprep.mubr.bf16.mxu0 %v5821
      %8252 = vmatmul.mubr.bf16.gmra.mxu0 %v5819
      %v8253 = vpop.f32.mrf.mxu0
      %v8254 = vadd.f32 0.0, %v8253
      %v8255 = vpop.f32.mrf.mxu0
      %v8256 = vpop.f32.mrf.mxu0
      %v8257 = vadd.f32 0.0, %v8256
      %v8258 = vpop.f32.mrf.mxu0
      %8259 = vmatprep.mubr.bf16.mxu0 %v5822
      %8260 = vmatmul.mubr.bf16.gmra.mxu0 %v5820
      %v8261 = vpop.f32.mrf.mxu0
      %v8262 = vadd.f32 0.0, %v8261
      %v8263 = vpop.f32.mrf.mxu0
      %v8264 = vpop.f32.mrf.mxu0
      %v8265 = vadd.f32 0.0, %v8264
      %v8266 = vpop.f32.mrf.mxu0
      %8267 = vmatprep.mubr.bf16.mxu0 %v5823
      %8268 = vmatmul.mubr.bf16.gmra.mxu0 %v5821
      %v8269 = vpop.f32.mrf.mxu0
      %v8270 = vadd.f32 0.0, %v8269
      %v8271 = vpop.f32.mrf.mxu0
      %v8272 = vpop.f32.mrf.mxu0
      %v8273 = vadd.f32 0.0, %v8272
      %v8274 = vpop.f32.mrf.mxu0
      %8275 = vmatprep.mubr.bf16.mxu0 %v5824
      %8276 = vmatmul.mubr.bf16.gmra.mxu0 %v5822
      %v8277 = vpop.f32.mrf.mxu0
      %v8278 = vadd.f32 0.0, %v8277
      %v8279 = vpop.f32.mrf.mxu0
      %v8280 = vpop.f32.mrf.mxu0
      %v8281 = vadd.f32 0.0, %v8280
      %v8282 = vpop.f32.mrf.mxu0
      %8283 = vmatprep.mubr.bf16.mxu0 %v5825
      %8284 = vmatmul.mubr.bf16.gmra.mxu0 %v5823
      %v8285 = vpop.f32.mrf.mxu0
      %v8286 = vadd.f32 0.0, %v8285
      %v8287 = vpop.f32.mrf.mxu0
      %v8288 = vpop.f32.mrf.mxu0
      %v8289 = vadd.f32 0.0, %v8288
      %v8290 = vpop.f32.mrf.mxu0
      %8291 = vmatprep.mubr.bf16.mxu0 %v5826
      %8292 = vmatmul.mubr.bf16.gmra.mxu0 %v5824
      %v8293 = vpop.f32.mrf.mxu0
      %v8294 = vadd.f32 0.0, %v8293
      %v8295 = vpop.f32.mrf.mxu0
      %v8296 = vpop.f32.mrf.mxu0
      %v8297 = vadd.f32 0.0, %v8296
      %v8298 = vpop.f32.mrf.mxu0
      %8299 = vmatprep.mubr.bf16.mxu0 %v5827
      %8300 = vmatmul.mubr.bf16.gmra.mxu0 %v5825
      %v8301 = vpop.f32.mrf.mxu0
      %v8302 = vadd.f32 0.0, %v8301
      %v8303 = vpop.f32.mrf.mxu0
      %v8304 = vpop.f32.mrf.mxu0
      %v8305 = vadd.f32 0.0, %v8304
      %v8306 = vpop.f32.mrf.mxu0
      %8307 = vmatprep.mubr.bf16.mxu0 %v5828
      %8308 = vmatmul.mubr.bf16.gmra.mxu0 %v5826
      %v8309 = vpop.f32.mrf.mxu0
      %v8310 = vadd.f32 0.0, %v8309
      %v8311 = vpop.f32.mrf.mxu0
      %v8312 = vpop.f32.mrf.mxu0
      %v8313 = vadd.f32 0.0, %v8312
      %v8314 = vpop.f32.mrf.mxu0
      %8315 = vmatprep.mubr.bf16.mxu0 %v5829
      %8316 = vmatmul.mubr.bf16.gmra.mxu0 %v5827
      %v8317 = vpop.f32.mrf.mxu0
      %v8318 = vadd.f32 0.0, %v8317
      %v8319 = vpop.f32.mrf.mxu0
      %v8320 = vpop.f32.mrf.mxu0
      %v8321 = vadd.f32 0.0, %v8320
      %v8322 = vpop.f32.mrf.mxu0
      %8323 = vmatprep.mubr.bf16.mxu0 %v5830
      %8324 = vmatmul.mubr.bf16.gmra.mxu0 %v5828
      %v8325 = vpop.f32.mrf.mxu0
      %v8326 = vadd.f32 0.0, %v8325
      %v8327 = vpop.f32.mrf.mxu0
      %v8328 = vpop.f32.mrf.mxu0
      %v8329 = vadd.f32 0.0, %v8328
      %v8330 = vpop.f32.mrf.mxu0
      %8331 = vmatprep.mubr.bf16.mxu0 %v5831
      %8332 = vmatmul.mubr.bf16.gmra.mxu0 %v5829
      %v8333 = vpop.f32.mrf.mxu0
      %v8334 = vadd.f32 0.0, %v8333
      %v8335 = vpop.f32.mrf.mxu0
      %v8336 = vpop.f32.mrf.mxu0
      %v8337 = vadd.f32 0.0, %v8336
      %v8338 = vpop.f32.mrf.mxu0
      %8339 = vmatprep.mubr.bf16.mxu0 %v5832
      %8340 = vmatmul.mubr.bf16.gmra.mxu0 %v5830
      %v8341 = vpop.f32.mrf.mxu0
      %v8342 = vadd.f32 0.0, %v8341
      %v8343 = vpop.f32.mrf.mxu0
      %v8344 = vpop.f32.mrf.mxu0
      %v8345 = vadd.f32 0.0, %v8344
      %v8346 = vpop.f32.mrf.mxu0
      %8347 = vmatprep.mubr.bf16.mxu0 %v5833
      %8348 = vmatmul.mubr.bf16.gmra.mxu0 %v5831
      %v8349 = vpop.f32.mrf.mxu0
      %v8350 = vadd.f32 0.0, %v8349
      %v8351 = vpop.f32.mrf.mxu0
      %v8352 = vpop.f32.mrf.mxu0
      %v8353 = vadd.f32 0.0, %v8352
      %v8354 = vpop.f32.mrf.mxu0
      %8355 = vmatprep.mubr.bf16.mxu0 %v5834
      %8356 = vmatmul.mubr.bf16.gmra.mxu0 %v5832
      %v8357 = vpop.f32.mrf.mxu0
      %v8358 = vadd.f32 0.0, %v8357
      %v8359 = vpop.f32.mrf.mxu0
      %v8360 = vpop.f32.mrf.mxu0
      %v8361 = vadd.f32 0.0, %v8360
      %v8362 = vpop.f32.mrf.mxu0
      %8363 = vmatprep.mubr.bf16.mxu0 %v5835
      %8364 = vmatmul.mubr.bf16.gmra.mxu0 %v5833
      %v8365 = vpop.f32.mrf.mxu0
      %v8366 = vadd.f32 0.0, %v8365
      %v8367 = vpop.f32.mrf.mxu0
      %v8368 = vpop.f32.mrf.mxu0
      %v8369 = vadd.f32 0.0, %v8368
      %v8370 = vpop.f32.mrf.mxu0
      %8371 = vmatprep.mubr.bf16.mxu0 %v5836
      %8372 = vmatmul.mubr.bf16.gmra.mxu0 %v5834
      %v8373 = vpop.f32.mrf.mxu0
      %v8374 = vadd.f32 0.0, %v8373
      %v8375 = vpop.f32.mrf.mxu0
      %v8376 = vpop.f32.mrf.mxu0
      %v8377 = vadd.f32 0.0, %v8376
      %v8378 = vpop.f32.mrf.mxu0
      %8379 = vmatprep.mubr.bf16.mxu0 %v5837
      %8380 = vmatmul.mubr.bf16.gmra.mxu0 %v5835
      %v8381 = vpop.f32.mrf.mxu0
      %v8382 = vadd.f32 0.0, %v8381
      %v8383 = vpop.f32.mrf.mxu0
      %v8384 = vpop.f32.mrf.mxu0
      %v8385 = vadd.f32 0.0, %v8384
      %v8386 = vpop.f32.mrf.mxu0
      %8387 = vmatprep.mubr.bf16.mxu0 %v5838
      %8388 = vmatmul.mubr.bf16.gmra.mxu0 %v5836
      %v8389 = vpop.f32.mrf.mxu0
      %v8390 = vadd.f32 0.0, %v8389
      %v8391 = vpop.f32.mrf.mxu0
      %v8392 = vpop.f32.mrf.mxu0
      %v8393 = vadd.f32 0.0, %v8392
      %v8394 = vpop.f32.mrf.mxu0
      %8395 = vmatprep.mubr.bf16.mxu0 %v5839
      %8396 = vmatmul.mubr.bf16.gmra.mxu0 %v5837
      %v8397 = vpop.f32.mrf.mxu0
      %v8398 = vadd.f32 0.0, %v8397
      %v8399 = vpop.f32.mrf.mxu0
      %v8400 = vpop.f32.mrf.mxu0
      %v8401 = vadd.f32 0.0, %v8400
      %v8402 = vpop.f32.mrf.mxu0
      %8403 = vmatprep.mubr.bf16.mxu0 %v5840
      %8404 = vmatmul.mubr.bf16.gmra.mxu0 %v5838
      %v8405 = vpop.f32.mrf.mxu0
      %v8406 = vadd.f32 0.0, %v8405
      %v8407 = vpop.f32.mrf.mxu0
      %v8408 = vpop.f32.mrf.mxu0
      %v8409 = vadd.f32 0.0, %v8408
      %v8410 = vpop.f32.mrf.mxu0
      %8411 = vmatprep.mubr.bf16.mxu0 %v5841
      %8412 = vmatmul.mubr.bf16.gmra.mxu0 %v5839
      %v8413 = vpop.f32.mrf.mxu0
      %v8414 = vadd.f32 0.0, %v8413
      %v8415 = vpop.f32.mrf.mxu0
      %v8416 = vpop.f32.mrf.mxu0
      %v8417 = vadd.f32 0.0, %v8416
      %v8418 = vpop.f32.mrf.mxu0
      %8419 = vmatprep.mubr.bf16.mxu0 %v5842
      %8420 = vmatmul.mubr.bf16.gmra.mxu0 %v5840
      %v8421 = vpop.f32.mrf.mxu0
      %v8422 = vadd.f32 0.0, %v8421
      %v8423 = vpop.f32.mrf.mxu0
      %v8424 = vpop.f32.mrf.mxu0
      %v8425 = vadd.f32 0.0, %v8424
      %v8426 = vpop.f32.mrf.mxu0
      %8427 = vmatprep.mubr.bf16.mxu0 %v5843
      %8428 = vmatmul.mubr.bf16.gmra.mxu0 %v5841
      %v8429 = vpop.f32.mrf.mxu0
      %v8430 = vadd.f32 0.0, %v8429
      %v8431 = vpop.f32.mrf.mxu0
      %v8432 = vpop.f32.mrf.mxu0
      %v8433 = vadd.f32 0.0, %v8432
      %v8434 = vpop.f32.mrf.mxu0
      %8435 = vmatprep.mubr.bf16.mxu0 %v5844
      %8436 = vmatmul.mubr.bf16.gmra.mxu0 %v5842
      %v8437 = vpop.f32.mrf.mxu0
      %v8438 = vadd.f32 0.0, %v8437
      %v8439 = vpop.f32.mrf.mxu0
      %v8440 = vpop.f32.mrf.mxu0
      %v8441 = vadd.f32 0.0, %v8440
      %v8442 = vpop.f32.mrf.mxu0
      %8443 = vmatprep.mubr.bf16.mxu0 %v5845
      %8444 = vmatmul.mubr.bf16.gmra.mxu0 %v5843
      %v8445 = vpop.f32.mrf.mxu0
      %v8446 = vadd.f32 0.0, %v8445
      %v8447 = vpop.f32.mrf.mxu0
      %v8448 = vpop.f32.mrf.mxu0
      %v8449 = vadd.f32 0.0, %v8448
      %v8450 = vpop.f32.mrf.mxu0
      %8451 = vmatprep.mubr.bf16.mxu0 %v5846
      %8452 = vmatmul.mubr.bf16.gmra.mxu0 %v5844
      %v8453 = vpop.f32.mrf.mxu0
      %v8454 = vadd.f32 0.0, %v8453
      %v8455 = vpop.f32.mrf.mxu0
      %v8456 = vpop.f32.mrf.mxu0
      %v8457 = vadd.f32 0.0, %v8456
      %v8458 = vpop.f32.mrf.mxu0
      %8459 = vmatprep.mubr.bf16.mxu0 %v5847
      %8460 = vmatmul.mubr.bf16.gmra.mxu0 %v5845
      %v8461 = vpop.f32.mrf.mxu0
      %v8462 = vadd.f32 0.0, %v8461
      %v8463 = vpop.f32.mrf.mxu0
      %v8464 = vpop.f32.mrf.mxu0
      %v8465 = vadd.f32 0.0, %v8464
      %v8466 = vpop.f32.mrf.mxu0
      %8467 = vmatprep.mubr.bf16.mxu0 %v5848
      %8468 = vmatmul.mubr.bf16.gmra.mxu0 %v5846
      %v8469 = vpop.f32.mrf.mxu0
      %v8470 = vadd.f32 0.0, %v8469
      %v8471 = vpop.f32.mrf.mxu0
      %v8472 = vpop.f32.mrf.mxu0
      %v8473 = vadd.f32 0.0, %v8472
      %v8474 = vpop.f32.mrf.mxu0
      %8475 = vmatprep.mubr.bf16.mxu0 %v5889
      %8476 = vmatmul.mubr.bf16.gmra.mxu0 %v5847
      %v8477 = vpop.f32.mrf.mxu0
      %v8478 = vadd.f32 0.0, %v8477
      %v8479 = vpop.f32.mrf.mxu0
      %v8480 = vpop.f32.mrf.mxu0
      %v8481 = vadd.f32 0.0, %v8480
      %v8482 = vpop.f32.mrf.mxu0
      %8483 = vmatprep.mubr.bf16.mxu0 %v5890
      %8484 = vmatmul.mubr.bf16.gmra.mxu0 %v5848
      %v8485 = vpop.f32.mrf.mxu0
      %v8486 = vadd.f32 0.0, %v8485
      %v8487 = vpop.f32.mrf.mxu0
      %v8488 = vpop.f32.mrf.mxu0
      %v8489 = vadd.f32 0.0, %v8488
      %v8490 = vpop.f32.mrf.mxu0
      %8491 = vdwg.mxu0
      %8492 = vmatprep.subr.bf16.mxu0 0
      %8493 = vmatpush1.bf16.msra.mxu0 %v8178
      %8494 = vmatprep.subr.bf16.mxu0 0
      %8495 = vmatpush1.bf16.msra.mxu0 %v8177
      %8496 = vmatprep.subr.bf16.mxu0 0
      %8497 = vmatpush1.bf16.msra.mxu0 %v8176
      %8498 = vmatprep.subr.bf16.mxu0 0
      %8499 = vmatpush1.bf16.msra.mxu0 %v8175
      %8500 = vmatprep.subr.bf16.mxu0 0
      %8501 = vmatpush1.bf16.msra.mxu0 %v8174
      %8502 = vmatprep.subr.bf16.mxu0 0
      %8503 = vmatpush1.bf16.msra.mxu0 %v8173
      %8504 = vmatprep.subr.bf16.mxu0 0
      %8505 = vmatpush1.bf16.msra.mxu0 %v8172
      %8506 = vmatprep.subr.bf16.mxu0 0
      %8507 = vmatpush1.bf16.msra.mxu0 %v8171
      %8508 = vmatprep.subr.bf16.mxu0 0
      %8509 = vmatpush2.bf16.msra.mxu0 0
      %8510 = vmatprep.subr.bf16.mxu0 0
      %8511 = vmatpush2.bf16.msra.mxu0 0
      %8512 = vmatprep.subr.bf16.mxu0 0
      %8513 = vmatpush2.bf16.msra.mxu0 0
      %8514 = vmatprep.subr.bf16.mxu0 0
      %8515 = vmatpush2.bf16.msra.mxu0 0
      %8516 = vmatprep.subr.bf16.mxu0 0
      %8517 = vmatpush2.bf16.msra.mxu0 0
      %8518 = vmatprep.subr.bf16.mxu0 0
      %8519 = vmatpush2.bf16.msra.mxu0 0
      %8520 = vmatprep.subr.bf16.mxu0 0
      %8521 = vmatpush2.bf16.msra.mxu0 0
      %8522 = vmatprep.subr.bf16.mxu0 0
      %8523 = vmatpush2.bf16.msra.mxu0 0
      %8524 = vmatprep.mubr.bf16.mxu0 0
      %8525 = vmatmul.mubr.bf16.gmra.mxu0 %v6021
      %v8526 = vpop.f32.mrf.mxu0
      %v8527 = vadd.f32 %v8238, %v8526
      %v8528 = vpop.f32.mrf.mxu0
      %v8529 = vpop.f32.mrf.mxu0
      %v8530 = vadd.f32 %v8241, %v8529
      %v8531 = vpop.f32.mrf.mxu0
      %8532 = vmatprep.mubr.bf16.mxu0 0
      %8533 = vmatmul.mubr.bf16.gmra.mxu0 %v6022
      %v8534 = vpop.f32.mrf.mxu0
      %v8535 = vadd.f32 %v8246, %v8534
      %v8536 = vpop.f32.mrf.mxu0
      %v8537 = vpop.f32.mrf.mxu0
      %v8538 = vadd.f32 %v8249, %v8537
      %v8539 = vpop.f32.mrf.mxu0
      %8540 = vmatprep.mubr.bf16.mxu0 0
      %8541 = vmatmul.mubr.bf16.gmra.mxu0 %v6023
      %v8542 = vpop.f32.mrf.mxu0
      %v8543 = vadd.f32 %v8254, %v8542
      %v8544 = vpop.f32.mrf.mxu0
      %v8545 = vpop.f32.mrf.mxu0
      %v8546 = vadd.f32 %v8257, %v8545
      %v8547 = vpop.f32.mrf.mxu0
      %8548 = vmatprep.mubr.bf16.mxu0 0
      %8549 = vmatmul.mubr.bf16.gmra.mxu0 %v6024
      %v8550 = vpop.f32.mrf.mxu0
      %v8551 = vadd.f32 %v8262, %v8550
      %v8552 = vpop.f32.mrf.mxu0
      %v8553 = vpop.f32.mrf.mxu0
      %v8554 = vadd.f32 %v8265, %v8553
      %v8555 = vpop.f32.mrf.mxu0
      %8556 = vmatprep.mubr.bf16.mxu0 0
      %8557 = vmatmul.mubr.bf16.gmra.mxu0 %v6025
      %v8558 = vpop.f32.mrf.mxu0
      %v8559 = vadd.f32 %v8270, %v8558
      %v8560 = vpop.f32.mrf.mxu0
      %v8561 = vpop.f32.mrf.mxu0
      %v8562 = vadd.f32 %v8273, %v8561
      %v8563 = vpop.f32.mrf.mxu0
      %8564 = vmatprep.mubr.bf16.mxu0 0
      %8565 = vmatmul.mubr.bf16.gmra.mxu0 %v6026
      %v8566 = vpop.f32.mrf.mxu0
      %v8567 = vadd.f32 %v8278, %v8566
      %v8568 = vpop.f32.mrf.mxu0
      %v8569 = vpop.f32.mrf.mxu0
      %v8570 = vadd.f32 %v8281, %v8569
      %v8571 = vpop.f32.mrf.mxu0
      %8572 = vmatprep.mubr.bf16.mxu0 0
      %8573 = vmatmul.mubr.bf16.gmra.mxu0 %v6027
      %v8574 = vpop.f32.mrf.mxu0
      %v8575 = vadd.f32 %v8286, %v8574
      %v8576 = vpop.f32.mrf.mxu0
      %v8577 = vpop.f32.mrf.mxu0
      %v8578 = vadd.f32 %v8289, %v8577
      %v8579 = vpop.f32.mrf.mxu0
      %8580 = vmatprep.mubr.bf16.mxu0 0
      %8581 = vmatmul.mubr.bf16.gmra.mxu0 %v6028
      %v8582 = vpop.f32.mrf.mxu0
      %v8583 = vadd.f32 %v8294, %v8582
      %v8584 = vpop.f32.mrf.mxu0
      %v8585 = vpop.f32.mrf.mxu0
      %v8586 = vadd.f32 %v8297, %v8585
      %v8587 = vpop.f32.mrf.mxu0
      %8588 = vmatprep.mubr.bf16.mxu0 0
      %8589 = vmatmul.mubr.bf16.gmra.mxu0 %v6029
      %v8590 = vpop.f32.mrf.mxu0
      %v8591 = vadd.f32 %v8302, %v8590
      %v8592 = vpop.f32.mrf.mxu0
      %v8593 = vpop.f32.mrf.mxu0
      %v8594 = vadd.f32 %v8305, %v8593
      %v8595 = vpop.f32.mrf.mxu0
      %8596 = vmatprep.mubr.bf16.mxu0 0
      %8597 = vmatmul.mubr.bf16.gmra.mxu0 %v6030
      %v8598 = vpop.f32.mrf.mxu0
      %v8599 = vadd.f32 %v8310, %v8598
      %v8600 = vpop.f32.mrf.mxu0
      %v8601 = vpop.f32.mrf.mxu0
      %v8602 = vadd.f32 %v8313, %v8601
      %v8603 = vpop.f32.mrf.mxu0
      %8604 = vmatprep.mubr.bf16.mxu0 0
      %8605 = vmatmul.mubr.bf16.gmra.mxu0 %v6031
      %v8606 = vpop.f32.mrf.mxu0
      %v8607 = vadd.f32 %v8318, %v8606
      %v8608 = vpop.f32.mrf.mxu0
      %v8609 = vpop.f32.mrf.mxu0
      %v8610 = vadd.f32 %v8321, %v8609
      %v8611 = vpop.f32.mrf.mxu0
      %8612 = vmatprep.mubr.bf16.mxu0 0
      %8613 = vmatmul.mubr.bf16.gmra.mxu0 %v6032
      %v8614 = vpop.f32.mrf.mxu0
      %v8615 = vadd.f32 %v8326, %v8614
      %v8616 = vpop.f32.mrf.mxu0
      %v8617 = vpop.f32.mrf.mxu0
      %v8618 = vadd.f32 %v8329, %v8617
      %v8619 = vpop.f32.mrf.mxu0
      %8620 = vmatprep.mubr.bf16.mxu0 0
      %8621 = vmatmul.mubr.bf16.gmra.mxu0 %v6033
      %v8622 = vpop.f32.mrf.mxu0
      %v8623 = vadd.f32 %v8334, %v8622
      %v8624 = vpop.f32.mrf.mxu0
      %v8625 = vpop.f32.mrf.mxu0
      %v8626 = vadd.f32 %v8337, %v8625
      %v8627 = vpop.f32.mrf.mxu0
      %8628 = vmatprep.mubr.bf16.mxu0 0
      %8629 = vmatmul.mubr.bf16.gmra.mxu0 %v6034
      %v8630 = vpop.f32.mrf.mxu0
      %v8631 = vadd.f32 %v8342, %v8630
      %v8632 = vpop.f32.mrf.mxu0
      %v8633 = vpop.f32.mrf.mxu0
      %v8634 = vadd.f32 %v8345, %v8633
      %v8635 = vpop.f32.mrf.mxu0
      %8636 = vmatprep.mubr.bf16.mxu0 0
      %8637 = vmatmul.mubr.bf16.gmra.mxu0 %v6035
      %v8638 = vpop.f32.mrf.mxu0
      %v8639 = vadd.f32 %v8350, %v8638
      %v8640 = vpop.f32.mrf.mxu0
      %v8641 = vpop.f32.mrf.mxu0
      %v8642 = vadd.f32 %v8353, %v8641
      %v8643 = vpop.f32.mrf.mxu0
      %8644 = vmatprep.mubr.bf16.mxu0 0
      %8645 = vmatmul.mubr.bf16.gmra.mxu0 %v6036
      %v8646 = vpop.f32.mrf.mxu0
      %v8647 = vadd.f32 %v8358, %v8646
      %v8648 = vpop.f32.mrf.mxu0
      %v8649 = vpop.f32.mrf.mxu0
      %v8650 = vadd.f32 %v8361, %v8649
      %v8651 = vpop.f32.mrf.mxu0
      %8652 = vmatprep.mubr.bf16.mxu0 0
      %8653 = vmatmul.mubr.bf16.gmra.mxu0 %v6037
      %v8654 = vpop.f32.mrf.mxu0
      %v8655 = vadd.f32 %v8366, %v8654
      %v8656 = vpop.f32.mrf.mxu0
      %v8657 = vpop.f32.mrf.mxu0
      %v8658 = vadd.f32 %v8369, %v8657
      %v8659 = vpop.f32.mrf.mxu0
      %8660 = vmatprep.mubr.bf16.mxu0 0
      %8661 = vmatmul.mubr.bf16.gmra.mxu0 %v6038
      %v8662 = vpop.f32.mrf.mxu0
      %v8663 = vadd.f32 %v8374, %v8662
      %v8664 = vpop.f32.mrf.mxu0
      %v8665 = vpop.f32.mrf.mxu0
      %v8666 = vadd.f32 %v8377, %v8665
      %v8667 = vpop.f32.mrf.mxu0
      %8668 = vmatprep.mubr.bf16.mxu0 0
      %8669 = vmatmul.mubr.bf16.gmra.mxu0 %v6039
      %v8670 = vpop.f32.mrf.mxu0
      %v8671 = vadd.f32 %v8382, %v8670
      %v8672 = vpop.f32.mrf.mxu0
      %v8673 = vpop.f32.mrf.mxu0
      %v8674 = vadd.f32 %v8385, %v8673
      %v8675 = vpop.f32.mrf.mxu0
      %8676 = vmatprep.mubr.bf16.mxu0 0
      %8677 = vmatmul.mubr.bf16.gmra.mxu0 %v6040
      %v8678 = vpop.f32.mrf.mxu0
      %v8679 = vadd.f32 %v8390, %v8678
      %v8680 = vpop.f32.mrf.mxu0
      %v8681 = vpop.f32.mrf.mxu0
      %v8682 = vadd.f32 %v8393, %v8681
      %v8683 = vpop.f32.mrf.mxu0
      %8684 = vmatprep.mubr.bf16.mxu0 0
      %8685 = vmatmul.mubr.bf16.gmra.mxu0 %v6041
      %v8686 = vpop.f32.mrf.mxu0
      %v8687 = vadd.f32 %v8398, %v8686
      %v8688 = vpop.f32.mrf.mxu0
      %v8689 = vpop.f32.mrf.mxu0
      %v8690 = vadd.f32 %v8401, %v8689
      %v8691 = vpop.f32.mrf.mxu0
      %8692 = vmatprep.mubr.bf16.mxu0 0
      %8693 = vmatmul.mubr.bf16.gmra.mxu0 %v6042
      %v8694 = vpop.f32.mrf.mxu0
      %v8695 = vadd.f32 %v8406, %v8694
      %v8696 = vpop.f32.mrf.mxu0
      %v8697 = vpop.f32.mrf.mxu0
      %v8698 = vadd.f32 %v8409, %v8697
      %v8699 = vpop.f32.mrf.mxu0
      %8700 = vmatprep.mubr.bf16.mxu0 0
      %8701 = vmatmul.mubr.bf16.gmra.mxu0 %v6043
      %v8702 = vpop.f32.mrf.mxu0
      %v8703 = vadd.f32 %v8414, %v8702
      %v8704 = vpop.f32.mrf.mxu0
      %v8705 = vpop.f32.mrf.mxu0
      %v8706 = vadd.f32 %v8417, %v8705
      %v8707 = vpop.f32.mrf.mxu0
      %8708 = vmatprep.mubr.bf16.mxu0 0
      %8709 = vmatmul.mubr.bf16.gmra.mxu0 %v6044
      %v8710 = vpop.f32.mrf.mxu0
      %v8711 = vadd.f32 %v8422, %v8710
      %v8712 = vpop.f32.mrf.mxu0
      %v8713 = vpop.f32.mrf.mxu0
      %v8714 = vadd.f32 %v8425, %v8713
      %v8715 = vpop.f32.mrf.mxu0
      %8716 = vmatprep.mubr.bf16.mxu0 0
      %8717 = vmatmul.mubr.bf16.gmra.mxu0 %v6045
      %v8718 = vpop.f32.mrf.mxu0
      %v8719 = vadd.f32 %v8430, %v8718
      %v8720 = vpop.f32.mrf.mxu0
      %v8721 = vpop.f32.mrf.mxu0
      %v8722 = vadd.f32 %v8433, %v8721
      %v8723 = vpop.f32.mrf.mxu0
      %8724 = vmatprep.mubr.bf16.mxu0 0
      %8725 = vmatmul.mubr.bf16.gmra.mxu0 %v6046
      %v8726 = vpop.f32.mrf.mxu0
      %v8727 = vadd.f32 %v8438, %v8726
      %v8728 = vpop.f32.mrf.mxu0
      %v8729 = vpop.f32.mrf.mxu0
      %v8730 = vadd.f32 %v8441, %v8729
      %v8731 = vpop.f32.mrf.mxu0
      %8732 = vmatprep.mubr.bf16.mxu0 0
      %8733 = vmatmul.mubr.bf16.gmra.mxu0 %v6047
      %v8734 = vpop.f32.mrf.mxu0
      %v8735 = vadd.f32 %v8446, %v8734
      %v8736 = vpop.f32.mrf.mxu0
      %v8737 = vpop.f32.mrf.mxu0
      %v8738 = vadd.f32 %v8449, %v8737
      %v8739 = vpop.f32.mrf.mxu0
      %8740 = vmatprep.mubr.bf16.mxu0 0
      %8741 = vmatmul.mubr.bf16.gmra.mxu0 %v6048
      %v8742 = vpop.f32.mrf.mxu0
      %v8743 = vadd.f32 %v8454, %v8742
      %v8744 = vpop.f32.mrf.mxu0
      %v8745 = vpop.f32.mrf.mxu0
      %v8746 = vadd.f32 %v8457, %v8745
      %v8747 = vpop.f32.mrf.mxu0
      %8748 = vmatprep.mubr.bf16.mxu0 0
      %8749 = vmatmul.mubr.bf16.gmra.mxu0 %v6049
      %v8750 = vpop.f32.mrf.mxu0
      %v8751 = vadd.f32 %v8462, %v8750
      %v8752 = vpop.f32.mrf.mxu0
      %v8753 = vpop.f32.mrf.mxu0
      %v8754 = vadd.f32 %v8465, %v8753
      %v8755 = vpop.f32.mrf.mxu0
      %8756 = vmatprep.mubr.bf16.mxu0 0
      %8757 = vmatmul.mubr.bf16.gmra.mxu0 %v6050
      %v8758 = vpop.f32.mrf.mxu0
      %v8759 = vadd.f32 %v8470, %v8758
      %v8760 = vpop.f32.mrf.mxu0
      %v8761 = vpop.f32.mrf.mxu0
      %v8762 = vadd.f32 %v8473, %v8761
      %v8763 = vpop.f32.mrf.mxu0
      %8764 = vmatprep.mubr.bf16.mxu0 0
      %8765 = vmatmul.mubr.bf16.gmra.mxu0 %v6051
      %v8766 = vpop.f32.mrf.mxu0
      %v8767 = vadd.f32 %v8478, %v8766
      %v8768 = vpop.f32.mrf.mxu0
      %v8769 = vpop.f32.mrf.mxu0
      %v8770 = vadd.f32 %v8481, %v8769
      %v8771 = vpop.f32.mrf.mxu0
      %8772 = vmatprep.mubr.bf16.mxu0 0
      %8773 = vmatmul.mubr.bf16.gmra.mxu0 %v6052
      %v8774 = vpop.f32.mrf.mxu0
      %v8775 = vadd.f32 %v8486, %v8774
      %v8776 = vpop.f32.mrf.mxu0
      %v8777 = vpop.f32.mrf.mxu0
      %v8778 = vadd.f32 %v8489, %v8777
      %v8779 = vpop.f32.mrf.mxu0
      %8780 = vdwg.mxu0
      %v8781 = vld [vmem:[#allocation2] sm:$0xff]
      %v8782 = vld [vmem:[#allocation2 + $0x8] sm:$0xff]
      %v8783 = vld [vmem:[#allocation2 + $0x10] sm:$0xff]
      %v8784 = vld [vmem:[#allocation2 + $0x18] sm:$0xff]
      %v8785 = vld [vmem:[#allocation2 + $0x20] sm:$0xff]
      %v8786 = vld [vmem:[#allocation2 + $0x28] sm:$0xff]
      %v8787 = vld [vmem:[#allocation2 + $0x30] sm:$0xff]
      %v8788 = vld [vmem:[#allocation2 + $0x38] sm:$0xff]
      %v8789 = vld [vmem:[#allocation2 + $0x40] sm:$0xff]
      %v8790 = vld [vmem:[#allocation2 + $0x48] sm:$0xff]
      %v8791 = vld [vmem:[#allocation2 + $0x50] sm:$0xff]
      %v8792 = vld [vmem:[#allocation2 + $0x58] sm:$0xff]
      %v8793 = vld [vmem:[#allocation2 + $0x60] sm:$0xff]
      %v8794 = vld [vmem:[#allocation2 + $0x68] sm:$0xff]
      %v8795 = vld [vmem:[#allocation2 + $0x70] sm:$0xff]
      %v8796 = vld [vmem:[#allocation2 + $0x78] sm:$0xff]
      %v8797 = vld [vmem:[#allocation2 + $0x80] sm:$0xff]
      %v8798 = vld [vmem:[#allocation2 + $0x88] sm:$0xff]
      %v8799 = vld [vmem:[#allocation2 + $0x90] sm:$0xff]
      %v8800 = vld [vmem:[#allocation2 + $0x98] sm:$0xff]
      %v8801 = vld [vmem:[#allocation2 + $0xa0] sm:$0xff]
      %v8802 = vld [vmem:[#allocation2 + $0xa8] sm:$0xff]
      %v8803 = vld [vmem:[#allocation2 + $0xb0] sm:$0xff]
      %v8804 = vld [vmem:[#allocation2 + $0xb8] sm:$0xff]
      %v8805 = vld [vmem:[#allocation2 + $0xc0] sm:$0xff]
      %v8806 = vld [vmem:[#allocation2 + $0xc8] sm:$0xff]
      %v8807 = vld [vmem:[#allocation2 + $0xd0] sm:$0xff]
      %v8808 = vld [vmem:[#allocation2 + $0xd8] sm:$0xff]
      %v8809 = vld [vmem:[#allocation2 + $0xe0] sm:$0xff]
      %v8810 = vld [vmem:[#allocation2 + $0xe8] sm:$0xff]
      %v8811 = vld [vmem:[#allocation2 + $0xf0] sm:$0xff]
      %v8812 = vld [vmem:[#allocation2 + $0xf8] sm:$0xff]
      %v8813 = vld [vmem:[#allocation2 + $0x100] sm:$0xff]
      %v8814 = vld [vmem:[#allocation2 + $0x108] sm:$0xff]
      %v8815 = vld [vmem:[#allocation2 + $0x110] sm:$0xff]
      %v8816 = vld [vmem:[#allocation2 + $0x118] sm:$0xff]
      %v8817 = vld [vmem:[#allocation2 + $0x120] sm:$0xff]
      %v8818 = vld [vmem:[#allocation2 + $0x128] sm:$0xff]
      %v8819 = vld [vmem:[#allocation2 + $0x130] sm:$0xff]
      %v8820 = vld [vmem:[#allocation2 + $0x138] sm:$0xff]
      %v8821 = vld [vmem:[#allocation2 + $0x140] sm:$0xff]
      %v8822 = vld [vmem:[#allocation2 + $0x148] sm:$0xff]
      %v8823 = vld [vmem:[#allocation2 + $0x150] sm:$0xff]
      %v8824 = vld [vmem:[#allocation2 + $0x158] sm:$0xff]
      %v8825 = vld [vmem:[#allocation2 + $0x160] sm:$0xff]
      %v8826 = vld [vmem:[#allocation2 + $0x168] sm:$0xff]
      %v8827 = vld [vmem:[#allocation2 + $0x170] sm:$0xff]
      %v8828 = vld [vmem:[#allocation2 + $0x178] sm:$0xff]
      %v8829 = vld [vmem:[#allocation2 + $0x180] sm:$0xff]
      %v8830 = vld [vmem:[#allocation2 + $0x188] sm:$0xff]
      %v8831 = vld [vmem:[#allocation2 + $0x190] sm:$0xff]
      %v8832 = vld [vmem:[#allocation2 + $0x198] sm:$0xff]
      %v8833 = vld [vmem:[#allocation2 + $0x1a0] sm:$0xff]
      %v8834 = vld [vmem:[#allocation2 + $0x1a8] sm:$0xff]
      %v8835 = vld [vmem:[#allocation2 + $0x1b0] sm:$0xff]
      %v8836 = vld [vmem:[#allocation2 + $0x1b8] sm:$0xff]
      %v8837 = vld [vmem:[#allocation2 + $0x1c0] sm:$0xff]
      %v8838 = vld [vmem:[#allocation2 + $0x1c8] sm:$0xff]
      %v8839 = vld [vmem:[#allocation2 + $0x1d0] sm:$0xff]
      %v8840 = vld [vmem:[#allocation2 + $0x1d8] sm:$0xff]
      %v8841 = vld [vmem:[#allocation2 + $0x1e0] sm:$0xff]
      %v8842 = vld [vmem:[#allocation2 + $0x1e8] sm:$0xff]
      %v8843 = vld [vmem:[#allocation2 + $0x1f0] sm:$0xff]
      %v8844 = vld [vmem:[#allocation2 + $0x1f8] sm:$0xff]
      %v8845 = vrot.slane %v8527, 1
      %v8846 = vrot.slane %v8530, 1
      %v8847 = vrot.slane %v8535, 1
      %v8848 = vrot.slane %v8538, 1
      %v8849 = vrot.slane %v8543, 1
      %v8850 = vrot.slane %v8546, 1
      %v8851 = vrot.slane %v8551, 1
      %v8852 = vrot.slane %v8554, 1
      %v8853 = vrot.slane %v8559, 1
      %v8854 = vrot.slane %v8562, 1
      %v8855 = vrot.slane %v8567, 1
      %v8856 = vrot.slane %v8570, 1
      %v8857 = vrot.slane %v8575, 1
      %v8858 = vrot.slane %v8578, 1
      %v8859 = vrot.slane %v8583, 1
      %v8860 = vrot.slane %v8586, 1
      %v8861 = vrot.slane %v8591, 1
      %v8862 = vrot.slane %v8594, 1
      %v8863 = vrot.slane %v8599, 1
      %v8864 = vrot.slane %v8602, 1
      %v8865 = vrot.slane %v8607, 1
      %v8866 = vrot.slane %v8610, 1
      %v8867 = vrot.slane %v8615, 1
      %v8868 = vrot.slane %v8618, 1
      %v8869 = vrot.slane %v8623, 1
      %v8870 = vrot.slane %v8626, 1
      %v8871 = vrot.slane %v8631, 1
      %v8872 = vrot.slane %v8634, 1
      %v8873 = vrot.slane %v8639, 1
      %v8874 = vrot.slane %v8642, 1
      %v8875 = vrot.slane %v8647, 1
      %v8876 = vrot.slane %v8650, 1
      %v8877 = vrot.slane %v8655, 1
      %v8878 = vrot.slane %v8658, 1
      %v8879 = vrot.slane %v8663, 1
      %v8880 = vrot.slane %v8666, 1
      %v8881 = vrot.slane %v8671, 1
      %v8882 = vrot.slane %v8674, 1
      %v8883 = vrot.slane %v8679, 1
      %v8884 = vrot.slane %v8682, 1
      %v8885 = vrot.slane %v8687, 1
      %v8886 = vrot.slane %v8690, 1
      %v8887 = vrot.slane %v8695, 1
      %v8888 = vrot.slane %v8698, 1
      %v8889 = vrot.slane %v8703, 1
      %v8890 = vrot.slane %v8706, 1
      %v8891 = vrot.slane %v8711, 1
      %v8892 = vrot.slane %v8714, 1
      %v8893 = vrot.slane %v8719, 1
      %v8894 = vrot.slane %v8722, 1
      %v8895 = vrot.slane %v8727, 1
      %v8896 = vrot.slane %v8730, 1
      %v8897 = vrot.slane %v8735, 1
      %v8898 = vrot.slane %v8738, 1
      %v8899 = vrot.slane %v8743, 1
      %v8900 = vrot.slane %v8746, 1
      %v8901 = vrot.slane %v8751, 1
      %v8902 = vrot.slane %v8754, 1
      %v8903 = vrot.slane %v8759, 1
      %v8904 = vrot.slane %v8762, 1
      %v8905 = vrot.slane %v8767, 1
      %v8906 = vrot.slane %v8770, 1
      %v8907 = vrot.slane %v8775, 1
      %v8908 = vrot.slane %v8778, 1
      %v8909 = vsel %vm4241, %v8907, %v8908
      %v8910 = vsel %vm4241, %v8906, %v8907
      %v8911 = vsel %vm4241, %v8905, %v8906
      %v8912 = vsel %vm4241, %v8904, %v8905
      %v8913 = vsel %vm4241, %v8903, %v8904
      %v8914 = vsel %vm4241, %v8902, %v8903
      %v8915 = vsel %vm4241, %v8901, %v8902
      %v8916 = vsel %vm4241, %v8900, %v8901
      %v8917 = vsel %vm4241, %v8899, %v8900
      %v8918 = vsel %vm4241, %v8898, %v8899
      %v8919 = vsel %vm4241, %v8897, %v8898
      %v8920 = vsel %vm4241, %v8896, %v8897
      %v8921 = vsel %vm4241, %v8895, %v8896
      %v8922 = vsel %vm4241, %v8894, %v8895
      %v8923 = vsel %vm4241, %v8893, %v8894
      %v8924 = vsel %vm4241, %v8892, %v8893
      %v8925 = vsel %vm4241, %v8891, %v8892
      %v8926 = vsel %vm4241, %v8890, %v8891
      %v8927 = vsel %vm4241, %v8889, %v8890
      %v8928 = vsel %vm4241, %v8888, %v8889
      %v8929 = vsel %vm4241, %v8887, %v8888
      %v8930 = vsel %vm4241, %v8886, %v8887
      %v8931 = vsel %vm4241, %v8885, %v8886
      %v8932 = vsel %vm4241, %v8884, %v8885
      %v8933 = vsel %vm4241, %v8883, %v8884
      %v8934 = vsel %vm4241, %v8882, %v8883
      %v8935 = vsel %vm4241, %v8881, %v8882
      %v8936 = vsel %vm4241, %v8880, %v8881
      %v8937 = vsel %vm4241, %v8879, %v8880
      %v8938 = vsel %vm4241, %v8878, %v8879
      %v8939 = vsel %vm4241, %v8877, %v8878
      %v8940 = vsel %vm4241, %v8876, %v8877
      %v8941 = vsel %vm4241, %v8875, %v8876
      %v8942 = vsel %vm4241, %v8874, %v8875
      %v8943 = vsel %vm4241, %v8873, %v8874
      %v8944 = vsel %vm4241, %v8872, %v8873
      %v8945 = vsel %vm4241, %v8871, %v8872
      %v8946 = vsel %vm4241, %v8870, %v8871
      %v8947 = vsel %vm4241, %v8869, %v8870
      %v8948 = vsel %vm4241, %v8868, %v8869
      %v8949 = vsel %vm4241, %v8867, %v8868
      %v8950 = vsel %vm4241, %v8866, %v8867
      %v8951 = vsel %vm4241, %v8865, %v8866
      %v8952 = vsel %vm4241, %v8864, %v8865
      %v8953 = vsel %vm4241, %v8863, %v8864
      %v8954 = vsel %vm4241, %v8862, %v8863
      %v8955 = vsel %vm4241, %v8861, %v8862
      %v8956 = vsel %vm4241, %v8860, %v8861
      %v8957 = vsel %vm4241, %v8859, %v8860
      %v8958 = vsel %vm4241, %v8858, %v8859
      %v8959 = vsel %vm4241, %v8857, %v8858
      %v8960 = vsel %vm4241, %v8856, %v8857
      %v8961 = vsel %vm4241, %v8855, %v8856
      %v8962 = vsel %vm4241, %v8854, %v8855
      %v8963 = vsel %vm4241, %v8853, %v8854
      %v8964 = vsel %vm4241, %v8852, %v8853
      %v8965 = vsel %vm4241, %v8851, %v8852
      %v8966 = vsel %vm4241, %v8850, %v8851
      %v8967 = vsel %vm4241, %v8849, %v8850
      %v8968 = vsel %vm4241, %v8848, %v8849
      %v8969 = vsel %vm4241, %v8847, %v8848
      %v8970 = vsel %vm4241, %v8846, %v8847
      %v8971 = vsel %vm4241, %v8845, %v8846
      %v8972 = vsel %vm4241, %v8908, %v8845
      %v8973 = vadd.f32 %v8781, %v8971
      %v8974 = vadd.f32 %v8782, %v8970
      %v8975 = vadd.f32 %v8783, %v8969
      %v8976 = vadd.f32 %v8784, %v8968
      %v8977 = vadd.f32 %v8785, %v8967
      %v8978 = vadd.f32 %v8786, %v8966
      %v8979 = vadd.f32 %v8787, %v8965
      %v8980 = vadd.f32 %v8788, %v8964
      %v8981 = vadd.f32 %v8789, %v8963
      %v8982 = vadd.f32 %v8790, %v8962
      %v8983 = vadd.f32 %v8791, %v8961
      %v8984 = vadd.f32 %v8792, %v8960
      %v8985 = vadd.f32 %v8793, %v8959
      %v8986 = vadd.f32 %v8794, %v8958
      %v8987 = vadd.f32 %v8795, %v8957
      %v8988 = vadd.f32 %v8796, %v8956
      %v8989 = vadd.f32 %v8797, %v8955
      %v8990 = vadd.f32 %v8798, %v8954
      %v8991 = vadd.f32 %v8799, %v8953
      %v8992 = vadd.f32 %v8800, %v8952
      %v8993 = vadd.f32 %v8801, %v8951
      %v8994 = vadd.f32 %v8802, %v8950
      %v8995 = vadd.f32 %v8803, %v8949
      %v8996 = vadd.f32 %v8804, %v8948
      %v8997 = vadd.f32 %v8805, %v8947
      %v8998 = vadd.f32 %v8806, %v8946
      %v8999 = vadd.f32 %v8807, %v8945
      %v9000 = vadd.f32 %v8808, %v8944
      %v9001 = vadd.f32 %v8809, %v8943
      %v9002 = vadd.f32 %v8810, %v8942
      %v9003 = vadd.f32 %v8811, %v8941
      %v9004 = vadd.f32 %v8812, %v8940
      %v9005 = vadd.f32 %v8813, %v8939
      %v9006 = vadd.f32 %v8814, %v8938
      %v9007 = vadd.f32 %v8815, %v8937
      %v9008 = vadd.f32 %v8816, %v8936
      %v9009 = vadd.f32 %v8817, %v8935
      %v9010 = vadd.f32 %v8818, %v8934
      %v9011 = vadd.f32 %v8819, %v8933
      %v9012 = vadd.f32 %v8820, %v8932
      %v9013 = vadd.f32 %v8821, %v8931
      %v9014 = vadd.f32 %v8822, %v8930
      %v9015 = vadd.f32 %v8823, %v8929
      %v9016 = vadd.f32 %v8824, %v8928
      %v9017 = vadd.f32 %v8825, %v8927
      %v9018 = vadd.f32 %v8826, %v8926
      %v9019 = vadd.f32 %v8827, %v8925
      %v9020 = vadd.f32 %v8828, %v8924
      %v9021 = vadd.f32 %v8829, %v8923
      %v9022 = vadd.f32 %v8830, %v8922
      %v9023 = vadd.f32 %v8831, %v8921
      %v9024 = vadd.f32 %v8832, %v8920
      %v9025 = vadd.f32 %v8833, %v8919
      %v9026 = vadd.f32 %v8834, %v8918
      %v9027 = vadd.f32 %v8835, %v8917
      %v9028 = vadd.f32 %v8836, %v8916
      %v9029 = vadd.f32 %v8837, %v8915
      %v9030 = vadd.f32 %v8838, %v8914
      %v9031 = vadd.f32 %v8839, %v8913
      %v9032 = vadd.f32 %v8840, %v8912
      %v9033 = vadd.f32 %v8841, %v8911
      %v9034 = vadd.f32 %v8842, %v8910
      %v9035 = vadd.f32 %v8843, %v8909
      %v9036 = vadd.f32 %v8844, %v8972
      %9037 = vst [vmem:[#allocation2] sm:$0xff] %v8973
      %9038 = vst [vmem:[#allocation2 + $0x8] sm:$0xff] %v8974
      %9039 = vst [vmem:[#allocation2 + $0x10] sm:$0xff] %v8975
      %9040 = vst [vmem:[#allocation2 + $0x18] sm:$0xff] %v8976
      %9041 = vst [vmem:[#allocation2 + $0x20] sm:$0xff] %v8977
      %9042 = vst [vmem:[#allocation2 + $0x28] sm:$0xff] %v8978
      %9043 = vst [vmem:[#allocation2 + $0x30] sm:$0xff] %v8979
      %9044 = vst [vmem:[#allocation2 + $0x38] sm:$0xff] %v8980
      %9045 = vst [vmem:[#allocation2 + $0x40] sm:$0xff] %v8981
      %9046 = vst [vmem:[#allocation2 + $0x48] sm:$0xff] %v8982
      %9047 = vst [vmem:[#allocation2 + $0x50] sm:$0xff] %v8983
      %9048 = vst [vmem:[#allocation2 + $0x58] sm:$0xff] %v8984
      %9049 = vst [vmem:[#allocation2 + $0x60] sm:$0xff] %v8985
      %9050 = vst [vmem:[#allocation2 + $0x68] sm:$0xff] %v8986
      %9051 = vst [vmem:[#allocation2 + $0x70] sm:$0xff] %v8987
      %9052 = vst [vmem:[#allocation2 + $0x78] sm:$0xff] %v8988
      %9053 = vst [vmem:[#allocation2 + $0x80] sm:$0xff] %v8989
      %9054 = vst [vmem:[#allocation2 + $0x88] sm:$0xff] %v8990
      %9055 = vst [vmem:[#allocation2 + $0x90] sm:$0xff] %v8991
      %9056 = vst [vmem:[#allocation2 + $0x98] sm:$0xff] %v8992
      %9057 = vst [vmem:[#allocation2 + $0xa0] sm:$0xff] %v8993
      %9058 = vst [vmem:[#allocation2 + $0xa8] sm:$0xff] %v8994
      %9059 = vst [vmem:[#allocation2 + $0xb0] sm:$0xff] %v8995
      %9060 = vst [vmem:[#allocation2 + $0xb8] sm:$0xff] %v8996
      %9061 = vst [vmem:[#allocation2 + $0xc0] sm:$0xff] %v8997
      %9062 = vst [vmem:[#allocation2 + $0xc8] sm:$0xff] %v8998
      %9063 = vst [vmem:[#allocation2 + $0xd0] sm:$0xff] %v8999
      %9064 = vst [vmem:[#allocation2 + $0xd8] sm:$0xff] %v9000
      %9065 = vst [vmem:[#allocation2 + $0xe0] sm:$0xff] %v9001
      %9066 = vst [vmem:[#allocation2 + $0xe8] sm:$0xff] %v9002
      %9067 = vst [vmem:[#allocation2 + $0xf0] sm:$0xff] %v9003
      %9068 = vst [vmem:[#allocation2 + $0xf8] sm:$0xff] %v9004
      %9069 = vst [vmem:[#allocation2 + $0x100] sm:$0xff] %v9005
      %9070 = vst [vmem:[#allocation2 + $0x108] sm:$0xff] %v9006
      %9071 = vst [vmem:[#allocation2 + $0x110] sm:$0xff] %v9007
      %9072 = vst [vmem:[#allocation2 + $0x118] sm:$0xff] %v9008
      %9073 = vst [vmem:[#allocation2 + $0x120] sm:$0xff] %v9009
      %9074 = vst [vmem:[#allocation2 + $0x128] sm:$0xff] %v9010
      %9075 = vst [vmem:[#allocation2 + $0x130] sm:$0xff] %v9011
      %9076 = vst [vmem:[#allocation2 + $0x138] sm:$0xff] %v9012
      %9077 = vst [vmem:[#allocation2 + $0x140] sm:$0xff] %v9013
      %9078 = vst [vmem:[#allocation2 + $0x148] sm:$0xff] %v9014
      %9079 = vst [vmem:[#allocation2 + $0x150] sm:$0xff] %v9015
      %9080 = vst [vmem:[#allocation2 + $0x158] sm:$0xff] %v9016
      %9081 = vst [vmem:[#allocation2 + $0x160] sm:$0xff] %v9017
      %9082 = vst [vmem:[#allocation2 + $0x168] sm:$0xff] %v9018
      %9083 = vst [vmem:[#allocation2 + $0x170] sm:$0xff] %v9019
      %9084 = vst [vmem:[#allocation2 + $0x178] sm:$0xff] %v9020
      %9085 = vst [vmem:[#allocation2 + $0x180] sm:$0xff] %v9021
      %9086 = vst [vmem:[#allocation2 + $0x188] sm:$0xff] %v9022
      %9087 = vst [vmem:[#allocation2 + $0x190] sm:$0xff] %v9023
      %9088 = vst [vmem:[#allocation2 + $0x198] sm:$0xff] %v9024
      %9089 = vst [vmem:[#allocation2 + $0x1a0] sm:$0xff] %v9025
      %9090 = vst [vmem:[#allocation2 + $0x1a8] sm:$0xff] %v9026
      %9091 = vst [vmem:[#allocation2 + $0x1b0] sm:$0xff] %v9027
      %9092 = vst [vmem:[#allocation2 + $0x1b8] sm:$0xff] %v9028
      %9093 = vst [vmem:[#allocation2 + $0x1c0] sm:$0xff] %v9029
      %9094 = vst [vmem:[#allocation2 + $0x1c8] sm:$0xff] %v9030
      %9095 = vst [vmem:[#allocation2 + $0x1d0] sm:$0xff] %v9031
      %9096 = vst [vmem:[#allocation2 + $0x1d8] sm:$0xff] %v9032
      %9097 = vst [vmem:[#allocation2 + $0x1e0] sm:$0xff] %v9033
      %9098 = vst [vmem:[#allocation2 + $0x1e8] sm:$0xff] %v9034
      %9099 = vst [vmem:[#allocation2 + $0x1f0] sm:$0xff] %v9035
      %9100 = vst [vmem:[#allocation2 + $0x1f8] sm:$0xff] %v9036
      %v9101 = vld [vmem:[%s437] sm:$0xf]
      %v9102 = vld [vmem:[%s437 + $0x4] sm:$0xf]
      %v9103 = vld [vmem:[%s437 + $0x8] sm:$0xf]
      %v9104 = vld [vmem:[%s437 + $0xc] sm:$0xf]
      %v9105 = vld [vmem:[%s437 + $0x10] sm:$0xf]
      %v9106 = vld [vmem:[%s437 + $0x14] sm:$0xf]
      %v9107 = vld [vmem:[%s437 + $0x18] sm:$0xf]
      %v9108 = vld [vmem:[%s437 + $0x1c] sm:$0xf]
      %v9109 = vld [vmem:[%s437 + $0x20] sm:$0xf]
      %v9110 = vld [vmem:[%s437 + $0x24] sm:$0xf]
      %v9111 = vld [vmem:[%s437 + $0x28] sm:$0xf]
      %v9112 = vld [vmem:[%s437 + $0x2c] sm:$0xf]
      %v9113 = vld [vmem:[%s437 + $0x30] sm:$0xf]
      %v9114 = vld [vmem:[%s437 + $0x34] sm:$0xf]
      %v9115 = vld [vmem:[%s437 + $0x38] sm:$0xf]
      %v9116 = vld [vmem:[%s437 + $0x3c] sm:$0xf]
      %v9117 = vld [vmem:[%s437 + $0x40] sm:$0xf]
      %v9118 = vld [vmem:[%s437 + $0x44] sm:$0xf]
      %v9119 = vld [vmem:[%s437 + $0x48] sm:$0xf]
      %v9120 = vld [vmem:[%s437 + $0x4c] sm:$0xf]
      %v9121 = vld [vmem:[%s437 + $0x50] sm:$0xf]
      %v9122 = vld [vmem:[%s437 + $0x54] sm:$0xf]
      %v9123 = vld [vmem:[%s437 + $0x58] sm:$0xf]
      %v9124 = vld [vmem:[%s437 + $0x5c] sm:$0xf]
      %v9125 = vld [vmem:[%s437 + $0x60] sm:$0xf]
      %v9126 = vld [vmem:[%s437 + $0x64] sm:$0xf]
      %v9127 = vld [vmem:[%s437 + $0x68] sm:$0xf]
      %v9128 = vld [vmem:[%s437 + $0x6c] sm:$0xf]
      %v9129 = vld [vmem:[%s437 + $0x70] sm:$0xf]
      %v9130 = vld [vmem:[%s437 + $0x74] sm:$0xf]
      %v9131 = vld [vmem:[%s437 + $0x78] sm:$0xf]
      %v9132 = vld [vmem:[%s437 + $0x7c] sm:$0xf]
      %v9133 = vld [vmem:[%s437 + $0x80] sm:$0xf]
      %v9134 = vld [vmem:[%s437 + $0x84] sm:$0xf]
      %v9135 = vld [vmem:[%s437 + $0x88] sm:$0xf]
      %v9136 = vld [vmem:[%s437 + $0x8c] sm:$0xf]
      %v9137 = vld [vmem:[%s437 + $0x90] sm:$0xf]
      %v9138 = vld [vmem:[%s437 + $0x94] sm:$0xf]
      %v9139 = vld [vmem:[%s437 + $0x98] sm:$0xf]
      %v9140 = vld [vmem:[%s437 + $0x9c] sm:$0xf]
      %v9141 = vld [vmem:[%s437 + $0xa0] sm:$0xf]
      %v9142 = vld [vmem:[%s437 + $0xa4] sm:$0xf]
      %v9143 = vld [vmem:[%s437 + $0xa8] sm:$0xf]
      %v9144 = vld [vmem:[%s437 + $0xac] sm:$0xf]
      %v9145 = vld [vmem:[%s437 + $0xb0] sm:$0xf]
      %v9146 = vld [vmem:[%s437 + $0xb4] sm:$0xf]
      %v9147 = vld [vmem:[%s437 + $0xb8] sm:$0xf]
      %v9148 = vld [vmem:[%s437 + $0xbc] sm:$0xf]
      %v9149 = vld [vmem:[%s437 + $0xc0] sm:$0xf]
      %v9150 = vld [vmem:[%s437 + $0xc4] sm:$0xf]
      %v9151 = vld [vmem:[%s437 + $0xc8] sm:$0xf]
      %v9152 = vld [vmem:[%s437 + $0xcc] sm:$0xf]
      %v9153 = vld [vmem:[%s437 + $0xd0] sm:$0xf]
      %v9154 = vld [vmem:[%s437 + $0xd4] sm:$0xf]
      %v9155 = vld [vmem:[%s437 + $0xd8] sm:$0xf]
      %v9156 = vld [vmem:[%s437 + $0xdc] sm:$0xf]
      %v9157 = vld [vmem:[%s437 + $0xe0] sm:$0xf]
      %v9158 = vld [vmem:[%s437 + $0xe4] sm:$0xf]
      %v9159 = vld [vmem:[%s437 + $0xe8] sm:$0xf]
      %v9160 = vld [vmem:[%s437 + $0xec] sm:$0xf]
      %v9161 = vld [vmem:[%s437 + $0xf0] sm:$0xf]
      %v9162 = vld [vmem:[%s437 + $0xf4] sm:$0xf]
      %v9163 = vld [vmem:[%s437 + $0xf8] sm:$0xf]
      %v9164 = vld [vmem:[%s437 + $0xfc] sm:$0xf]
      %v9165 = vunpack.c.l.bf16 %v9101
      %v9166 = vunpack.c.l.bf16 %v9102
      %v9167 = vunpack.c.l.bf16 %v9103
      %v9168 = vunpack.c.l.bf16 %v9104
      %v9169 = vunpack.c.l.bf16 %v9105
      %v9170 = vunpack.c.l.bf16 %v9106
      %v9171 = vunpack.c.l.bf16 %v9107
      %v9172 = vunpack.c.l.bf16 %v9108
      %v9173 = vunpack.c.l.bf16 %v9109
      %v9174 = vunpack.c.l.bf16 %v9110
      %v9175 = vunpack.c.l.bf16 %v9111
      %v9176 = vunpack.c.l.bf16 %v9112
      %v9177 = vunpack.c.l.bf16 %v9113
      %v9178 = vunpack.c.l.bf16 %v9114
      %v9179 = vunpack.c.l.bf16 %v9115
      %v9180 = vunpack.c.l.bf16 %v9116
      %v9181 = vunpack.c.l.bf16 %v9117
      %v9182 = vunpack.c.l.bf16 %v9118
      %v9183 = vunpack.c.l.bf16 %v9119
      %v9184 = vunpack.c.l.bf16 %v9120
      %v9185 = vunpack.c.l.bf16 %v9121
      %v9186 = vunpack.c.l.bf16 %v9122
      %v9187 = vunpack.c.l.bf16 %v9123
      %v9188 = vunpack.c.l.bf16 %v9124
      %v9189 = vunpack.c.l.bf16 %v9125
      %v9190 = vunpack.c.l.bf16 %v9126
      %v9191 = vunpack.c.l.bf16 %v9127
      %v9192 = vunpack.c.l.bf16 %v9128
      %v9193 = vunpack.c.l.bf16 %v9129
      %v9194 = vunpack.c.l.bf16 %v9130
      %v9195 = vunpack.c.l.bf16 %v9131
      %v9196 = vunpack.c.l.bf16 %v9132
      %v9197 = vunpack.c.l.bf16 %v9133
      %v9198 = vunpack.c.l.bf16 %v9134
      %v9199 = vunpack.c.l.bf16 %v9135
      %v9200 = vunpack.c.l.bf16 %v9136
      %v9201 = vunpack.c.l.bf16 %v9137
      %v9202 = vunpack.c.l.bf16 %v9138
      %v9203 = vunpack.c.l.bf16 %v9139
      %v9204 = vunpack.c.l.bf16 %v9140
      %v9205 = vunpack.c.l.bf16 %v9141
      %v9206 = vunpack.c.l.bf16 %v9142
      %v9207 = vunpack.c.l.bf16 %v9143
      %v9208 = vunpack.c.l.bf16 %v9144
      %v9209 = vunpack.c.l.bf16 %v9145
      %v9210 = vunpack.c.l.bf16 %v9146
      %v9211 = vunpack.c.l.bf16 %v9147
      %v9212 = vunpack.c.l.bf16 %v9148
      %v9213 = vunpack.c.l.bf16 %v9149
      %v9214 = vunpack.c.l.bf16 %v9150
      %v9215 = vunpack.c.l.bf16 %v9151
      %v9216 = vunpack.c.l.bf16 %v9152
      %v9217 = vunpack.c.l.bf16 %v9153
      %v9218 = vunpack.c.l.bf16 %v9154
      %v9219 = vunpack.c.l.bf16 %v9155
      %v9220 = vunpack.c.l.bf16 %v9156
      %v9221 = vunpack.c.l.bf16 %v9157
      %v9222 = vunpack.c.l.bf16 %v9158
      %v9223 = vunpack.c.l.bf16 %v9159
      %v9224 = vunpack.c.l.bf16 %v9160
      %v9225 = vunpack.c.l.bf16 %v9161
      %v9226 = vunpack.c.l.bf16 %v9162
      %v9227 = vunpack.c.l.bf16 %v9163
      %v9228 = vunpack.c.l.bf16 %v9164
      %v9229 = vld [vmem:[#allocation2] sm:$0xff]
      %v9230 = vld [vmem:[#allocation2 + $0x8] sm:$0xff]
      %v9231 = vld [vmem:[#allocation2 + $0x10] sm:$0xff]
      %v9232 = vld [vmem:[#allocation2 + $0x18] sm:$0xff]
      %v9233 = vld [vmem:[#allocation2 + $0x20] sm:$0xff]
      %v9234 = vld [vmem:[#allocation2 + $0x28] sm:$0xff]
      %v9235 = vld [vmem:[#allocation2 + $0x30] sm:$0xff]
      %v9236 = vld [vmem:[#allocation2 + $0x38] sm:$0xff]
      %v9237 = vld [vmem:[#allocation2 + $0x40] sm:$0xff]
      %v9238 = vld [vmem:[#allocation2 + $0x48] sm:$0xff]
      %v9239 = vld [vmem:[#allocation2 + $0x50] sm:$0xff]
      %v9240 = vld [vmem:[#allocation2 + $0x58] sm:$0xff]
      %v9241 = vld [vmem:[#allocation2 + $0x60] sm:$0xff]
      %v9242 = vld [vmem:[#allocation2 + $0x68] sm:$0xff]
      %v9243 = vld [vmem:[#allocation2 + $0x70] sm:$0xff]
      %v9244 = vld [vmem:[#allocation2 + $0x78] sm:$0xff]
      %v9245 = vld [vmem:[#allocation2 + $0x80] sm:$0xff]
      %v9246 = vld [vmem:[#allocation2 + $0x88] sm:$0xff]
      %v9247 = vld [vmem:[#allocation2 + $0x90] sm:$0xff]
      %v9248 = vld [vmem:[#allocation2 + $0x98] sm:$0xff]
      %v9249 = vld [vmem:[#allocation2 + $0xa0] sm:$0xff]
      %v9250 = vld [vmem:[#allocation2 + $0xa8] sm:$0xff]
      %v9251 = vld [vmem:[#allocation2 + $0xb0] sm:$0xff]
      %v9252 = vld [vmem:[#allocation2 + $0xb8] sm:$0xff]
      %v9253 = vld [vmem:[#allocation2 + $0xc0] sm:$0xff]
      %v9254 = vld [vmem:[#allocation2 + $0xc8] sm:$0xff]
      %v9255 = vld [vmem:[#allocation2 + $0xd0] sm:$0xff]
      %v9256 = vld [vmem:[#allocation2 + $0xd8] sm:$0xff]
      %v9257 = vld [vmem:[#allocation2 + $0xe0] sm:$0xff]
      %v9258 = vld [vmem:[#allocation2 + $0xe8] sm:$0xff]
      %v9259 = vld [vmem:[#allocation2 + $0xf0] sm:$0xff]
      %v9260 = vld [vmem:[#allocation2 + $0xf8] sm:$0xff]
      %v9261 = vld [vmem:[#allocation2 + $0x100] sm:$0xff]
      %v9262 = vld [vmem:[#allocation2 + $0x108] sm:$0xff]
      %v9263 = vld [vmem:[#allocation2 + $0x110] sm:$0xff]
      %v9264 = vld [vmem:[#allocation2 + $0x118] sm:$0xff]
      %v9265 = vld [vmem:[#allocation2 + $0x120] sm:$0xff]
      %v9266 = vld [vmem:[#allocation2 + $0x128] sm:$0xff]
      %v9267 = vld [vmem:[#allocation2 + $0x130] sm:$0xff]
      %v9268 = vld [vmem:[#allocation2 + $0x138] sm:$0xff]
      %v9269 = vld [vmem:[#allocation2 + $0x140] sm:$0xff]
      %v9270 = vld [vmem:[#allocation2 + $0x148] sm:$0xff]
      %v9271 = vld [vmem:[#allocation2 + $0x150] sm:$0xff]
      %v9272 = vld [vmem:[#allocation2 + $0x158] sm:$0xff]
      %v9273 = vld [vmem:[#allocation2 + $0x160] sm:$0xff]
      %v9274 = vld [vmem:[#allocation2 + $0x168] sm:$0xff]
      %v9275 = vld [vmem:[#allocation2 + $0x170] sm:$0xff]
      %v9276 = vld [vmem:[#allocation2 + $0x178] sm:$0xff]
      %v9277 = vld [vmem:[#allocation2 + $0x180] sm:$0xff]
      %v9278 = vld [vmem:[#allocation2 + $0x188] sm:$0xff]
      %v9279 = vld [vmem:[#allocation2 + $0x190] sm:$0xff]
      %v9280 = vld [vmem:[#allocation2 + $0x198] sm:$0xff]
      %v9281 = vld [vmem:[#allocation2 + $0x1a0] sm:$0xff]
      %v9282 = vld [vmem:[#allocation2 + $0x1a8] sm:$0xff]
      %v9283 = vld [vmem:[#allocation2 + $0x1b0] sm:$0xff]
      %v9284 = vld [vmem:[#allocation2 + $0x1b8] sm:$0xff]
      %v9285 = vld [vmem:[#allocation2 + $0x1c0] sm:$0xff]
      %v9286 = vld [vmem:[#allocation2 + $0x1c8] sm:$0xff]
      %v9287 = vld [vmem:[#allocation2 + $0x1d0] sm:$0xff]
      %v9288 = vld [vmem:[#allocation2 + $0x1d8] sm:$0xff]
      %v9289 = vld [vmem:[#allocation2 + $0x1e0] sm:$0xff]
      %v9290 = vld [vmem:[#allocation2 + $0x1e8] sm:$0xff]
      %v9291 = vld [vmem:[#allocation2 + $0x1f0] sm:$0xff]
      %v9292 = vld [vmem:[#allocation2 + $0x1f8] sm:$0xff]
      %v9293 = vld [vmem:[%s4] sm:$0x1]
      %v9295 = vlaneseq
      %v9296 = vshrl.u32 %v9295, 7
      %v9297 = vsub.s32 0, %v9296
      %v9298 = vrot.slane %v9293, %v9297
      %v9300 = vadd.f32 %v9229, %v9298
      %v9301 = vadd.f32 %v9230, %v9298
      %v9302 = vadd.f32 %v9231, %v9298
      %v9303 = vadd.f32 %v9232, %v9298
      %v9304 = vadd.f32 %v9233, %v9298
      %v9305 = vadd.f32 %v9234, %v9298
      %v9306 = vadd.f32 %v9235, %v9298
      %v9307 = vadd.f32 %v9236, %v9298
      %v9308 = vadd.f32 %v9237, %v9298
      %v9309 = vadd.f32 %v9238, %v9298
      %v9310 = vadd.f32 %v9239, %v9298
      %v9311 = vadd.f32 %v9240, %v9298
      %v9312 = vadd.f32 %v9241, %v9298
      %v9313 = vadd.f32 %v9242, %v9298
      %v9314 = vadd.f32 %v9243, %v9298
      %v9315 = vadd.f32 %v9244, %v9298
      %v9316 = vadd.f32 %v9245, %v9298
      %v9317 = vadd.f32 %v9246, %v9298
      %v9318 = vadd.f32 %v9247, %v9298
      %v9319 = vadd.f32 %v9248, %v9298
      %v9320 = vadd.f32 %v9249, %v9298
      %v9321 = vadd.f32 %v9250, %v9298
      %v9322 = vadd.f32 %v9251, %v9298
      %v9323 = vadd.f32 %v9252, %v9298
      %v9324 = vadd.f32 %v9253, %v9298
      %v9325 = vadd.f32 %v9254, %v9298
      %v9326 = vadd.f32 %v9255, %v9298
      %v9327 = vadd.f32 %v9256, %v9298
      %v9328 = vadd.f32 %v9257, %v9298
      %v9329 = vadd.f32 %v9258, %v9298
      %v9330 = vadd.f32 %v9259, %v9298
      %v9331 = vadd.f32 %v9260, %v9298
      %v9332 = vadd.f32 %v9261, %v9298
      %v9333 = vadd.f32 %v9262, %v9298
      %v9334 = vadd.f32 %v9263, %v9298
      %v9335 = vadd.f32 %v9264, %v9298
      %v9336 = vadd.f32 %v9265, %v9298
      %v9337 = vadd.f32 %v9266, %v9298
      %v9338 = vadd.f32 %v9267, %v9298
      %v9339 = vadd.f32 %v9268, %v9298
      %v9340 = vadd.f32 %v9269, %v9298
      %v9341 = vadd.f32 %v9270, %v9298
      %v9342 = vadd.f32 %v9271, %v9298
      %v9343 = vadd.f32 %v9272, %v9298
      %v9344 = vadd.f32 %v9273, %v9298
      %v9345 = vadd.f32 %v9274, %v9298
      %v9346 = vadd.f32 %v9275, %v9298
      %v9347 = vadd.f32 %v9276, %v9298
      %v9348 = vadd.f32 %v9277, %v9298
      %v9349 = vadd.f32 %v9278, %v9298
      %v9350 = vadd.f32 %v9279, %v9298
      %v9351 = vadd.f32 %v9280, %v9298
      %v9352 = vadd.f32 %v9281, %v9298
      %v9353 = vadd.f32 %v9282, %v9298
      %v9354 = vadd.f32 %v9283, %v9298
      %v9355 = vadd.f32 %v9284, %v9298
      %v9356 = vadd.f32 %v9285, %v9298
      %v9357 = vadd.f32 %v9286, %v9298
      %v9358 = vadd.f32 %v9287, %v9298
      %v9359 = vadd.f32 %v9288, %v9298
      %v9360 = vadd.f32 %v9289, %v9298
      %v9361 = vadd.f32 %v9290, %v9298
      %v9362 = vadd.f32 %v9291, %v9298
      %v9363 = vadd.f32 %v9292, %v9298
      %v9364 = vadd.f32 %v9300, %v9165
      %v9365 = vadd.f32 %v9301, %v9166
      %v9366 = vadd.f32 %v9302, %v9167
      %v9367 = vadd.f32 %v9303, %v9168
      %v9368 = vadd.f32 %v9304, %v9169
      %v9369 = vadd.f32 %v9305, %v9170
      %v9370 = vadd.f32 %v9306, %v9171
      %v9371 = vadd.f32 %v9307, %v9172
      %v9372 = vadd.f32 %v9308, %v9173
      %v9373 = vadd.f32 %v9309, %v9174
      %v9374 = vadd.f32 %v9310, %v9175
      %v9375 = vadd.f32 %v9311, %v9176
      %v9376 = vadd.f32 %v9312, %v9177
      %v9377 = vadd.f32 %v9313, %v9178
      %v9378 = vadd.f32 %v9314, %v9179
      %v9379 = vadd.f32 %v9315, %v9180
      %v9380 = vadd.f32 %v9316, %v9181
      %v9381 = vadd.f32 %v9317, %v9182
      %v9382 = vadd.f32 %v9318, %v9183
      %v9383 = vadd.f32 %v9319, %v9184
      %v9384 = vadd.f32 %v9320, %v9185
      %v9385 = vadd.f32 %v9321, %v9186
      %v9386 = vadd.f32 %v9322, %v9187
      %v9387 = vadd.f32 %v9323, %v9188
      %v9388 = vadd.f32 %v9324, %v9189
      %v9389 = vadd.f32 %v9325, %v9190
      %v9390 = vadd.f32 %v9326, %v9191
      %v9391 = vadd.f32 %v9327, %v9192
      %v9392 = vadd.f32 %v9328, %v9193
      %v9393 = vadd.f32 %v9329, %v9194
      %v9394 = vadd.f32 %v9330, %v9195
      %v9395 = vadd.f32 %v9331, %v9196
      %v9396 = vadd.f32 %v9332, %v9197
      %v9397 = vadd.f32 %v9333, %v9198
      %v9398 = vadd.f32 %v9334, %v9199
      %v9399 = vadd.f32 %v9335, %v9200
      %v9400 = vadd.f32 %v9336, %v9201
      %v9401 = vadd.f32 %v9337, %v9202
      %v9402 = vadd.f32 %v9338, %v9203
      %v9403 = vadd.f32 %v9339, %v9204
      %v9404 = vadd.f32 %v9340, %v9205
      %v9405 = vadd.f32 %v9341, %v9206
      %v9406 = vadd.f32 %v9342, %v9207
      %v9407 = vadd.f32 %v9343, %v9208
      %v9408 = vadd.f32 %v9344, %v9209
      %v9409 = vadd.f32 %v9345, %v9210
      %v9410 = vadd.f32 %v9346, %v9211
      %v9411 = vadd.f32 %v9347, %v9212
      %v9412 = vadd.f32 %v9348, %v9213
      %v9413 = vadd.f32 %v9349, %v9214
      %v9414 = vadd.f32 %v9350, %v9215
      %v9415 = vadd.f32 %v9351, %v9216
      %v9416 = vadd.f32 %v9352, %v9217
      %v9417 = vadd.f32 %v9353, %v9218
      %v9418 = vadd.f32 %v9354, %v9219
      %v9419 = vadd.f32 %v9355, %v9220
      %v9420 = vadd.f32 %v9356, %v9221
      %v9421 = vadd.f32 %v9357, %v9222
      %v9422 = vadd.f32 %v9358, %v9223
      %v9423 = vadd.f32 %v9359, %v9224
      %v9424 = vadd.f32 %v9360, %v9225
      %v9425 = vadd.f32 %v9361, %v9226
      %v9426 = vadd.f32 %v9362, %v9227
      %v9427 = vadd.f32 %v9363, %v9228
      %v9428 = vmax.f32 %v9364, 0.0
      %v9429 = vmax.f32 %v9365, 0.0
      %v9430 = vmax.f32 %v9366, 0.0
      %v9431 = vmax.f32 %v9367, 0.0
      %v9432 = vmax.f32 %v9368, 0.0
      %v9433 = vmax.f32 %v9369, 0.0
      %v9434 = vmax.f32 %v9370, 0.0
      %v9435 = vmax.f32 %v9371, 0.0
      %v9436 = vmax.f32 %v9372, 0.0
      %v9437 = vmax.f32 %v9373, 0.0
      %v9438 = vmax.f32 %v9374, 0.0
      %v9439 = vmax.f32 %v9375, 0.0
      %v9440 = vmax.f32 %v9376, 0.0
      %v9441 = vmax.f32 %v9377, 0.0
      %v9442 = vmax.f32 %v9378, 0.0
      %v9443 = vmax.f32 %v9379, 0.0
      %v9444 = vmax.f32 %v9380, 0.0
      %v9445 = vmax.f32 %v9381, 0.0
      %v9446 = vmax.f32 %v9382, 0.0
      %v9447 = vmax.f32 %v9383, 0.0
      %v9448 = vmax.f32 %v9384, 0.0
      %v9449 = vmax.f32 %v9385, 0.0
      %v9450 = vmax.f32 %v9386, 0.0
      %v9451 = vmax.f32 %v9387, 0.0
      %v9452 = vmax.f32 %v9388, 0.0
      %v9453 = vmax.f32 %v9389, 0.0
      %v9454 = vmax.f32 %v9390, 0.0
      %v9455 = vmax.f32 %v9391, 0.0
      %v9456 = vmax.f32 %v9392, 0.0
      %v9457 = vmax.f32 %v9393, 0.0
      %v9458 = vmax.f32 %v9394, 0.0
      %v9459 = vmax.f32 %v9395, 0.0
      %v9460 = vmax.f32 %v9396, 0.0
      %v9461 = vmax.f32 %v9397, 0.0
      %v9462 = vmax.f32 %v9398, 0.0
      %v9463 = vmax.f32 %v9399, 0.0
      %v9464 = vmax.f32 %v9400, 0.0
      %v9465 = vmax.f32 %v9401, 0.0
      %v9466 = vmax.f32 %v9402, 0.0
      %v9467 = vmax.f32 %v9403, 0.0
      %v9468 = vmax.f32 %v9404, 0.0
      %v9469 = vmax.f32 %v9405, 0.0
      %v9470 = vmax.f32 %v9406, 0.0
      %v9471 = vmax.f32 %v9407, 0.0
      %v9472 = vmax.f32 %v9408, 0.0
      %v9473 = vmax.f32 %v9409, 0.0
      %v9474 = vmax.f32 %v9410, 0.0
      %v9475 = vmax.f32 %v9411, 0.0
      %v9476 = vmax.f32 %v9412, 0.0
      %v9477 = vmax.f32 %v9413, 0.0
      %v9478 = vmax.f32 %v9414, 0.0
      %v9479 = vmax.f32 %v9415, 0.0
      %v9480 = vmax.f32 %v9416, 0.0
      %v9481 = vmax.f32 %v9417, 0.0
      %v9482 = vmax.f32 %v9418, 0.0
      %v9483 = vmax.f32 %v9419, 0.0
      %v9484 = vmax.f32 %v9420, 0.0
      %v9485 = vmax.f32 %v9421, 0.0
      %v9486 = vmax.f32 %v9422, 0.0
      %v9487 = vmax.f32 %v9423, 0.0
      %v9488 = vmax.f32 %v9424, 0.0
      %v9489 = vmax.f32 %v9425, 0.0
      %v9490 = vmax.f32 %v9426, 0.0
      %v9491 = vmax.f32 %v9427, 0.0
      %v9492 = vpack.c.bf16 %v9429, %v9428
      %v9493 = vpack.c.bf16 %v9431, %v9430
      %v9494 = vpack.c.bf16 %v9433, %v9432
      %v9495 = vpack.c.bf16 %v9435, %v9434
      %v9496 = vpack.c.bf16 %v9437, %v9436
      %v9497 = vpack.c.bf16 %v9439, %v9438
      %v9498 = vpack.c.bf16 %v9441, %v9440
      %v9499 = vpack.c.bf16 %v9443, %v9442
      %v9500 = vpack.c.bf16 %v9445, %v9444
      %v9501 = vpack.c.bf16 %v9447, %v9446
      %v9502 = vpack.c.bf16 %v9449, %v9448
      %v9503 = vpack.c.bf16 %v9451, %v9450
      %v9504 = vpack.c.bf16 %v9453, %v9452
      %v9505 = vpack.c.bf16 %v9455, %v9454
      %v9506 = vpack.c.bf16 %v9457, %v9456
      %v9507 = vpack.c.bf16 %v9459, %v9458
      %v9508 = vpack.c.bf16 %v9461, %v9460
      %v9509 = vpack.c.bf16 %v9463, %v9462
      %v9510 = vpack.c.bf16 %v9465, %v9464
      %v9511 = vpack.c.bf16 %v9467, %v9466
      %v9512 = vpack.c.bf16 %v9469, %v9468
      %v9513 = vpack.c.bf16 %v9471, %v9470
      %v9514 = vpack.c.bf16 %v9473, %v9472
      %v9515 = vpack.c.bf16 %v9475, %v9474
      %v9516 = vpack.c.bf16 %v9477, %v9476
      %v9517 = vpack.c.bf16 %v9479, %v9478
      %v9518 = vpack.c.bf16 %v9481, %v9480
      %v9519 = vpack.c.bf16 %v9483, %v9482
      %v9520 = vpack.c.bf16 %v9485, %v9484
      %v9521 = vpack.c.bf16 %v9487, %v9486
      %v9522 = vpack.c.bf16 %v9489, %v9488
      %v9523 = vpack.c.bf16 %v9491, %v9490
      %v9556 = vunpack.c.l.b16 %v9492
      %v9557 = vunpack.c.h.b16 %v9492
      %v9558 = vunpack.c.l.b16 %v9493
      %v9559 = vunpack.c.h.b16 %v9493
      %v9560 = vunpack.c.l.b16 %v9494
      %v9561 = vunpack.c.h.b16 %v9494
      %v9562 = vunpack.c.l.b16 %v9495
      %v9563 = vunpack.c.h.b16 %v9495
      %v9564 = vunpack.c.l.b16 %v9496
      %v9565 = vunpack.c.h.b16 %v9496
      %v9566 = vunpack.c.l.b16 %v9497
      %v9567 = vunpack.c.h.b16 %v9497
      %v9568 = vunpack.c.l.b16 %v9498
      %v9569 = vunpack.c.h.b16 %v9498
      %v9570 = vunpack.c.l.b16 %v9499
      %v9571 = vunpack.c.h.b16 %v9499
      %v9572 = vunpack.c.l.b16 %v9500
      %v9573 = vunpack.c.h.b16 %v9500
      %v9574 = vunpack.c.l.b16 %v9501
      %v9575 = vunpack.c.h.b16 %v9501
      %v9576 = vunpack.c.l.b16 %v9502
      %v9577 = vunpack.c.h.b16 %v9502
      %v9578 = vunpack.c.l.b16 %v9503
      %v9579 = vunpack.c.h.b16 %v9503
      %v9580 = vunpack.c.l.b16 %v9504
      %v9581 = vunpack.c.h.b16 %v9504
      %v9582 = vunpack.c.l.b16 %v9505
      %v9583 = vunpack.c.h.b16 %v9505
      %v9584 = vunpack.c.l.b16 %v9506
      %v9585 = vunpack.c.h.b16 %v9506
      %v9586 = vunpack.c.l.b16 %v9507
      %v9587 = vunpack.c.h.b16 %v9507
      %v9588 = vunpack.c.l.b16 %v9508
      %v9589 = vunpack.c.h.b16 %v9508
      %v9590 = vunpack.c.l.b16 %v9509
      %v9591 = vunpack.c.h.b16 %v9509
      %v9592 = vunpack.c.l.b16 %v9510
      %v9593 = vunpack.c.h.b16 %v9510
      %v9594 = vunpack.c.l.b16 %v9511
      %v9595 = vunpack.c.h.b16 %v9511
      %v9596 = vunpack.c.l.b16 %v9512
      %v9597 = vunpack.c.h.b16 %v9512
      %v9598 = vunpack.c.l.b16 %v9513
      %v9599 = vunpack.c.h.b16 %v9513
      %v9600 = vunpack.c.l.b16 %v9514
      %v9601 = vunpack.c.h.b16 %v9514
      %v9602 = vunpack.c.l.b16 %v9515
      %v9603 = vunpack.c.h.b16 %v9515
      %v9604 = vunpack.c.l.b16 %v9516
      %v9605 = vunpack.c.h.b16 %v9516
      %v9606 = vunpack.c.l.b16 %v9517
      %v9607 = vunpack.c.h.b16 %v9517
      %v9608 = vunpack.c.l.b16 %v9518
      %v9609 = vunpack.c.h.b16 %v9518
      %v9610 = vunpack.c.l.b16 %v9519
      %v9611 = vunpack.c.h.b16 %v9519
      %v9612 = vunpack.c.l.b16 %v9520
      %v9613 = vunpack.c.h.b16 %v9520
      %v9614 = vunpack.c.l.b16 %v9521
      %v9615 = vunpack.c.h.b16 %v9521
      %v9616 = vunpack.c.l.b16 %v9522
      %v9617 = vunpack.c.h.b16 %v9522
      %v9618 = vunpack.c.l.b16 %v9523
      %v9619 = vunpack.c.h.b16 %v9523
      %v9620 = vpack.c.b16 %v9556, %v9556
      %v9621 = vpack.c.b16 %v9557, %v9557
      %v9622 = vpack.c.b16 %v9558, %v9558
      %v9623 = vpack.c.b16 %v9559, %v9559
      %v9624 = vpack.c.b16 %v9560, %v9560
      %v9625 = vpack.c.b16 %v9561, %v9561
      %v9626 = vpack.c.b16 %v9562, %v9562
      %v9627 = vpack.c.b16 %v9563, %v9563
      %v9628 = vpack.c.b16 %v9564, %v9564
      %v9629 = vpack.c.b16 %v9565, %v9565
      %v9630 = vpack.c.b16 %v9566, %v9566
      %v9631 = vpack.c.b16 %v9567, %v9567
      %v9632 = vpack.c.b16 %v9568, %v9568
      %v9633 = vpack.c.b16 %v9569, %v9569
      %v9634 = vpack.c.b16 %v9570, %v9570
      %v9635 = vpack.c.b16 %v9571, %v9571
      %v9636 = vpack.c.b16 %v9572, %v9572
      %v9637 = vpack.c.b16 %v9573, %v9573
      %v9638 = vpack.c.b16 %v9574, %v9574
      %v9639 = vpack.c.b16 %v9575, %v9575
      %v9640 = vpack.c.b16 %v9576, %v9576
      %v9641 = vpack.c.b16 %v9577, %v9577
      %v9642 = vpack.c.b16 %v9578, %v9578
      %v9643 = vpack.c.b16 %v9579, %v9579
      %v9644 = vpack.c.b16 %v9580, %v9580
      %v9645 = vpack.c.b16 %v9581, %v9581
      %v9646 = vpack.c.b16 %v9582, %v9582
      %v9647 = vpack.c.b16 %v9583, %v9583
      %v9648 = vpack.c.b16 %v9584, %v9584
      %v9649 = vpack.c.b16 %v9585, %v9585
      %v9650 = vpack.c.b16 %v9586, %v9586
      %v9651 = vpack.c.b16 %v9587, %v9587
      %v9652 = vpack.c.b16 %v9588, %v9588
      %v9653 = vpack.c.b16 %v9589, %v9589
      %v9654 = vpack.c.b16 %v9590, %v9590
      %v9655 = vpack.c.b16 %v9591, %v9591
      %v9656 = vpack.c.b16 %v9592, %v9592
      %v9657 = vpack.c.b16 %v9593, %v9593
      %v9658 = vpack.c.b16 %v9594, %v9594
      %v9659 = vpack.c.b16 %v9595, %v9595
      %v9660 = vpack.c.b16 %v9596, %v9596
      %v9661 = vpack.c.b16 %v9597, %v9597
      %v9662 = vpack.c.b16 %v9598, %v9598
      %v9663 = vpack.c.b16 %v9599, %v9599
      %v9664 = vpack.c.b16 %v9600, %v9600
      %v9665 = vpack.c.b16 %v9601, %v9601
      %v9666 = vpack.c.b16 %v9602, %v9602
      %v9667 = vpack.c.b16 %v9603, %v9603
      %v9668 = vpack.c.b16 %v9604, %v9604
      %v9669 = vpack.c.b16 %v9605, %v9605
      %v9670 = vpack.c.b16 %v9606, %v9606
      %v9671 = vpack.c.b16 %v9607, %v9607
      %v9672 = vpack.c.b16 %v9608, %v9608
      %v9673 = vpack.c.b16 %v9609, %v9609
      %v9674 = vpack.c.b16 %v9610, %v9610
      %v9675 = vpack.c.b16 %v9611, %v9611
      %v9676 = vpack.c.b16 %v9612, %v9612
      %v9677 = vpack.c.b16 %v9613, %v9613
      %v9678 = vpack.c.b16 %v9614, %v9614
      %v9679 = vpack.c.b16 %v9615, %v9615
      %v9680 = vpack.c.b16 %v9616, %v9616
      %v9681 = vpack.c.b16 %v9617, %v9617
      %v9682 = vpack.c.b16 %v9618, %v9618
      %v9683 = vpack.c.b16 %v9619, %v9619
      %9748 = vst [vmem:[%s273] sm:$0xf] %v9620
      %9749 = vst [vmem:[%s273 + $0x4] sm:$0xf] %v9621
      %9750 = vst [vmem:[%s273 + $0x8] sm:$0xf] %v9622
      %9751 = vst [vmem:[%s273 + $0xc] sm:$0xf] %v9623
      %9752 = vst [vmem:[%s273 + $0x10] sm:$0xf] %v9624
      %9753 = vst [vmem:[%s273 + $0x14] sm:$0xf] %v9625
      %9754 = vst [vmem:[%s273 + $0x18] sm:$0xf] %v9626
      %9755 = vst [vmem:[%s273 + $0x1c] sm:$0xf] %v9627
      %9756 = vst [vmem:[%s273 + $0x20] sm:$0xf] %v9628
      %9757 = vst [vmem:[%s273 + $0x24] sm:$0xf] %v9629
      %9758 = vst [vmem:[%s273 + $0x28] sm:$0xf] %v9630
      %9759 = vst [vmem:[%s273 + $0x2c] sm:$0xf] %v9631
      %9760 = vst [vmem:[%s273 + $0x30] sm:$0xf] %v9632
      %9761 = vst [vmem:[%s273 + $0x34] sm:$0xf] %v9633
      %9762 = vst [vmem:[%s273 + $0x38] sm:$0xf] %v9634
      %9763 = vst [vmem:[%s273 + $0x3c] sm:$0xf] %v9635
      %9764 = vst [vmem:[%s273 + $0x40] sm:$0xf] %v9636
      %9765 = vst [vmem:[%s273 + $0x44] sm:$0xf] %v9637
      %9766 = vst [vmem:[%s273 + $0x48] sm:$0xf] %v9638
      %9767 = vst [vmem:[%s273 + $0x4c] sm:$0xf] %v9639
      %9768 = vst [vmem:[%s273 + $0x50] sm:$0xf] %v9640
      %9769 = vst [vmem:[%s273 + $0x54] sm:$0xf] %v9641
      %9770 = vst [vmem:[%s273 + $0x58] sm:$0xf] %v9642
      %9771 = vst [vmem:[%s273 + $0x5c] sm:$0xf] %v9643
      %9772 = vst [vmem:[%s273 + $0x60] sm:$0xf] %v9644
      %9773 = vst [vmem:[%s273 + $0x64] sm:$0xf] %v9645
      %9774 = vst [vmem:[%s273 + $0x68] sm:$0xf] %v9646
      %9775 = vst [vmem:[%s273 + $0x6c] sm:$0xf] %v9647
      %9776 = vst [vmem:[%s273 + $0x70] sm:$0xf] %v9648
      %9777 = vst [vmem:[%s273 + $0x74] sm:$0xf] %v9649
      %9778 = vst [vmem:[%s273 + $0x78] sm:$0xf] %v9650
      %9779 = vst [vmem:[%s273 + $0x7c] sm:$0xf] %v9651
      %9780 = vst [vmem:[%s273 + $0x80] sm:$0xf] %v9652
      %9781 = vst [vmem:[%s273 + $0x84] sm:$0xf] %v9653
      %9782 = vst [vmem:[%s273 + $0x88] sm:$0xf] %v9654
      %9783 = vst [vmem:[%s273 + $0x8c] sm:$0xf] %v9655
      %9784 = vst [vmem:[%s273 + $0x90] sm:$0xf] %v9656
      %9785 = vst [vmem:[%s273 + $0x94] sm:$0xf] %v9657
      %9786 = vst [vmem:[%s273 + $0x98] sm:$0xf] %v9658
      %9787 = vst [vmem:[%s273 + $0x9c] sm:$0xf] %v9659
      %9788 = vst [vmem:[%s273 + $0xa0] sm:$0xf] %v9660
      %9789 = vst [vmem:[%s273 + $0xa4] sm:$0xf] %v9661
      %9790 = vst [vmem:[%s273 + $0xa8] sm:$0xf] %v9662
      %9791 = vst [vmem:[%s273 + $0xac] sm:$0xf] %v9663
      %9792 = vst [vmem:[%s273 + $0xb0] sm:$0xf] %v9664
      %9793 = vst [vmem:[%s273 + $0xb4] sm:$0xf] %v9665
      %9794 = vst [vmem:[%s273 + $0xb8] sm:$0xf] %v9666
      %9795 = vst [vmem:[%s273 + $0xbc] sm:$0xf] %v9667
      %9796 = vst [vmem:[%s273 + $0xc0] sm:$0xf] %v9668
      %9797 = vst [vmem:[%s273 + $0xc4] sm:$0xf] %v9669
      %9798 = vst [vmem:[%s273 + $0xc8] sm:$0xf] %v9670
      %9799 = vst [vmem:[%s273 + $0xcc] sm:$0xf] %v9671
      %9800 = vst [vmem:[%s273 + $0xd0] sm:$0xf] %v9672
      %9801 = vst [vmem:[%s273 + $0xd4] sm:$0xf] %v9673
      %9802 = vst [vmem:[%s273 + $0xd8] sm:$0xf] %v9674
      %9803 = vst [vmem:[%s273 + $0xdc] sm:$0xf] %v9675
      %9804 = vst [vmem:[%s273 + $0xe0] sm:$0xf] %v9676
      %9805 = vst [vmem:[%s273 + $0xe4] sm:$0xf] %v9677
      %9806 = vst [vmem:[%s273 + $0xe8] sm:$0xf] %v9678
      %9807 = vst [vmem:[%s273 + $0xec] sm:$0xf] %v9679
      %9808 = vst [vmem:[%s273 + $0xf0] sm:$0xf] %v9680
      %9809 = vst [vmem:[%s273 + $0xf4] sm:$0xf] %v9681
      %9810 = vst [vmem:[%s273 + $0xf8] sm:$0xf] %v9682
      %9811 = vst [vmem:[%s273 + $0xfc] sm:$0xf] %v9683
      %s9812 = smul.u32 64, %s22
      %p9813 = scmp.lt.s32.totalorder %s21, 1
      %s9814 = scalar_select %p9813, %s21, 1
      %p9815 = scmp.lt.s32.totalorder %s9812, 63
      %s9816 = scalar_select %p9815, %s9812, 63
      %s9817 = smul.addr %s9814, 64
      %s9818 = sadd.s32 %s9816, %s9817
      %s9819 = smul.addr %s9818, 4
      %s9820 = scalar_lea.vmem %s6, %s9819
      // Predicated region
      $region49: #{basic_block_forward.1} parent=43 // pred_check
        %p9821 = pneg %p180
      $region50: #{basic_block_forward.1} parent=43 // pred_check_branch
        %9823 = sbr.rel (%p9821) target = $region52
      $region51: #{basic_block_forward.1} parent=43 // pred_region
        %s9824 = smul.u32 64, %s22
      $region52: #{basic_block_forward.1} parent=43 // pred_fallthru
        _
    $region44: #{basic_block_forward.1} parent=5 // pred_fallthru
      _
    %p9825 = scmp.le.s32.totalorder 2, %s12
    // Predicated region
    $region53: #{basic_block_forward.1} parent=5 // pred_check
      %p9826 = pneg %p9825
    $region54: #{basic_block_forward.1} parent=5 // pred_check_branch
      %9828 = sbr.rel (%p9826) target = $region56
    $region55: #{basic_block_forward.1} parent=5 // pred_region
      %s9829 = ssub.s32 %s12, 2
      // Predicated region
      $region57: #{basic_block_forward.1} parent=55 // pred_check
        %p9830 = pneg %p186
      $region58: #{basic_block_forward.1} parent=55 // pred_check_branch
        %9832 = sbr.rel (%p9830) target = $region60
      $region59: #{basic_block_forward.1} parent=55 // pred_region
        %s9833 = smul.u32 64, %s24
        %p9834 = scmp.lt.s32.totalorder %s23, 1
        %s9835 = scalar_select %p9834, %s23, 1
        %p9836 = scmp.lt.s32.totalorder %s9833, 63
        %s9837 = scalar_select %p9836, %s9833, 63
        %s9838 = smul.addr %s9835, 64
        %s9839 = sadd.s32 %s9837, %s9838
        %s9840 = smul.addr %s9839, 4
        %s9841 = scalar_lea.vmem %s6, %s9840
      $region60: #{basic_block_forward.1} parent=55 // pred_fallthru
        _
    $region56: #{basic_block_forward.1} parent=5 // pred_fallthru
      _
  $region6: #{basic_block_forward.1} parent=0 // loop_footer
    %s16 = sadd.s32 1, %s12
  $region7: #{basic_block_forward.1} parent=0 // loop_footer_branch
    %11 = sbr.rel target = $region3
  $region8: #{basic_block_forward.1} parent=0 // loop_exit
    _

</llo_original>
